<compile_context>
chip_gen: v7x
topology: tpu7x:2x2x1
jax: 0.10.0
libtpu: 0.0.40
codegen_flags: <defaults>
</compile_context>

<pallas_src>
import math

import jax
import jax.numpy as jnp
from jax.experimental import pallas as pl
from jax.experimental.pallas import tpu as pltpu


def _round_up(v, m):
    return (v + m - 1) // m * m


def _nbytes(shape, dtype):
    return math.prod(shape) * jnp.dtype(dtype).itemsize


def _fold_bn(gamma, beta, mean, var, eps):
    scale = gamma / jnp.sqrt(var + eps)
    bias = beta - mean * scale
    return scale.astype(jnp.float32), bias.astype(jnp.float32)


def _pick_imgs_per_step(batch, rows_per_img, target_rows=1024):
    """Images per grid step: enough matmul rows to feed the MXU, but keep >= 2 grid
    steps when possible so both TensorCores are used on v7x."""
    n = max(1, min(batch, target_rows // max(1, rows_per_img)))
    while n > 1 and batch % n:
        n -= 1
    if n > 1 and batch // n < 2:
        n = max(1, batch // 2)
        while n > 1 and batch % n:
            n -= 1
    return n


def bottleneck_pallas(x, w1, bn1, w2, bn2, *, eps=1e-3, shortcut=True,
                      compute_dtype=jnp.bfloat16):
    """x: (B, H, W, C1) NHWC.  w1: (3,3,C1,C_), w2: (3,3,C_,C2) in HWIO.
    bn1/bn2: (gamma, beta, running_mean, running_var). Returns (B, H, W, C2)."""
    B, H, W, C1 = x.shape
    kh1, kw1, _, Ch = w1.shape
    kh2, kw2, Ch2, C2 = w2.shape
    assert (kh1, kw1) == (3, 3) and (kh2, kw2) == (3, 3), "fused for k=(3,3) only"
    assert Ch2 == Ch
    # TODO(synk): grouped convolution (g > 1) is not implemented; g=1 only.
    add = bool(shortcut and C1 == C2)

    cdtype = compute_dtype
    SUB = 16  # bf16 sublane tile (also a multiple of the f32 tile 8) -> aligned reshapes

    # cv1's working output grid: the HxW image at offset (1,1) plus a 1-px ring (which,
    # once zeroed, IS cv2's zero padding).  Wp is the sublane axis of every in-kernel
    # reshape, so round it to the tile; Hp is a leading axis and needs no rounding.
    Hp = H + 2
    Wp = _round_up(W + 2, SUB)

    # --- wrapper-side data prep (cheap XLA fusions, bf16) ----------------------------
    # Pad so the original image sits at offset (2,2): 1 px of cv1's own zero padding
    # + 1 px for cv2's ring.
    xp = jnp.zeros((B, Hp + 2, Wp + 2, C1), cdtype)
    xp = xp.at[:, 2:2 + H, 2:2 + W, :].set(x.astype(cdtype))
    # dx-shifted copies concatenated along channels: the conv K dim becomes 3*C1, so the
    # kernel only slices along the leading dy axis (free) and issues 3 dots per conv.
    xcat = jnp.concatenate([xp[:, :, dx:dx + Wp, :] for dx in range(3)], axis=-1)

    # Tap-major weights with the dx taps stacked along K: w1cat[dy][dx*C1 + ci, co].
    w1cat = w1.astype(cdtype).reshape(3, 3 * C1, Ch)
    w2cat = w2.astype(cdtype).reshape(3, 3 * Ch, C2)

    s1, b1 = _fold_bn(*bn1, eps)
    s2, b2 = _fold_bn(*bn2, eps)
    s1 = s1.reshape(1, Ch); b1 = b1.reshape(1, Ch)
    s2 = s2.reshape(1, C2); b2 = b2.reshape(1, C2)

    # 0/1 mask of the valid HxW interior on the (Hp, Wp) working grid (tiny input).
    ri = jnp.arange(Hp)[:, None]
    ci = jnp.arange(Wp)[None, :]
    mask = (((ri >= 1) & (ri <= H)) & ((ci >= 1) & (ci <= W))).astype(jnp.float32)
    mask = mask.reshape(1, Hp, Wp, 1)

    # Lane-dense residual view of the original input.
    res = x.reshape(B, H * W, C1)

    n = _pick_imgs_per_step(B, Hp * Wp)
    grid = (B // n,)

    def kernel(xcat_ref, res_ref, mask_ref, w1_ref, s1_ref, b1_ref,
               w2_ref, s2_ref, b2_ref, o_ref):
        # ---- cv1: 3 dy-taps, K = 3*C1, bf16 x bf16 -> f32 accumulation ----
        acc1 = jnp.zeros((n * Hp * Wp, Ch), jnp.float32)
        for dy in range(3):                      # unrolled straight accumulation chain
            win = xcat_ref[:, dy:dy + Hp, :, :].reshape(n * Hp * Wp, 3 * C1)
            acc1 = acc1 + jnp.dot(win, w1_ref[dy],
                                  preferred_element_type=jnp.float32)
        h = acc1 * s1_ref[...] + b1_ref[...]     # folded BatchNorm (f32)
        h = h * jax.nn.sigmoid(h)                # SiLU (EUP)
        # Zero the ring outside the HxW interior (== cv2's zero padding); back to bf16.
        h4 = (h.reshape(n, Hp, Wp, Ch) * mask_ref[...]).astype(cdtype)

        # ---- cv2: dx-concat built once (2 small shifted copies), then 3 dy-taps ----
        hcat = jnp.concatenate([h4[:, :, dx:dx + W, :] for dx in range(3)], axis=-1)
        acc2 = jnp.zeros((n * H * W, C2), jnp.float32)
        for dy in range(3):
            win2 = hcat[:, dy:dy + H, :, :].reshape(n * H * W, 3 * Ch)
            acc2 = acc2 + jnp.dot(win2, w2_ref[dy],
                                  preferred_element_type=jnp.float32)
        y = acc2 * s2_ref[...] + b2_ref[...]
        y = y * jax.nn.sigmoid(y)

        if add:  # residual from the lane-dense original input (exact f32 add)
            y = y + res_ref[...].reshape(n * H * W, C1).astype(jnp.float32)

        o_ref[...] = y.reshape(n, H * W, C2).astype(o_ref.dtype)

    # VMEM budget from the actual block sizes (double-buffered) + live temporaries.
    blk_io = (_nbytes((n, Hp + 2, Wp, 3 * C1), cdtype)
              + _nbytes((n, H * W, C1), x.dtype)
              + _nbytes((1, Hp, Wp, 1), jnp.float32)
              + _nbytes((n, H * W, C2), x.dtype))
    blk_const = (_nbytes((3, 3 * C1, Ch), cdtype) + _nbytes((3, 3 * Ch, C2), cdtype)
                 + 2 * _nbytes((1, Ch), jnp.float32) + 2 * _nbytes((1, C2), jnp.float32))
    work = (n * Hp * Wp * (4 * Ch * 2 + 2 * Ch * 4)      # acc1 / h (f32), h4 / hcat (bf16)
            + n * H * W * (4 * C2 * 3))                   # acc2 / y / store staging
    vmem_limit = int(max(16 << 20,
                         min(100 << 20, 2 * (blk_io + blk_const) + work + (8 << 20))))

    out = pl.pallas_call(
        kernel,
        out_shape=jax.ShapeDtypeStruct((B, H * W, C2), x.dtype),
        grid_spec=pltpu.PrefetchScalarGridSpec(
            num_scalar_prefetch=0,
            grid=grid,
            in_specs=[
                # per-step (n images) dx-concatenated padded slab
                pl.BlockSpec((n, Hp + 2, Wp, 3 * C1), lambda b: (b, 0, 0, 0)),
                # lane-dense residual
                pl.BlockSpec((n, H * W, C1), lambda b: (b, 0, 0)),
                # constant-index-map operands (VMEM resident across the grid)
                pl.BlockSpec((1, Hp, Wp, 1), lambda b: (0, 0, 0, 0)),
                pl.BlockSpec((3, 3 * C1, Ch), lambda b: (0, 0, 0)),
                pl.BlockSpec((1, Ch), lambda b: (0, 0)),
                pl.BlockSpec((1, Ch), lambda b: (0, 0)),
                pl.BlockSpec((3, 3 * Ch, C2), lambda b: (0, 0, 0)),
                pl.BlockSpec((1, C2), lambda b: (0, 0)),
                pl.BlockSpec((1, C2), lambda b: (0, 0)),
            ],
            out_specs=pl.BlockSpec((n, H * W, C2), lambda b: (b, 0, 0)),
        ),
        compiler_params=pltpu.CompilerParams(
            dimension_semantics=("parallel",),
            vmem_limit_bytes=vmem_limit,
        ),
    )(xcat, res, mask, w1cat, s1, b1, w2cat, s2, b2)

    # NOTE: for real YOLO feature maps (e.g. 80x80x256) add a row-band grid axis with a
    # 2-row halo so the per-step working set fits v7x's 64 MiB VMEM; whole-image blocks
    # are fine at the demo sizes used here.
    return out.reshape(B, H, W, C2)


def bottleneck_reference(x, w1, bn1, w2, bn2, *, eps=1e-3, shortcut=True,
                         compute_dtype=jnp.bfloat16):
    """Pure-JAX reference mirroring the kernel's numerics: bf16 conv operands,
    f32 accumulation / BatchNorm / SiLU / residual."""
    def conv_bn_silu(t, w, bn):
        gamma, beta, mean, var = bn
        y = jax.lax.conv_general_dilated(
            t.astype(compute_dtype), w.astype(compute_dtype),
            window_strides=(1, 1), padding="SAME",
            dimension_numbers=("NHWC", "HWIO", "NHWC"),
            preferred_element_type=jnp.float32)
        scale = gamma / jnp.sqrt(var + eps)
        y = y * scale + (beta - mean * scale)
        return y * jax.nn.sigmoid(y)

    y = conv_bn_silu(conv_bn_silu(x, w1, bn1), w2, bn2)
    if shortcut and x.shape[-1] == y.shape[-1]:
        y = x.astype(jnp.float32) + y
    return y.astype(x.dtype)


if __name__ == "__main__":
    # Small YOLO-bottleneck-like shapes: c1 == c2 (shortcut path), e = 0.5.
    B, H, W = 2, 16, 16
    c1 = c2 = 128
    e = 0.5
    c_ = int(c2 * e)          # 64
    eps = 1e-3                # ultralytics BatchNorm2d eps

    key = jax.random.PRNGKey(0)
    ks = jax.random.split(key, 11)

    x = jax.random.normal(ks[0], (B, H, W, c1), dtype=jnp.float32)

    # Conv weights in HWIO, scaled so activations stay O(1).
    w1 = jax.random.normal(ks[1], (3, 3, c1, c_), dtype=jnp.float32) / jnp.sqrt(9.0 * c1)
    w2 = jax.random.normal(ks[2], (3, 3, c_, c2), dtype=jnp.float32) / jnp.sqrt(9.0 * c_)

    # BatchNorm (inference) params: gamma, beta, running_mean, running_var.
    bn1 = (jax.random.uniform(ks[3], (c_,), minval=0.5, maxval=1.5, dtype=jnp.float32),
           0.1 * jax.random.normal(ks[4], (c_,), dtype=jnp.float32),
           0.1 * jax.random.normal(ks[5], (c_,), dtype=jnp.float32),
           jax.random.uniform(ks[6], (c_,), minval=0.5, maxval=1.5, dtype=jnp.float32))
    bn2 = (jax.random.uniform(ks[7], (c2,), minval=0.5, maxval=1.5, dtype=jnp.float32),
           0.1 * jax.random.normal(ks[8], (c2,), dtype=jnp.float32),
           0.1 * jax.random.normal(ks[9], (c2,), dtype=jnp.float32),
           jax.random.uniform(ks[10], (c2,), minval=0.5, maxval=1.5, dtype=jnp.float32))

    out = bottleneck_pallas(x, w1, bn1, w2, bn2, eps=eps, shortcut=True)
    out = jax.block_until_ready(out)

    ref = bottleneck_reference(x, w1, bn1, w2, bn2, eps=eps, shortcut=True)
    assert out.shape == (B, H, W, c2)
    max_abs = float(jnp.max(jnp.abs(out - ref)))
    # Both paths use bf16 operands with f32 accumulation; residual differences come
    # only from accumulation order / rounding of the intermediate activation.
    assert max_abs < 5e-2, f"mismatch vs reference: max abs diff = {max_abs}"

    print("KERNEL_OK")
</pallas_src>

<mosaic_0001>
module attributes {stable_mosaic.version = 11 : i64} {
  func.func @kernel(%arg0: i32, %arg1: memref<1x20x32x384xbf16, #tpu.memory_space<vmem>>, %arg2: memref<1x256x128xf32, #tpu.memory_space<vmem>>, %arg3: memref<1x18x32x1xf32, #tpu.memory_space<vmem>>, %arg4: memref<3x384x64xbf16, #tpu.memory_space<vmem>>, %arg5: memref<1x64xf32, #tpu.memory_space<vmem>>, %arg6: memref<1x64xf32, #tpu.memory_space<vmem>>, %arg7: memref<3x192x128xbf16, #tpu.memory_space<vmem>>, %arg8: memref<1x128xf32, #tpu.memory_space<vmem>>, %arg9: memref<1x128xf32, #tpu.memory_space<vmem>>, %arg10: memref<1x256x128xf32, #tpu.memory_space<vmem>>) attributes {dimension_semantics = [#tpu.dimension_semantics<parallel>], iteration_bounds = array<i64: 2>, scalar_prefetch = 0 : i64, scratch_operands = 0 : i64, tpu.core_type = #tpu.core_type<tc>, window_params = [{transform_indices = @transform_0, window_bounds = array<i64: 1, 20, 32, 384>}, {transform_indices = @transform_1, window_bounds = array<i64: 1, 256, 128>}, {pipeline_mode = #tpu.pipeline_mode<synchronous>, transform_indices = @transform_2, window_bounds = array<i64: 1, 18, 32, 1>}, {pipeline_mode = #tpu.pipeline_mode<synchronous>, transform_indices = @transform_3, window_bounds = array<i64: 3, 384, 64>}, {pipeline_mode = #tpu.pipeline_mode<synchronous>, transform_indices = @transform_4, window_bounds = array<i64: 1, 64>}, {pipeline_mode = #tpu.pipeline_mode<synchronous>, transform_indices = @transform_5, window_bounds = array<i64: 1, 64>}, {pipeline_mode = #tpu.pipeline_mode<synchronous>, transform_indices = @transform_6, window_bounds = array<i64: 3, 192, 128>}, {pipeline_mode = #tpu.pipeline_mode<synchronous>, transform_indices = @transform_7, window_bounds = array<i64: 1, 128>}, {pipeline_mode = #tpu.pipeline_mode<synchronous>, transform_indices = @transform_8, window_bounds = array<i64: 1, 128>}, {transform_indices = @transform_9, window_bounds = array<i64: 1, 256, 128>}]} {
    %cst = arith.constant 0.000000e+00 : f32
    %0 = vector.broadcast %cst : f32 to vector<576x64xf32>
    %c0 = arith.constant 0 : index
    %c0_0 = arith.constant 0 : index
    %c0_1 = arith.constant 0 : index
    %c0_2 = arith.constant 0 : index
    %1 = vector.load %arg1[%c0, %c0_0, %c0_1, %c0_2] : memref<1x20x32x384xbf16, #tpu.memory_space<vmem>>, vector<1x18x32x384xbf16>
    %2 = vector.shape_cast %1 : vector<1x18x32x384xbf16> to vector<576x384xbf16>
    %c0_3 = arith.constant 0 : index
    %c0_4 = arith.constant 0 : index
    %c0_5 = arith.constant 0 : index
    %3 = vector.load %arg4[%c0_3, %c0_4, %c0_5] : memref<3x384x64xbf16, #tpu.memory_space<vmem>>, vector<1x384x64xbf16>
    %4 = vector.shape_cast %3 : vector<1x384x64xbf16> to vector<384x64xbf16>
    %cst_6 = arith.constant dense<0.000000e+00> : vector<576x64xf32>
    %5 = tpu.matmul %2, %4, %cst_6 {dimension_numbers = #tpu.dot_dimension_numbers<[1], [0], [0], [1], [0, 0, 1, 1], [], []>} : vector<576x384xbf16>, vector<384x64xbf16>, vector<576x64xf32> -> vector<576x64xf32>
    %6 = arith.addf %0, %5 : vector<576x64xf32>
    %c0_7 = arith.constant 0 : index
    %c1 = arith.constant 1 : index
    %c0_8 = arith.constant 0 : index
    %c0_9 = arith.constant 0 : index
    %7 = vector.load %arg1[%c0_7, %c1, %c0_8, %c0_9] : memref<1x20x32x384xbf16, #tpu.memory_space<vmem>>, vector<1x18x32x384xbf16>
    %8 = vector.shape_cast %7 : vector<1x18x32x384xbf16> to vector<576x384xbf16>
    %c1_10 = arith.constant 1 : index
    %c0_11 = arith.constant 0 : index
    %c0_12 = arith.constant 0 : index
    %9 = vector.load %arg4[%c1_10, %c0_11, %c0_12] : memref<3x384x64xbf16, #tpu.memory_space<vmem>>, vector<1x384x64xbf16>
    %10 = vector.shape_cast %9 : vector<1x384x64xbf16> to vector<384x64xbf16>
    %cst_13 = arith.constant dense<0.000000e+00> : vector<576x64xf32>
    %11 = tpu.matmul %8, %10, %cst_13 {dimension_numbers = #tpu.dot_dimension_numbers<[1], [0], [0], [1], [0, 0, 1, 1], [], []>} : vector<576x384xbf16>, vector<384x64xbf16>, vector<576x64xf32> -> vector<576x64xf32>
    %12 = arith.addf %6, %11 : vector<576x64xf32>
    %c0_14 = arith.constant 0 : index
    %c2 = arith.constant 2 : index
    %c0_15 = arith.constant 0 : index
    %c0_16 = arith.constant 0 : index
    %13 = vector.load %arg1[%c0_14, %c2, %c0_15, %c0_16] : memref<1x20x32x384xbf16, #tpu.memory_space<vmem>>, vector<1x18x32x384xbf16>
    %14 = vector.shape_cast %13 : vector<1x18x32x384xbf16> to vector<576x384xbf16>
    %c2_17 = arith.constant 2 : index
    %c0_18 = arith.constant 0 : index
    %c0_19 = arith.constant 0 : index
    %15 = vector.load %arg4[%c2_17, %c0_18, %c0_19] : memref<3x384x64xbf16, #tpu.memory_space<vmem>>, vector<1x384x64xbf16>
    %16 = vector.shape_cast %15 : vector<1x384x64xbf16> to vector<384x64xbf16>
    %cst_20 = arith.constant dense<0.000000e+00> : vector<576x64xf32>
    %17 = tpu.matmul %14, %16, %cst_20 {dimension_numbers = #tpu.dot_dimension_numbers<[1], [0], [0], [1], [0, 0, 1, 1], [], []>} : vector<576x384xbf16>, vector<384x64xbf16>, vector<576x64xf32> -> vector<576x64xf32>
    %18 = arith.addf %12, %17 : vector<576x64xf32>
    %c0_21 = arith.constant 0 : index
    %c0_22 = arith.constant 0 : index
    %19 = vector.load %arg5[%c0_21, %c0_22] : memref<1x64xf32, #tpu.memory_space<vmem>>, vector<1x64xf32>
    %20 = vector.broadcast %19 : vector<1x64xf32> to vector<576x64xf32>
    %21 = arith.mulf %18, %20 : vector<576x64xf32>
    %c0_23 = arith.constant 0 : index
    %c0_24 = arith.constant 0 : index
    %22 = vector.load %arg6[%c0_23, %c0_24] : memref<1x64xf32, #tpu.memory_space<vmem>>, vector<1x64xf32>
    %23 = vector.broadcast %22 : vector<1x64xf32> to vector<576x64xf32>
    %24 = arith.addf %21, %23 : vector<576x64xf32>
    %25 = arith.negf %24 : vector<576x64xf32>
    %26 = math.exp %25 : vector<576x64xf32>
    %cst_25 = arith.constant 1.000000e+00 : f32
    %27 = vector.broadcast %cst_25 : f32 to vector<576x64xf32>
    %28 = arith.addf %27, %26 : vector<576x64xf32>
    %29 = arith.divf %27, %28 : vector<576x64xf32>
    %30 = arith.mulf %24, %29 : vector<576x64xf32>
    %31 = vector.shape_cast %30 : vector<576x64xf32> to vector<1x18x32x64xf32>
    %c0_26 = arith.constant 0 : index
    %c0_27 = arith.constant 0 : index
    %c0_28 = arith.constant 0 : index
    %c0_29 = arith.constant 0 : index
    %32 = vector.load %arg3[%c0_26, %c0_27, %c0_28, %c0_29] : memref<1x18x32x1xf32, #tpu.memory_space<vmem>>, vector<1x18x32x1xf32>
    %33 = vector.broadcast %32 : vector<1x18x32x1xf32> to vector<1x18x32x64xf32>
    %34 = arith.mulf %31, %33 : vector<1x18x32x64xf32>
    %35 = arith.truncf %34 : vector<1x18x32x64xf32> to vector<1x18x32x64xbf16>
    %36 = vector.extract_strided_slice %35 {offsets = [0, 0, 0, 0], sizes = [1, 18, 16, 64], strides = [1, 1, 1, 1]} : vector<1x18x32x64xbf16> to vector<1x18x16x64xbf16>
    %37 = vector.extract_strided_slice %35 {offsets = [0, 0, 1, 0], sizes = [1, 18, 16, 64], strides = [1, 1, 1, 1]} : vector<1x18x32x64xbf16> to vector<1x18x16x64xbf16>
    %38 = vector.extract_strided_slice %35 {offsets = [0, 0, 2, 0], sizes = [1, 18, 16, 64], strides = [1, 1, 1, 1]} : vector<1x18x32x64xbf16> to vector<1x18x16x64xbf16>
    %39 = tpu.concatenate %36, %37, %38 in 3 : vector<1x18x16x64xbf16>, vector<1x18x16x64xbf16>, vector<1x18x16x64xbf16> -> vector<1x18x16x192xbf16>
    %cst_30 = arith.constant 0.000000e+00 : f32
    %40 = vector.broadcast %cst_30 : f32 to vector<256x128xf32>
    %41 = vector.extract_strided_slice %39 {offsets = [0, 0, 0, 0], sizes = [1, 16, 16, 192], strides = [1, 1, 1, 1]} : vector<1x18x16x192xbf16> to vector<1x16x16x192xbf16>
    %42 = vector.shape_cast %41 : vector<1x16x16x192xbf16> to vector<256x192xbf16>
    %c0_31 = arith.constant 0 : index
    %c0_32 = arith.constant 0 : index
    %c0_33 = arith.constant 0 : index
    %43 = vector.load %arg7[%c0_31, %c0_32, %c0_33] : memref<3x192x128xbf16, #tpu.memory_space<vmem>>, vector<1x192x128xbf16>
    %44 = vector.shape_cast %43 : vector<1x192x128xbf16> to vector<192x128xbf16>
    %cst_34 = arith.constant dense<0.000000e+00> : vector<256x128xf32>
    %45 = tpu.matmul %42, %44, %cst_34 {dimension_numbers = #tpu.dot_dimension_numbers<[1], [0], [0], [1], [0, 0, 1, 1], [], []>} : vector<256x192xbf16>, vector<192x128xbf16>, vector<256x128xf32> -> vector<256x128xf32>
    %46 = arith.addf %40, %45 : vector<256x128xf32>
    %47 = vector.extract_strided_slice %39 {offsets = [0, 1, 0, 0], sizes = [1, 16, 16, 192], strides = [1, 1, 1, 1]} : vector<1x18x16x192xbf16> to vector<1x16x16x192xbf16>
    %48 = vector.shape_cast %47 : vector<1x16x16x192xbf16> to vector<256x192xbf16>
    %c1_35 = arith.constant 1 : index
    %c0_36 = arith.constant 0 : index
    %c0_37 = arith.constant 0 : index
    %49 = vector.load %arg7[%c1_35, %c0_36, %c0_37] : memref<3x192x128xbf16, #tpu.memory_space<vmem>>, vector<1x192x128xbf16>
    %50 = vector.shape_cast %49 : vector<1x192x128xbf16> to vector<192x128xbf16>
    %cst_38 = arith.constant dense<0.000000e+00> : vector<256x128xf32>
    %51 = tpu.matmul %48, %50, %cst_38 {dimension_numbers = #tpu.dot_dimension_numbers<[1], [0], [0], [1], [0, 0, 1, 1], [], []>} : vector<256x192xbf16>, vector<192x128xbf16>, vector<256x128xf32> -> vector<256x128xf32>
    %52 = arith.addf %46, %51 : vector<256x128xf32>
    %53 = vector.extract_strided_slice %39 {offsets = [0, 2, 0, 0], sizes = [1, 16, 16, 192], strides = [1, 1, 1, 1]} : vector<1x18x16x192xbf16> to vector<1x16x16x192xbf16>
    %54 = vector.shape_cast %53 : vector<1x16x16x192xbf16> to vector<256x192xbf16>
    %c2_39 = arith.constant 2 : index
    %c0_40 = arith.constant 0 : index
    %c0_41 = arith.constant 0 : index
    %55 = vector.load %arg7[%c2_39, %c0_40, %c0_41] : memref<3x192x128xbf16, #tpu.memory_space<vmem>>, vector<1x192x128xbf16>
    %56 = vector.shape_cast %55 : vector<1x192x128xbf16> to vector<192x128xbf16>
    %cst_42 = arith.constant dense<0.000000e+00> : vector<256x128xf32>
    %57 = tpu.matmul %54, %56, %cst_42 {dimension_numbers = #tpu.dot_dimension_numbers<[1], [0], [0], [1], [0, 0, 1, 1], [], []>} : vector<256x192xbf16>, vector<192x128xbf16>, vector<256x128xf32> -> vector<256x128xf32>
    %58 = arith.addf %52, %57 : vector<256x128xf32>
    %c0_43 = arith.constant 0 : index
    %c0_44 = arith.constant 0 : index
    %59 = vector.load %arg8[%c0_43, %c0_44] : memref<1x128xf32, #tpu.memory_space<vmem>>, vector<1x128xf32>
    %60 = vector.broadcast %59 : vector<1x128xf32> to vector<256x128xf32>
    %61 = arith.mulf %58, %60 : vector<256x128xf32>
    %c0_45 = arith.constant 0 : index
    %c0_46 = arith.constant 0 : index
    %62 = vector.load %arg9[%c0_45, %c0_46] : memref<1x128xf32, #tpu.memory_space<vmem>>, vector<1x128xf32>
    %63 = vector.broadcast %62 : vector<1x128xf32> to vector<256x128xf32>
    %64 = arith.addf %61, %63 : vector<256x128xf32>
    %65 = arith.negf %64 : vector<256x128xf32>
    %66 = math.exp %65 : vector<256x128xf32>
    %cst_47 = arith.constant 1.000000e+00 : f32
    %67 = vector.broadcast %cst_47 : f32 to vector<256x128xf32>
    %68 = arith.addf %67, %66 : vector<256x128xf32>
    %69 = arith.divf %67, %68 : vector<256x128xf32>
    %70 = arith.mulf %64, %69 : vector<256x128xf32>
    %c0_48 = arith.constant 0 : index
    %c0_49 = arith.constant 0 : index
    %c0_50 = arith.constant 0 : index
    %71 = vector.load %arg2[%c0_48, %c0_49, %c0_50] : memref<1x256x128xf32, #tpu.memory_space<vmem>>, vector<1x256x128xf32>
    %72 = vector.shape_cast %71 : vector<1x256x128xf32> to vector<256x128xf32>
    %73 = arith.addf %70, %72 : vector<256x128xf32>
    %74 = vector.shape_cast %73 : vector<256x128xf32> to vector<1x256x128xf32>
    %c0_51 = arith.constant 0 : index
    %c0_52 = arith.constant 0 : index
    %c0_53 = arith.constant 0 : index
    %75 = vector.load %arg10[%c0_51, %c0_52, %c0_53] : memref<1x256x128xf32, #tpu.memory_space<vmem>>, vector<1x256x128xf32>
    tpu.vector_store %arg10[%c0_51, %c0_52, %c0_53], %74 {strides = array<i32>} : memref<1x256x128xf32, #tpu.memory_space<vmem>>, vector<1x256x128xf32>,
    return
  }
  func.func @transform_0(%arg0: i32) -> (i32, i32, i32, i32) {
    %c0_i32 = arith.constant 0 : i32
    %c0_i32_0 = arith.constant 0 : i32
    %c0_i32_1 = arith.constant 0 : i32
    %c0_i32_2 = arith.constant 0 : i32
    return %arg0, %c0_i32, %c0_i32_0, %c0_i32_1 : i32, i32, i32, i32
  }
  func.func @transform_1(%arg0: i32) -> (i32, i32, i32) {
    %c0_i32 = arith.constant 0 : i32
    %c0_i32_0 = arith.constant 0 : i32
    %c0_i32_1 = arith.constant 0 : i32
    return %arg0, %c0_i32, %c0_i32_0 : i32, i32, i32
  }
  func.func @transform_2(%arg0: i32) -> (i32, i32, i32, i32) {
    %c0_i32 = arith.constant 0 : i32
    %c0_i32_0 = arith.constant 0 : i32
    %c0_i32_1 = arith.constant 0 : i32
    %c0_i32_2 = arith.constant 0 : i32
    %c0_i32_3 = arith.constant 0 : i32
    return %c0_i32, %c0_i32_0, %c0_i32_1, %c0_i32_2 : i32, i32, i32, i32
  }
  func.func @transform_3(%arg0: i32) -> (i32, i32, i32) {
    %c0_i32 = arith.constant 0 : i32
    %c0_i32_0 = arith.constant 0 : i32
    %c0_i32_1 = arith.constant 0 : i32
    %c0_i32_2 = arith.constant 0 : i32
    return %c0_i32, %c0_i32_0, %c0_i32_1 : i32, i32, i32
  }
  func.func @transform_4(%arg0: i32) -> (i32, i32) {
    %c0_i32 = arith.constant 0 : i32
    %c0_i32_0 = arith.constant 0 : i32
    %c0_i32_1 = arith.constant 0 : i32
    return %c0_i32, %c0_i32_0 : i32, i32
  }
  func.func @transform_5(%arg0: i32) -> (i32, i32) {
    %c0_i32 = arith.constant 0 : i32
    %c0_i32_0 = arith.constant 0 : i32
    %c0_i32_1 = arith.constant 0 : i32
    return %c0_i32, %c0_i32_0 : i32, i32
  }
  func.func @transform_6(%arg0: i32) -> (i32, i32, i32) {
    %c0_i32 = arith.constant 0 : i32
    %c0_i32_0 = arith.constant 0 : i32
    %c0_i32_1 = arith.constant 0 : i32
    %c0_i32_2 = arith.constant 0 : i32
    return %c0_i32, %c0_i32_0, %c0_i32_1 : i32, i32, i32
  }
  func.func @transform_7(%arg0: i32) -> (i32, i32) {
    %c0_i32 = arith.constant 0 : i32
    %c0_i32_0 = arith.constant 0 : i32
    %c0_i32_1 = arith.constant 0 : i32
    return %c0_i32, %c0_i32_0 : i32, i32
  }
  func.func @transform_8(%arg0: i32) -> (i32, i32) {
    %c0_i32 = arith.constant 0 : i32
    %c0_i32_0 = arith.constant 0 : i32
    %c0_i32_1 = arith.constant 0 : i32
    return %c0_i32, %c0_i32_0 : i32, i32
  }
  func.func @transform_9(%arg0: i32) -> (i32, i32, i32) {
    %c0_i32 = arith.constant 0 : i32
    %c0_i32_0 = arith.constant 0 : i32
    %c0_i32_1 = arith.constant 0 : i32
    return %arg0, %c0_i32, %c0_i32_0 : i32, i32, i32
  }
}

</mosaic_0001>

<llo_original>
// kernel: tpu_custom_call.1
$region0: #{tpu_custom_call.1}
  #allocation0 [shape = 'u32[]', space=smem, size = 0x4, offset = 0x4, fixed_abs, tag = 'smem constant byte address 0x4 - core index']
  #allocation1 [shape = 'u32[144,128]{1,0:T(1,128)}', space=vmem, size = 0x12000, scoped, tag = 'internal scratch']
  %s0 = inlined_call_operand.hbm [shape: bf16[2,20,32,384], index: 0, kind: input, shape index: {}]
  %s1 = inlined_call_operand.vmem [shape: f32[2,256,128], index: 1, kind: input, shape index: {}]
  %s2 = inlined_call_operand.vmem [shape: f32[1,18,32,1], index: 2, kind: input, shape index: {}]
  %s3 = inlined_call_operand.vmem [shape: bf16[3,384,64], index: 3, kind: input, shape index: {}]
  %s4 = inlined_call_operand.vmem [shape: f32[1,64], index: 4, kind: input, shape index: {}]
  %s5 = inlined_call_operand.vmem [shape: f32[1,64], index: 5, kind: input, shape index: {}]
  %s6 = inlined_call_operand.vmem [shape: bf16[3,192,128], index: 6, kind: input, shape index: {}]
  %s7 = inlined_call_operand.vmem [shape: f32[1,128], index: 7, kind: input, shape index: {}]
  %s8 = inlined_call_operand.vmem [shape: f32[1,128], index: 8, kind: input, shape index: {}]
  %s9 = inlined_call_operand.hbm [shape: f32[2,256,128], index: 9, kind: output, shape index: {}]
  %s10 = sld [smem:[#allocation0]]
  $region73: #{tpu_custom_call.1} parent=0
    _
  %s12 = ssub.s32 1, %s10
  %s13 = scalar_select 0, %s12, %s10
  $region1: #{tpu_custom_call.1} parent=0
    #allocation2 [shape = 'u8[983040]{0}', space=vmem, size = 0xf0000, scoped, tag = 'input window, operand 0']
    #allocation3 [shape = 's32[2]{0}', space=sflag, size = 0x8, scoped, tag = 'scoped memory for tpu_custom_call.1']
    #allocation4 [shape = 's32[2]{0}', space=sflag, size = 0x8, scoped, tag = 'scoped memory for tpu_custom_call.1']
    #allocation5 [shape = 'u8[262144]{0}', space=vmem, size = 0x40000, scoped, tag = 'output window, operand 0']
    %14 = vsyncpa [#allocation3], 0
    %s15 = scalar_lea.sflag [#allocation3], 1
    %16 = vsyncpa %s15, 0
    %17 = vsyncpa [#allocation4], 0
    %s18 = scalar_lea.sflag [#allocation4], 1
    %19 = vsyncpa %s18, 0
    loop: start=0, step=1, limit=4
    $region2: #{tpu_custom_call.1} parent=1 // loop_pre_header
      _
    $region3: #{tpu_custom_call.1} parent=1 // loop_header
      %s21 = sphi 0, %s25
      %p22 = scmp.ge.s32.totalorder %s21, 4
      %s31 = sphi 0, %s33
      %s34 = sphi 0, %s31
      %s35 = sphi 0, %s34
      %s51 = sphi 0, %s35
      %s57 = sphi 0, %s59
      %s60 = sphi 0, %s57
      %s61 = sphi 0, %s60
      %s77 = sphi 0, %s61
      %s81 = sphi 0, %s81
      %s83 = sphi 0, %s81
      %s84 = sphi 0, %s83
      %s98 = sphi 0, %s84
      %s102 = sphi 0, %s102
      %s104 = sphi 0, %s102
      %s105 = sphi 0, %s104
      %s119 = sphi 0, %s105
      %s123 = sphi 0, %s123
      %s125 = sphi 0, %s123
      %s126 = sphi 0, %s125
      %s140 = sphi 0, %s126
      %s144 = sphi 0, %s144
      %s146 = sphi 0, %s144
      %s147 = sphi 0, %s146
      %s161 = sphi 0, %s147
      %s165 = sphi 0, %s165
      %s167 = sphi 0, %s165
      %s168 = sphi 0, %s167
      %s182 = sphi 0, %s168
      %s186 = sphi 0, %s186
      %s188 = sphi 0, %s186
      %s189 = sphi 0, %s188
      %s203 = sphi 0, %s189
      %s207 = sphi 0, %s207
      %s209 = sphi 0, %s207
      %s210 = sphi 0, %s209
      %s224 = sphi 0, %s210
      %s230 = sphi 0, %s232
      %s233 = sphi 0, %s230
      %s234 = sphi 0, %s233
      %s250 = sphi 0, %s234
    $region4: #{tpu_custom_call.1} parent=1 // loop_header_branch
      %24 = sbr.rel (%p22) target = $region8
    $region5: #{tpu_custom_call.1} parent=1 // loop_body
      %s26 = ssub.s32 %s21, 1
      %s27 = ssub.s32 %s21, 2
      %s28 = sadd.s32 %s21, 1
      %s29 = ssub.s32 %s21, %s28
      %p30 = scmp.eq.s32.totalorder %s29, 0
      %s32 = sadd.s32 %s31, 1
      %s33 = scalar_select %p30, %s31, %s32
      %p36 = pneg %p30
      %p37 = scmp.eq.s32.totalorder %s21, 1
      %p38 = por %p36, %p37
      %p39 = scmp.ne.s32.totalorder %s31, %s34
      %p40 = scmp.eq.s32.totalorder %s21, 0
      %p41 = por %p39, %p40
      %p42 = scmp.ne.s32.totalorder %s31, %s34
      %p43 = scmp.eq.s32.totalorder %s26, 1
      %p44 = por %p42, %p43
      %p45 = scmp.ne.s32.totalorder %s34, %s35
      %p46 = scmp.eq.s32.totalorder %s26, 0
      %p47 = por %p45, %p46
      %p48 = scmp.ne.s32.totalorder %s34, %s35
      %p49 = scmp.eq.s32.totalorder %s27, 1
      %p50 = por %p48, %p49
      %p52 = scmp.ne.s32.totalorder %s35, %s51
      %p53 = scmp.eq.s32.totalorder %s27, 0
      %p54 = por %p52, %p53
      %s55 = ssub.s32 %s21, %s28
      %p56 = scmp.eq.s32.totalorder %s55, 0
      %s58 = sadd.s32 %s57, 1
      %s59 = scalar_select %p56, %s57, %s58
      %p62 = pneg %p56
      %p63 = scmp.eq.s32.totalorder %s21, 1
      %p64 = por %p62, %p63
      %p65 = scmp.ne.s32.totalorder %s57, %s60
      %p66 = scmp.eq.s32.totalorder %s21, 0
      %p67 = por %p65, %p66
      %p68 = scmp.ne.s32.totalorder %s57, %s60
      %p69 = scmp.eq.s32.totalorder %s26, 1
      %p70 = por %p68, %p69
      %p71 = scmp.ne.s32.totalorder %s60, %s61
      %p72 = scmp.eq.s32.totalorder %s26, 0
      %p73 = por %p71, %p72
      %p74 = scmp.ne.s32.totalorder %s60, %s61
      %p75 = scmp.eq.s32.totalorder %s27, 1
      %p76 = por %p74, %p75
      %p78 = scmp.ne.s32.totalorder %s61, %s77
      %p79 = scmp.eq.s32.totalorder %s27, 0
      %p80 = por %p78, %p79
      %s82 = sadd.s32 %s81, 1
      %p85 = scmp.eq.s32.totalorder %s21, 1
      %p86 = scmp.ne.s32.totalorder %s81, %s83
      %p87 = scmp.eq.s32.totalorder %s21, 0
      %p88 = por %p86, %p87
      %p89 = scmp.ne.s32.totalorder %s81, %s83
      %p90 = scmp.eq.s32.totalorder %s26, 1
      %p91 = por %p89, %p90
      %p92 = scmp.ne.s32.totalorder %s83, %s84
      %p93 = scmp.eq.s32.totalorder %s26, 0
      %p94 = por %p92, %p93
      %p95 = scmp.ne.s32.totalorder %s83, %s84
      %p96 = scmp.eq.s32.totalorder %s27, 1
      %p97 = por %p95, %p96
      %p99 = scmp.ne.s32.totalorder %s84, %s98
      %p100 = scmp.eq.s32.totalorder %s27, 0
      %p101 = por %p99, %p100
      %s103 = sadd.s32 %s102, 1
      %p106 = scmp.eq.s32.totalorder %s21, 1
      %p107 = scmp.ne.s32.totalorder %s102, %s104
      %p108 = scmp.eq.s32.totalorder %s21, 0
      %p109 = por %p107, %p108
      %p110 = scmp.ne.s32.totalorder %s102, %s104
      %p111 = scmp.eq.s32.totalorder %s26, 1
      %p112 = por %p110, %p111
      %p113 = scmp.ne.s32.totalorder %s104, %s105
      %p114 = scmp.eq.s32.totalorder %s26, 0
      %p115 = por %p113, %p114
      %p116 = scmp.ne.s32.totalorder %s104, %s105
      %p117 = scmp.eq.s32.totalorder %s27, 1
      %p118 = por %p116, %p117
      %p120 = scmp.ne.s32.totalorder %s105, %s119
      %p121 = scmp.eq.s32.totalorder %s27, 0
      %p122 = por %p120, %p121
      %s124 = sadd.s32 %s123, 1
      %p127 = scmp.eq.s32.totalorder %s21, 1
      %p128 = scmp.ne.s32.totalorder %s123, %s125
      %p129 = scmp.eq.s32.totalorder %s21, 0
      %p130 = por %p128, %p129
      %p131 = scmp.ne.s32.totalorder %s123, %s125
      %p132 = scmp.eq.s32.totalorder %s26, 1
      %p133 = por %p131, %p132
      %p134 = scmp.ne.s32.totalorder %s125, %s126
      %p135 = scmp.eq.s32.totalorder %s26, 0
      %p136 = por %p134, %p135
      %p137 = scmp.ne.s32.totalorder %s125, %s126
      %p138 = scmp.eq.s32.totalorder %s27, 1
      %p139 = por %p137, %p138
      %p141 = scmp.ne.s32.totalorder %s126, %s140
      %p142 = scmp.eq.s32.totalorder %s27, 0
      %p143 = por %p141, %p142
      %s145 = sadd.s32 %s144, 1
      %p148 = scmp.eq.s32.totalorder %s21, 1
      %p149 = scmp.ne.s32.totalorder %s144, %s146
      %p150 = scmp.eq.s32.totalorder %s21, 0
      %p151 = por %p149, %p150
      %p152 = scmp.ne.s32.totalorder %s144, %s146
      %p153 = scmp.eq.s32.totalorder %s26, 1
      %p154 = por %p152, %p153
      %p155 = scmp.ne.s32.totalorder %s146, %s147
      %p156 = scmp.eq.s32.totalorder %s26, 0
      %p157 = por %p155, %p156
      %p158 = scmp.ne.s32.totalorder %s146, %s147
      %p159 = scmp.eq.s32.totalorder %s27, 1
      %p160 = por %p158, %p159
      %p162 = scmp.ne.s32.totalorder %s147, %s161
      %p163 = scmp.eq.s32.totalorder %s27, 0
      %p164 = por %p162, %p163
      %s166 = sadd.s32 %s165, 1
      %p169 = scmp.eq.s32.totalorder %s21, 1
      %p170 = scmp.ne.s32.totalorder %s165, %s167
      %p171 = scmp.eq.s32.totalorder %s21, 0
      %p172 = por %p170, %p171
      %p173 = scmp.ne.s32.totalorder %s165, %s167
      %p174 = scmp.eq.s32.totalorder %s26, 1
      %p175 = por %p173, %p174
      %p176 = scmp.ne.s32.totalorder %s167, %s168
      %p177 = scmp.eq.s32.totalorder %s26, 0
      %p178 = por %p176, %p177
      %p179 = scmp.ne.s32.totalorder %s167, %s168
      %p180 = scmp.eq.s32.totalorder %s27, 1
      %p181 = por %p179, %p180
      %p183 = scmp.ne.s32.totalorder %s168, %s182
      %p184 = scmp.eq.s32.totalorder %s27, 0
      %p185 = por %p183, %p184
      %s187 = sadd.s32 %s186, 1
      %p190 = scmp.eq.s32.totalorder %s21, 1
      %p191 = scmp.ne.s32.totalorder %s186, %s188
      %p192 = scmp.eq.s32.totalorder %s21, 0
      %p193 = por %p191, %p192
      %p194 = scmp.ne.s32.totalorder %s186, %s188
      %p195 = scmp.eq.s32.totalorder %s26, 1
      %p196 = por %p194, %p195
      %p197 = scmp.ne.s32.totalorder %s188, %s189
      %p198 = scmp.eq.s32.totalorder %s26, 0
      %p199 = por %p197, %p198
      %p200 = scmp.ne.s32.totalorder %s188, %s189
      %p201 = scmp.eq.s32.totalorder %s27, 1
      %p202 = por %p200, %p201
      %p204 = scmp.ne.s32.totalorder %s189, %s203
      %p205 = scmp.eq.s32.totalorder %s27, 0
      %p206 = por %p204, %p205
      %s208 = sadd.s32 %s207, 1
      %p211 = scmp.eq.s32.totalorder %s21, 1
      %p212 = scmp.ne.s32.totalorder %s207, %s209
      %p213 = scmp.eq.s32.totalorder %s21, 0
      %p214 = por %p212, %p213
      %p215 = scmp.ne.s32.totalorder %s207, %s209
      %p216 = scmp.eq.s32.totalorder %s26, 1
      %p217 = por %p215, %p216
      %p218 = scmp.ne.s32.totalorder %s209, %s210
      %p219 = scmp.eq.s32.totalorder %s26, 0
      %p220 = por %p218, %p219
      %p221 = scmp.ne.s32.totalorder %s209, %s210
      %p222 = scmp.eq.s32.totalorder %s27, 1
      %p223 = por %p221, %p222
      %p225 = scmp.ne.s32.totalorder %s210, %s224
      %p226 = scmp.eq.s32.totalorder %s27, 0
      %p227 = por %p225, %p226
      %s228 = ssub.s32 %s21, %s28
      %p229 = scmp.eq.s32.totalorder %s228, 0
      %s231 = sadd.s32 %s230, 1
      %s232 = scalar_select %p229, %s230, %s231
      %p235 = pneg %p229
      %p236 = scmp.eq.s32.totalorder %s21, 1
      %p237 = por %p235, %p236
      %p238 = scmp.ne.s32.totalorder %s230, %s233
      %p239 = scmp.eq.s32.totalorder %s21, 0
      %p240 = por %p238, %p239
      %p241 = scmp.ne.s32.totalorder %s230, %s233
      %p242 = scmp.eq.s32.totalorder %s26, 1
      %p243 = por %p241, %p242
      %p244 = scmp.ne.s32.totalorder %s233, %s234
      %p245 = scmp.eq.s32.totalorder %s26, 0
      %p246 = por %p244, %p245
      %p247 = scmp.ne.s32.totalorder %s233, %s234
      %p248 = scmp.eq.s32.totalorder %s27, 1
      %p249 = por %p247, %p248
      %p251 = scmp.ne.s32.totalorder %s234, %s250
      %p252 = scmp.eq.s32.totalorder %s27, 0
      %p253 = por %p251, %p252
      %p254 = scmp.le.s32.totalorder 1, %s21
      %p255 = scmp.lt.s32.totalorder %s21, 3
      %p256 = pnand %p254, %p255
      %p257 = pneg %p256
      // Predicated region
      $region9: #{tpu_custom_call.1} parent=5 // pred_check
        _
      $region10: #{tpu_custom_call.1} parent=5 // pred_check_branch
        %259 = sbr.rel (%p256) target = $region12
      $region11: #{tpu_custom_call.1} parent=5 // pred_region
        %s260 = ssub.s32 %s21, 1
        // Predicated region
        $region13: #{tpu_custom_call.1} parent=11 // pred_check
          %p261 = pneg %p94
        $region14: #{tpu_custom_call.1} parent=11 // pred_check_branch
          %263 = sbr.rel (%p261) target = $region16
        $region15: #{tpu_custom_call.1} parent=11 // pred_region
          _
        $region16: #{tpu_custom_call.1} parent=11 // pred_fallthru
          _
        // Predicated region
        $region17: #{tpu_custom_call.1} parent=11 // pred_check
          %p264 = pneg %p115
        $region18: #{tpu_custom_call.1} parent=11 // pred_check_branch
          %266 = sbr.rel (%p264) target = $region20
        $region19: #{tpu_custom_call.1} parent=11 // pred_region
          _
        $region20: #{tpu_custom_call.1} parent=11 // pred_fallthru
          _
        // Predicated region
        $region21: #{tpu_custom_call.1} parent=11 // pred_check
          %p267 = pneg %p136
        $region22: #{tpu_custom_call.1} parent=11 // pred_check_branch
          %269 = sbr.rel (%p267) target = $region24
        $region23: #{tpu_custom_call.1} parent=11 // pred_region
          _
        $region24: #{tpu_custom_call.1} parent=11 // pred_fallthru
          _
        // Predicated region
        $region25: #{tpu_custom_call.1} parent=11 // pred_check
          %p270 = pneg %p157
        $region26: #{tpu_custom_call.1} parent=11 // pred_check_branch
          %272 = sbr.rel (%p270) target = $region28
        $region27: #{tpu_custom_call.1} parent=11 // pred_region
          _
        $region28: #{tpu_custom_call.1} parent=11 // pred_fallthru
          _
        // Predicated region
        $region29: #{tpu_custom_call.1} parent=11 // pred_check
          %p273 = pneg %p178
        $region30: #{tpu_custom_call.1} parent=11 // pred_check_branch
          %275 = sbr.rel (%p273) target = $region32
        $region31: #{tpu_custom_call.1} parent=11 // pred_region
          _
        $region32: #{tpu_custom_call.1} parent=11 // pred_fallthru
          _
        // Predicated region
        $region33: #{tpu_custom_call.1} parent=11 // pred_check
          %p276 = pneg %p199
        $region34: #{tpu_custom_call.1} parent=11 // pred_check_branch
          %278 = sbr.rel (%p276) target = $region36
        $region35: #{tpu_custom_call.1} parent=11 // pred_region
          _
        $region36: #{tpu_custom_call.1} parent=11 // pred_fallthru
          _
        // Predicated region
        $region37: #{tpu_custom_call.1} parent=11 // pred_check
          %p279 = pneg %p220
        $region38: #{tpu_custom_call.1} parent=11 // pred_check_branch
          %281 = sbr.rel (%p279) target = $region40
        $region39: #{tpu_custom_call.1} parent=11 // pred_region
          _
        $region40: #{tpu_custom_call.1} parent=11 // pred_fallthru
          _
      $region12: #{tpu_custom_call.1} parent=5 // pred_fallthru
        _
      %p282 = scmp.lt.s32.totalorder %s21, 2
      // Predicated region
      $region41: #{tpu_custom_call.1} parent=5 // pred_check
        %p283 = pneg %p282
      $region42: #{tpu_custom_call.1} parent=5 // pred_check_branch
        %285 = sbr.rel (%p283) target = $region44
      $region43: #{tpu_custom_call.1} parent=5 // pred_region
        // Predicated region
        $region45: #{tpu_custom_call.1} parent=43 // pred_check
          %p286 = pneg %p41
        $region46: #{tpu_custom_call.1} parent=43 // pred_check_branch
          %288 = sbr.rel (%p286) target = $region48
        $region47: #{tpu_custom_call.1} parent=43 // pred_region
          %s289 = sand.u32 %s31, 1
          %s290 = scalar_lea.sflag [#allocation3], %s289
          %s291 = sand.u32 %s31, 1
          %s292 = smul.addr %s291, 960
          %s293 = scalar_lea.vmem [#allocation2], %s292
          %s295 = ssub.s32 15360, 15360
          %296 = vsyncadd %s290, %s295
          %s297 = smul.addr %s21, 240
          %s298 = smul.addr %s297, 64
          %s299 = scalar_lea.hbm %s0, %s298
          %s300 = sshll.u32 %s293, 4
          %s301 = int_to_ptr.vmem [resolvable:$true] %s300
          %306 = dma.hbm_to_vmem [thread:$0]  %s299, 15360, %s301, %s290, 192, 192, 12
        $region48: #{tpu_custom_call.1} parent=43 // pred_fallthru
          _
        // Predicated region
        $region49: #{tpu_custom_call.1} parent=43 // pred_check
          %p307 = pneg %p67
        $region50: #{tpu_custom_call.1} parent=43 // pred_check_branch
          %309 = sbr.rel (%p307) target = $region52
        $region51: #{tpu_custom_call.1} parent=43 // pred_region
          %p310 = scmp.lt.s32.totalorder %s21, 1
          %s311 = scalar_select %p310, %s21, 1
          %s312 = smul.addr %s311, 32
          %s313 = smul.addr %s312, 8
          %s314 = scalar_lea.vmem %s1, %s313
        $region52: #{tpu_custom_call.1} parent=43 // pred_fallthru
          _
      $region44: #{tpu_custom_call.1} parent=5 // pred_fallthru
        _
      %p315 = scmp.le.s32.totalorder 1, %s21
      %p316 = scmp.lt.s32.totalorder %s21, 3
      %p317 = pnand %p315, %p316
      %p318 = pneg %p317
      // Predicated region
      $region53: #{tpu_custom_call.1} parent=5 // pred_check
        _
      $region54: #{tpu_custom_call.1} parent=5 // pred_check_branch
        %320 = sbr.rel (%p317) target = $region56
      $region55: #{tpu_custom_call.1} parent=5 // pred_region
        %s321 = ssub.s32 %s21, 1
        %s322 = sand.u32 %s34, 1
        %s323 = scalar_lea.sflag [#allocation3], %s322
        %s324 = sand.u32 %s34, 1
        %s325 = smul.addr %s324, 960
        %s326 = scalar_lea.vmem [#allocation2], %s325
        // Predicated region
        $region57: #{tpu_custom_call.1} parent=55 // pred_check
          %p327 = pneg %p47
        $region58: #{tpu_custom_call.1} parent=55 // pred_check_branch
          %329 = sbr.rel (%p327) target = $region60
        $region59: #{tpu_custom_call.1} parent=55 // pred_region
          %330 = dma.done %s323, 15360
        $region60: #{tpu_custom_call.1} parent=55 // pred_fallthru
          _
        %s331 = sand.u32 %s34, 1
        %s332 = scalar_lea.sflag [#allocation3], %s331
        %s333 = sand.u32 %s34, 1
        %s334 = smul.addr %s333, 960
        %s335 = scalar_lea.vmem [#allocation2], %s334
        %p336 = pneg %p47
        %p337 = pneg %p44
        %p338 = scmp.lt.s32.totalorder %s26, 1
        %s339 = scalar_select %p338, %s26, 1
        %s340 = smul.addr %s339, 32
        %s341 = smul.addr %s340, 8
        %s342 = scalar_lea.vmem %s1, %s341
        %p343 = pneg %p73
        %p344 = pneg %p70
        %p345 = pneg %p94
        %p346 = pneg %p91
        %p347 = pneg %p115
        %p348 = pneg %p112
        %p349 = pneg %p136
        %p350 = pneg %p133
        %p351 = pneg %p157
        %p352 = pneg %p154
        %p353 = pneg %p178
        %p354 = pneg %p175
        %p355 = pneg %p199
        %p356 = pneg %p196
        %p357 = pneg %p220
        %p358 = pneg %p217
        %p359 = pneg %p246
        %p360 = pneg %p243
        %s361 = sand.u32 %s233, 1
        %s362 = scalar_lea.sflag [#allocation4], %s361
        %s363 = sand.u32 %s233, 1
        %s364 = smul.addr %s363, 256
        %s365 = scalar_lea.vmem [#allocation5], %s364
        %p366 = scmp.lt.s32.totalorder %s26, 1
        %s367 = scalar_select %p366, %s26, 1
        %s368 = smul.addr %s367, 32
        %s369 = smul.addr %s368, 8
        %s370 = scalar_lea.vmem %s1, %s369
        %v372 = vld [vmem:[%s326] sm:$0xff]
        %v373 = vld [vmem:[%s326 + $0x8] sm:$0xf]
        %v374 = vld [vmem:[%s326 + $0xc] sm:$0xff]
        %v375 = vld [vmem:[%s326 + $0x14] sm:$0xf]
        %v376 = vld [vmem:[%s326 + $0x18] sm:$0xff]
        %v377 = vld [vmem:[%s326 + $0x20] sm:$0xf]
        %v378 = vld [vmem:[%s326 + $0x24] sm:$0xff]
        %v379 = vld [vmem:[%s326 + $0x2c] sm:$0xf]
        %v380 = vld [vmem:[%s326 + $0x30] sm:$0xff]
        %v381 = vld [vmem:[%s326 + $0x38] sm:$0xf]
        %v382 = vld [vmem:[%s326 + $0x3c] sm:$0xff]
        %v383 = vld [vmem:[%s326 + $0x44] sm:$0xf]
        %v384 = vld [vmem:[%s326 + $0x48] sm:$0xff]
        %v385 = vld [vmem:[%s326 + $0x50] sm:$0xf]
        %v386 = vld [vmem:[%s326 + $0x54] sm:$0xff]
        %v387 = vld [vmem:[%s326 + $0x5c] sm:$0xf]
        %v388 = vld [vmem:[%s326 + $0x60] sm:$0xff]
        %v389 = vld [vmem:[%s326 + $0x68] sm:$0xf]
        %v390 = vld [vmem:[%s326 + $0x6c] sm:$0xff]
        %v391 = vld [vmem:[%s326 + $0x74] sm:$0xf]
        %v392 = vld [vmem:[%s326 + $0x78] sm:$0xff]
        %v393 = vld [vmem:[%s326 + $0x80] sm:$0xf]
        %v394 = vld [vmem:[%s326 + $0x84] sm:$0xff]
        %v395 = vld [vmem:[%s326 + $0x8c] sm:$0xf]
        %v396 = vld [vmem:[%s326 + $0x90] sm:$0xff]
        %v397 = vld [vmem:[%s326 + $0x98] sm:$0xf]
        %v398 = vld [vmem:[%s326 + $0x9c] sm:$0xff]
        %v399 = vld [vmem:[%s326 + $0xa4] sm:$0xf]
        %v400 = vld [vmem:[%s326 + $0xa8] sm:$0xff]
        %v401 = vld [vmem:[%s326 + $0xb0] sm:$0xf]
        %v402 = vld [vmem:[%s326 + $0xb4] sm:$0xff]
        %v403 = vld [vmem:[%s326 + $0xbc] sm:$0xf]
        %v404 = vld [vmem:[%s326 + $0xc0] sm:$0xff]
        %v405 = vld [vmem:[%s326 + $0xc8] sm:$0xf]
        %v406 = vld [vmem:[%s326 + $0xcc] sm:$0xff]
        %v407 = vld [vmem:[%s326 + $0xd4] sm:$0xf]
        %v408 = vld [vmem:[%s326 + $0xd8] sm:$0xff]
        %v409 = vld [vmem:[%s326 + $0xe0] sm:$0xf]
        %v410 = vld [vmem:[%s326 + $0xe4] sm:$0xff]
        %v411 = vld [vmem:[%s326 + $0xec] sm:$0xf]
        %v412 = vld [vmem:[%s326 + $0xf0] sm:$0xff]
        %v413 = vld [vmem:[%s326 + $0xf8] sm:$0xf]
        %v414 = vld [vmem:[%s326 + $0xfc] sm:$0xff]
        %v415 = vld [vmem:[%s326 + $0x104] sm:$0xf]
        %v416 = vld [vmem:[%s326 + $0x108] sm:$0xff]
        %v417 = vld [vmem:[%s326 + $0x110] sm:$0xf]
        %v418 = vld [vmem:[%s326 + $0x114] sm:$0xff]
        %v419 = vld [vmem:[%s326 + $0x11c] sm:$0xf]
        %v420 = vld [vmem:[%s326 + $0x120] sm:$0xff]
        %v421 = vld [vmem:[%s326 + $0x128] sm:$0xf]
        %v422 = vld [vmem:[%s326 + $0x12c] sm:$0xff]
        %v423 = vld [vmem:[%s326 + $0x134] sm:$0xf]
        %v424 = vld [vmem:[%s326 + $0x138] sm:$0xff]
        %v425 = vld [vmem:[%s326 + $0x140] sm:$0xf]
        %v426 = vld [vmem:[%s326 + $0x144] sm:$0xff]
        %v427 = vld [vmem:[%s326 + $0x14c] sm:$0xf]
        %v428 = vld [vmem:[%s326 + $0x150] sm:$0xff]
        %v429 = vld [vmem:[%s326 + $0x158] sm:$0xf]
        %v430 = vld [vmem:[%s326 + $0x15c] sm:$0xff]
        %v431 = vld [vmem:[%s326 + $0x164] sm:$0xf]
        %v432 = vld [vmem:[%s326 + $0x168] sm:$0xff]
        %v433 = vld [vmem:[%s326 + $0x170] sm:$0xf]
        %v434 = vld [vmem:[%s326 + $0x174] sm:$0xff]
        %v435 = vld [vmem:[%s326 + $0x17c] sm:$0xf]
        %v436 = vld [vmem:[%s326 + $0x180] sm:$0xff]
        %v437 = vld [vmem:[%s326 + $0x188] sm:$0xf]
        %v438 = vld [vmem:[%s326 + $0x18c] sm:$0xff]
        %v439 = vld [vmem:[%s326 + $0x194] sm:$0xf]
        %v440 = vld [vmem:[%s326 + $0x198] sm:$0xff]
        %v441 = vld [vmem:[%s326 + $0x1a0] sm:$0xf]
        %v442 = vld [vmem:[%s326 + $0x1a4] sm:$0xff]
        %v443 = vld [vmem:[%s326 + $0x1ac] sm:$0xf]
        %v444 = vld [vmem:[%s326 + $0x1b0] sm:$0xff]
        %v445 = vld [vmem:[%s326 + $0x1b8] sm:$0xf]
        %v446 = vld [vmem:[%s326 + $0x1bc] sm:$0xff]
        %v447 = vld [vmem:[%s326 + $0x1c4] sm:$0xf]
        %v448 = vld [vmem:[%s326 + $0x1c8] sm:$0xff]
        %v449 = vld [vmem:[%s326 + $0x1d0] sm:$0xf]
        %v450 = vld [vmem:[%s326 + $0x1d4] sm:$0xff]
        %v451 = vld [vmem:[%s326 + $0x1dc] sm:$0xf]
        %v452 = vld [vmem:[%s326 + $0x1e0] sm:$0xff]
        %v453 = vld [vmem:[%s326 + $0x1e8] sm:$0xf]
        %v454 = vld [vmem:[%s326 + $0x1ec] sm:$0xff]
        %v455 = vld [vmem:[%s326 + $0x1f4] sm:$0xf]
        %v456 = vld [vmem:[%s326 + $0x1f8] sm:$0xff]
        %v457 = vld [vmem:[%s326 + $0x200] sm:$0xf]
        %v458 = vld [vmem:[%s326 + $0x204] sm:$0xff]
        %v459 = vld [vmem:[%s326 + $0x20c] sm:$0xf]
        %v460 = vld [vmem:[%s326 + $0x210] sm:$0xff]
        %v461 = vld [vmem:[%s326 + $0x218] sm:$0xf]
        %v462 = vld [vmem:[%s326 + $0x21c] sm:$0xff]
        %v463 = vld [vmem:[%s326 + $0x224] sm:$0xf]
        %v464 = vld [vmem:[%s326 + $0x228] sm:$0xff]
        %v465 = vld [vmem:[%s326 + $0x230] sm:$0xf]
        %v466 = vld [vmem:[%s326 + $0x234] sm:$0xff]
        %v467 = vld [vmem:[%s326 + $0x23c] sm:$0xf]
        %v468 = vld [vmem:[%s326 + $0x240] sm:$0xff]
        %v469 = vld [vmem:[%s326 + $0x248] sm:$0xf]
        %v470 = vld [vmem:[%s326 + $0x24c] sm:$0xff]
        %v471 = vld [vmem:[%s326 + $0x254] sm:$0xf]
        %v472 = vld [vmem:[%s326 + $0x258] sm:$0xff]
        %v473 = vld [vmem:[%s326 + $0x260] sm:$0xf]
        %v474 = vld [vmem:[%s326 + $0x264] sm:$0xff]
        %v475 = vld [vmem:[%s326 + $0x26c] sm:$0xf]
        %v476 = vld [vmem:[%s326 + $0x270] sm:$0xff]
        %v477 = vld [vmem:[%s326 + $0x278] sm:$0xf]
        %v478 = vld [vmem:[%s326 + $0x27c] sm:$0xff]
        %v479 = vld [vmem:[%s326 + $0x284] sm:$0xf]
        %v480 = vld [vmem:[%s326 + $0x288] sm:$0xff]
        %v481 = vld [vmem:[%s326 + $0x290] sm:$0xf]
        %v482 = vld [vmem:[%s326 + $0x294] sm:$0xff]
        %v483 = vld [vmem:[%s326 + $0x29c] sm:$0xf]
        %v484 = vld [vmem:[%s326 + $0x2a0] sm:$0xff]
        %v485 = vld [vmem:[%s326 + $0x2a8] sm:$0xf]
        %v486 = vld [vmem:[%s326 + $0x2ac] sm:$0xff]
        %v487 = vld [vmem:[%s326 + $0x2b4] sm:$0xf]
        %v488 = vld [vmem:[%s326 + $0x2b8] sm:$0xff]
        %v489 = vld [vmem:[%s326 + $0x2c0] sm:$0xf]
        %v490 = vld [vmem:[%s326 + $0x2c4] sm:$0xff]
        %v491 = vld [vmem:[%s326 + $0x2cc] sm:$0xf]
        %v492 = vld [vmem:[%s326 + $0x2d0] sm:$0xff]
        %v493 = vld [vmem:[%s326 + $0x2d8] sm:$0xf]
        %v494 = vld [vmem:[%s326 + $0x2dc] sm:$0xff]
        %v495 = vld [vmem:[%s326 + $0x2e4] sm:$0xf]
        %v496 = vld [vmem:[%s326 + $0x2e8] sm:$0xff]
        %v497 = vld [vmem:[%s326 + $0x2f0] sm:$0xf]
        %v498 = vld [vmem:[%s326 + $0x2f4] sm:$0xff]
        %v499 = vld [vmem:[%s326 + $0x2fc] sm:$0xf]
        %v500 = vld [vmem:[%s326 + $0x300] sm:$0xff]
        %v501 = vld [vmem:[%s326 + $0x308] sm:$0xf]
        %v502 = vld [vmem:[%s326 + $0x30c] sm:$0xff]
        %v503 = vld [vmem:[%s326 + $0x314] sm:$0xf]
        %v504 = vld [vmem:[%s326 + $0x318] sm:$0xff]
        %v505 = vld [vmem:[%s326 + $0x320] sm:$0xf]
        %v506 = vld [vmem:[%s326 + $0x324] sm:$0xff]
        %v507 = vld [vmem:[%s326 + $0x32c] sm:$0xf]
        %v508 = vld [vmem:[%s326 + $0x330] sm:$0xff]
        %v509 = vld [vmem:[%s326 + $0x338] sm:$0xf]
        %v510 = vld [vmem:[%s326 + $0x33c] sm:$0xff]
        %v511 = vld [vmem:[%s326 + $0x344] sm:$0xf]
        %v512 = vld [vmem:[%s326 + $0x348] sm:$0xff]
        %v513 = vld [vmem:[%s326 + $0x350] sm:$0xf]
        %v514 = vld [vmem:[%s326 + $0x354] sm:$0xff]
        %v515 = vld [vmem:[%s326 + $0x35c] sm:$0xf]
        %v516 = vld [vmem:[%s3] sm:$0xf]
        %v517 = vld [vmem:[%s3 + $0x4] sm:$0xf]
        %v518 = vld [vmem:[%s3 + $0x8] sm:$0xf]
        %v519 = vld [vmem:[%s3 + $0xc] sm:$0xf]
        %v520 = vld [vmem:[%s3 + $0x10] sm:$0xf]
        %v521 = vld [vmem:[%s3 + $0x14] sm:$0xf]
        %v522 = vld [vmem:[%s3 + $0x18] sm:$0xf]
        %v523 = vld [vmem:[%s3 + $0x1c] sm:$0xf]
        %v524 = vld [vmem:[%s3 + $0x20] sm:$0xf]
        %v525 = vld [vmem:[%s3 + $0x24] sm:$0xf]
        %v526 = vld [vmem:[%s3 + $0x28] sm:$0xf]
        %v527 = vld [vmem:[%s3 + $0x2c] sm:$0xf]
        %v528 = vld [vmem:[%s3 + $0x30] sm:$0xf]
        %v529 = vld [vmem:[%s3 + $0x34] sm:$0xf]
        %v530 = vld [vmem:[%s3 + $0x38] sm:$0xf]
        %v531 = vld [vmem:[%s3 + $0x3c] sm:$0xf]
        %v532 = vld [vmem:[%s3 + $0x40] sm:$0xf]
        %v533 = vld [vmem:[%s3 + $0x44] sm:$0xf]
        %v534 = vld [vmem:[%s3 + $0x48] sm:$0xf]
        %v535 = vld [vmem:[%s3 + $0x4c] sm:$0xf]
        %v536 = vld [vmem:[%s3 + $0x50] sm:$0xf]
        %v537 = vld [vmem:[%s3 + $0x54] sm:$0xf]
        %v538 = vld [vmem:[%s3 + $0x58] sm:$0xf]
        %v539 = vld [vmem:[%s3 + $0x5c] sm:$0xf]
        %v540 = vld [vmem:[%s3 + $0x60] sm:$0xf]
        %v541 = vld [vmem:[%s3 + $0x64] sm:$0xf]
        %v542 = vld [vmem:[%s3 + $0x68] sm:$0xf]
        %v543 = vld [vmem:[%s3 + $0x6c] sm:$0xf]
        %v544 = vld [vmem:[%s3 + $0x70] sm:$0xf]
        %v545 = vld [vmem:[%s3 + $0x74] sm:$0xf]
        %v546 = vld [vmem:[%s3 + $0x78] sm:$0xf]
        %v547 = vld [vmem:[%s3 + $0x7c] sm:$0xf]
        %v548 = vld [vmem:[%s3 + $0x80] sm:$0xf]
        %v549 = vld [vmem:[%s3 + $0x84] sm:$0xf]
        %v550 = vld [vmem:[%s3 + $0x88] sm:$0xf]
        %v551 = vld [vmem:[%s3 + $0x8c] sm:$0xf]
        %v552 = vld [vmem:[%s3 + $0x90] sm:$0xf]
        %v553 = vld [vmem:[%s3 + $0x94] sm:$0xf]
        %v554 = vld [vmem:[%s3 + $0x98] sm:$0xf]
        %v555 = vld [vmem:[%s3 + $0x9c] sm:$0xf]
        %v556 = vld [vmem:[%s3 + $0xa0] sm:$0xf]
        %v557 = vld [vmem:[%s3 + $0xa4] sm:$0xf]
        %v558 = vld [vmem:[%s3 + $0xa8] sm:$0xf]
        %v559 = vld [vmem:[%s3 + $0xac] sm:$0xf]
        %v560 = vld [vmem:[%s3 + $0xb0] sm:$0xf]
        %v561 = vld [vmem:[%s3 + $0xb4] sm:$0xf]
        %v562 = vld [vmem:[%s3 + $0xb8] sm:$0xf]
        %v563 = vld [vmem:[%s3 + $0xbc] sm:$0xf]
        %s564 = scalar_lea.vmem %s326, 48 [#allocation2]
        %v565 = vld [vmem:[%s564] sm:$0xff]
        %v566 = vld [vmem:[%s564 + $0x8] sm:$0xf]
        %v567 = vld [vmem:[%s564 + $0xc] sm:$0xff]
        %v568 = vld [vmem:[%s564 + $0x14] sm:$0xf]
        %v569 = vld [vmem:[%s564 + $0x18] sm:$0xff]
        %v570 = vld [vmem:[%s564 + $0x20] sm:$0xf]
        %v571 = vld [vmem:[%s564 + $0x24] sm:$0xff]
        %v572 = vld [vmem:[%s564 + $0x2c] sm:$0xf]
        %v573 = vld [vmem:[%s564 + $0x30] sm:$0xff]
        %v574 = vld [vmem:[%s564 + $0x38] sm:$0xf]
        %v575 = vld [vmem:[%s564 + $0x3c] sm:$0xff]
        %v576 = vld [vmem:[%s564 + $0x44] sm:$0xf]
        %v577 = vld [vmem:[%s564 + $0x48] sm:$0xff]
        %v578 = vld [vmem:[%s564 + $0x50] sm:$0xf]
        %v579 = vld [vmem:[%s564 + $0x54] sm:$0xff]
        %v580 = vld [vmem:[%s564 + $0x5c] sm:$0xf]
        %v581 = vld [vmem:[%s564 + $0x60] sm:$0xff]
        %v582 = vld [vmem:[%s564 + $0x68] sm:$0xf]
        %v583 = vld [vmem:[%s564 + $0x6c] sm:$0xff]
        %v584 = vld [vmem:[%s564 + $0x74] sm:$0xf]
        %v585 = vld [vmem:[%s564 + $0x78] sm:$0xff]
        %v586 = vld [vmem:[%s564 + $0x80] sm:$0xf]
        %v587 = vld [vmem:[%s564 + $0x84] sm:$0xff]
        %v588 = vld [vmem:[%s564 + $0x8c] sm:$0xf]
        %v589 = vld [vmem:[%s564 + $0x90] sm:$0xff]
        %v590 = vld [vmem:[%s564 + $0x98] sm:$0xf]
        %v591 = vld [vmem:[%s564 + $0x9c] sm:$0xff]
        %v592 = vld [vmem:[%s564 + $0xa4] sm:$0xf]
        %v593 = vld [vmem:[%s564 + $0xa8] sm:$0xff]
        %v594 = vld [vmem:[%s564 + $0xb0] sm:$0xf]
        %v595 = vld [vmem:[%s564 + $0xb4] sm:$0xff]
        %v596 = vld [vmem:[%s564 + $0xbc] sm:$0xf]
        %v597 = vld [vmem:[%s564 + $0xc0] sm:$0xff]
        %v598 = vld [vmem:[%s564 + $0xc8] sm:$0xf]
        %v599 = vld [vmem:[%s564 + $0xcc] sm:$0xff]
        %v600 = vld [vmem:[%s564 + $0xd4] sm:$0xf]
        %v601 = vld [vmem:[%s564 + $0xd8] sm:$0xff]
        %v602 = vld [vmem:[%s564 + $0xe0] sm:$0xf]
        %v603 = vld [vmem:[%s564 + $0xe4] sm:$0xff]
        %v604 = vld [vmem:[%s564 + $0xec] sm:$0xf]
        %v605 = vld [vmem:[%s564 + $0xf0] sm:$0xff]
        %v606 = vld [vmem:[%s564 + $0xf8] sm:$0xf]
        %v607 = vld [vmem:[%s564 + $0xfc] sm:$0xff]
        %v608 = vld [vmem:[%s564 + $0x104] sm:$0xf]
        %v609 = vld [vmem:[%s564 + $0x108] sm:$0xff]
        %v610 = vld [vmem:[%s564 + $0x110] sm:$0xf]
        %v611 = vld [vmem:[%s564 + $0x114] sm:$0xff]
        %v612 = vld [vmem:[%s564 + $0x11c] sm:$0xf]
        %v613 = vld [vmem:[%s564 + $0x120] sm:$0xff]
        %v614 = vld [vmem:[%s564 + $0x128] sm:$0xf]
        %v615 = vld [vmem:[%s564 + $0x12c] sm:$0xff]
        %v616 = vld [vmem:[%s564 + $0x134] sm:$0xf]
        %v617 = vld [vmem:[%s564 + $0x138] sm:$0xff]
        %v618 = vld [vmem:[%s564 + $0x140] sm:$0xf]
        %v619 = vld [vmem:[%s564 + $0x144] sm:$0xff]
        %v620 = vld [vmem:[%s564 + $0x14c] sm:$0xf]
        %v621 = vld [vmem:[%s564 + $0x150] sm:$0xff]
        %v622 = vld [vmem:[%s564 + $0x158] sm:$0xf]
        %v623 = vld [vmem:[%s564 + $0x15c] sm:$0xff]
        %v624 = vld [vmem:[%s564 + $0x164] sm:$0xf]
        %v625 = vld [vmem:[%s564 + $0x168] sm:$0xff]
        %v626 = vld [vmem:[%s564 + $0x170] sm:$0xf]
        %v627 = vld [vmem:[%s564 + $0x174] sm:$0xff]
        %v628 = vld [vmem:[%s564 + $0x17c] sm:$0xf]
        %v629 = vld [vmem:[%s564 + $0x180] sm:$0xff]
        %v630 = vld [vmem:[%s564 + $0x188] sm:$0xf]
        %v631 = vld [vmem:[%s564 + $0x18c] sm:$0xff]
        %v632 = vld [vmem:[%s564 + $0x194] sm:$0xf]
        %v633 = vld [vmem:[%s564 + $0x198] sm:$0xff]
        %v634 = vld [vmem:[%s564 + $0x1a0] sm:$0xf]
        %v635 = vld [vmem:[%s564 + $0x1a4] sm:$0xff]
        %v636 = vld [vmem:[%s564 + $0x1ac] sm:$0xf]
        %v637 = vld [vmem:[%s564 + $0x1b0] sm:$0xff]
        %v638 = vld [vmem:[%s564 + $0x1b8] sm:$0xf]
        %v639 = vld [vmem:[%s564 + $0x1bc] sm:$0xff]
        %v640 = vld [vmem:[%s564 + $0x1c4] sm:$0xf]
        %v641 = vld [vmem:[%s564 + $0x1c8] sm:$0xff]
        %v642 = vld [vmem:[%s564 + $0x1d0] sm:$0xf]
        %v643 = vld [vmem:[%s564 + $0x1d4] sm:$0xff]
        %v644 = vld [vmem:[%s564 + $0x1dc] sm:$0xf]
        %v645 = vld [vmem:[%s564 + $0x1e0] sm:$0xff]
        %v646 = vld [vmem:[%s564 + $0x1e8] sm:$0xf]
        %v647 = vld [vmem:[%s564 + $0x1ec] sm:$0xff]
        %v648 = vld [vmem:[%s564 + $0x1f4] sm:$0xf]
        %v649 = vld [vmem:[%s564 + $0x1f8] sm:$0xff]
        %v650 = vld [vmem:[%s564 + $0x200] sm:$0xf]
        %v651 = vld [vmem:[%s564 + $0x204] sm:$0xff]
        %v652 = vld [vmem:[%s564 + $0x20c] sm:$0xf]
        %v653 = vld [vmem:[%s564 + $0x210] sm:$0xff]
        %v654 = vld [vmem:[%s564 + $0x218] sm:$0xf]
        %v655 = vld [vmem:[%s564 + $0x21c] sm:$0xff]
        %v656 = vld [vmem:[%s564 + $0x224] sm:$0xf]
        %v657 = vld [vmem:[%s564 + $0x228] sm:$0xff]
        %v658 = vld [vmem:[%s564 + $0x230] sm:$0xf]
        %v659 = vld [vmem:[%s564 + $0x234] sm:$0xff]
        %v660 = vld [vmem:[%s564 + $0x23c] sm:$0xf]
        %v661 = vld [vmem:[%s564 + $0x240] sm:$0xff]
        %v662 = vld [vmem:[%s564 + $0x248] sm:$0xf]
        %v663 = vld [vmem:[%s564 + $0x24c] sm:$0xff]
        %v664 = vld [vmem:[%s564 + $0x254] sm:$0xf]
        %v665 = vld [vmem:[%s564 + $0x258] sm:$0xff]
        %v666 = vld [vmem:[%s564 + $0x260] sm:$0xf]
        %v667 = vld [vmem:[%s564 + $0x264] sm:$0xff]
        %v668 = vld [vmem:[%s564 + $0x26c] sm:$0xf]
        %v669 = vld [vmem:[%s564 + $0x270] sm:$0xff]
        %v670 = vld [vmem:[%s564 + $0x278] sm:$0xf]
        %v671 = vld [vmem:[%s564 + $0x27c] sm:$0xff]
        %v672 = vld [vmem:[%s564 + $0x284] sm:$0xf]
        %v673 = vld [vmem:[%s564 + $0x288] sm:$0xff]
        %v674 = vld [vmem:[%s564 + $0x290] sm:$0xf]
        %v675 = vld [vmem:[%s564 + $0x294] sm:$0xff]
        %v676 = vld [vmem:[%s564 + $0x29c] sm:$0xf]
        %v677 = vld [vmem:[%s564 + $0x2a0] sm:$0xff]
        %v678 = vld [vmem:[%s564 + $0x2a8] sm:$0xf]
        %v679 = vld [vmem:[%s564 + $0x2ac] sm:$0xff]
        %v680 = vld [vmem:[%s564 + $0x2b4] sm:$0xf]
        %v681 = vld [vmem:[%s564 + $0x2b8] sm:$0xff]
        %v682 = vld [vmem:[%s564 + $0x2c0] sm:$0xf]
        %v683 = vld [vmem:[%s564 + $0x2c4] sm:$0xff]
        %v684 = vld [vmem:[%s564 + $0x2cc] sm:$0xf]
        %v685 = vld [vmem:[%s564 + $0x2d0] sm:$0xff]
        %v686 = vld [vmem:[%s564 + $0x2d8] sm:$0xf]
        %v687 = vld [vmem:[%s564 + $0x2dc] sm:$0xff]
        %v688 = vld [vmem:[%s564 + $0x2e4] sm:$0xf]
        %v689 = vld [vmem:[%s564 + $0x2e8] sm:$0xff]
        %v690 = vld [vmem:[%s564 + $0x2f0] sm:$0xf]
        %v691 = vld [vmem:[%s564 + $0x2f4] sm:$0xff]
        %v692 = vld [vmem:[%s564 + $0x2fc] sm:$0xf]
        %v693 = vld [vmem:[%s564 + $0x300] sm:$0xff]
        %v694 = vld [vmem:[%s564 + $0x308] sm:$0xf]
        %v695 = vld [vmem:[%s564 + $0x30c] sm:$0xff]
        %v696 = vld [vmem:[%s564 + $0x314] sm:$0xf]
        %v697 = vld [vmem:[%s564 + $0x318] sm:$0xff]
        %v698 = vld [vmem:[%s564 + $0x320] sm:$0xf]
        %v699 = vld [vmem:[%s564 + $0x324] sm:$0xff]
        %v700 = vld [vmem:[%s564 + $0x32c] sm:$0xf]
        %v701 = vld [vmem:[%s564 + $0x330] sm:$0xff]
        %v702 = vld [vmem:[%s564 + $0x338] sm:$0xf]
        %v703 = vld [vmem:[%s564 + $0x33c] sm:$0xff]
        %v704 = vld [vmem:[%s564 + $0x344] sm:$0xf]
        %v705 = vld [vmem:[%s564 + $0x348] sm:$0xff]
        %v706 = vld [vmem:[%s564 + $0x350] sm:$0xf]
        %v707 = vld [vmem:[%s564 + $0x354] sm:$0xff]
        %v708 = vld [vmem:[%s564 + $0x35c] sm:$0xf]
        %s709 = scalar_lea.vmem %s3, 192
        %v710 = vld [vmem:[%s709] sm:$0xf]
        %v711 = vld [vmem:[%s709 + $0x4] sm:$0xf]
        %v712 = vld [vmem:[%s709 + $0x8] sm:$0xf]
        %v713 = vld [vmem:[%s709 + $0xc] sm:$0xf]
        %v714 = vld [vmem:[%s709 + $0x10] sm:$0xf]
        %v715 = vld [vmem:[%s709 + $0x14] sm:$0xf]
        %v716 = vld [vmem:[%s709 + $0x18] sm:$0xf]
        %v717 = vld [vmem:[%s709 + $0x1c] sm:$0xf]
        %v718 = vld [vmem:[%s709 + $0x20] sm:$0xf]
        %v719 = vld [vmem:[%s709 + $0x24] sm:$0xf]
        %v720 = vld [vmem:[%s709 + $0x28] sm:$0xf]
        %v721 = vld [vmem:[%s709 + $0x2c] sm:$0xf]
        %v722 = vld [vmem:[%s709 + $0x30] sm:$0xf]
        %v723 = vld [vmem:[%s709 + $0x34] sm:$0xf]
        %v724 = vld [vmem:[%s709 + $0x38] sm:$0xf]
        %v725 = vld [vmem:[%s709 + $0x3c] sm:$0xf]
        %v726 = vld [vmem:[%s709 + $0x40] sm:$0xf]
        %v727 = vld [vmem:[%s709 + $0x44] sm:$0xf]
        %v728 = vld [vmem:[%s709 + $0x48] sm:$0xf]
        %v729 = vld [vmem:[%s709 + $0x4c] sm:$0xf]
        %v730 = vld [vmem:[%s709 + $0x50] sm:$0xf]
        %v731 = vld [vmem:[%s709 + $0x54] sm:$0xf]
        %v732 = vld [vmem:[%s709 + $0x58] sm:$0xf]
        %v733 = vld [vmem:[%s709 + $0x5c] sm:$0xf]
        %v734 = vld [vmem:[%s709 + $0x60] sm:$0xf]
        %v735 = vld [vmem:[%s709 + $0x64] sm:$0xf]
        %v736 = vld [vmem:[%s709 + $0x68] sm:$0xf]
        %v737 = vld [vmem:[%s709 + $0x6c] sm:$0xf]
        %v738 = vld [vmem:[%s709 + $0x70] sm:$0xf]
        %v739 = vld [vmem:[%s709 + $0x74] sm:$0xf]
        %v740 = vld [vmem:[%s709 + $0x78] sm:$0xf]
        %v741 = vld [vmem:[%s709 + $0x7c] sm:$0xf]
        %v742 = vld [vmem:[%s709 + $0x80] sm:$0xf]
        %v743 = vld [vmem:[%s709 + $0x84] sm:$0xf]
        %v744 = vld [vmem:[%s709 + $0x88] sm:$0xf]
        %v745 = vld [vmem:[%s709 + $0x8c] sm:$0xf]
        %v746 = vld [vmem:[%s709 + $0x90] sm:$0xf]
        %v747 = vld [vmem:[%s709 + $0x94] sm:$0xf]
        %v748 = vld [vmem:[%s709 + $0x98] sm:$0xf]
        %v749 = vld [vmem:[%s709 + $0x9c] sm:$0xf]
        %v750 = vld [vmem:[%s709 + $0xa0] sm:$0xf]
        %v751 = vld [vmem:[%s709 + $0xa4] sm:$0xf]
        %v752 = vld [vmem:[%s709 + $0xa8] sm:$0xf]
        %v753 = vld [vmem:[%s709 + $0xac] sm:$0xf]
        %v754 = vld [vmem:[%s709 + $0xb0] sm:$0xf]
        %v755 = vld [vmem:[%s709 + $0xb4] sm:$0xf]
        %v756 = vld [vmem:[%s709 + $0xb8] sm:$0xf]
        %v757 = vld [vmem:[%s709 + $0xbc] sm:$0xf]
        %v902 = vunpack.c.l.b16 %v565
        %v903 = vunpack.c.h.b16 %v565
        %v904 = vunpack.c.l.b16 %v566
        %v905 = vunpack.c.l.b16 %v567
        %v906 = vunpack.c.h.b16 %v567
        %v907 = vunpack.c.l.b16 %v568
        %v908 = vunpack.c.l.b16 %v569
        %v909 = vunpack.c.h.b16 %v569
        %v910 = vunpack.c.l.b16 %v570
        %v911 = vunpack.c.l.b16 %v571
        %v912 = vunpack.c.h.b16 %v571
        %v913 = vunpack.c.l.b16 %v572
        %v914 = vunpack.c.l.b16 %v573
        %v915 = vunpack.c.h.b16 %v573
        %v916 = vunpack.c.l.b16 %v574
        %v917 = vunpack.c.l.b16 %v575
        %v918 = vunpack.c.h.b16 %v575
        %v919 = vunpack.c.l.b16 %v576
        %v920 = vunpack.c.l.b16 %v577
        %v921 = vunpack.c.h.b16 %v577
        %v922 = vunpack.c.l.b16 %v578
        %v923 = vunpack.c.l.b16 %v579
        %v924 = vunpack.c.h.b16 %v579
        %v925 = vunpack.c.l.b16 %v580
        %v926 = vunpack.c.l.b16 %v581
        %v927 = vunpack.c.h.b16 %v581
        %v928 = vunpack.c.l.b16 %v582
        %v929 = vunpack.c.l.b16 %v583
        %v930 = vunpack.c.h.b16 %v583
        %v931 = vunpack.c.l.b16 %v584
        %v932 = vunpack.c.l.b16 %v585
        %v933 = vunpack.c.h.b16 %v585
        %v934 = vunpack.c.l.b16 %v586
        %v935 = vunpack.c.l.b16 %v587
        %v936 = vunpack.c.h.b16 %v587
        %v937 = vunpack.c.l.b16 %v588
        %v938 = vunpack.c.l.b16 %v589
        %v939 = vunpack.c.h.b16 %v589
        %v940 = vunpack.c.l.b16 %v590
        %v941 = vunpack.c.l.b16 %v591
        %v942 = vunpack.c.h.b16 %v591
        %v943 = vunpack.c.l.b16 %v592
        %v944 = vunpack.c.l.b16 %v593
        %v945 = vunpack.c.h.b16 %v593
        %v946 = vunpack.c.l.b16 %v594
        %v947 = vunpack.c.l.b16 %v595
        %v948 = vunpack.c.h.b16 %v595
        %v949 = vunpack.c.l.b16 %v596
        %v950 = vunpack.c.l.b16 %v597
        %v951 = vunpack.c.h.b16 %v597
        %v952 = vunpack.c.l.b16 %v598
        %v953 = vunpack.c.l.b16 %v599
        %v954 = vunpack.c.h.b16 %v599
        %v955 = vunpack.c.l.b16 %v600
        %v956 = vunpack.c.l.b16 %v601
        %v957 = vunpack.c.h.b16 %v601
        %v958 = vunpack.c.l.b16 %v602
        %v959 = vunpack.c.l.b16 %v603
        %v960 = vunpack.c.h.b16 %v603
        %v961 = vunpack.c.l.b16 %v604
        %v962 = vunpack.c.l.b16 %v605
        %v963 = vunpack.c.h.b16 %v605
        %v964 = vunpack.c.l.b16 %v606
        %v965 = vunpack.c.l.b16 %v607
        %v966 = vunpack.c.h.b16 %v607
        %v967 = vunpack.c.l.b16 %v608
        %v968 = vunpack.c.l.b16 %v609
        %v969 = vunpack.c.h.b16 %v609
        %v970 = vunpack.c.l.b16 %v610
        %v971 = vunpack.c.l.b16 %v611
        %v972 = vunpack.c.h.b16 %v611
        %v973 = vunpack.c.l.b16 %v612
        %v974 = vunpack.c.l.b16 %v613
        %v975 = vunpack.c.h.b16 %v613
        %v976 = vunpack.c.l.b16 %v614
        %v977 = vunpack.c.l.b16 %v615
        %v978 = vunpack.c.h.b16 %v615
        %v979 = vunpack.c.l.b16 %v616
        %v980 = vunpack.c.l.b16 %v617
        %v981 = vunpack.c.h.b16 %v617
        %v982 = vunpack.c.l.b16 %v618
        %v983 = vunpack.c.l.b16 %v619
        %v984 = vunpack.c.h.b16 %v619
        %v985 = vunpack.c.l.b16 %v620
        %v986 = vunpack.c.l.b16 %v621
        %v987 = vunpack.c.h.b16 %v621
        %v988 = vunpack.c.l.b16 %v622
        %v989 = vunpack.c.l.b16 %v623
        %v990 = vunpack.c.h.b16 %v623
        %v991 = vunpack.c.l.b16 %v624
        %v992 = vunpack.c.l.b16 %v625
        %v993 = vunpack.c.h.b16 %v625
        %v994 = vunpack.c.l.b16 %v626
        %v995 = vunpack.c.l.b16 %v627
        %v996 = vunpack.c.h.b16 %v627
        %v997 = vunpack.c.l.b16 %v628
        %v998 = vunpack.c.l.b16 %v629
        %v999 = vunpack.c.h.b16 %v629
        %v1000 = vunpack.c.l.b16 %v630
        %v1001 = vunpack.c.l.b16 %v631
        %v1002 = vunpack.c.h.b16 %v631
        %v1003 = vunpack.c.l.b16 %v632
        %v1004 = vunpack.c.l.b16 %v633
        %v1005 = vunpack.c.h.b16 %v633
        %v1006 = vunpack.c.l.b16 %v634
        %v1007 = vunpack.c.l.b16 %v635
        %v1008 = vunpack.c.h.b16 %v635
        %v1009 = vunpack.c.l.b16 %v636
        %v1010 = vunpack.c.l.b16 %v637
        %v1011 = vunpack.c.h.b16 %v637
        %v1012 = vunpack.c.l.b16 %v638
        %v1013 = vunpack.c.l.b16 %v639
        %v1014 = vunpack.c.h.b16 %v639
        %v1015 = vunpack.c.l.b16 %v640
        %v1016 = vunpack.c.l.b16 %v641
        %v1017 = vunpack.c.h.b16 %v641
        %v1018 = vunpack.c.l.b16 %v642
        %v1019 = vunpack.c.l.b16 %v643
        %v1020 = vunpack.c.h.b16 %v643
        %v1021 = vunpack.c.l.b16 %v644
        %v1022 = vunpack.c.l.b16 %v645
        %v1023 = vunpack.c.h.b16 %v645
        %v1024 = vunpack.c.l.b16 %v646
        %v1025 = vunpack.c.l.b16 %v647
        %v1026 = vunpack.c.h.b16 %v647
        %v1027 = vunpack.c.l.b16 %v648
        %v1028 = vunpack.c.l.b16 %v649
        %v1029 = vunpack.c.h.b16 %v649
        %v1030 = vunpack.c.l.b16 %v650
        %v1031 = vunpack.c.l.b16 %v651
        %v1032 = vunpack.c.h.b16 %v651
        %v1033 = vunpack.c.l.b16 %v652
        %v1034 = vunpack.c.l.b16 %v653
        %v1035 = vunpack.c.h.b16 %v653
        %v1036 = vunpack.c.l.b16 %v654
        %v1037 = vunpack.c.l.b16 %v655
        %v1038 = vunpack.c.h.b16 %v655
        %v1039 = vunpack.c.l.b16 %v656
        %v1040 = vunpack.c.l.b16 %v657
        %v1041 = vunpack.c.h.b16 %v657
        %v1042 = vunpack.c.l.b16 %v658
        %v1043 = vunpack.c.l.b16 %v659
        %v1044 = vunpack.c.h.b16 %v659
        %v1045 = vunpack.c.l.b16 %v660
        %v1046 = vunpack.c.l.b16 %v661
        %v1047 = vunpack.c.h.b16 %v661
        %v1048 = vunpack.c.l.b16 %v662
        %v1049 = vunpack.c.l.b16 %v663
        %v1050 = vunpack.c.h.b16 %v663
        %v1051 = vunpack.c.l.b16 %v664
        %v1052 = vunpack.c.l.b16 %v665
        %v1053 = vunpack.c.h.b16 %v665
        %v1054 = vunpack.c.l.b16 %v666
        %v1055 = vunpack.c.l.b16 %v667
        %v1056 = vunpack.c.h.b16 %v667
        %v1057 = vunpack.c.l.b16 %v668
        %v1058 = vunpack.c.l.b16 %v669
        %v1059 = vunpack.c.h.b16 %v669
        %v1060 = vunpack.c.l.b16 %v670
        %v1061 = vunpack.c.l.b16 %v671
        %v1062 = vunpack.c.h.b16 %v671
        %v1063 = vunpack.c.l.b16 %v672
        %v1064 = vunpack.c.l.b16 %v673
        %v1065 = vunpack.c.h.b16 %v673
        %v1066 = vunpack.c.l.b16 %v674
        %v1067 = vunpack.c.l.b16 %v675
        %v1068 = vunpack.c.h.b16 %v675
        %v1069 = vunpack.c.l.b16 %v676
        %v1070 = vunpack.c.l.b16 %v677
        %v1071 = vunpack.c.h.b16 %v677
        %v1072 = vunpack.c.l.b16 %v678
        %v1073 = vunpack.c.l.b16 %v679
        %v1074 = vunpack.c.h.b16 %v679
        %v1075 = vunpack.c.l.b16 %v680
        %v1076 = vunpack.c.l.b16 %v681
        %v1077 = vunpack.c.h.b16 %v681
        %v1078 = vunpack.c.l.b16 %v682
        %v1079 = vunpack.c.l.b16 %v683
        %v1080 = vunpack.c.h.b16 %v683
        %v1081 = vunpack.c.l.b16 %v684
        %v1082 = vunpack.c.l.b16 %v685
        %v1083 = vunpack.c.h.b16 %v685
        %v1084 = vunpack.c.l.b16 %v686
        %v1085 = vunpack.c.l.b16 %v687
        %v1086 = vunpack.c.h.b16 %v687
        %v1087 = vunpack.c.l.b16 %v688
        %v1088 = vunpack.c.l.b16 %v689
        %v1089 = vunpack.c.h.b16 %v689
        %v1090 = vunpack.c.l.b16 %v690
        %v1091 = vunpack.c.l.b16 %v691
        %v1092 = vunpack.c.h.b16 %v691
        %v1093 = vunpack.c.l.b16 %v692
        %v1094 = vunpack.c.l.b16 %v693
        %v1095 = vunpack.c.h.b16 %v693
        %v1096 = vunpack.c.l.b16 %v694
        %v1097 = vunpack.c.l.b16 %v695
        %v1098 = vunpack.c.h.b16 %v695
        %v1099 = vunpack.c.l.b16 %v696
        %v1100 = vunpack.c.l.b16 %v697
        %v1101 = vunpack.c.h.b16 %v697
        %v1102 = vunpack.c.l.b16 %v698
        %v1103 = vunpack.c.l.b16 %v699
        %v1104 = vunpack.c.h.b16 %v699
        %v1105 = vunpack.c.l.b16 %v700
        %v1106 = vunpack.c.l.b16 %v701
        %v1107 = vunpack.c.h.b16 %v701
        %v1108 = vunpack.c.l.b16 %v702
        %v1109 = vunpack.c.l.b16 %v703
        %v1110 = vunpack.c.h.b16 %v703
        %v1111 = vunpack.c.l.b16 %v704
        %v1112 = vunpack.c.l.b16 %v705
        %v1113 = vunpack.c.h.b16 %v705
        %v1114 = vunpack.c.l.b16 %v706
        %v1115 = vunpack.c.l.b16 %v707
        %v1116 = vunpack.c.h.b16 %v707
        %v1117 = vunpack.c.l.b16 %v708
        %v1118 = vpack.c.b16 %v905, %v902
        %v1119 = vpack.c.b16 %v906, %v903
        %v1120 = vpack.c.b16 %v907, %v904
        %v1121 = vpack.c.b16 %v911, %v908
        %v1122 = vpack.c.b16 %v912, %v909
        %v1123 = vpack.c.b16 %v913, %v910
        %v1124 = vpack.c.b16 %v917, %v914
        %v1125 = vpack.c.b16 %v918, %v915
        %v1126 = vpack.c.b16 %v919, %v916
        %v1127 = vpack.c.b16 %v923, %v920
        %v1128 = vpack.c.b16 %v924, %v921
        %v1129 = vpack.c.b16 %v925, %v922
        %v1130 = vpack.c.b16 %v929, %v926
        %v1131 = vpack.c.b16 %v930, %v927
        %v1132 = vpack.c.b16 %v931, %v928
        %v1133 = vpack.c.b16 %v935, %v932
        %v1134 = vpack.c.b16 %v936, %v933
        %v1135 = vpack.c.b16 %v937, %v934
        %v1136 = vpack.c.b16 %v941, %v938
        %v1137 = vpack.c.b16 %v942, %v939
        %v1138 = vpack.c.b16 %v943, %v940
        %v1139 = vpack.c.b16 %v947, %v944
        %v1140 = vpack.c.b16 %v948, %v945
        %v1141 = vpack.c.b16 %v949, %v946
        %v1142 = vpack.c.b16 %v953, %v950
        %v1143 = vpack.c.b16 %v954, %v951
        %v1144 = vpack.c.b16 %v955, %v952
        %v1145 = vpack.c.b16 %v959, %v956
        %v1146 = vpack.c.b16 %v960, %v957
        %v1147 = vpack.c.b16 %v961, %v958
        %v1148 = vpack.c.b16 %v965, %v962
        %v1149 = vpack.c.b16 %v966, %v963
        %v1150 = vpack.c.b16 %v967, %v964
        %v1151 = vpack.c.b16 %v971, %v968
        %v1152 = vpack.c.b16 %v972, %v969
        %v1153 = vpack.c.b16 %v973, %v970
        %v1154 = vpack.c.b16 %v977, %v974
        %v1155 = vpack.c.b16 %v978, %v975
        %v1156 = vpack.c.b16 %v979, %v976
        %v1157 = vpack.c.b16 %v983, %v980
        %v1158 = vpack.c.b16 %v984, %v981
        %v1159 = vpack.c.b16 %v985, %v982
        %v1160 = vpack.c.b16 %v989, %v986
        %v1161 = vpack.c.b16 %v990, %v987
        %v1162 = vpack.c.b16 %v991, %v988
        %v1163 = vpack.c.b16 %v995, %v992
        %v1164 = vpack.c.b16 %v996, %v993
        %v1165 = vpack.c.b16 %v997, %v994
        %v1166 = vpack.c.b16 %v1001, %v998
        %v1167 = vpack.c.b16 %v1002, %v999
        %v1168 = vpack.c.b16 %v1003, %v1000
        %v1169 = vpack.c.b16 %v1007, %v1004
        %v1170 = vpack.c.b16 %v1008, %v1005
        %v1171 = vpack.c.b16 %v1009, %v1006
        %v1172 = vpack.c.b16 %v1013, %v1010
        %v1173 = vpack.c.b16 %v1014, %v1011
        %v1174 = vpack.c.b16 %v1015, %v1012
        %v1175 = vpack.c.b16 %v1019, %v1016
        %v1176 = vpack.c.b16 %v1020, %v1017
        %v1177 = vpack.c.b16 %v1021, %v1018
        %v1178 = vpack.c.b16 %v1025, %v1022
        %v1179 = vpack.c.b16 %v1026, %v1023
        %v1180 = vpack.c.b16 %v1027, %v1024
        %v1181 = vpack.c.b16 %v1031, %v1028
        %v1182 = vpack.c.b16 %v1032, %v1029
        %v1183 = vpack.c.b16 %v1033, %v1030
        %v1184 = vpack.c.b16 %v1037, %v1034
        %v1185 = vpack.c.b16 %v1038, %v1035
        %v1186 = vpack.c.b16 %v1039, %v1036
        %v1187 = vpack.c.b16 %v1043, %v1040
        %v1188 = vpack.c.b16 %v1044, %v1041
        %v1189 = vpack.c.b16 %v1045, %v1042
        %v1190 = vpack.c.b16 %v1049, %v1046
        %v1191 = vpack.c.b16 %v1050, %v1047
        %v1192 = vpack.c.b16 %v1051, %v1048
        %v1193 = vpack.c.b16 %v1055, %v1052
        %v1194 = vpack.c.b16 %v1056, %v1053
        %v1195 = vpack.c.b16 %v1057, %v1054
        %v1196 = vpack.c.b16 %v1061, %v1058
        %v1197 = vpack.c.b16 %v1062, %v1059
        %v1198 = vpack.c.b16 %v1063, %v1060
        %v1199 = vpack.c.b16 %v1067, %v1064
        %v1200 = vpack.c.b16 %v1068, %v1065
        %v1201 = vpack.c.b16 %v1069, %v1066
        %v1202 = vpack.c.b16 %v1073, %v1070
        %v1203 = vpack.c.b16 %v1074, %v1071
        %v1204 = vpack.c.b16 %v1075, %v1072
        %v1205 = vpack.c.b16 %v1079, %v1076
        %v1206 = vpack.c.b16 %v1080, %v1077
        %v1207 = vpack.c.b16 %v1081, %v1078
        %v1208 = vpack.c.b16 %v1085, %v1082
        %v1209 = vpack.c.b16 %v1086, %v1083
        %v1210 = vpack.c.b16 %v1087, %v1084
        %v1211 = vpack.c.b16 %v1091, %v1088
        %v1212 = vpack.c.b16 %v1092, %v1089
        %v1213 = vpack.c.b16 %v1093, %v1090
        %v1214 = vpack.c.b16 %v1097, %v1094
        %v1215 = vpack.c.b16 %v1098, %v1095
        %v1216 = vpack.c.b16 %v1099, %v1096
        %v1217 = vpack.c.b16 %v1103, %v1100
        %v1218 = vpack.c.b16 %v1104, %v1101
        %v1219 = vpack.c.b16 %v1105, %v1102
        %v1220 = vpack.c.b16 %v1109, %v1106
        %v1221 = vpack.c.b16 %v1110, %v1107
        %v1222 = vpack.c.b16 %v1111, %v1108
        %v1223 = vpack.c.b16 %v1115, %v1112
        %v1224 = vpack.c.b16 %v1116, %v1113
        %v1225 = vpack.c.b16 %v1117, %v1114
        %v1382 = vunpack.c.l.b16 %v710
        %v1383 = vunpack.c.l.b16 %v711
        %v1384 = vunpack.c.l.b16 %v712
        %v1385 = vunpack.c.l.b16 %v713
        %v1386 = vunpack.c.l.b16 %v714
        %v1387 = vunpack.c.l.b16 %v715
        %v1388 = vunpack.c.l.b16 %v716
        %v1389 = vunpack.c.l.b16 %v717
        %v1390 = vunpack.c.l.b16 %v718
        %v1391 = vunpack.c.l.b16 %v719
        %v1392 = vunpack.c.l.b16 %v720
        %v1393 = vunpack.c.l.b16 %v721
        %v1394 = vunpack.c.l.b16 %v722
        %v1395 = vunpack.c.l.b16 %v723
        %v1396 = vunpack.c.l.b16 %v724
        %v1397 = vunpack.c.l.b16 %v725
        %v1398 = vunpack.c.l.b16 %v726
        %v1399 = vunpack.c.l.b16 %v727
        %v1400 = vunpack.c.l.b16 %v728
        %v1401 = vunpack.c.l.b16 %v729
        %v1402 = vunpack.c.l.b16 %v730
        %v1403 = vunpack.c.l.b16 %v731
        %v1404 = vunpack.c.l.b16 %v732
        %v1405 = vunpack.c.l.b16 %v733
        %v1406 = vunpack.c.l.b16 %v734
        %v1407 = vunpack.c.l.b16 %v735
        %v1408 = vunpack.c.l.b16 %v736
        %v1409 = vunpack.c.l.b16 %v737
        %v1410 = vunpack.c.l.b16 %v738
        %v1411 = vunpack.c.l.b16 %v739
        %v1412 = vunpack.c.l.b16 %v740
        %v1413 = vunpack.c.l.b16 %v741
        %v1414 = vunpack.c.l.b16 %v742
        %v1415 = vunpack.c.l.b16 %v743
        %v1416 = vunpack.c.l.b16 %v744
        %v1417 = vunpack.c.l.b16 %v745
        %v1418 = vunpack.c.l.b16 %v746
        %v1419 = vunpack.c.l.b16 %v747
        %v1420 = vunpack.c.l.b16 %v748
        %v1421 = vunpack.c.l.b16 %v749
        %v1422 = vunpack.c.l.b16 %v750
        %v1423 = vunpack.c.l.b16 %v751
        %v1424 = vunpack.c.l.b16 %v752
        %v1425 = vunpack.c.l.b16 %v753
        %v1426 = vunpack.c.l.b16 %v754
        %v1427 = vunpack.c.l.b16 %v755
        %v1428 = vunpack.c.l.b16 %v756
        %v1429 = vunpack.c.l.b16 %v757
        %v1430 = vpack.c.b16 %v1383, %v1382
        %v1431 = vpack.c.b16 %v1385, %v1384
        %v1432 = vpack.c.b16 %v1387, %v1386
        %v1433 = vpack.c.b16 %v1389, %v1388
        %v1434 = vpack.c.b16 %v1391, %v1390
        %v1435 = vpack.c.b16 %v1393, %v1392
        %v1436 = vpack.c.b16 %v1395, %v1394
        %v1437 = vpack.c.b16 %v1397, %v1396
        %v1438 = vpack.c.b16 %v1399, %v1398
        %v1439 = vpack.c.b16 %v1401, %v1400
        %v1440 = vpack.c.b16 %v1403, %v1402
        %v1441 = vpack.c.b16 %v1405, %v1404
        %v1442 = vpack.c.b16 %v1407, %v1406
        %v1443 = vpack.c.b16 %v1409, %v1408
        %v1444 = vpack.c.b16 %v1411, %v1410
        %v1445 = vpack.c.b16 %v1413, %v1412
        %v1446 = vpack.c.b16 %v1415, %v1414
        %v1447 = vpack.c.b16 %v1417, %v1416
        %v1448 = vpack.c.b16 %v1419, %v1418
        %v1449 = vpack.c.b16 %v1421, %v1420
        %v1450 = vpack.c.b16 %v1423, %v1422
        %v1451 = vpack.c.b16 %v1425, %v1424
        %v1452 = vpack.c.b16 %v1427, %v1426
        %v1453 = vpack.c.b16 %v1429, %v1428
        %1478 = vmatprep.subr.bf16.mxu0 0
        %1479 = vmatpush1.bf16.msra.mxu0 %v1430
        %1480 = vmatprep.subr.bf16.mxu0 0
        %1481 = vmatpush1.bf16.msra.mxu0 %v1431
        %1482 = vmatprep.subr.bf16.mxu0 0
        %1483 = vmatpush1.bf16.msra.mxu0 %v1432
        %1484 = vmatprep.subr.bf16.mxu0 0
        %1485 = vmatpush1.bf16.msra.mxu0 %v1433
        %1486 = vmatprep.subr.bf16.mxu0 0
        %1487 = vmatpush1.bf16.msra.mxu0 %v1434
        %1488 = vmatprep.subr.bf16.mxu0 0
        %1489 = vmatpush1.bf16.msra.mxu0 %v1435
        %1490 = vmatprep.subr.bf16.mxu0 0
        %1491 = vmatpush1.bf16.msra.mxu0 %v1436
        %1492 = vmatprep.subr.bf16.mxu0 0
        %1493 = vmatpush1.bf16.msra.mxu0 %v1437
        %1494 = vmatprep.subr.bf16.mxu0 0
        %1495 = vmatpush1.bf16.msra.mxu0 %v1438
        %1496 = vmatprep.subr.bf16.mxu0 0
        %1497 = vmatpush1.bf16.msra.mxu0 %v1439
        %1498 = vmatprep.subr.bf16.mxu0 0
        %1499 = vmatpush1.bf16.msra.mxu0 %v1440
        %1500 = vmatprep.subr.bf16.mxu0 0
        %1501 = vmatpush1.bf16.msra.mxu0 %v1441
        %1502 = vmatprep.subr.bf16.mxu0 0
        %1503 = vmatpush1.bf16.msra.mxu0 %v1442
        %1504 = vmatprep.subr.bf16.mxu0 0
        %1505 = vmatpush1.bf16.msra.mxu0 %v1443
        %1506 = vmatprep.subr.bf16.mxu0 0
        %1507 = vmatpush1.bf16.msra.mxu0 %v1444
        %1508 = vmatprep.subr.bf16.mxu0 0
        %1509 = vmatpush1.bf16.msra.mxu0 %v1445
        %1510 = vmatprep.mubr.bf16.mxu0 %v1119
        %1511 = vmatmul.mubr.bf16.gmra.mrb[0].mxu0 %v1118
        %v1512 = vpop.f32.mrb[0].mxu0
        %v1513 = vadd.f32 0.0, %v1512
        %v1514 = vpop.f32.mrb[0].mxu0
        %v1515 = vpop.f32.mrb[0].mxu0
        %v1516 = vadd.f32 0.0, %v1515
        %v1517 = vpop.f32.mrb[0].mxu0
        %1518 = vmatprep.mubr.bf16.mxu0 %v1122
        %1519 = vmatmul.mubr.bf16.gmra.mrb[0].mxu0 %v1121
        %v1520 = vpop.f32.mrb[0].mxu0
        %v1521 = vadd.f32 0.0, %v1520
        %v1522 = vpop.f32.mrb[0].mxu0
        %v1523 = vpop.f32.mrb[0].mxu0
        %v1524 = vadd.f32 0.0, %v1523
        %v1525 = vpop.f32.mrb[0].mxu0
        %1526 = vmatprep.mubr.bf16.mxu0 %v1125
        %1527 = vmatmul.mubr.bf16.gmra.mrb[0].mxu0 %v1124
        %v1528 = vpop.f32.mrb[0].mxu0
        %v1529 = vadd.f32 0.0, %v1528
        %v1530 = vpop.f32.mrb[0].mxu0
        %v1531 = vpop.f32.mrb[0].mxu0
        %v1532 = vadd.f32 0.0, %v1531
        %v1533 = vpop.f32.mrb[0].mxu0
        %1534 = vmatprep.mubr.bf16.mxu0 %v1128
        %1535 = vmatmul.mubr.bf16.gmra.mrb[0].mxu0 %v1127
        %v1536 = vpop.f32.mrb[0].mxu0
        %v1537 = vadd.f32 0.0, %v1536
        %v1538 = vpop.f32.mrb[0].mxu0
        %v1539 = vpop.f32.mrb[0].mxu0
        %v1540 = vadd.f32 0.0, %v1539
        %v1541 = vpop.f32.mrb[0].mxu0
        %1542 = vmatprep.mubr.bf16.mxu0 %v1131
        %1543 = vmatmul.mubr.bf16.gmra.mrb[0].mxu0 %v1130
        %v1544 = vpop.f32.mrb[0].mxu0
        %v1545 = vadd.f32 0.0, %v1544
        %v1546 = vpop.f32.mrb[0].mxu0
        %v1547 = vpop.f32.mrb[0].mxu0
        %v1548 = vadd.f32 0.0, %v1547
        %v1549 = vpop.f32.mrb[0].mxu0
        %1550 = vmatprep.mubr.bf16.mxu0 %v1134
        %1551 = vmatmul.mubr.bf16.gmra.mrb[0].mxu0 %v1133
        %v1552 = vpop.f32.mrb[0].mxu0
        %v1553 = vadd.f32 0.0, %v1552
        %v1554 = vpop.f32.mrb[0].mxu0
        %v1555 = vpop.f32.mrb[0].mxu0
        %v1556 = vadd.f32 0.0, %v1555
        %v1557 = vpop.f32.mrb[0].mxu0
        %1558 = vmatprep.mubr.bf16.mxu0 %v1137
        %1559 = vmatmul.mubr.bf16.gmra.mrb[0].mxu0 %v1136
        %v1560 = vpop.f32.mrb[0].mxu0
        %v1561 = vadd.f32 0.0, %v1560
        %v1562 = vpop.f32.mrb[0].mxu0
        %v1563 = vpop.f32.mrb[0].mxu0
        %v1564 = vadd.f32 0.0, %v1563
        %v1565 = vpop.f32.mrb[0].mxu0
        %1566 = vmatprep.mubr.bf16.mxu0 %v1140
        %1567 = vmatmul.mubr.bf16.gmra.mrb[0].mxu0 %v1139
        %v1568 = vpop.f32.mrb[0].mxu0
        %v1569 = vadd.f32 0.0, %v1568
        %v1570 = vpop.f32.mrb[0].mxu0
        %v1571 = vpop.f32.mrb[0].mxu0
        %v1572 = vadd.f32 0.0, %v1571
        %v1573 = vpop.f32.mrb[0].mxu0
        %1574 = vmatprep.mubr.bf16.mxu0 %v1143
        %1575 = vmatmul.mubr.bf16.gmra.mrb[0].mxu0 %v1142
        %v1576 = vpop.f32.mrb[0].mxu0
        %v1577 = vadd.f32 0.0, %v1576
        %v1578 = vpop.f32.mrb[0].mxu0
        %v1579 = vpop.f32.mrb[0].mxu0
        %v1580 = vadd.f32 0.0, %v1579
        %v1581 = vpop.f32.mrb[0].mxu0
        %1582 = vmatprep.mubr.bf16.mxu0 %v1146
        %1583 = vmatmul.mubr.bf16.gmra.mrb[0].mxu0 %v1145
        %v1584 = vpop.f32.mrb[0].mxu0
        %v1585 = vadd.f32 0.0, %v1584
        %v1586 = vpop.f32.mrb[0].mxu0
        %v1587 = vpop.f32.mrb[0].mxu0
        %v1588 = vadd.f32 0.0, %v1587
        %v1589 = vpop.f32.mrb[0].mxu0
        %1590 = vmatprep.mubr.bf16.mxu0 %v1149
        %1591 = vmatmul.mubr.bf16.gmra.mrb[0].mxu0 %v1148
        %v1592 = vpop.f32.mrb[0].mxu0
        %v1593 = vadd.f32 0.0, %v1592
        %v1594 = vpop.f32.mrb[0].mxu0
        %v1595 = vpop.f32.mrb[0].mxu0
        %v1596 = vadd.f32 0.0, %v1595
        %v1597 = vpop.f32.mrb[0].mxu0
        %1598 = vmatprep.mubr.bf16.mxu0 %v1152
        %1599 = vmatmul.mubr.bf16.gmra.mrb[0].mxu0 %v1151
        %v1600 = vpop.f32.mrb[0].mxu0
        %v1601 = vadd.f32 0.0, %v1600
        %v1602 = vpop.f32.mrb[0].mxu0
        %v1603 = vpop.f32.mrb[0].mxu0
        %v1604 = vadd.f32 0.0, %v1603
        %v1605 = vpop.f32.mrb[0].mxu0
        %1606 = vmatprep.mubr.bf16.mxu0 %v1155
        %1607 = vmatmul.mubr.bf16.gmra.mrb[0].mxu0 %v1154
        %v1608 = vpop.f32.mrb[0].mxu0
        %v1609 = vadd.f32 0.0, %v1608
        %v1610 = vpop.f32.mrb[0].mxu0
        %v1611 = vpop.f32.mrb[0].mxu0
        %v1612 = vadd.f32 0.0, %v1611
        %v1613 = vpop.f32.mrb[0].mxu0
        %1614 = vmatprep.mubr.bf16.mxu0 %v1158
        %1615 = vmatmul.mubr.bf16.gmra.mrb[0].mxu0 %v1157
        %v1616 = vpop.f32.mrb[0].mxu0
        %v1617 = vadd.f32 0.0, %v1616
        %v1618 = vpop.f32.mrb[0].mxu0
        %v1619 = vpop.f32.mrb[0].mxu0
        %v1620 = vadd.f32 0.0, %v1619
        %v1621 = vpop.f32.mrb[0].mxu0
        %1622 = vmatprep.mubr.bf16.mxu0 %v1161
        %1623 = vmatmul.mubr.bf16.gmra.mrb[0].mxu0 %v1160
        %v1624 = vpop.f32.mrb[0].mxu0
        %v1625 = vadd.f32 0.0, %v1624
        %v1626 = vpop.f32.mrb[0].mxu0
        %v1627 = vpop.f32.mrb[0].mxu0
        %v1628 = vadd.f32 0.0, %v1627
        %v1629 = vpop.f32.mrb[0].mxu0
        %1630 = vmatprep.mubr.bf16.mxu0 %v1164
        %1631 = vmatmul.mubr.bf16.gmra.mrb[0].mxu0 %v1163
        %v1632 = vpop.f32.mrb[0].mxu0
        %v1633 = vadd.f32 0.0, %v1632
        %v1634 = vpop.f32.mrb[0].mxu0
        %v1635 = vpop.f32.mrb[0].mxu0
        %v1636 = vadd.f32 0.0, %v1635
        %v1637 = vpop.f32.mrb[0].mxu0
        %1638 = vmatprep.mubr.bf16.mxu0 %v1167
        %1639 = vmatmul.mubr.bf16.gmra.mrb[0].mxu0 %v1166
        %v1640 = vpop.f32.mrb[0].mxu0
        %v1641 = vadd.f32 0.0, %v1640
        %v1642 = vpop.f32.mrb[0].mxu0
        %v1643 = vpop.f32.mrb[0].mxu0
        %v1644 = vadd.f32 0.0, %v1643
        %v1645 = vpop.f32.mrb[0].mxu0
        %1646 = vmatprep.mubr.bf16.mxu0 %v1170
        %1647 = vmatmul.mubr.bf16.gmra.mrb[0].mxu0 %v1169
        %v1648 = vpop.f32.mrb[0].mxu0
        %v1649 = vadd.f32 0.0, %v1648
        %v1650 = vpop.f32.mrb[0].mxu0
        %v1651 = vpop.f32.mrb[0].mxu0
        %v1652 = vadd.f32 0.0, %v1651
        %v1653 = vpop.f32.mrb[0].mxu0
        %1654 = vmatprep.mubr.bf16.mxu0 %v1173
        %1655 = vmatmul.mubr.bf16.gmra.mrb[0].mxu0 %v1172
        %v1656 = vpop.f32.mrb[0].mxu0
        %v1657 = vadd.f32 0.0, %v1656
        %v1658 = vpop.f32.mrb[0].mxu0
        %v1659 = vpop.f32.mrb[0].mxu0
        %v1660 = vadd.f32 0.0, %v1659
        %v1661 = vpop.f32.mrb[0].mxu0
        %1662 = vmatprep.mubr.bf16.mxu0 %v1176
        %1663 = vmatmul.mubr.bf16.gmra.mrb[0].mxu0 %v1175
        %v1664 = vpop.f32.mrb[0].mxu0
        %v1665 = vadd.f32 0.0, %v1664
        %v1666 = vpop.f32.mrb[0].mxu0
        %v1667 = vpop.f32.mrb[0].mxu0
        %v1668 = vadd.f32 0.0, %v1667
        %v1669 = vpop.f32.mrb[0].mxu0
        %1670 = vmatprep.mubr.bf16.mxu0 %v1179
        %1671 = vmatmul.mubr.bf16.gmra.mrb[0].mxu0 %v1178
        %v1672 = vpop.f32.mrb[0].mxu0
        %v1673 = vadd.f32 0.0, %v1672
        %v1674 = vpop.f32.mrb[0].mxu0
        %v1675 = vpop.f32.mrb[0].mxu0
        %v1676 = vadd.f32 0.0, %v1675
        %v1677 = vpop.f32.mrb[0].mxu0
        %1678 = vmatprep.mubr.bf16.mxu0 %v1182
        %1679 = vmatmul.mubr.bf16.gmra.mrb[0].mxu0 %v1181
        %v1680 = vpop.f32.mrb[0].mxu0
        %v1681 = vadd.f32 0.0, %v1680
        %v1682 = vpop.f32.mrb[0].mxu0
        %v1683 = vpop.f32.mrb[0].mxu0
        %v1684 = vadd.f32 0.0, %v1683
        %v1685 = vpop.f32.mrb[0].mxu0
        %1686 = vmatprep.mubr.bf16.mxu0 %v1185
        %1687 = vmatmul.mubr.bf16.gmra.mrb[0].mxu0 %v1184
        %v1688 = vpop.f32.mrb[0].mxu0
        %v1689 = vadd.f32 0.0, %v1688
        %v1690 = vpop.f32.mrb[0].mxu0
        %v1691 = vpop.f32.mrb[0].mxu0
        %v1692 = vadd.f32 0.0, %v1691
        %v1693 = vpop.f32.mrb[0].mxu0
        %1694 = vmatprep.mubr.bf16.mxu0 %v1188
        %1695 = vmatmul.mubr.bf16.gmra.mrb[0].mxu0 %v1187
        %v1696 = vpop.f32.mrb[0].mxu0
        %v1697 = vadd.f32 0.0, %v1696
        %v1698 = vpop.f32.mrb[0].mxu0
        %v1699 = vpop.f32.mrb[0].mxu0
        %v1700 = vadd.f32 0.0, %v1699
        %v1701 = vpop.f32.mrb[0].mxu0
        %1702 = vmatprep.mubr.bf16.mxu0 %v1191
        %1703 = vmatmul.mubr.bf16.gmra.mrb[0].mxu0 %v1190
        %v1704 = vpop.f32.mrb[0].mxu0
        %v1705 = vadd.f32 0.0, %v1704
        %v1706 = vpop.f32.mrb[0].mxu0
        %v1707 = vpop.f32.mrb[0].mxu0
        %v1708 = vadd.f32 0.0, %v1707
        %v1709 = vpop.f32.mrb[0].mxu0
        %1710 = vmatprep.mubr.bf16.mxu0 %v1194
        %1711 = vmatmul.mubr.bf16.gmra.mrb[0].mxu0 %v1193
        %v1712 = vpop.f32.mrb[0].mxu0
        %v1713 = vadd.f32 0.0, %v1712
        %v1714 = vpop.f32.mrb[0].mxu0
        %v1715 = vpop.f32.mrb[0].mxu0
        %v1716 = vadd.f32 0.0, %v1715
        %v1717 = vpop.f32.mrb[0].mxu0
        %1718 = vmatprep.mubr.bf16.mxu0 %v1197
        %1719 = vmatmul.mubr.bf16.gmra.mrb[0].mxu0 %v1196
        %v1720 = vpop.f32.mrb[0].mxu0
        %v1721 = vadd.f32 0.0, %v1720
        %v1722 = vpop.f32.mrb[0].mxu0
        %v1723 = vpop.f32.mrb[0].mxu0
        %v1724 = vadd.f32 0.0, %v1723
        %v1725 = vpop.f32.mrb[0].mxu0
        %1726 = vmatprep.mubr.bf16.mxu0 %v1200
        %1727 = vmatmul.mubr.bf16.gmra.mrb[0].mxu0 %v1199
        %v1728 = vpop.f32.mrb[0].mxu0
        %v1729 = vadd.f32 0.0, %v1728
        %v1730 = vpop.f32.mrb[0].mxu0
        %v1731 = vpop.f32.mrb[0].mxu0
        %v1732 = vadd.f32 0.0, %v1731
        %v1733 = vpop.f32.mrb[0].mxu0
        %1734 = vmatprep.mubr.bf16.mxu0 %v1203
        %1735 = vmatmul.mubr.bf16.gmra.mrb[0].mxu0 %v1202
        %v1736 = vpop.f32.mrb[0].mxu0
        %v1737 = vadd.f32 0.0, %v1736
        %v1738 = vpop.f32.mrb[0].mxu0
        %v1739 = vpop.f32.mrb[0].mxu0
        %v1740 = vadd.f32 0.0, %v1739
        %v1741 = vpop.f32.mrb[0].mxu0
        %1742 = vmatprep.mubr.bf16.mxu0 %v1206
        %1743 = vmatmul.mubr.bf16.gmra.mrb[0].mxu0 %v1205
        %v1744 = vpop.f32.mrb[0].mxu0
        %v1745 = vadd.f32 0.0, %v1744
        %v1746 = vpop.f32.mrb[0].mxu0
        %v1747 = vpop.f32.mrb[0].mxu0
        %v1748 = vadd.f32 0.0, %v1747
        %v1749 = vpop.f32.mrb[0].mxu0
        %1750 = vmatprep.mubr.bf16.mxu0 %v1209
        %1751 = vmatmul.mubr.bf16.gmra.mrb[0].mxu0 %v1208
        %v1752 = vpop.f32.mrb[0].mxu0
        %v1753 = vadd.f32 0.0, %v1752
        %v1754 = vpop.f32.mrb[0].mxu0
        %v1755 = vpop.f32.mrb[0].mxu0
        %v1756 = vadd.f32 0.0, %v1755
        %v1757 = vpop.f32.mrb[0].mxu0
        %1758 = vmatprep.mubr.bf16.mxu0 %v1212
        %1759 = vmatmul.mubr.bf16.gmra.mrb[0].mxu0 %v1211
        %v1760 = vpop.f32.mrb[0].mxu0
        %v1761 = vadd.f32 0.0, %v1760
        %v1762 = vpop.f32.mrb[0].mxu0
        %v1763 = vpop.f32.mrb[0].mxu0
        %v1764 = vadd.f32 0.0, %v1763
        %v1765 = vpop.f32.mrb[0].mxu0
        %1766 = vmatprep.mubr.bf16.mxu0 %v1215
        %1767 = vmatmul.mubr.bf16.gmra.mrb[0].mxu0 %v1214
        %v1768 = vpop.f32.mrb[0].mxu0
        %v1769 = vadd.f32 0.0, %v1768
        %v1770 = vpop.f32.mrb[0].mxu0
        %v1771 = vpop.f32.mrb[0].mxu0
        %v1772 = vadd.f32 0.0, %v1771
        %v1773 = vpop.f32.mrb[0].mxu0
        %1774 = vmatprep.mubr.bf16.mxu0 %v1218
        %1775 = vmatmul.mubr.bf16.gmra.mrb[0].mxu0 %v1217
        %v1776 = vpop.f32.mrb[0].mxu0
        %v1777 = vadd.f32 0.0, %v1776
        %v1778 = vpop.f32.mrb[0].mxu0
        %v1779 = vpop.f32.mrb[0].mxu0
        %v1780 = vadd.f32 0.0, %v1779
        %v1781 = vpop.f32.mrb[0].mxu0
        %1782 = vmatprep.mubr.bf16.mxu0 %v1221
        %1783 = vmatmul.mubr.bf16.gmra.mrb[0].mxu0 %v1220
        %v1784 = vpop.f32.mrb[0].mxu0
        %v1785 = vadd.f32 0.0, %v1784
        %v1786 = vpop.f32.mrb[0].mxu0
        %v1787 = vpop.f32.mrb[0].mxu0
        %v1788 = vadd.f32 0.0, %v1787
        %v1789 = vpop.f32.mrb[0].mxu0
        %1790 = vmatprep.mubr.bf16.mxu0 %v1224
        %1791 = vmatmul.mubr.bf16.gmra.mrb[0].mxu0 %v1223
        %v1792 = vpop.f32.mrb[0].mxu0
        %v1793 = vadd.f32 0.0, %v1792
        %v1794 = vpop.f32.mrb[0].mxu0
        %v1795 = vpop.f32.mrb[0].mxu0
        %v1796 = vadd.f32 0.0, %v1795
        %v1797 = vpop.f32.mrb[0].mxu0
        %1798 = vdwg.mxu0
        %1799 = vmatprep.subr.bf16.mxu0 0
        %1800 = vmatpush1.bf16.msra.mxu0 %v1446
        %1801 = vmatprep.subr.bf16.mxu0 0
        %1802 = vmatpush1.bf16.msra.mxu0 %v1447
        %1803 = vmatprep.subr.bf16.mxu0 0
        %1804 = vmatpush1.bf16.msra.mxu0 %v1448
        %1805 = vmatprep.subr.bf16.mxu0 0
        %1806 = vmatpush1.bf16.msra.mxu0 %v1449
        %1807 = vmatprep.subr.bf16.mxu0 0
        %1808 = vmatpush1.bf16.msra.mxu0 %v1450
        %1809 = vmatprep.subr.bf16.mxu0 0
        %1810 = vmatpush1.bf16.msra.mxu0 %v1451
        %1811 = vmatprep.subr.bf16.mxu0 0
        %1812 = vmatpush1.bf16.msra.mxu0 %v1452
        %1813 = vmatprep.subr.bf16.mxu0 0
        %1814 = vmatpush1.bf16.msra.mxu0 %v1453
        %1815 = vmatprep.subr.bf16.mxu0 0
        %1816 = vmatpush1.bf16.msra.mxu0 0
        %1817 = vmatprep.subr.bf16.mxu0 0
        %1818 = vmatpush1.bf16.msra.mxu0 0
        %1819 = vmatprep.subr.bf16.mxu0 0
        %1820 = vmatpush1.bf16.msra.mxu0 0
        %1821 = vmatprep.subr.bf16.mxu0 0
        %1822 = vmatpush1.bf16.msra.mxu0 0
        %1823 = vmatprep.subr.bf16.mxu0 0
        %1824 = vmatpush1.bf16.msra.mxu0 0
        %1825 = vmatprep.subr.bf16.mxu0 0
        %1826 = vmatpush1.bf16.msra.mxu0 0
        %1827 = vmatprep.subr.bf16.mxu0 0
        %1828 = vmatpush1.bf16.msra.mxu0 0
        %1829 = vmatprep.subr.bf16.mxu0 0
        %1830 = vmatpush1.bf16.msra.mxu0 0
        %1831 = vmatprep.mubr.bf16.mxu0 0
        %1832 = vmatmul.mubr.bf16.gmra.mrb[0].mxu0 %v1120
        %v1833 = vpop.f32.mrb[0].mxu0
        %v1834 = vadd.f32 %v1513, %v1833
        %v1835 = vpop.f32.mrb[0].mxu0
        %v1836 = vpop.f32.mrb[0].mxu0
        %v1837 = vadd.f32 %v1516, %v1836
        %v1838 = vpop.f32.mrb[0].mxu0
        %1839 = vmatprep.mubr.bf16.mxu0 0
        %1840 = vmatmul.mubr.bf16.gmra.mrb[0].mxu0 %v1123
        %v1841 = vpop.f32.mrb[0].mxu0
        %v1842 = vadd.f32 %v1521, %v1841
        %v1843 = vpop.f32.mrb[0].mxu0
        %v1844 = vpop.f32.mrb[0].mxu0
        %v1845 = vadd.f32 %v1524, %v1844
        %v1846 = vpop.f32.mrb[0].mxu0
        %1847 = vmatprep.mubr.bf16.mxu0 0
        %1848 = vmatmul.mubr.bf16.gmra.mrb[0].mxu0 %v1126
        %v1849 = vpop.f32.mrb[0].mxu0
        %v1850 = vadd.f32 %v1529, %v1849
        %v1851 = vpop.f32.mrb[0].mxu0
        %v1852 = vpop.f32.mrb[0].mxu0
        %v1853 = vadd.f32 %v1532, %v1852
        %v1854 = vpop.f32.mrb[0].mxu0
        %1855 = vmatprep.mubr.bf16.mxu0 0
        %1856 = vmatmul.mubr.bf16.gmra.mrb[0].mxu0 %v1129
        %v1857 = vpop.f32.mrb[0].mxu0
        %v1858 = vadd.f32 %v1537, %v1857
        %v1859 = vpop.f32.mrb[0].mxu0
        %v1860 = vpop.f32.mrb[0].mxu0
        %v1861 = vadd.f32 %v1540, %v1860
        %v1862 = vpop.f32.mrb[0].mxu0
        %1863 = vmatprep.mubr.bf16.mxu0 0
        %1864 = vmatmul.mubr.bf16.gmra.mrb[0].mxu0 %v1132
        %v1865 = vpop.f32.mrb[0].mxu0
        %v1866 = vadd.f32 %v1545, %v1865
        %v1867 = vpop.f32.mrb[0].mxu0
        %v1868 = vpop.f32.mrb[0].mxu0
        %v1869 = vadd.f32 %v1548, %v1868
        %v1870 = vpop.f32.mrb[0].mxu0
        %1871 = vmatprep.mubr.bf16.mxu0 0
        %1872 = vmatmul.mubr.bf16.gmra.mrb[0].mxu0 %v1135
        %v1873 = vpop.f32.mrb[0].mxu0
        %v1874 = vadd.f32 %v1553, %v1873
        %v1875 = vpop.f32.mrb[0].mxu0
        %v1876 = vpop.f32.mrb[0].mxu0
        %v1877 = vadd.f32 %v1556, %v1876
        %v1878 = vpop.f32.mrb[0].mxu0
        %1879 = vmatprep.mubr.bf16.mxu0 0
        %1880 = vmatmul.mubr.bf16.gmra.mrb[0].mxu0 %v1138
        %v1881 = vpop.f32.mrb[0].mxu0
        %v1882 = vadd.f32 %v1561, %v1881
        %v1883 = vpop.f32.mrb[0].mxu0
        %v1884 = vpop.f32.mrb[0].mxu0
        %v1885 = vadd.f32 %v1564, %v1884
        %v1886 = vpop.f32.mrb[0].mxu0
        %1887 = vmatprep.mubr.bf16.mxu0 0
        %1888 = vmatmul.mubr.bf16.gmra.mrb[0].mxu0 %v1141
        %v1889 = vpop.f32.mrb[0].mxu0
        %v1890 = vadd.f32 %v1569, %v1889
        %v1891 = vpop.f32.mrb[0].mxu0
        %v1892 = vpop.f32.mrb[0].mxu0
        %v1893 = vadd.f32 %v1572, %v1892
        %v1894 = vpop.f32.mrb[0].mxu0
        %1895 = vmatprep.mubr.bf16.mxu0 0
        %1896 = vmatmul.mubr.bf16.gmra.mrb[0].mxu0 %v1144
        %v1897 = vpop.f32.mrb[0].mxu0
        %v1898 = vadd.f32 %v1577, %v1897
        %v1899 = vpop.f32.mrb[0].mxu0
        %v1900 = vpop.f32.mrb[0].mxu0
        %v1901 = vadd.f32 %v1580, %v1900
        %v1902 = vpop.f32.mrb[0].mxu0
        %1903 = vmatprep.mubr.bf16.mxu0 0
        %1904 = vmatmul.mubr.bf16.gmra.mrb[0].mxu0 %v1147
        %v1905 = vpop.f32.mrb[0].mxu0
        %v1906 = vadd.f32 %v1585, %v1905
        %v1907 = vpop.f32.mrb[0].mxu0
        %v1908 = vpop.f32.mrb[0].mxu0
        %v1909 = vadd.f32 %v1588, %v1908
        %v1910 = vpop.f32.mrb[0].mxu0
        %1911 = vmatprep.mubr.bf16.mxu0 0
        %1912 = vmatmul.mubr.bf16.gmra.mrb[0].mxu0 %v1150
        %v1913 = vpop.f32.mrb[0].mxu0
        %v1914 = vadd.f32 %v1593, %v1913
        %v1915 = vpop.f32.mrb[0].mxu0
        %v1916 = vpop.f32.mrb[0].mxu0
        %v1917 = vadd.f32 %v1596, %v1916
        %v1918 = vpop.f32.mrb[0].mxu0
        %1919 = vmatprep.mubr.bf16.mxu0 0
        %1920 = vmatmul.mubr.bf16.gmra.mrb[0].mxu0 %v1153
        %v1921 = vpop.f32.mrb[0].mxu0
        %v1922 = vadd.f32 %v1601, %v1921
        %v1923 = vpop.f32.mrb[0].mxu0
        %v1924 = vpop.f32.mrb[0].mxu0
        %v1925 = vadd.f32 %v1604, %v1924
        %v1926 = vpop.f32.mrb[0].mxu0
        %1927 = vmatprep.mubr.bf16.mxu0 0
        %1928 = vmatmul.mubr.bf16.gmra.mrb[0].mxu0 %v1156
        %v1929 = vpop.f32.mrb[0].mxu0
        %v1930 = vadd.f32 %v1609, %v1929
        %v1931 = vpop.f32.mrb[0].mxu0
        %v1932 = vpop.f32.mrb[0].mxu0
        %v1933 = vadd.f32 %v1612, %v1932
        %v1934 = vpop.f32.mrb[0].mxu0
        %1935 = vmatprep.mubr.bf16.mxu0 0
        %1936 = vmatmul.mubr.bf16.gmra.mrb[0].mxu0 %v1159
        %v1937 = vpop.f32.mrb[0].mxu0
        %v1938 = vadd.f32 %v1617, %v1937
        %v1939 = vpop.f32.mrb[0].mxu0
        %v1940 = vpop.f32.mrb[0].mxu0
        %v1941 = vadd.f32 %v1620, %v1940
        %v1942 = vpop.f32.mrb[0].mxu0
        %1943 = vmatprep.mubr.bf16.mxu0 0
        %1944 = vmatmul.mubr.bf16.gmra.mrb[0].mxu0 %v1162
        %v1945 = vpop.f32.mrb[0].mxu0
        %v1946 = vadd.f32 %v1625, %v1945
        %v1947 = vpop.f32.mrb[0].mxu0
        %v1948 = vpop.f32.mrb[0].mxu0
        %v1949 = vadd.f32 %v1628, %v1948
        %v1950 = vpop.f32.mrb[0].mxu0
        %1951 = vmatprep.mubr.bf16.mxu0 0
        %1952 = vmatmul.mubr.bf16.gmra.mrb[0].mxu0 %v1165
        %v1953 = vpop.f32.mrb[0].mxu0
        %v1954 = vadd.f32 %v1633, %v1953
        %v1955 = vpop.f32.mrb[0].mxu0
        %v1956 = vpop.f32.mrb[0].mxu0
        %v1957 = vadd.f32 %v1636, %v1956
        %v1958 = vpop.f32.mrb[0].mxu0
        %1959 = vmatprep.mubr.bf16.mxu0 0
        %1960 = vmatmul.mubr.bf16.gmra.mrb[0].mxu0 %v1168
        %v1961 = vpop.f32.mrb[0].mxu0
        %v1962 = vadd.f32 %v1641, %v1961
        %v1963 = vpop.f32.mrb[0].mxu0
        %v1964 = vpop.f32.mrb[0].mxu0
        %v1965 = vadd.f32 %v1644, %v1964
        %v1966 = vpop.f32.mrb[0].mxu0
        %1967 = vmatprep.mubr.bf16.mxu0 0
        %1968 = vmatmul.mubr.bf16.gmra.mrb[0].mxu0 %v1171
        %v1969 = vpop.f32.mrb[0].mxu0
        %v1970 = vadd.f32 %v1649, %v1969
        %v1971 = vpop.f32.mrb[0].mxu0
        %v1972 = vpop.f32.mrb[0].mxu0
        %v1973 = vadd.f32 %v1652, %v1972
        %v1974 = vpop.f32.mrb[0].mxu0
        %1975 = vmatprep.mubr.bf16.mxu0 0
        %1976 = vmatmul.mubr.bf16.gmra.mrb[0].mxu0 %v1174
        %v1977 = vpop.f32.mrb[0].mxu0
        %v1978 = vadd.f32 %v1657, %v1977
        %v1979 = vpop.f32.mrb[0].mxu0
        %v1980 = vpop.f32.mrb[0].mxu0
        %v1981 = vadd.f32 %v1660, %v1980
        %v1982 = vpop.f32.mrb[0].mxu0
        %1983 = vmatprep.mubr.bf16.mxu0 0
        %1984 = vmatmul.mubr.bf16.gmra.mrb[0].mxu0 %v1177
        %v1985 = vpop.f32.mrb[0].mxu0
        %v1986 = vadd.f32 %v1665, %v1985
        %v1987 = vpop.f32.mrb[0].mxu0
        %v1988 = vpop.f32.mrb[0].mxu0
        %v1989 = vadd.f32 %v1668, %v1988
        %v1990 = vpop.f32.mrb[0].mxu0
        %1991 = vmatprep.mubr.bf16.mxu0 0
        %1992 = vmatmul.mubr.bf16.gmra.mrb[0].mxu0 %v1180
        %v1993 = vpop.f32.mrb[0].mxu0
        %v1994 = vadd.f32 %v1673, %v1993
        %v1995 = vpop.f32.mrb[0].mxu0
        %v1996 = vpop.f32.mrb[0].mxu0
        %v1997 = vadd.f32 %v1676, %v1996
        %v1998 = vpop.f32.mrb[0].mxu0
        %1999 = vmatprep.mubr.bf16.mxu0 0
        %2000 = vmatmul.mubr.bf16.gmra.mrb[0].mxu0 %v1183
        %v2001 = vpop.f32.mrb[0].mxu0
        %v2002 = vadd.f32 %v1681, %v2001
        %v2003 = vpop.f32.mrb[0].mxu0
        %v2004 = vpop.f32.mrb[0].mxu0
        %v2005 = vadd.f32 %v1684, %v2004
        %v2006 = vpop.f32.mrb[0].mxu0
        %2007 = vmatprep.mubr.bf16.mxu0 0
        %2008 = vmatmul.mubr.bf16.gmra.mrb[0].mxu0 %v1186
        %v2009 = vpop.f32.mrb[0].mxu0
        %v2010 = vadd.f32 %v1689, %v2009
        %v2011 = vpop.f32.mrb[0].mxu0
        %v2012 = vpop.f32.mrb[0].mxu0
        %v2013 = vadd.f32 %v1692, %v2012
        %v2014 = vpop.f32.mrb[0].mxu0
        %2015 = vmatprep.mubr.bf16.mxu0 0
        %2016 = vmatmul.mubr.bf16.gmra.mrb[0].mxu0 %v1189
        %v2017 = vpop.f32.mrb[0].mxu0
        %v2018 = vadd.f32 %v1697, %v2017
        %v2019 = vpop.f32.mrb[0].mxu0
        %v2020 = vpop.f32.mrb[0].mxu0
        %v2021 = vadd.f32 %v1700, %v2020
        %v2022 = vpop.f32.mrb[0].mxu0
        %2023 = vmatprep.mubr.bf16.mxu0 0
        %2024 = vmatmul.mubr.bf16.gmra.mrb[0].mxu0 %v1192
        %v2025 = vpop.f32.mrb[0].mxu0
        %v2026 = vadd.f32 %v1705, %v2025
        %v2027 = vpop.f32.mrb[0].mxu0
        %v2028 = vpop.f32.mrb[0].mxu0
        %v2029 = vadd.f32 %v1708, %v2028
        %v2030 = vpop.f32.mrb[0].mxu0
        %2031 = vmatprep.mubr.bf16.mxu0 0
        %2032 = vmatmul.mubr.bf16.gmra.mrb[0].mxu0 %v1195
        %v2033 = vpop.f32.mrb[0].mxu0
        %v2034 = vadd.f32 %v1713, %v2033
        %v2035 = vpop.f32.mrb[0].mxu0
        %v2036 = vpop.f32.mrb[0].mxu0
        %v2037 = vadd.f32 %v1716, %v2036
        %v2038 = vpop.f32.mrb[0].mxu0
        %2039 = vmatprep.mubr.bf16.mxu0 0
        %2040 = vmatmul.mubr.bf16.gmra.mrb[0].mxu0 %v1198
        %v2041 = vpop.f32.mrb[0].mxu0
        %v2042 = vadd.f32 %v1721, %v2041
        %v2043 = vpop.f32.mrb[0].mxu0
        %v2044 = vpop.f32.mrb[0].mxu0
        %v2045 = vadd.f32 %v1724, %v2044
        %v2046 = vpop.f32.mrb[0].mxu0
        %2047 = vmatprep.mubr.bf16.mxu0 0
        %2048 = vmatmul.mubr.bf16.gmra.mrb[0].mxu0 %v1201
        %v2049 = vpop.f32.mrb[0].mxu0
        %v2050 = vadd.f32 %v1729, %v2049
        %v2051 = vpop.f32.mrb[0].mxu0
        %v2052 = vpop.f32.mrb[0].mxu0
        %v2053 = vadd.f32 %v1732, %v2052
        %v2054 = vpop.f32.mrb[0].mxu0
        %2055 = vmatprep.mubr.bf16.mxu0 0
        %2056 = vmatmul.mubr.bf16.gmra.mrb[0].mxu0 %v1204
        %v2057 = vpop.f32.mrb[0].mxu0
        %v2058 = vadd.f32 %v1737, %v2057
        %v2059 = vpop.f32.mrb[0].mxu0
        %v2060 = vpop.f32.mrb[0].mxu0
        %v2061 = vadd.f32 %v1740, %v2060
        %v2062 = vpop.f32.mrb[0].mxu0
        %2063 = vmatprep.mubr.bf16.mxu0 0
        %2064 = vmatmul.mubr.bf16.gmra.mrb[0].mxu0 %v1207
        %v2065 = vpop.f32.mrb[0].mxu0
        %v2066 = vadd.f32 %v1745, %v2065
        %v2067 = vpop.f32.mrb[0].mxu0
        %v2068 = vpop.f32.mrb[0].mxu0
        %v2069 = vadd.f32 %v1748, %v2068
        %v2070 = vpop.f32.mrb[0].mxu0
        %2071 = vmatprep.mubr.bf16.mxu0 0
        %2072 = vmatmul.mubr.bf16.gmra.mrb[0].mxu0 %v1210
        %v2073 = vpop.f32.mrb[0].mxu0
        %v2074 = vadd.f32 %v1753, %v2073
        %v2075 = vpop.f32.mrb[0].mxu0
        %v2076 = vpop.f32.mrb[0].mxu0
        %v2077 = vadd.f32 %v1756, %v2076
        %v2078 = vpop.f32.mrb[0].mxu0
        %2079 = vmatprep.mubr.bf16.mxu0 0
        %2080 = vmatmul.mubr.bf16.gmra.mrb[0].mxu0 %v1213
        %v2081 = vpop.f32.mrb[0].mxu0
        %v2082 = vadd.f32 %v1761, %v2081
        %v2083 = vpop.f32.mrb[0].mxu0
        %v2084 = vpop.f32.mrb[0].mxu0
        %v2085 = vadd.f32 %v1764, %v2084
        %v2086 = vpop.f32.mrb[0].mxu0
        %2087 = vmatprep.mubr.bf16.mxu0 0
        %2088 = vmatmul.mubr.bf16.gmra.mrb[0].mxu0 %v1216
        %v2089 = vpop.f32.mrb[0].mxu0
        %v2090 = vadd.f32 %v1769, %v2089
        %v2091 = vpop.f32.mrb[0].mxu0
        %v2092 = vpop.f32.mrb[0].mxu0
        %v2093 = vadd.f32 %v1772, %v2092
        %v2094 = vpop.f32.mrb[0].mxu0
        %2095 = vmatprep.mubr.bf16.mxu0 0
        %2096 = vmatmul.mubr.bf16.gmra.mrb[0].mxu0 %v1219
        %v2097 = vpop.f32.mrb[0].mxu0
        %v2098 = vadd.f32 %v1777, %v2097
        %v2099 = vpop.f32.mrb[0].mxu0
        %v2100 = vpop.f32.mrb[0].mxu0
        %v2101 = vadd.f32 %v1780, %v2100
        %v2102 = vpop.f32.mrb[0].mxu0
        %2103 = vmatprep.mubr.bf16.mxu0 0
        %2104 = vmatmul.mubr.bf16.gmra.mrb[0].mxu0 %v1222
        %v2105 = vpop.f32.mrb[0].mxu0
        %v2106 = vadd.f32 %v1785, %v2105
        %v2107 = vpop.f32.mrb[0].mxu0
        %v2108 = vpop.f32.mrb[0].mxu0
        %v2109 = vadd.f32 %v1788, %v2108
        %v2110 = vpop.f32.mrb[0].mxu0
        %2111 = vmatprep.mubr.bf16.mxu0 0
        %2112 = vmatmul.mubr.bf16.gmra.mrb[0].mxu0 %v1225
        %v2113 = vpop.f32.mrb[0].mxu0
        %v2114 = vadd.f32 %v1793, %v2113
        %v2115 = vpop.f32.mrb[0].mxu0
        %v2116 = vpop.f32.mrb[0].mxu0
        %v2117 = vadd.f32 %v1796, %v2116
        %v2118 = vpop.f32.mrb[0].mxu0
        %2119 = vdwg.mxu0
        %v2264 = vunpack.c.l.b16 %v372
        %v2265 = vunpack.c.h.b16 %v372
        %v2266 = vunpack.c.l.b16 %v373
        %v2267 = vunpack.c.l.b16 %v374
        %v2268 = vunpack.c.h.b16 %v374
        %v2269 = vunpack.c.l.b16 %v375
        %v2270 = vunpack.c.l.b16 %v376
        %v2271 = vunpack.c.h.b16 %v376
        %v2272 = vunpack.c.l.b16 %v377
        %v2273 = vunpack.c.l.b16 %v378
        %v2274 = vunpack.c.h.b16 %v378
        %v2275 = vunpack.c.l.b16 %v379
        %v2276 = vunpack.c.l.b16 %v380
        %v2277 = vunpack.c.h.b16 %v380
        %v2278 = vunpack.c.l.b16 %v381
        %v2279 = vunpack.c.l.b16 %v382
        %v2280 = vunpack.c.h.b16 %v382
        %v2281 = vunpack.c.l.b16 %v383
        %v2282 = vunpack.c.l.b16 %v384
        %v2283 = vunpack.c.h.b16 %v384
        %v2284 = vunpack.c.l.b16 %v385
        %v2285 = vunpack.c.l.b16 %v386
        %v2286 = vunpack.c.h.b16 %v386
        %v2287 = vunpack.c.l.b16 %v387
        %v2288 = vunpack.c.l.b16 %v388
        %v2289 = vunpack.c.h.b16 %v388
        %v2290 = vunpack.c.l.b16 %v389
        %v2291 = vunpack.c.l.b16 %v390
        %v2292 = vunpack.c.h.b16 %v390
        %v2293 = vunpack.c.l.b16 %v391
        %v2294 = vunpack.c.l.b16 %v392
        %v2295 = vunpack.c.h.b16 %v392
        %v2296 = vunpack.c.l.b16 %v393
        %v2297 = vunpack.c.l.b16 %v394
        %v2298 = vunpack.c.h.b16 %v394
        %v2299 = vunpack.c.l.b16 %v395
        %v2300 = vunpack.c.l.b16 %v396
        %v2301 = vunpack.c.h.b16 %v396
        %v2302 = vunpack.c.l.b16 %v397
        %v2303 = vunpack.c.l.b16 %v398
        %v2304 = vunpack.c.h.b16 %v398
        %v2305 = vunpack.c.l.b16 %v399
        %v2306 = vunpack.c.l.b16 %v400
        %v2307 = vunpack.c.h.b16 %v400
        %v2308 = vunpack.c.l.b16 %v401
        %v2309 = vunpack.c.l.b16 %v402
        %v2310 = vunpack.c.h.b16 %v402
        %v2311 = vunpack.c.l.b16 %v403
        %v2312 = vunpack.c.l.b16 %v404
        %v2313 = vunpack.c.h.b16 %v404
        %v2314 = vunpack.c.l.b16 %v405
        %v2315 = vunpack.c.l.b16 %v406
        %v2316 = vunpack.c.h.b16 %v406
        %v2317 = vunpack.c.l.b16 %v407
        %v2318 = vunpack.c.l.b16 %v408
        %v2319 = vunpack.c.h.b16 %v408
        %v2320 = vunpack.c.l.b16 %v409
        %v2321 = vunpack.c.l.b16 %v410
        %v2322 = vunpack.c.h.b16 %v410
        %v2323 = vunpack.c.l.b16 %v411
        %v2324 = vunpack.c.l.b16 %v412
        %v2325 = vunpack.c.h.b16 %v412
        %v2326 = vunpack.c.l.b16 %v413
        %v2327 = vunpack.c.l.b16 %v414
        %v2328 = vunpack.c.h.b16 %v414
        %v2329 = vunpack.c.l.b16 %v415
        %v2330 = vunpack.c.l.b16 %v416
        %v2331 = vunpack.c.h.b16 %v416
        %v2332 = vunpack.c.l.b16 %v417
        %v2333 = vunpack.c.l.b16 %v418
        %v2334 = vunpack.c.h.b16 %v418
        %v2335 = vunpack.c.l.b16 %v419
        %v2336 = vunpack.c.l.b16 %v420
        %v2337 = vunpack.c.h.b16 %v420
        %v2338 = vunpack.c.l.b16 %v421
        %v2339 = vunpack.c.l.b16 %v422
        %v2340 = vunpack.c.h.b16 %v422
        %v2341 = vunpack.c.l.b16 %v423
        %v2342 = vunpack.c.l.b16 %v424
        %v2343 = vunpack.c.h.b16 %v424
        %v2344 = vunpack.c.l.b16 %v425
        %v2345 = vunpack.c.l.b16 %v426
        %v2346 = vunpack.c.h.b16 %v426
        %v2347 = vunpack.c.l.b16 %v427
        %v2348 = vunpack.c.l.b16 %v428
        %v2349 = vunpack.c.h.b16 %v428
        %v2350 = vunpack.c.l.b16 %v429
        %v2351 = vunpack.c.l.b16 %v430
        %v2352 = vunpack.c.h.b16 %v430
        %v2353 = vunpack.c.l.b16 %v431
        %v2354 = vunpack.c.l.b16 %v432
        %v2355 = vunpack.c.h.b16 %v432
        %v2356 = vunpack.c.l.b16 %v433
        %v2357 = vunpack.c.l.b16 %v434
        %v2358 = vunpack.c.h.b16 %v434
        %v2359 = vunpack.c.l.b16 %v435
        %v2360 = vunpack.c.l.b16 %v436
        %v2361 = vunpack.c.h.b16 %v436
        %v2362 = vunpack.c.l.b16 %v437
        %v2363 = vunpack.c.l.b16 %v438
        %v2364 = vunpack.c.h.b16 %v438
        %v2365 = vunpack.c.l.b16 %v439
        %v2366 = vunpack.c.l.b16 %v440
        %v2367 = vunpack.c.h.b16 %v440
        %v2368 = vunpack.c.l.b16 %v441
        %v2369 = vunpack.c.l.b16 %v442
        %v2370 = vunpack.c.h.b16 %v442
        %v2371 = vunpack.c.l.b16 %v443
        %v2372 = vunpack.c.l.b16 %v444
        %v2373 = vunpack.c.h.b16 %v444
        %v2374 = vunpack.c.l.b16 %v445
        %v2375 = vunpack.c.l.b16 %v446
        %v2376 = vunpack.c.h.b16 %v446
        %v2377 = vunpack.c.l.b16 %v447
        %v2378 = vunpack.c.l.b16 %v448
        %v2379 = vunpack.c.h.b16 %v448
        %v2380 = vunpack.c.l.b16 %v449
        %v2381 = vunpack.c.l.b16 %v450
        %v2382 = vunpack.c.h.b16 %v450
        %v2383 = vunpack.c.l.b16 %v451
        %v2384 = vunpack.c.l.b16 %v452
        %v2385 = vunpack.c.h.b16 %v452
        %v2386 = vunpack.c.l.b16 %v453
        %v2387 = vunpack.c.l.b16 %v454
        %v2388 = vunpack.c.h.b16 %v454
        %v2389 = vunpack.c.l.b16 %v455
        %v2390 = vunpack.c.l.b16 %v456
        %v2391 = vunpack.c.h.b16 %v456
        %v2392 = vunpack.c.l.b16 %v457
        %v2393 = vunpack.c.l.b16 %v458
        %v2394 = vunpack.c.h.b16 %v458
        %v2395 = vunpack.c.l.b16 %v459
        %v2396 = vunpack.c.l.b16 %v460
        %v2397 = vunpack.c.h.b16 %v460
        %v2398 = vunpack.c.l.b16 %v461
        %v2399 = vunpack.c.l.b16 %v462
        %v2400 = vunpack.c.h.b16 %v462
        %v2401 = vunpack.c.l.b16 %v463
        %v2402 = vunpack.c.l.b16 %v464
        %v2403 = vunpack.c.h.b16 %v464
        %v2404 = vunpack.c.l.b16 %v465
        %v2405 = vunpack.c.l.b16 %v466
        %v2406 = vunpack.c.h.b16 %v466
        %v2407 = vunpack.c.l.b16 %v467
        %v2408 = vunpack.c.l.b16 %v468
        %v2409 = vunpack.c.h.b16 %v468
        %v2410 = vunpack.c.l.b16 %v469
        %v2411 = vunpack.c.l.b16 %v470
        %v2412 = vunpack.c.h.b16 %v470
        %v2413 = vunpack.c.l.b16 %v471
        %v2414 = vunpack.c.l.b16 %v472
        %v2415 = vunpack.c.h.b16 %v472
        %v2416 = vunpack.c.l.b16 %v473
        %v2417 = vunpack.c.l.b16 %v474
        %v2418 = vunpack.c.h.b16 %v474
        %v2419 = vunpack.c.l.b16 %v475
        %v2420 = vunpack.c.l.b16 %v476
        %v2421 = vunpack.c.h.b16 %v476
        %v2422 = vunpack.c.l.b16 %v477
        %v2423 = vunpack.c.l.b16 %v478
        %v2424 = vunpack.c.h.b16 %v478
        %v2425 = vunpack.c.l.b16 %v479
        %v2426 = vunpack.c.l.b16 %v480
        %v2427 = vunpack.c.h.b16 %v480
        %v2428 = vunpack.c.l.b16 %v481
        %v2429 = vunpack.c.l.b16 %v482
        %v2430 = vunpack.c.h.b16 %v482
        %v2431 = vunpack.c.l.b16 %v483
        %v2432 = vunpack.c.l.b16 %v484
        %v2433 = vunpack.c.h.b16 %v484
        %v2434 = vunpack.c.l.b16 %v485
        %v2435 = vunpack.c.l.b16 %v486
        %v2436 = vunpack.c.h.b16 %v486
        %v2437 = vunpack.c.l.b16 %v487
        %v2438 = vunpack.c.l.b16 %v488
        %v2439 = vunpack.c.h.b16 %v488
        %v2440 = vunpack.c.l.b16 %v489
        %v2441 = vunpack.c.l.b16 %v490
        %v2442 = vunpack.c.h.b16 %v490
        %v2443 = vunpack.c.l.b16 %v491
        %v2444 = vunpack.c.l.b16 %v492
        %v2445 = vunpack.c.h.b16 %v492
        %v2446 = vunpack.c.l.b16 %v493
        %v2447 = vunpack.c.l.b16 %v494
        %v2448 = vunpack.c.h.b16 %v494
        %v2449 = vunpack.c.l.b16 %v495
        %v2450 = vunpack.c.l.b16 %v496
        %v2451 = vunpack.c.h.b16 %v496
        %v2452 = vunpack.c.l.b16 %v497
        %v2453 = vunpack.c.l.b16 %v498
        %v2454 = vunpack.c.h.b16 %v498
        %v2455 = vunpack.c.l.b16 %v499
        %v2456 = vunpack.c.l.b16 %v500
        %v2457 = vunpack.c.h.b16 %v500
        %v2458 = vunpack.c.l.b16 %v501
        %v2459 = vunpack.c.l.b16 %v502
        %v2460 = vunpack.c.h.b16 %v502
        %v2461 = vunpack.c.l.b16 %v503
        %v2462 = vunpack.c.l.b16 %v504
        %v2463 = vunpack.c.h.b16 %v504
        %v2464 = vunpack.c.l.b16 %v505
        %v2465 = vunpack.c.l.b16 %v506
        %v2466 = vunpack.c.h.b16 %v506
        %v2467 = vunpack.c.l.b16 %v507
        %v2468 = vunpack.c.l.b16 %v508
        %v2469 = vunpack.c.h.b16 %v508
        %v2470 = vunpack.c.l.b16 %v509
        %v2471 = vunpack.c.l.b16 %v510
        %v2472 = vunpack.c.h.b16 %v510
        %v2473 = vunpack.c.l.b16 %v511
        %v2474 = vunpack.c.l.b16 %v512
        %v2475 = vunpack.c.h.b16 %v512
        %v2476 = vunpack.c.l.b16 %v513
        %v2477 = vunpack.c.l.b16 %v514
        %v2478 = vunpack.c.h.b16 %v514
        %v2479 = vunpack.c.l.b16 %v515
        %v2480 = vpack.c.b16 %v2267, %v2264
        %v2481 = vpack.c.b16 %v2268, %v2265
        %v2482 = vpack.c.b16 %v2269, %v2266
        %v2483 = vpack.c.b16 %v2273, %v2270
        %v2484 = vpack.c.b16 %v2274, %v2271
        %v2485 = vpack.c.b16 %v2275, %v2272
        %v2486 = vpack.c.b16 %v2279, %v2276
        %v2487 = vpack.c.b16 %v2280, %v2277
        %v2488 = vpack.c.b16 %v2281, %v2278
        %v2489 = vpack.c.b16 %v2285, %v2282
        %v2490 = vpack.c.b16 %v2286, %v2283
        %v2491 = vpack.c.b16 %v2287, %v2284
        %v2492 = vpack.c.b16 %v2291, %v2288
        %v2493 = vpack.c.b16 %v2292, %v2289
        %v2494 = vpack.c.b16 %v2293, %v2290
        %v2495 = vpack.c.b16 %v2297, %v2294
        %v2496 = vpack.c.b16 %v2298, %v2295
        %v2497 = vpack.c.b16 %v2299, %v2296
        %v2498 = vpack.c.b16 %v2303, %v2300
        %v2499 = vpack.c.b16 %v2304, %v2301
        %v2500 = vpack.c.b16 %v2305, %v2302
        %v2501 = vpack.c.b16 %v2309, %v2306
        %v2502 = vpack.c.b16 %v2310, %v2307
        %v2503 = vpack.c.b16 %v2311, %v2308
        %v2504 = vpack.c.b16 %v2315, %v2312
        %v2505 = vpack.c.b16 %v2316, %v2313
        %v2506 = vpack.c.b16 %v2317, %v2314
        %v2507 = vpack.c.b16 %v2321, %v2318
        %v2508 = vpack.c.b16 %v2322, %v2319
        %v2509 = vpack.c.b16 %v2323, %v2320
        %v2510 = vpack.c.b16 %v2327, %v2324
        %v2511 = vpack.c.b16 %v2328, %v2325
        %v2512 = vpack.c.b16 %v2329, %v2326
        %v2513 = vpack.c.b16 %v2333, %v2330
        %v2514 = vpack.c.b16 %v2334, %v2331
        %v2515 = vpack.c.b16 %v2335, %v2332
        %v2516 = vpack.c.b16 %v2339, %v2336
        %v2517 = vpack.c.b16 %v2340, %v2337
        %v2518 = vpack.c.b16 %v2341, %v2338
        %v2519 = vpack.c.b16 %v2345, %v2342
        %v2520 = vpack.c.b16 %v2346, %v2343
        %v2521 = vpack.c.b16 %v2347, %v2344
        %v2522 = vpack.c.b16 %v2351, %v2348
        %v2523 = vpack.c.b16 %v2352, %v2349
        %v2524 = vpack.c.b16 %v2353, %v2350
        %v2525 = vpack.c.b16 %v2357, %v2354
        %v2526 = vpack.c.b16 %v2358, %v2355
        %v2527 = vpack.c.b16 %v2359, %v2356
        %v2528 = vpack.c.b16 %v2363, %v2360
        %v2529 = vpack.c.b16 %v2364, %v2361
        %v2530 = vpack.c.b16 %v2365, %v2362
        %v2531 = vpack.c.b16 %v2369, %v2366
        %v2532 = vpack.c.b16 %v2370, %v2367
        %v2533 = vpack.c.b16 %v2371, %v2368
        %v2534 = vpack.c.b16 %v2375, %v2372
        %v2535 = vpack.c.b16 %v2376, %v2373
        %v2536 = vpack.c.b16 %v2377, %v2374
        %v2537 = vpack.c.b16 %v2381, %v2378
        %v2538 = vpack.c.b16 %v2382, %v2379
        %v2539 = vpack.c.b16 %v2383, %v2380
        %v2540 = vpack.c.b16 %v2387, %v2384
        %v2541 = vpack.c.b16 %v2388, %v2385
        %v2542 = vpack.c.b16 %v2389, %v2386
        %v2543 = vpack.c.b16 %v2393, %v2390
        %v2544 = vpack.c.b16 %v2394, %v2391
        %v2545 = vpack.c.b16 %v2395, %v2392
        %v2546 = vpack.c.b16 %v2399, %v2396
        %v2547 = vpack.c.b16 %v2400, %v2397
        %v2548 = vpack.c.b16 %v2401, %v2398
        %v2549 = vpack.c.b16 %v2405, %v2402
        %v2550 = vpack.c.b16 %v2406, %v2403
        %v2551 = vpack.c.b16 %v2407, %v2404
        %v2552 = vpack.c.b16 %v2411, %v2408
        %v2553 = vpack.c.b16 %v2412, %v2409
        %v2554 = vpack.c.b16 %v2413, %v2410
        %v2555 = vpack.c.b16 %v2417, %v2414
        %v2556 = vpack.c.b16 %v2418, %v2415
        %v2557 = vpack.c.b16 %v2419, %v2416
        %v2558 = vpack.c.b16 %v2423, %v2420
        %v2559 = vpack.c.b16 %v2424, %v2421
        %v2560 = vpack.c.b16 %v2425, %v2422
        %v2561 = vpack.c.b16 %v2429, %v2426
        %v2562 = vpack.c.b16 %v2430, %v2427
        %v2563 = vpack.c.b16 %v2431, %v2428
        %v2564 = vpack.c.b16 %v2435, %v2432
        %v2565 = vpack.c.b16 %v2436, %v2433
        %v2566 = vpack.c.b16 %v2437, %v2434
        %v2567 = vpack.c.b16 %v2441, %v2438
        %v2568 = vpack.c.b16 %v2442, %v2439
        %v2569 = vpack.c.b16 %v2443, %v2440
        %v2570 = vpack.c.b16 %v2447, %v2444
        %v2571 = vpack.c.b16 %v2448, %v2445
        %v2572 = vpack.c.b16 %v2449, %v2446
        %v2573 = vpack.c.b16 %v2453, %v2450
        %v2574 = vpack.c.b16 %v2454, %v2451
        %v2575 = vpack.c.b16 %v2455, %v2452
        %v2576 = vpack.c.b16 %v2459, %v2456
        %v2577 = vpack.c.b16 %v2460, %v2457
        %v2578 = vpack.c.b16 %v2461, %v2458
        %v2579 = vpack.c.b16 %v2465, %v2462
        %v2580 = vpack.c.b16 %v2466, %v2463
        %v2581 = vpack.c.b16 %v2467, %v2464
        %v2582 = vpack.c.b16 %v2471, %v2468
        %v2583 = vpack.c.b16 %v2472, %v2469
        %v2584 = vpack.c.b16 %v2473, %v2470
        %v2585 = vpack.c.b16 %v2477, %v2474
        %v2586 = vpack.c.b16 %v2478, %v2475
        %v2587 = vpack.c.b16 %v2479, %v2476
        %v2744 = vunpack.c.l.b16 %v516
        %v2745 = vunpack.c.l.b16 %v517
        %v2746 = vunpack.c.l.b16 %v518
        %v2747 = vunpack.c.l.b16 %v519
        %v2748 = vunpack.c.l.b16 %v520
        %v2749 = vunpack.c.l.b16 %v521
        %v2750 = vunpack.c.l.b16 %v522
        %v2751 = vunpack.c.l.b16 %v523
        %v2752 = vunpack.c.l.b16 %v524
        %v2753 = vunpack.c.l.b16 %v525
        %v2754 = vunpack.c.l.b16 %v526
        %v2755 = vunpack.c.l.b16 %v527
        %v2756 = vunpack.c.l.b16 %v528
        %v2757 = vunpack.c.l.b16 %v529
        %v2758 = vunpack.c.l.b16 %v530
        %v2759 = vunpack.c.l.b16 %v531
        %v2760 = vunpack.c.l.b16 %v532
        %v2761 = vunpack.c.l.b16 %v533
        %v2762 = vunpack.c.l.b16 %v534
        %v2763 = vunpack.c.l.b16 %v535
        %v2764 = vunpack.c.l.b16 %v536
        %v2765 = vunpack.c.l.b16 %v537
        %v2766 = vunpack.c.l.b16 %v538
        %v2767 = vunpack.c.l.b16 %v539
        %v2768 = vunpack.c.l.b16 %v540
        %v2769 = vunpack.c.l.b16 %v541
        %v2770 = vunpack.c.l.b16 %v542
        %v2771 = vunpack.c.l.b16 %v543
        %v2772 = vunpack.c.l.b16 %v544
        %v2773 = vunpack.c.l.b16 %v545
        %v2774 = vunpack.c.l.b16 %v546
        %v2775 = vunpack.c.l.b16 %v547
        %v2776 = vunpack.c.l.b16 %v548
        %v2777 = vunpack.c.l.b16 %v549
        %v2778 = vunpack.c.l.b16 %v550
        %v2779 = vunpack.c.l.b16 %v551
        %v2780 = vunpack.c.l.b16 %v552
        %v2781 = vunpack.c.l.b16 %v553
        %v2782 = vunpack.c.l.b16 %v554
        %v2783 = vunpack.c.l.b16 %v555
        %v2784 = vunpack.c.l.b16 %v556
        %v2785 = vunpack.c.l.b16 %v557
        %v2786 = vunpack.c.l.b16 %v558
        %v2787 = vunpack.c.l.b16 %v559
        %v2788 = vunpack.c.l.b16 %v560
        %v2789 = vunpack.c.l.b16 %v561
        %v2790 = vunpack.c.l.b16 %v562
        %v2791 = vunpack.c.l.b16 %v563
        %v2792 = vpack.c.b16 %v2745, %v2744
        %v2793 = vpack.c.b16 %v2747, %v2746
        %v2794 = vpack.c.b16 %v2749, %v2748
        %v2795 = vpack.c.b16 %v2751, %v2750
        %v2796 = vpack.c.b16 %v2753, %v2752
        %v2797 = vpack.c.b16 %v2755, %v2754
        %v2798 = vpack.c.b16 %v2757, %v2756
        %v2799 = vpack.c.b16 %v2759, %v2758
        %v2800 = vpack.c.b16 %v2761, %v2760
        %v2801 = vpack.c.b16 %v2763, %v2762
        %v2802 = vpack.c.b16 %v2765, %v2764
        %v2803 = vpack.c.b16 %v2767, %v2766
        %v2804 = vpack.c.b16 %v2769, %v2768
        %v2805 = vpack.c.b16 %v2771, %v2770
        %v2806 = vpack.c.b16 %v2773, %v2772
        %v2807 = vpack.c.b16 %v2775, %v2774
        %v2808 = vpack.c.b16 %v2777, %v2776
        %v2809 = vpack.c.b16 %v2779, %v2778
        %v2810 = vpack.c.b16 %v2781, %v2780
        %v2811 = vpack.c.b16 %v2783, %v2782
        %v2812 = vpack.c.b16 %v2785, %v2784
        %v2813 = vpack.c.b16 %v2787, %v2786
        %v2814 = vpack.c.b16 %v2789, %v2788
        %v2815 = vpack.c.b16 %v2791, %v2790
        %2840 = vmatprep.subr.bf16.mxu0 0
        %2841 = vmatpush1.bf16.msra.mxu0 %v2792
        %2842 = vmatprep.subr.bf16.mxu0 0
        %2843 = vmatpush1.bf16.msra.mxu0 %v2793
        %2844 = vmatprep.subr.bf16.mxu0 0
        %2845 = vmatpush1.bf16.msra.mxu0 %v2794
        %2846 = vmatprep.subr.bf16.mxu0 0
        %2847 = vmatpush1.bf16.msra.mxu0 %v2795
        %2848 = vmatprep.subr.bf16.mxu0 0
        %2849 = vmatpush1.bf16.msra.mxu0 %v2796
        %2850 = vmatprep.subr.bf16.mxu0 0
        %2851 = vmatpush1.bf16.msra.mxu0 %v2797
        %2852 = vmatprep.subr.bf16.mxu0 0
        %2853 = vmatpush1.bf16.msra.mxu0 %v2798
        %2854 = vmatprep.subr.bf16.mxu0 0
        %2855 = vmatpush1.bf16.msra.mxu0 %v2799
        %2856 = vmatprep.subr.bf16.mxu0 0
        %2857 = vmatpush1.bf16.msra.mxu0 %v2800
        %2858 = vmatprep.subr.bf16.mxu0 0
        %2859 = vmatpush1.bf16.msra.mxu0 %v2801
        %2860 = vmatprep.subr.bf16.mxu0 0
        %2861 = vmatpush1.bf16.msra.mxu0 %v2802
        %2862 = vmatprep.subr.bf16.mxu0 0
        %2863 = vmatpush1.bf16.msra.mxu0 %v2803
        %2864 = vmatprep.subr.bf16.mxu0 0
        %2865 = vmatpush1.bf16.msra.mxu0 %v2804
        %2866 = vmatprep.subr.bf16.mxu0 0
        %2867 = vmatpush1.bf16.msra.mxu0 %v2805
        %2868 = vmatprep.subr.bf16.mxu0 0
        %2869 = vmatpush1.bf16.msra.mxu0 %v2806
        %2870 = vmatprep.subr.bf16.mxu0 0
        %2871 = vmatpush1.bf16.msra.mxu0 %v2807
        %2872 = vmatprep.mubr.bf16.mxu0 %v2481
        %2873 = vmatmul.mubr.bf16.gmra.mrb[0].mxu0 %v2480
        %v2874 = vpop.f32.mrb[0].mxu0
        %v2875 = vadd.f32 %v1834, %v2874
        %v2876 = vpop.f32.mrb[0].mxu0
        %v2877 = vpop.f32.mrb[0].mxu0
        %v2878 = vadd.f32 %v1837, %v2877
        %v2879 = vpop.f32.mrb[0].mxu0
        %2880 = vmatprep.mubr.bf16.mxu0 %v2484
        %2881 = vmatmul.mubr.bf16.gmra.mrb[0].mxu0 %v2483
        %v2882 = vpop.f32.mrb[0].mxu0
        %v2883 = vadd.f32 %v1842, %v2882
        %v2884 = vpop.f32.mrb[0].mxu0
        %v2885 = vpop.f32.mrb[0].mxu0
        %v2886 = vadd.f32 %v1845, %v2885
        %v2887 = vpop.f32.mrb[0].mxu0
        %2888 = vmatprep.mubr.bf16.mxu0 %v2487
        %2889 = vmatmul.mubr.bf16.gmra.mrb[0].mxu0 %v2486
        %v2890 = vpop.f32.mrb[0].mxu0
        %v2891 = vadd.f32 %v1850, %v2890
        %v2892 = vpop.f32.mrb[0].mxu0
        %v2893 = vpop.f32.mrb[0].mxu0
        %v2894 = vadd.f32 %v1853, %v2893
        %v2895 = vpop.f32.mrb[0].mxu0
        %2896 = vmatprep.mubr.bf16.mxu0 %v2490
        %2897 = vmatmul.mubr.bf16.gmra.mrb[0].mxu0 %v2489
        %v2898 = vpop.f32.mrb[0].mxu0
        %v2899 = vadd.f32 %v1858, %v2898
        %v2900 = vpop.f32.mrb[0].mxu0
        %v2901 = vpop.f32.mrb[0].mxu0
        %v2902 = vadd.f32 %v1861, %v2901
        %v2903 = vpop.f32.mrb[0].mxu0
        %2904 = vmatprep.mubr.bf16.mxu0 %v2493
        %2905 = vmatmul.mubr.bf16.gmra.mrb[0].mxu0 %v2492
        %v2906 = vpop.f32.mrb[0].mxu0
        %v2907 = vadd.f32 %v1866, %v2906
        %v2908 = vpop.f32.mrb[0].mxu0
        %v2909 = vpop.f32.mrb[0].mxu0
        %v2910 = vadd.f32 %v1869, %v2909
        %v2911 = vpop.f32.mrb[0].mxu0
        %2912 = vmatprep.mubr.bf16.mxu0 %v2496
        %2913 = vmatmul.mubr.bf16.gmra.mrb[0].mxu0 %v2495
        %v2914 = vpop.f32.mrb[0].mxu0
        %v2915 = vadd.f32 %v1874, %v2914
        %v2916 = vpop.f32.mrb[0].mxu0
        %v2917 = vpop.f32.mrb[0].mxu0
        %v2918 = vadd.f32 %v1877, %v2917
        %v2919 = vpop.f32.mrb[0].mxu0
        %2920 = vmatprep.mubr.bf16.mxu0 %v2499
        %2921 = vmatmul.mubr.bf16.gmra.mrb[0].mxu0 %v2498
        %v2922 = vpop.f32.mrb[0].mxu0
        %v2923 = vadd.f32 %v1882, %v2922
        %v2924 = vpop.f32.mrb[0].mxu0
        %v2925 = vpop.f32.mrb[0].mxu0
        %v2926 = vadd.f32 %v1885, %v2925
        %v2927 = vpop.f32.mrb[0].mxu0
        %2928 = vmatprep.mubr.bf16.mxu0 %v2502
        %2929 = vmatmul.mubr.bf16.gmra.mrb[0].mxu0 %v2501
        %v2930 = vpop.f32.mrb[0].mxu0
        %v2931 = vadd.f32 %v1890, %v2930
        %v2932 = vpop.f32.mrb[0].mxu0
        %v2933 = vpop.f32.mrb[0].mxu0
        %v2934 = vadd.f32 %v1893, %v2933
        %v2935 = vpop.f32.mrb[0].mxu0
        %2936 = vmatprep.mubr.bf16.mxu0 %v2505
        %2937 = vmatmul.mubr.bf16.gmra.mrb[0].mxu0 %v2504
        %v2938 = vpop.f32.mrb[0].mxu0
        %v2939 = vadd.f32 %v1898, %v2938
        %v2940 = vpop.f32.mrb[0].mxu0
        %v2941 = vpop.f32.mrb[0].mxu0
        %v2942 = vadd.f32 %v1901, %v2941
        %v2943 = vpop.f32.mrb[0].mxu0
        %2944 = vmatprep.mubr.bf16.mxu0 %v2508
        %2945 = vmatmul.mubr.bf16.gmra.mrb[0].mxu0 %v2507
        %v2946 = vpop.f32.mrb[0].mxu0
        %v2947 = vadd.f32 %v1906, %v2946
        %v2948 = vpop.f32.mrb[0].mxu0
        %v2949 = vpop.f32.mrb[0].mxu0
        %v2950 = vadd.f32 %v1909, %v2949
        %v2951 = vpop.f32.mrb[0].mxu0
        %2952 = vmatprep.mubr.bf16.mxu0 %v2511
        %2953 = vmatmul.mubr.bf16.gmra.mrb[0].mxu0 %v2510
        %v2954 = vpop.f32.mrb[0].mxu0
        %v2955 = vadd.f32 %v1914, %v2954
        %v2956 = vpop.f32.mrb[0].mxu0
        %v2957 = vpop.f32.mrb[0].mxu0
        %v2958 = vadd.f32 %v1917, %v2957
        %v2959 = vpop.f32.mrb[0].mxu0
        %2960 = vmatprep.mubr.bf16.mxu0 %v2514
        %2961 = vmatmul.mubr.bf16.gmra.mrb[0].mxu0 %v2513
        %v2962 = vpop.f32.mrb[0].mxu0
        %v2963 = vadd.f32 %v1922, %v2962
        %v2964 = vpop.f32.mrb[0].mxu0
        %v2965 = vpop.f32.mrb[0].mxu0
        %v2966 = vadd.f32 %v1925, %v2965
        %v2967 = vpop.f32.mrb[0].mxu0
        %2968 = vmatprep.mubr.bf16.mxu0 %v2517
        %2969 = vmatmul.mubr.bf16.gmra.mrb[0].mxu0 %v2516
        %v2970 = vpop.f32.mrb[0].mxu0
        %v2971 = vadd.f32 %v1930, %v2970
        %v2972 = vpop.f32.mrb[0].mxu0
        %v2973 = vpop.f32.mrb[0].mxu0
        %v2974 = vadd.f32 %v1933, %v2973
        %v2975 = vpop.f32.mrb[0].mxu0
        %2976 = vmatprep.mubr.bf16.mxu0 %v2520
        %2977 = vmatmul.mubr.bf16.gmra.mrb[0].mxu0 %v2519
        %v2978 = vpop.f32.mrb[0].mxu0
        %v2979 = vadd.f32 %v1938, %v2978
        %v2980 = vpop.f32.mrb[0].mxu0
        %v2981 = vpop.f32.mrb[0].mxu0
        %v2982 = vadd.f32 %v1941, %v2981
        %v2983 = vpop.f32.mrb[0].mxu0
        %2984 = vmatprep.mubr.bf16.mxu0 %v2523
        %2985 = vmatmul.mubr.bf16.gmra.mrb[0].mxu0 %v2522
        %v2986 = vpop.f32.mrb[0].mxu0
        %v2987 = vadd.f32 %v1946, %v2986
        %v2988 = vpop.f32.mrb[0].mxu0
        %v2989 = vpop.f32.mrb[0].mxu0
        %v2990 = vadd.f32 %v1949, %v2989
        %v2991 = vpop.f32.mrb[0].mxu0
        %2992 = vmatprep.mubr.bf16.mxu0 %v2526
        %2993 = vmatmul.mubr.bf16.gmra.mrb[0].mxu0 %v2525
        %v2994 = vpop.f32.mrb[0].mxu0
        %v2995 = vadd.f32 %v1954, %v2994
        %v2996 = vpop.f32.mrb[0].mxu0
        %v2997 = vpop.f32.mrb[0].mxu0
        %v2998 = vadd.f32 %v1957, %v2997
        %v2999 = vpop.f32.mrb[0].mxu0
        %3000 = vmatprep.mubr.bf16.mxu0 %v2529
        %3001 = vmatmul.mubr.bf16.gmra.mrb[0].mxu0 %v2528
        %v3002 = vpop.f32.mrb[0].mxu0
        %v3003 = vadd.f32 %v1962, %v3002
        %v3004 = vpop.f32.mrb[0].mxu0
        %v3005 = vpop.f32.mrb[0].mxu0
        %v3006 = vadd.f32 %v1965, %v3005
        %v3007 = vpop.f32.mrb[0].mxu0
        %3008 = vmatprep.mubr.bf16.mxu0 %v2532
        %3009 = vmatmul.mubr.bf16.gmra.mrb[0].mxu0 %v2531
        %v3010 = vpop.f32.mrb[0].mxu0
        %v3011 = vadd.f32 %v1970, %v3010
        %v3012 = vpop.f32.mrb[0].mxu0
        %v3013 = vpop.f32.mrb[0].mxu0
        %v3014 = vadd.f32 %v1973, %v3013
        %v3015 = vpop.f32.mrb[0].mxu0
        %3016 = vmatprep.mubr.bf16.mxu0 %v2535
        %3017 = vmatmul.mubr.bf16.gmra.mrb[0].mxu0 %v2534
        %v3018 = vpop.f32.mrb[0].mxu0
        %v3019 = vadd.f32 %v1978, %v3018
        %v3020 = vpop.f32.mrb[0].mxu0
        %v3021 = vpop.f32.mrb[0].mxu0
        %v3022 = vadd.f32 %v1981, %v3021
        %v3023 = vpop.f32.mrb[0].mxu0
        %3024 = vmatprep.mubr.bf16.mxu0 %v2538
        %3025 = vmatmul.mubr.bf16.gmra.mrb[0].mxu0 %v2537
        %v3026 = vpop.f32.mrb[0].mxu0
        %v3027 = vadd.f32 %v1986, %v3026
        %v3028 = vpop.f32.mrb[0].mxu0
        %v3029 = vpop.f32.mrb[0].mxu0
        %v3030 = vadd.f32 %v1989, %v3029
        %v3031 = vpop.f32.mrb[0].mxu0
        %3032 = vmatprep.mubr.bf16.mxu0 %v2541
        %3033 = vmatmul.mubr.bf16.gmra.mrb[0].mxu0 %v2540
        %v3034 = vpop.f32.mrb[0].mxu0
        %v3035 = vadd.f32 %v1994, %v3034
        %v3036 = vpop.f32.mrb[0].mxu0
        %v3037 = vpop.f32.mrb[0].mxu0
        %v3038 = vadd.f32 %v1997, %v3037
        %v3039 = vpop.f32.mrb[0].mxu0
        %3040 = vmatprep.mubr.bf16.mxu0 %v2544
        %3041 = vmatmul.mubr.bf16.gmra.mrb[0].mxu0 %v2543
        %v3042 = vpop.f32.mrb[0].mxu0
        %v3043 = vadd.f32 %v2002, %v3042
        %v3044 = vpop.f32.mrb[0].mxu0
        %v3045 = vpop.f32.mrb[0].mxu0
        %v3046 = vadd.f32 %v2005, %v3045
        %v3047 = vpop.f32.mrb[0].mxu0
        %3048 = vmatprep.mubr.bf16.mxu0 %v2547
        %3049 = vmatmul.mubr.bf16.gmra.mrb[0].mxu0 %v2546
        %v3050 = vpop.f32.mrb[0].mxu0
        %v3051 = vadd.f32 %v2010, %v3050
        %v3052 = vpop.f32.mrb[0].mxu0
        %v3053 = vpop.f32.mrb[0].mxu0
        %v3054 = vadd.f32 %v2013, %v3053
        %v3055 = vpop.f32.mrb[0].mxu0
        %3056 = vmatprep.mubr.bf16.mxu0 %v2550
        %3057 = vmatmul.mubr.bf16.gmra.mrb[0].mxu0 %v2549
        %v3058 = vpop.f32.mrb[0].mxu0
        %v3059 = vadd.f32 %v2018, %v3058
        %v3060 = vpop.f32.mrb[0].mxu0
        %v3061 = vpop.f32.mrb[0].mxu0
        %v3062 = vadd.f32 %v2021, %v3061
        %v3063 = vpop.f32.mrb[0].mxu0
        %3064 = vmatprep.mubr.bf16.mxu0 %v2553
        %3065 = vmatmul.mubr.bf16.gmra.mrb[0].mxu0 %v2552
        %v3066 = vpop.f32.mrb[0].mxu0
        %v3067 = vadd.f32 %v2026, %v3066
        %v3068 = vpop.f32.mrb[0].mxu0
        %v3069 = vpop.f32.mrb[0].mxu0
        %v3070 = vadd.f32 %v2029, %v3069
        %v3071 = vpop.f32.mrb[0].mxu0
        %3072 = vmatprep.mubr.bf16.mxu0 %v2556
        %3073 = vmatmul.mubr.bf16.gmra.mrb[0].mxu0 %v2555
        %v3074 = vpop.f32.mrb[0].mxu0
        %v3075 = vadd.f32 %v2034, %v3074
        %v3076 = vpop.f32.mrb[0].mxu0
        %v3077 = vpop.f32.mrb[0].mxu0
        %v3078 = vadd.f32 %v2037, %v3077
        %v3079 = vpop.f32.mrb[0].mxu0
        %3080 = vmatprep.mubr.bf16.mxu0 %v2559
        %3081 = vmatmul.mubr.bf16.gmra.mrb[0].mxu0 %v2558
        %v3082 = vpop.f32.mrb[0].mxu0
        %v3083 = vadd.f32 %v2042, %v3082
        %v3084 = vpop.f32.mrb[0].mxu0
        %v3085 = vpop.f32.mrb[0].mxu0
        %v3086 = vadd.f32 %v2045, %v3085
        %v3087 = vpop.f32.mrb[0].mxu0
        %3088 = vmatprep.mubr.bf16.mxu0 %v2562
        %3089 = vmatmul.mubr.bf16.gmra.mrb[0].mxu0 %v2561
        %v3090 = vpop.f32.mrb[0].mxu0
        %v3091 = vadd.f32 %v2050, %v3090
        %v3092 = vpop.f32.mrb[0].mxu0
        %v3093 = vpop.f32.mrb[0].mxu0
        %v3094 = vadd.f32 %v2053, %v3093
        %v3095 = vpop.f32.mrb[0].mxu0
        %3096 = vmatprep.mubr.bf16.mxu0 %v2565
        %3097 = vmatmul.mubr.bf16.gmra.mrb[0].mxu0 %v2564
        %v3098 = vpop.f32.mrb[0].mxu0
        %v3099 = vadd.f32 %v2058, %v3098
        %v3100 = vpop.f32.mrb[0].mxu0
        %v3101 = vpop.f32.mrb[0].mxu0
        %v3102 = vadd.f32 %v2061, %v3101
        %v3103 = vpop.f32.mrb[0].mxu0
        %3104 = vmatprep.mubr.bf16.mxu0 %v2568
        %3105 = vmatmul.mubr.bf16.gmra.mrb[0].mxu0 %v2567
        %v3106 = vpop.f32.mrb[0].mxu0
        %v3107 = vadd.f32 %v2066, %v3106
        %v3108 = vpop.f32.mrb[0].mxu0
        %v3109 = vpop.f32.mrb[0].mxu0
        %v3110 = vadd.f32 %v2069, %v3109
        %v3111 = vpop.f32.mrb[0].mxu0
        %3112 = vmatprep.mubr.bf16.mxu0 %v2571
        %3113 = vmatmul.mubr.bf16.gmra.mrb[0].mxu0 %v2570
        %v3114 = vpop.f32.mrb[0].mxu0
        %v3115 = vadd.f32 %v2074, %v3114
        %v3116 = vpop.f32.mrb[0].mxu0
        %v3117 = vpop.f32.mrb[0].mxu0
        %v3118 = vadd.f32 %v2077, %v3117
        %v3119 = vpop.f32.mrb[0].mxu0
        %3120 = vmatprep.mubr.bf16.mxu0 %v2574
        %3121 = vmatmul.mubr.bf16.gmra.mrb[0].mxu0 %v2573
        %v3122 = vpop.f32.mrb[0].mxu0
        %v3123 = vadd.f32 %v2082, %v3122
        %v3124 = vpop.f32.mrb[0].mxu0
        %v3125 = vpop.f32.mrb[0].mxu0
        %v3126 = vadd.f32 %v2085, %v3125
        %v3127 = vpop.f32.mrb[0].mxu0
        %3128 = vmatprep.mubr.bf16.mxu0 %v2577
        %3129 = vmatmul.mubr.bf16.gmra.mrb[0].mxu0 %v2576
        %v3130 = vpop.f32.mrb[0].mxu0
        %v3131 = vadd.f32 %v2090, %v3130
        %v3132 = vpop.f32.mrb[0].mxu0
        %v3133 = vpop.f32.mrb[0].mxu0
        %v3134 = vadd.f32 %v2093, %v3133
        %v3135 = vpop.f32.mrb[0].mxu0
        %3136 = vmatprep.mubr.bf16.mxu0 %v2580
        %3137 = vmatmul.mubr.bf16.gmra.mrb[0].mxu0 %v2579
        %v3138 = vpop.f32.mrb[0].mxu0
        %v3139 = vadd.f32 %v2098, %v3138
        %v3140 = vpop.f32.mrb[0].mxu0
        %v3141 = vpop.f32.mrb[0].mxu0
        %v3142 = vadd.f32 %v2101, %v3141
        %v3143 = vpop.f32.mrb[0].mxu0
        %3144 = vmatprep.mubr.bf16.mxu0 %v2583
        %3145 = vmatmul.mubr.bf16.gmra.mrb[0].mxu0 %v2582
        %v3146 = vpop.f32.mrb[0].mxu0
        %v3147 = vadd.f32 %v2106, %v3146
        %v3148 = vpop.f32.mrb[0].mxu0
        %v3149 = vpop.f32.mrb[0].mxu0
        %v3150 = vadd.f32 %v2109, %v3149
        %v3151 = vpop.f32.mrb[0].mxu0
        %3152 = vmatprep.mubr.bf16.mxu0 %v2586
        %3153 = vmatmul.mubr.bf16.gmra.mrb[0].mxu0 %v2585
        %v3154 = vpop.f32.mrb[0].mxu0
        %v3155 = vadd.f32 %v2114, %v3154
        %v3156 = vpop.f32.mrb[0].mxu0
        %v3157 = vpop.f32.mrb[0].mxu0
        %v3158 = vadd.f32 %v2117, %v3157
        %v3159 = vpop.f32.mrb[0].mxu0
        %3160 = vdwg.mxu0
        %3161 = vmatprep.subr.bf16.mxu0 0
        %3162 = vmatpush1.bf16.msra.mxu0 %v2808
        %3163 = vmatprep.subr.bf16.mxu0 0
        %3164 = vmatpush1.bf16.msra.mxu0 %v2809
        %3165 = vmatprep.subr.bf16.mxu0 0
        %3166 = vmatpush1.bf16.msra.mxu0 %v2810
        %3167 = vmatprep.subr.bf16.mxu0 0
        %3168 = vmatpush1.bf16.msra.mxu0 %v2811
        %3169 = vmatprep.subr.bf16.mxu0 0
        %3170 = vmatpush1.bf16.msra.mxu0 %v2812
        %3171 = vmatprep.subr.bf16.mxu0 0
        %3172 = vmatpush1.bf16.msra.mxu0 %v2813
        %3173 = vmatprep.subr.bf16.mxu0 0
        %3174 = vmatpush1.bf16.msra.mxu0 %v2814
        %3175 = vmatprep.subr.bf16.mxu0 0
        %3176 = vmatpush1.bf16.msra.mxu0 %v2815
        %3177 = vmatprep.subr.bf16.mxu0 0
        %3178 = vmatpush1.bf16.msra.mxu0 0
        %3179 = vmatprep.subr.bf16.mxu0 0
        %3180 = vmatpush1.bf16.msra.mxu0 0
        %3181 = vmatprep.subr.bf16.mxu0 0
        %3182 = vmatpush1.bf16.msra.mxu0 0
        %3183 = vmatprep.subr.bf16.mxu0 0
        %3184 = vmatpush1.bf16.msra.mxu0 0
        %3185 = vmatprep.subr.bf16.mxu0 0
        %3186 = vmatpush1.bf16.msra.mxu0 0
        %3187 = vmatprep.subr.bf16.mxu0 0
        %3188 = vmatpush1.bf16.msra.mxu0 0
        %3189 = vmatprep.subr.bf16.mxu0 0
        %3190 = vmatpush1.bf16.msra.mxu0 0
        %3191 = vmatprep.subr.bf16.mxu0 0
        %3192 = vmatpush1.bf16.msra.mxu0 0
        %3193 = vmatprep.mubr.bf16.mxu0 0
        %3194 = vmatmul.mubr.bf16.gmra.mrb[0].mxu0 %v2482
        %v3195 = vpop.f32.mrb[0].mxu0
        %v3196 = vadd.f32 %v2875, %v3195
        %v3197 = vpop.f32.mrb[0].mxu0
        %v3198 = vpop.f32.mrb[0].mxu0
        %v3199 = vadd.f32 %v2878, %v3198
        %v3200 = vpop.f32.mrb[0].mxu0
        %3201 = vmatprep.mubr.bf16.mxu0 0
        %3202 = vmatmul.mubr.bf16.gmra.mrb[0].mxu0 %v2485
        %v3203 = vpop.f32.mrb[0].mxu0
        %v3204 = vadd.f32 %v2883, %v3203
        %v3205 = vpop.f32.mrb[0].mxu0
        %v3206 = vpop.f32.mrb[0].mxu0
        %v3207 = vadd.f32 %v2886, %v3206
        %v3208 = vpop.f32.mrb[0].mxu0
        %3209 = vmatprep.mubr.bf16.mxu0 0
        %3210 = vmatmul.mubr.bf16.gmra.mrb[0].mxu0 %v2488
        %v3211 = vpop.f32.mrb[0].mxu0
        %v3212 = vadd.f32 %v2891, %v3211
        %v3213 = vpop.f32.mrb[0].mxu0
        %v3214 = vpop.f32.mrb[0].mxu0
        %v3215 = vadd.f32 %v2894, %v3214
        %v3216 = vpop.f32.mrb[0].mxu0
        %3217 = vmatprep.mubr.bf16.mxu0 0
        %3218 = vmatmul.mubr.bf16.gmra.mrb[0].mxu0 %v2491
        %v3219 = vpop.f32.mrb[0].mxu0
        %v3220 = vadd.f32 %v2899, %v3219
        %v3221 = vpop.f32.mrb[0].mxu0
        %v3222 = vpop.f32.mrb[0].mxu0
        %v3223 = vadd.f32 %v2902, %v3222
        %v3224 = vpop.f32.mrb[0].mxu0
        %3225 = vmatprep.mubr.bf16.mxu0 0
        %3226 = vmatmul.mubr.bf16.gmra.mrb[0].mxu0 %v2494
        %v3227 = vpop.f32.mrb[0].mxu0
        %v3228 = vadd.f32 %v2907, %v3227
        %v3229 = vpop.f32.mrb[0].mxu0
        %v3230 = vpop.f32.mrb[0].mxu0
        %v3231 = vadd.f32 %v2910, %v3230
        %v3232 = vpop.f32.mrb[0].mxu0
        %3233 = vmatprep.mubr.bf16.mxu0 0
        %3234 = vmatmul.mubr.bf16.gmra.mrb[0].mxu0 %v2497
        %v3235 = vpop.f32.mrb[0].mxu0
        %v3236 = vadd.f32 %v2915, %v3235
        %v3237 = vpop.f32.mrb[0].mxu0
        %v3238 = vpop.f32.mrb[0].mxu0
        %v3239 = vadd.f32 %v2918, %v3238
        %v3240 = vpop.f32.mrb[0].mxu0
        %3241 = vmatprep.mubr.bf16.mxu0 0
        %3242 = vmatmul.mubr.bf16.gmra.mrb[0].mxu0 %v2500
        %v3243 = vpop.f32.mrb[0].mxu0
        %v3244 = vadd.f32 %v2923, %v3243
        %v3245 = vpop.f32.mrb[0].mxu0
        %v3246 = vpop.f32.mrb[0].mxu0
        %v3247 = vadd.f32 %v2926, %v3246
        %v3248 = vpop.f32.mrb[0].mxu0
        %3249 = vmatprep.mubr.bf16.mxu0 0
        %3250 = vmatmul.mubr.bf16.gmra.mrb[0].mxu0 %v2503
        %v3251 = vpop.f32.mrb[0].mxu0
        %v3252 = vadd.f32 %v2931, %v3251
        %v3253 = vpop.f32.mrb[0].mxu0
        %v3254 = vpop.f32.mrb[0].mxu0
        %v3255 = vadd.f32 %v2934, %v3254
        %v3256 = vpop.f32.mrb[0].mxu0
        %3257 = vmatprep.mubr.bf16.mxu0 0
        %3258 = vmatmul.mubr.bf16.gmra.mrb[0].mxu0 %v2506
        %v3259 = vpop.f32.mrb[0].mxu0
        %v3260 = vadd.f32 %v2939, %v3259
        %v3261 = vpop.f32.mrb[0].mxu0
        %v3262 = vpop.f32.mrb[0].mxu0
        %v3263 = vadd.f32 %v2942, %v3262
        %v3264 = vpop.f32.mrb[0].mxu0
        %3265 = vmatprep.mubr.bf16.mxu0 0
        %3266 = vmatmul.mubr.bf16.gmra.mrb[0].mxu0 %v2509
        %v3267 = vpop.f32.mrb[0].mxu0
        %v3268 = vadd.f32 %v2947, %v3267
        %v3269 = vpop.f32.mrb[0].mxu0
        %v3270 = vpop.f32.mrb[0].mxu0
        %v3271 = vadd.f32 %v2950, %v3270
        %v3272 = vpop.f32.mrb[0].mxu0
        %3273 = vmatprep.mubr.bf16.mxu0 0
        %3274 = vmatmul.mubr.bf16.gmra.mrb[0].mxu0 %v2512
        %v3275 = vpop.f32.mrb[0].mxu0
        %v3276 = vadd.f32 %v2955, %v3275
        %v3277 = vpop.f32.mrb[0].mxu0
        %v3278 = vpop.f32.mrb[0].mxu0
        %v3279 = vadd.f32 %v2958, %v3278
        %v3280 = vpop.f32.mrb[0].mxu0
        %3281 = vmatprep.mubr.bf16.mxu0 0
        %3282 = vmatmul.mubr.bf16.gmra.mrb[0].mxu0 %v2515
        %v3283 = vpop.f32.mrb[0].mxu0
        %v3284 = vadd.f32 %v2963, %v3283
        %v3285 = vpop.f32.mrb[0].mxu0
        %v3286 = vpop.f32.mrb[0].mxu0
        %v3287 = vadd.f32 %v2966, %v3286
        %v3288 = vpop.f32.mrb[0].mxu0
        %3289 = vmatprep.mubr.bf16.mxu0 0
        %3290 = vmatmul.mubr.bf16.gmra.mrb[0].mxu0 %v2518
        %v3291 = vpop.f32.mrb[0].mxu0
        %v3292 = vadd.f32 %v2971, %v3291
        %v3293 = vpop.f32.mrb[0].mxu0
        %v3294 = vpop.f32.mrb[0].mxu0
        %v3295 = vadd.f32 %v2974, %v3294
        %v3296 = vpop.f32.mrb[0].mxu0
        %3297 = vmatprep.mubr.bf16.mxu0 0
        %3298 = vmatmul.mubr.bf16.gmra.mrb[0].mxu0 %v2521
        %v3299 = vpop.f32.mrb[0].mxu0
        %v3300 = vadd.f32 %v2979, %v3299
        %v3301 = vpop.f32.mrb[0].mxu0
        %v3302 = vpop.f32.mrb[0].mxu0
        %v3303 = vadd.f32 %v2982, %v3302
        %v3304 = vpop.f32.mrb[0].mxu0
        %3305 = vmatprep.mubr.bf16.mxu0 0
        %3306 = vmatmul.mubr.bf16.gmra.mrb[0].mxu0 %v2524
        %v3307 = vpop.f32.mrb[0].mxu0
        %v3308 = vadd.f32 %v2987, %v3307
        %v3309 = vpop.f32.mrb[0].mxu0
        %v3310 = vpop.f32.mrb[0].mxu0
        %v3311 = vadd.f32 %v2990, %v3310
        %v3312 = vpop.f32.mrb[0].mxu0
        %3313 = vmatprep.mubr.bf16.mxu0 0
        %3314 = vmatmul.mubr.bf16.gmra.mrb[0].mxu0 %v2527
        %v3315 = vpop.f32.mrb[0].mxu0
        %v3316 = vadd.f32 %v2995, %v3315
        %v3317 = vpop.f32.mrb[0].mxu0
        %v3318 = vpop.f32.mrb[0].mxu0
        %v3319 = vadd.f32 %v2998, %v3318
        %v3320 = vpop.f32.mrb[0].mxu0
        %3321 = vmatprep.mubr.bf16.mxu0 0
        %3322 = vmatmul.mubr.bf16.gmra.mrb[0].mxu0 %v2530
        %v3323 = vpop.f32.mrb[0].mxu0
        %v3324 = vadd.f32 %v3003, %v3323
        %v3325 = vpop.f32.mrb[0].mxu0
        %v3326 = vpop.f32.mrb[0].mxu0
        %v3327 = vadd.f32 %v3006, %v3326
        %v3328 = vpop.f32.mrb[0].mxu0
        %3329 = vmatprep.mubr.bf16.mxu0 0
        %3330 = vmatmul.mubr.bf16.gmra.mrb[0].mxu0 %v2533
        %v3331 = vpop.f32.mrb[0].mxu0
        %v3332 = vadd.f32 %v3011, %v3331
        %v3333 = vpop.f32.mrb[0].mxu0
        %v3334 = vpop.f32.mrb[0].mxu0
        %v3335 = vadd.f32 %v3014, %v3334
        %v3336 = vpop.f32.mrb[0].mxu0
        %3337 = vmatprep.mubr.bf16.mxu0 0
        %3338 = vmatmul.mubr.bf16.gmra.mrb[0].mxu0 %v2536
        %v3339 = vpop.f32.mrb[0].mxu0
        %v3340 = vadd.f32 %v3019, %v3339
        %v3341 = vpop.f32.mrb[0].mxu0
        %v3342 = vpop.f32.mrb[0].mxu0
        %v3343 = vadd.f32 %v3022, %v3342
        %v3344 = vpop.f32.mrb[0].mxu0
        %3345 = vmatprep.mubr.bf16.mxu0 0
        %3346 = vmatmul.mubr.bf16.gmra.mrb[0].mxu0 %v2539
        %v3347 = vpop.f32.mrb[0].mxu0
        %v3348 = vadd.f32 %v3027, %v3347
        %v3349 = vpop.f32.mrb[0].mxu0
        %v3350 = vpop.f32.mrb[0].mxu0
        %v3351 = vadd.f32 %v3030, %v3350
        %v3352 = vpop.f32.mrb[0].mxu0
        %3353 = vmatprep.mubr.bf16.mxu0 0
        %3354 = vmatmul.mubr.bf16.gmra.mrb[0].mxu0 %v2542
        %v3355 = vpop.f32.mrb[0].mxu0
        %v3356 = vadd.f32 %v3035, %v3355
        %v3357 = vpop.f32.mrb[0].mxu0
        %v3358 = vpop.f32.mrb[0].mxu0
        %v3359 = vadd.f32 %v3038, %v3358
        %v3360 = vpop.f32.mrb[0].mxu0
        %3361 = vmatprep.mubr.bf16.mxu0 0
        %3362 = vmatmul.mubr.bf16.gmra.mrb[0].mxu0 %v2545
        %v3363 = vpop.f32.mrb[0].mxu0
        %v3364 = vadd.f32 %v3043, %v3363
        %v3365 = vpop.f32.mrb[0].mxu0
        %v3366 = vpop.f32.mrb[0].mxu0
        %v3367 = vadd.f32 %v3046, %v3366
        %v3368 = vpop.f32.mrb[0].mxu0
        %3369 = vmatprep.mubr.bf16.mxu0 0
        %3370 = vmatmul.mubr.bf16.gmra.mrb[0].mxu0 %v2548
        %v3371 = vpop.f32.mrb[0].mxu0
        %v3372 = vadd.f32 %v3051, %v3371
        %v3373 = vpop.f32.mrb[0].mxu0
        %v3374 = vpop.f32.mrb[0].mxu0
        %v3375 = vadd.f32 %v3054, %v3374
        %v3376 = vpop.f32.mrb[0].mxu0
        %3377 = vmatprep.mubr.bf16.mxu0 0
        %3378 = vmatmul.mubr.bf16.gmra.mrb[0].mxu0 %v2551
        %v3379 = vpop.f32.mrb[0].mxu0
        %v3380 = vadd.f32 %v3059, %v3379
        %v3381 = vpop.f32.mrb[0].mxu0
        %v3382 = vpop.f32.mrb[0].mxu0
        %v3383 = vadd.f32 %v3062, %v3382
        %v3384 = vpop.f32.mrb[0].mxu0
        %3385 = vmatprep.mubr.bf16.mxu0 0
        %3386 = vmatmul.mubr.bf16.gmra.mrb[0].mxu0 %v2554
        %v3387 = vpop.f32.mrb[0].mxu0
        %v3388 = vadd.f32 %v3067, %v3387
        %v3389 = vpop.f32.mrb[0].mxu0
        %v3390 = vpop.f32.mrb[0].mxu0
        %v3391 = vadd.f32 %v3070, %v3390
        %v3392 = vpop.f32.mrb[0].mxu0
        %3393 = vmatprep.mubr.bf16.mxu0 0
        %3394 = vmatmul.mubr.bf16.gmra.mrb[0].mxu0 %v2557
        %v3395 = vpop.f32.mrb[0].mxu0
        %v3396 = vadd.f32 %v3075, %v3395
        %v3397 = vpop.f32.mrb[0].mxu0
        %v3398 = vpop.f32.mrb[0].mxu0
        %v3399 = vadd.f32 %v3078, %v3398
        %v3400 = vpop.f32.mrb[0].mxu0
        %3401 = vmatprep.mubr.bf16.mxu0 0
        %3402 = vmatmul.mubr.bf16.gmra.mrb[0].mxu0 %v2560
        %v3403 = vpop.f32.mrb[0].mxu0
        %v3404 = vadd.f32 %v3083, %v3403
        %v3405 = vpop.f32.mrb[0].mxu0
        %v3406 = vpop.f32.mrb[0].mxu0
        %v3407 = vadd.f32 %v3086, %v3406
        %v3408 = vpop.f32.mrb[0].mxu0
        %3409 = vmatprep.mubr.bf16.mxu0 0
        %3410 = vmatmul.mubr.bf16.gmra.mrb[0].mxu0 %v2563
        %v3411 = vpop.f32.mrb[0].mxu0
        %v3412 = vadd.f32 %v3091, %v3411
        %v3413 = vpop.f32.mrb[0].mxu0
        %v3414 = vpop.f32.mrb[0].mxu0
        %v3415 = vadd.f32 %v3094, %v3414
        %v3416 = vpop.f32.mrb[0].mxu0
        %3417 = vmatprep.mubr.bf16.mxu0 0
        %3418 = vmatmul.mubr.bf16.gmra.mrb[0].mxu0 %v2566
        %v3419 = vpop.f32.mrb[0].mxu0
        %v3420 = vadd.f32 %v3099, %v3419
        %v3421 = vpop.f32.mrb[0].mxu0
        %v3422 = vpop.f32.mrb[0].mxu0
        %v3423 = vadd.f32 %v3102, %v3422
        %v3424 = vpop.f32.mrb[0].mxu0
        %3425 = vmatprep.mubr.bf16.mxu0 0
        %3426 = vmatmul.mubr.bf16.gmra.mrb[0].mxu0 %v2569
        %v3427 = vpop.f32.mrb[0].mxu0
        %v3428 = vadd.f32 %v3107, %v3427
        %v3429 = vpop.f32.mrb[0].mxu0
        %v3430 = vpop.f32.mrb[0].mxu0
        %v3431 = vadd.f32 %v3110, %v3430
        %v3432 = vpop.f32.mrb[0].mxu0
        %3433 = vmatprep.mubr.bf16.mxu0 0
        %3434 = vmatmul.mubr.bf16.gmra.mrb[0].mxu0 %v2572
        %v3435 = vpop.f32.mrb[0].mxu0
        %v3436 = vadd.f32 %v3115, %v3435
        %v3437 = vpop.f32.mrb[0].mxu0
        %v3438 = vpop.f32.mrb[0].mxu0
        %v3439 = vadd.f32 %v3118, %v3438
        %v3440 = vpop.f32.mrb[0].mxu0
        %3441 = vmatprep.mubr.bf16.mxu0 0
        %3442 = vmatmul.mubr.bf16.gmra.mrb[0].mxu0 %v2575
        %v3443 = vpop.f32.mrb[0].mxu0
        %v3444 = vadd.f32 %v3123, %v3443
        %v3445 = vpop.f32.mrb[0].mxu0
        %v3446 = vpop.f32.mrb[0].mxu0
        %v3447 = vadd.f32 %v3126, %v3446
        %v3448 = vpop.f32.mrb[0].mxu0
        %3449 = vmatprep.mubr.bf16.mxu0 0
        %3450 = vmatmul.mubr.bf16.gmra.mrb[0].mxu0 %v2578
        %v3451 = vpop.f32.mrb[0].mxu0
        %v3452 = vadd.f32 %v3131, %v3451
        %v3453 = vpop.f32.mrb[0].mxu0
        %v3454 = vpop.f32.mrb[0].mxu0
        %v3455 = vadd.f32 %v3134, %v3454
        %v3456 = vpop.f32.mrb[0].mxu0
        %3457 = vmatprep.mubr.bf16.mxu0 0
        %3458 = vmatmul.mubr.bf16.gmra.mrb[0].mxu0 %v2581
        %v3459 = vpop.f32.mrb[0].mxu0
        %v3460 = vadd.f32 %v3139, %v3459
        %v3461 = vpop.f32.mrb[0].mxu0
        %v3462 = vpop.f32.mrb[0].mxu0
        %v3463 = vadd.f32 %v3142, %v3462
        %v3464 = vpop.f32.mrb[0].mxu0
        %3465 = vmatprep.mubr.bf16.mxu0 0
        %3466 = vmatmul.mubr.bf16.gmra.mrb[0].mxu0 %v2584
        %v3467 = vpop.f32.mrb[0].mxu0
        %v3468 = vadd.f32 %v3147, %v3467
        %v3469 = vpop.f32.mrb[0].mxu0
        %v3470 = vpop.f32.mrb[0].mxu0
        %v3471 = vadd.f32 %v3150, %v3470
        %v3472 = vpop.f32.mrb[0].mxu0
        %3473 = vmatprep.mubr.bf16.mxu0 0
        %3474 = vmatmul.mubr.bf16.gmra.mrb[0].mxu0 %v2587
        %v3475 = vpop.f32.mrb[0].mxu0
        %v3476 = vadd.f32 %v3155, %v3475
        %v3477 = vpop.f32.mrb[0].mxu0
        %v3478 = vpop.f32.mrb[0].mxu0
        %v3479 = vadd.f32 %v3158, %v3478
        %v3480 = vpop.f32.mrb[0].mxu0
        %3481 = vdwg.mxu0
        %s3482 = scalar_lea.vmem %s326, 96 [#allocation2]
        %v3483 = vld [vmem:[%s3482] sm:$0xff]
        %v3484 = vld [vmem:[%s3482 + $0x8] sm:$0xf]
        %v3485 = vld [vmem:[%s3482 + $0xc] sm:$0xff]
        %v3486 = vld [vmem:[%s3482 + $0x14] sm:$0xf]
        %v3487 = vld [vmem:[%s3482 + $0x18] sm:$0xff]
        %v3488 = vld [vmem:[%s3482 + $0x20] sm:$0xf]
        %v3489 = vld [vmem:[%s3482 + $0x24] sm:$0xff]
        %v3490 = vld [vmem:[%s3482 + $0x2c] sm:$0xf]
        %v3491 = vld [vmem:[%s3482 + $0x30] sm:$0xff]
        %v3492 = vld [vmem:[%s3482 + $0x38] sm:$0xf]
        %v3493 = vld [vmem:[%s3482 + $0x3c] sm:$0xff]
        %v3494 = vld [vmem:[%s3482 + $0x44] sm:$0xf]
        %v3495 = vld [vmem:[%s3482 + $0x48] sm:$0xff]
        %v3496 = vld [vmem:[%s3482 + $0x50] sm:$0xf]
        %v3497 = vld [vmem:[%s3482 + $0x54] sm:$0xff]
        %v3498 = vld [vmem:[%s3482 + $0x5c] sm:$0xf]
        %v3499 = vld [vmem:[%s3482 + $0x60] sm:$0xff]
        %v3500 = vld [vmem:[%s3482 + $0x68] sm:$0xf]
        %v3501 = vld [vmem:[%s3482 + $0x6c] sm:$0xff]
        %v3502 = vld [vmem:[%s3482 + $0x74] sm:$0xf]
        %v3503 = vld [vmem:[%s3482 + $0x78] sm:$0xff]
        %v3504 = vld [vmem:[%s3482 + $0x80] sm:$0xf]
        %v3505 = vld [vmem:[%s3482 + $0x84] sm:$0xff]
        %v3506 = vld [vmem:[%s3482 + $0x8c] sm:$0xf]
        %v3507 = vld [vmem:[%s3482 + $0x90] sm:$0xff]
        %v3508 = vld [vmem:[%s3482 + $0x98] sm:$0xf]
        %v3509 = vld [vmem:[%s3482 + $0x9c] sm:$0xff]
        %v3510 = vld [vmem:[%s3482 + $0xa4] sm:$0xf]
        %v3511 = vld [vmem:[%s3482 + $0xa8] sm:$0xff]
        %v3512 = vld [vmem:[%s3482 + $0xb0] sm:$0xf]
        %v3513 = vld [vmem:[%s3482 + $0xb4] sm:$0xff]
        %v3514 = vld [vmem:[%s3482 + $0xbc] sm:$0xf]
        %v3515 = vld [vmem:[%s3482 + $0xc0] sm:$0xff]
        %v3516 = vld [vmem:[%s3482 + $0xc8] sm:$0xf]
        %v3517 = vld [vmem:[%s3482 + $0xcc] sm:$0xff]
        %v3518 = vld [vmem:[%s3482 + $0xd4] sm:$0xf]
        %v3519 = vld [vmem:[%s3482 + $0xd8] sm:$0xff]
        %v3520 = vld [vmem:[%s3482 + $0xe0] sm:$0xf]
        %v3521 = vld [vmem:[%s3482 + $0xe4] sm:$0xff]
        %v3522 = vld [vmem:[%s3482 + $0xec] sm:$0xf]
        %v3523 = vld [vmem:[%s3482 + $0xf0] sm:$0xff]
        %v3524 = vld [vmem:[%s3482 + $0xf8] sm:$0xf]
        %v3525 = vld [vmem:[%s3482 + $0xfc] sm:$0xff]
        %v3526 = vld [vmem:[%s3482 + $0x104] sm:$0xf]
        %v3527 = vld [vmem:[%s3482 + $0x108] sm:$0xff]
        %v3528 = vld [vmem:[%s3482 + $0x110] sm:$0xf]
        %v3529 = vld [vmem:[%s3482 + $0x114] sm:$0xff]
        %v3530 = vld [vmem:[%s3482 + $0x11c] sm:$0xf]
        %v3531 = vld [vmem:[%s3482 + $0x120] sm:$0xff]
        %v3532 = vld [vmem:[%s3482 + $0x128] sm:$0xf]
        %v3533 = vld [vmem:[%s3482 + $0x12c] sm:$0xff]
        %v3534 = vld [vmem:[%s3482 + $0x134] sm:$0xf]
        %v3535 = vld [vmem:[%s3482 + $0x138] sm:$0xff]
        %v3536 = vld [vmem:[%s3482 + $0x140] sm:$0xf]
        %v3537 = vld [vmem:[%s3482 + $0x144] sm:$0xff]
        %v3538 = vld [vmem:[%s3482 + $0x14c] sm:$0xf]
        %v3539 = vld [vmem:[%s3482 + $0x150] sm:$0xff]
        %v3540 = vld [vmem:[%s3482 + $0x158] sm:$0xf]
        %v3541 = vld [vmem:[%s3482 + $0x15c] sm:$0xff]
        %v3542 = vld [vmem:[%s3482 + $0x164] sm:$0xf]
        %v3543 = vld [vmem:[%s3482 + $0x168] sm:$0xff]
        %v3544 = vld [vmem:[%s3482 + $0x170] sm:$0xf]
        %v3545 = vld [vmem:[%s3482 + $0x174] sm:$0xff]
        %v3546 = vld [vmem:[%s3482 + $0x17c] sm:$0xf]
        %v3547 = vld [vmem:[%s3482 + $0x180] sm:$0xff]
        %v3548 = vld [vmem:[%s3482 + $0x188] sm:$0xf]
        %v3549 = vld [vmem:[%s3482 + $0x18c] sm:$0xff]
        %v3550 = vld [vmem:[%s3482 + $0x194] sm:$0xf]
        %v3551 = vld [vmem:[%s3482 + $0x198] sm:$0xff]
        %v3552 = vld [vmem:[%s3482 + $0x1a0] sm:$0xf]
        %v3553 = vld [vmem:[%s3482 + $0x1a4] sm:$0xff]
        %v3554 = vld [vmem:[%s3482 + $0x1ac] sm:$0xf]
        %v3555 = vld [vmem:[%s3482 + $0x1b0] sm:$0xff]
        %v3556 = vld [vmem:[%s3482 + $0x1b8] sm:$0xf]
        %v3557 = vld [vmem:[%s3482 + $0x1bc] sm:$0xff]
        %v3558 = vld [vmem:[%s3482 + $0x1c4] sm:$0xf]
        %v3559 = vld [vmem:[%s3482 + $0x1c8] sm:$0xff]
        %v3560 = vld [vmem:[%s3482 + $0x1d0] sm:$0xf]
        %v3561 = vld [vmem:[%s3482 + $0x1d4] sm:$0xff]
        %v3562 = vld [vmem:[%s3482 + $0x1dc] sm:$0xf]
        %v3563 = vld [vmem:[%s3482 + $0x1e0] sm:$0xff]
        %v3564 = vld [vmem:[%s3482 + $0x1e8] sm:$0xf]
        %v3565 = vld [vmem:[%s3482 + $0x1ec] sm:$0xff]
        %v3566 = vld [vmem:[%s3482 + $0x1f4] sm:$0xf]
        %v3567 = vld [vmem:[%s3482 + $0x1f8] sm:$0xff]
        %v3568 = vld [vmem:[%s3482 + $0x200] sm:$0xf]
        %v3569 = vld [vmem:[%s3482 + $0x204] sm:$0xff]
        %v3570 = vld [vmem:[%s3482 + $0x20c] sm:$0xf]
        %v3571 = vld [vmem:[%s3482 + $0x210] sm:$0xff]
        %v3572 = vld [vmem:[%s3482 + $0x218] sm:$0xf]
        %v3573 = vld [vmem:[%s3482 + $0x21c] sm:$0xff]
        %v3574 = vld [vmem:[%s3482 + $0x224] sm:$0xf]
        %v3575 = vld [vmem:[%s3482 + $0x228] sm:$0xff]
        %v3576 = vld [vmem:[%s3482 + $0x230] sm:$0xf]
        %v3577 = vld [vmem:[%s3482 + $0x234] sm:$0xff]
        %v3578 = vld [vmem:[%s3482 + $0x23c] sm:$0xf]
        %v3579 = vld [vmem:[%s3482 + $0x240] sm:$0xff]
        %v3580 = vld [vmem:[%s3482 + $0x248] sm:$0xf]
        %v3581 = vld [vmem:[%s3482 + $0x24c] sm:$0xff]
        %v3582 = vld [vmem:[%s3482 + $0x254] sm:$0xf]
        %v3583 = vld [vmem:[%s3482 + $0x258] sm:$0xff]
        %v3584 = vld [vmem:[%s3482 + $0x260] sm:$0xf]
        %v3585 = vld [vmem:[%s3482 + $0x264] sm:$0xff]
        %v3586 = vld [vmem:[%s3482 + $0x26c] sm:$0xf]
        %v3587 = vld [vmem:[%s3482 + $0x270] sm:$0xff]
        %v3588 = vld [vmem:[%s3482 + $0x278] sm:$0xf]
        %v3589 = vld [vmem:[%s3482 + $0x27c] sm:$0xff]
        %v3590 = vld [vmem:[%s3482 + $0x284] sm:$0xf]
        %v3591 = vld [vmem:[%s3482 + $0x288] sm:$0xff]
        %v3592 = vld [vmem:[%s3482 + $0x290] sm:$0xf]
        %v3593 = vld [vmem:[%s3482 + $0x294] sm:$0xff]
        %v3594 = vld [vmem:[%s3482 + $0x29c] sm:$0xf]
        %v3595 = vld [vmem:[%s3482 + $0x2a0] sm:$0xff]
        %v3596 = vld [vmem:[%s3482 + $0x2a8] sm:$0xf]
        %v3597 = vld [vmem:[%s3482 + $0x2ac] sm:$0xff]
        %v3598 = vld [vmem:[%s3482 + $0x2b4] sm:$0xf]
        %v3599 = vld [vmem:[%s3482 + $0x2b8] sm:$0xff]
        %v3600 = vld [vmem:[%s3482 + $0x2c0] sm:$0xf]
        %v3601 = vld [vmem:[%s3482 + $0x2c4] sm:$0xff]
        %v3602 = vld [vmem:[%s3482 + $0x2cc] sm:$0xf]
        %v3603 = vld [vmem:[%s3482 + $0x2d0] sm:$0xff]
        %v3604 = vld [vmem:[%s3482 + $0x2d8] sm:$0xf]
        %v3605 = vld [vmem:[%s3482 + $0x2dc] sm:$0xff]
        %v3606 = vld [vmem:[%s3482 + $0x2e4] sm:$0xf]
        %v3607 = vld [vmem:[%s3482 + $0x2e8] sm:$0xff]
        %v3608 = vld [vmem:[%s3482 + $0x2f0] sm:$0xf]
        %v3609 = vld [vmem:[%s3482 + $0x2f4] sm:$0xff]
        %v3610 = vld [vmem:[%s3482 + $0x2fc] sm:$0xf]
        %v3611 = vld [vmem:[%s3482 + $0x300] sm:$0xff]
        %v3612 = vld [vmem:[%s3482 + $0x308] sm:$0xf]
        %v3613 = vld [vmem:[%s3482 + $0x30c] sm:$0xff]
        %v3614 = vld [vmem:[%s3482 + $0x314] sm:$0xf]
        %v3615 = vld [vmem:[%s3482 + $0x318] sm:$0xff]
        %v3616 = vld [vmem:[%s3482 + $0x320] sm:$0xf]
        %v3617 = vld [vmem:[%s3482 + $0x324] sm:$0xff]
        %v3618 = vld [vmem:[%s3482 + $0x32c] sm:$0xf]
        %v3619 = vld [vmem:[%s3482 + $0x330] sm:$0xff]
        %v3620 = vld [vmem:[%s3482 + $0x338] sm:$0xf]
        %v3621 = vld [vmem:[%s3482 + $0x33c] sm:$0xff]
        %v3622 = vld [vmem:[%s3482 + $0x344] sm:$0xf]
        %v3623 = vld [vmem:[%s3482 + $0x348] sm:$0xff]
        %v3624 = vld [vmem:[%s3482 + $0x350] sm:$0xf]
        %v3625 = vld [vmem:[%s3482 + $0x354] sm:$0xff]
        %v3626 = vld [vmem:[%s3482 + $0x35c] sm:$0xf]
        %s3627 = scalar_lea.vmem %s3, 384
        %v3628 = vld [vmem:[%s3627] sm:$0xf]
        %v3629 = vld [vmem:[%s3627 + $0x4] sm:$0xf]
        %v3630 = vld [vmem:[%s3627 + $0x8] sm:$0xf]
        %v3631 = vld [vmem:[%s3627 + $0xc] sm:$0xf]
        %v3632 = vld [vmem:[%s3627 + $0x10] sm:$0xf]
        %v3633 = vld [vmem:[%s3627 + $0x14] sm:$0xf]
        %v3634 = vld [vmem:[%s3627 + $0x18] sm:$0xf]
        %v3635 = vld [vmem:[%s3627 + $0x1c] sm:$0xf]
        %v3636 = vld [vmem:[%s3627 + $0x20] sm:$0xf]
        %v3637 = vld [vmem:[%s3627 + $0x24] sm:$0xf]
        %v3638 = vld [vmem:[%s3627 + $0x28] sm:$0xf]
        %v3639 = vld [vmem:[%s3627 + $0x2c] sm:$0xf]
        %v3640 = vld [vmem:[%s3627 + $0x30] sm:$0xf]
        %v3641 = vld [vmem:[%s3627 + $0x34] sm:$0xf]
        %v3642 = vld [vmem:[%s3627 + $0x38] sm:$0xf]
        %v3643 = vld [vmem:[%s3627 + $0x3c] sm:$0xf]
        %v3644 = vld [vmem:[%s3627 + $0x40] sm:$0xf]
        %v3645 = vld [vmem:[%s3627 + $0x44] sm:$0xf]
        %v3646 = vld [vmem:[%s3627 + $0x48] sm:$0xf]
        %v3647 = vld [vmem:[%s3627 + $0x4c] sm:$0xf]
        %v3648 = vld [vmem:[%s3627 + $0x50] sm:$0xf]
        %v3649 = vld [vmem:[%s3627 + $0x54] sm:$0xf]
        %v3650 = vld [vmem:[%s3627 + $0x58] sm:$0xf]
        %v3651 = vld [vmem:[%s3627 + $0x5c] sm:$0xf]
        %v3652 = vld [vmem:[%s3627 + $0x60] sm:$0xf]
        %v3653 = vld [vmem:[%s3627 + $0x64] sm:$0xf]
        %v3654 = vld [vmem:[%s3627 + $0x68] sm:$0xf]
        %v3655 = vld [vmem:[%s3627 + $0x6c] sm:$0xf]
        %v3656 = vld [vmem:[%s3627 + $0x70] sm:$0xf]
        %v3657 = vld [vmem:[%s3627 + $0x74] sm:$0xf]
        %v3658 = vld [vmem:[%s3627 + $0x78] sm:$0xf]
        %v3659 = vld [vmem:[%s3627 + $0x7c] sm:$0xf]
        %v3660 = vld [vmem:[%s3627 + $0x80] sm:$0xf]
        %v3661 = vld [vmem:[%s3627 + $0x84] sm:$0xf]
        %v3662 = vld [vmem:[%s3627 + $0x88] sm:$0xf]
        %v3663 = vld [vmem:[%s3627 + $0x8c] sm:$0xf]
        %v3664 = vld [vmem:[%s3627 + $0x90] sm:$0xf]
        %v3665 = vld [vmem:[%s3627 + $0x94] sm:$0xf]
        %v3666 = vld [vmem:[%s3627 + $0x98] sm:$0xf]
        %v3667 = vld [vmem:[%s3627 + $0x9c] sm:$0xf]
        %v3668 = vld [vmem:[%s3627 + $0xa0] sm:$0xf]
        %v3669 = vld [vmem:[%s3627 + $0xa4] sm:$0xf]
        %v3670 = vld [vmem:[%s3627 + $0xa8] sm:$0xf]
        %v3671 = vld [vmem:[%s3627 + $0xac] sm:$0xf]
        %v3672 = vld [vmem:[%s3627 + $0xb0] sm:$0xf]
        %v3673 = vld [vmem:[%s3627 + $0xb4] sm:$0xf]
        %v3674 = vld [vmem:[%s3627 + $0xb8] sm:$0xf]
        %v3675 = vld [vmem:[%s3627 + $0xbc] sm:$0xf]
        %v3820 = vunpack.c.l.b16 %v3483
        %v3821 = vunpack.c.h.b16 %v3483
        %v3822 = vunpack.c.l.b16 %v3484
        %v3823 = vunpack.c.l.b16 %v3485
        %v3824 = vunpack.c.h.b16 %v3485
        %v3825 = vunpack.c.l.b16 %v3486
        %v3826 = vunpack.c.l.b16 %v3487
        %v3827 = vunpack.c.h.b16 %v3487
        %v3828 = vunpack.c.l.b16 %v3488
        %v3829 = vunpack.c.l.b16 %v3489
        %v3830 = vunpack.c.h.b16 %v3489
        %v3831 = vunpack.c.l.b16 %v3490
        %v3832 = vunpack.c.l.b16 %v3491
        %v3833 = vunpack.c.h.b16 %v3491
        %v3834 = vunpack.c.l.b16 %v3492
        %v3835 = vunpack.c.l.b16 %v3493
        %v3836 = vunpack.c.h.b16 %v3493
        %v3837 = vunpack.c.l.b16 %v3494
        %v3838 = vunpack.c.l.b16 %v3495
        %v3839 = vunpack.c.h.b16 %v3495
        %v3840 = vunpack.c.l.b16 %v3496
        %v3841 = vunpack.c.l.b16 %v3497
        %v3842 = vunpack.c.h.b16 %v3497
        %v3843 = vunpack.c.l.b16 %v3498
        %v3844 = vunpack.c.l.b16 %v3499
        %v3845 = vunpack.c.h.b16 %v3499
        %v3846 = vunpack.c.l.b16 %v3500
        %v3847 = vunpack.c.l.b16 %v3501
        %v3848 = vunpack.c.h.b16 %v3501
        %v3849 = vunpack.c.l.b16 %v3502
        %v3850 = vunpack.c.l.b16 %v3503
        %v3851 = vunpack.c.h.b16 %v3503
        %v3852 = vunpack.c.l.b16 %v3504
        %v3853 = vunpack.c.l.b16 %v3505
        %v3854 = vunpack.c.h.b16 %v3505
        %v3855 = vunpack.c.l.b16 %v3506
        %v3856 = vunpack.c.l.b16 %v3507
        %v3857 = vunpack.c.h.b16 %v3507
        %v3858 = vunpack.c.l.b16 %v3508
        %v3859 = vunpack.c.l.b16 %v3509
        %v3860 = vunpack.c.h.b16 %v3509
        %v3861 = vunpack.c.l.b16 %v3510
        %v3862 = vunpack.c.l.b16 %v3511
        %v3863 = vunpack.c.h.b16 %v3511
        %v3864 = vunpack.c.l.b16 %v3512
        %v3865 = vunpack.c.l.b16 %v3513
        %v3866 = vunpack.c.h.b16 %v3513
        %v3867 = vunpack.c.l.b16 %v3514
        %v3868 = vunpack.c.l.b16 %v3515
        %v3869 = vunpack.c.h.b16 %v3515
        %v3870 = vunpack.c.l.b16 %v3516
        %v3871 = vunpack.c.l.b16 %v3517
        %v3872 = vunpack.c.h.b16 %v3517
        %v3873 = vunpack.c.l.b16 %v3518
        %v3874 = vunpack.c.l.b16 %v3519
        %v3875 = vunpack.c.h.b16 %v3519
        %v3876 = vunpack.c.l.b16 %v3520
        %v3877 = vunpack.c.l.b16 %v3521
        %v3878 = vunpack.c.h.b16 %v3521
        %v3879 = vunpack.c.l.b16 %v3522
        %v3880 = vunpack.c.l.b16 %v3523
        %v3881 = vunpack.c.h.b16 %v3523
        %v3882 = vunpack.c.l.b16 %v3524
        %v3883 = vunpack.c.l.b16 %v3525
        %v3884 = vunpack.c.h.b16 %v3525
        %v3885 = vunpack.c.l.b16 %v3526
        %v3886 = vunpack.c.l.b16 %v3527
        %v3887 = vunpack.c.h.b16 %v3527
        %v3888 = vunpack.c.l.b16 %v3528
        %v3889 = vunpack.c.l.b16 %v3529
        %v3890 = vunpack.c.h.b16 %v3529
        %v3891 = vunpack.c.l.b16 %v3530
        %v3892 = vunpack.c.l.b16 %v3531
        %v3893 = vunpack.c.h.b16 %v3531
        %v3894 = vunpack.c.l.b16 %v3532
        %v3895 = vunpack.c.l.b16 %v3533
        %v3896 = vunpack.c.h.b16 %v3533
        %v3897 = vunpack.c.l.b16 %v3534
        %v3898 = vunpack.c.l.b16 %v3535
        %v3899 = vunpack.c.h.b16 %v3535
        %v3900 = vunpack.c.l.b16 %v3536
        %v3901 = vunpack.c.l.b16 %v3537
        %v3902 = vunpack.c.h.b16 %v3537
        %v3903 = vunpack.c.l.b16 %v3538
        %v3904 = vunpack.c.l.b16 %v3539
        %v3905 = vunpack.c.h.b16 %v3539
        %v3906 = vunpack.c.l.b16 %v3540
        %v3907 = vunpack.c.l.b16 %v3541
        %v3908 = vunpack.c.h.b16 %v3541
        %v3909 = vunpack.c.l.b16 %v3542
        %v3910 = vunpack.c.l.b16 %v3543
        %v3911 = vunpack.c.h.b16 %v3543
        %v3912 = vunpack.c.l.b16 %v3544
        %v3913 = vunpack.c.l.b16 %v3545
        %v3914 = vunpack.c.h.b16 %v3545
        %v3915 = vunpack.c.l.b16 %v3546
        %v3916 = vunpack.c.l.b16 %v3547
        %v3917 = vunpack.c.h.b16 %v3547
        %v3918 = vunpack.c.l.b16 %v3548
        %v3919 = vunpack.c.l.b16 %v3549
        %v3920 = vunpack.c.h.b16 %v3549
        %v3921 = vunpack.c.l.b16 %v3550
        %v3922 = vunpack.c.l.b16 %v3551
        %v3923 = vunpack.c.h.b16 %v3551
        %v3924 = vunpack.c.l.b16 %v3552
        %v3925 = vunpack.c.l.b16 %v3553
        %v3926 = vunpack.c.h.b16 %v3553
        %v3927 = vunpack.c.l.b16 %v3554
        %v3928 = vunpack.c.l.b16 %v3555
        %v3929 = vunpack.c.h.b16 %v3555
        %v3930 = vunpack.c.l.b16 %v3556
        %v3931 = vunpack.c.l.b16 %v3557
        %v3932 = vunpack.c.h.b16 %v3557
        %v3933 = vunpack.c.l.b16 %v3558
        %v3934 = vunpack.c.l.b16 %v3559
        %v3935 = vunpack.c.h.b16 %v3559
        %v3936 = vunpack.c.l.b16 %v3560
        %v3937 = vunpack.c.l.b16 %v3561
        %v3938 = vunpack.c.h.b16 %v3561
        %v3939 = vunpack.c.l.b16 %v3562
        %v3940 = vunpack.c.l.b16 %v3563
        %v3941 = vunpack.c.h.b16 %v3563
        %v3942 = vunpack.c.l.b16 %v3564
        %v3943 = vunpack.c.l.b16 %v3565
        %v3944 = vunpack.c.h.b16 %v3565
        %v3945 = vunpack.c.l.b16 %v3566
        %v3946 = vunpack.c.l.b16 %v3567
        %v3947 = vunpack.c.h.b16 %v3567
        %v3948 = vunpack.c.l.b16 %v3568
        %v3949 = vunpack.c.l.b16 %v3569
        %v3950 = vunpack.c.h.b16 %v3569
        %v3951 = vunpack.c.l.b16 %v3570
        %v3952 = vunpack.c.l.b16 %v3571
        %v3953 = vunpack.c.h.b16 %v3571
        %v3954 = vunpack.c.l.b16 %v3572
        %v3955 = vunpack.c.l.b16 %v3573
        %v3956 = vunpack.c.h.b16 %v3573
        %v3957 = vunpack.c.l.b16 %v3574
        %v3958 = vunpack.c.l.b16 %v3575
        %v3959 = vunpack.c.h.b16 %v3575
        %v3960 = vunpack.c.l.b16 %v3576
        %v3961 = vunpack.c.l.b16 %v3577
        %v3962 = vunpack.c.h.b16 %v3577
        %v3963 = vunpack.c.l.b16 %v3578
        %v3964 = vunpack.c.l.b16 %v3579
        %v3965 = vunpack.c.h.b16 %v3579
        %v3966 = vunpack.c.l.b16 %v3580
        %v3967 = vunpack.c.l.b16 %v3581
        %v3968 = vunpack.c.h.b16 %v3581
        %v3969 = vunpack.c.l.b16 %v3582
        %v3970 = vunpack.c.l.b16 %v3583
        %v3971 = vunpack.c.h.b16 %v3583
        %v3972 = vunpack.c.l.b16 %v3584
        %v3973 = vunpack.c.l.b16 %v3585
        %v3974 = vunpack.c.h.b16 %v3585
        %v3975 = vunpack.c.l.b16 %v3586
        %v3976 = vunpack.c.l.b16 %v3587
        %v3977 = vunpack.c.h.b16 %v3587
        %v3978 = vunpack.c.l.b16 %v3588
        %v3979 = vunpack.c.l.b16 %v3589
        %v3980 = vunpack.c.h.b16 %v3589
        %v3981 = vunpack.c.l.b16 %v3590
        %v3982 = vunpack.c.l.b16 %v3591
        %v3983 = vunpack.c.h.b16 %v3591
        %v3984 = vunpack.c.l.b16 %v3592
        %v3985 = vunpack.c.l.b16 %v3593
        %v3986 = vunpack.c.h.b16 %v3593
        %v3987 = vunpack.c.l.b16 %v3594
        %v3988 = vunpack.c.l.b16 %v3595
        %v3989 = vunpack.c.h.b16 %v3595
        %v3990 = vunpack.c.l.b16 %v3596
        %v3991 = vunpack.c.l.b16 %v3597
        %v3992 = vunpack.c.h.b16 %v3597
        %v3993 = vunpack.c.l.b16 %v3598
        %v3994 = vunpack.c.l.b16 %v3599
        %v3995 = vunpack.c.h.b16 %v3599
        %v3996 = vunpack.c.l.b16 %v3600
        %v3997 = vunpack.c.l.b16 %v3601
        %v3998 = vunpack.c.h.b16 %v3601
        %v3999 = vunpack.c.l.b16 %v3602
        %v4000 = vunpack.c.l.b16 %v3603
        %v4001 = vunpack.c.h.b16 %v3603
        %v4002 = vunpack.c.l.b16 %v3604
        %v4003 = vunpack.c.l.b16 %v3605
        %v4004 = vunpack.c.h.b16 %v3605
        %v4005 = vunpack.c.l.b16 %v3606
        %v4006 = vunpack.c.l.b16 %v3607
        %v4007 = vunpack.c.h.b16 %v3607
        %v4008 = vunpack.c.l.b16 %v3608
        %v4009 = vunpack.c.l.b16 %v3609
        %v4010 = vunpack.c.h.b16 %v3609
        %v4011 = vunpack.c.l.b16 %v3610
        %v4012 = vunpack.c.l.b16 %v3611
        %v4013 = vunpack.c.h.b16 %v3611
        %v4014 = vunpack.c.l.b16 %v3612
        %v4015 = vunpack.c.l.b16 %v3613
        %v4016 = vunpack.c.h.b16 %v3613
        %v4017 = vunpack.c.l.b16 %v3614
        %v4018 = vunpack.c.l.b16 %v3615
        %v4019 = vunpack.c.h.b16 %v3615
        %v4020 = vunpack.c.l.b16 %v3616
        %v4021 = vunpack.c.l.b16 %v3617
        %v4022 = vunpack.c.h.b16 %v3617
        %v4023 = vunpack.c.l.b16 %v3618
        %v4024 = vunpack.c.l.b16 %v3619
        %v4025 = vunpack.c.h.b16 %v3619
        %v4026 = vunpack.c.l.b16 %v3620
        %v4027 = vunpack.c.l.b16 %v3621
        %v4028 = vunpack.c.h.b16 %v3621
        %v4029 = vunpack.c.l.b16 %v3622
        %v4030 = vunpack.c.l.b16 %v3623
        %v4031 = vunpack.c.h.b16 %v3623
        %v4032 = vunpack.c.l.b16 %v3624
        %v4033 = vunpack.c.l.b16 %v3625
        %v4034 = vunpack.c.h.b16 %v3625
        %v4035 = vunpack.c.l.b16 %v3626
        %v4036 = vpack.c.b16 %v3823, %v3820
        %v4037 = vpack.c.b16 %v3824, %v3821
        %v4038 = vpack.c.b16 %v3825, %v3822
        %v4039 = vpack.c.b16 %v3829, %v3826
        %v4040 = vpack.c.b16 %v3830, %v3827
        %v4041 = vpack.c.b16 %v3831, %v3828
        %v4042 = vpack.c.b16 %v3835, %v3832
        %v4043 = vpack.c.b16 %v3836, %v3833
        %v4044 = vpack.c.b16 %v3837, %v3834
        %v4045 = vpack.c.b16 %v3841, %v3838
        %v4046 = vpack.c.b16 %v3842, %v3839
        %v4047 = vpack.c.b16 %v3843, %v3840
        %v4048 = vpack.c.b16 %v3847, %v3844
        %v4049 = vpack.c.b16 %v3848, %v3845
        %v4050 = vpack.c.b16 %v3849, %v3846
        %v4051 = vpack.c.b16 %v3853, %v3850
        %v4052 = vpack.c.b16 %v3854, %v3851
        %v4053 = vpack.c.b16 %v3855, %v3852
        %v4054 = vpack.c.b16 %v3859, %v3856
        %v4055 = vpack.c.b16 %v3860, %v3857
        %v4056 = vpack.c.b16 %v3861, %v3858
        %v4057 = vpack.c.b16 %v3865, %v3862
        %v4058 = vpack.c.b16 %v3866, %v3863
        %v4059 = vpack.c.b16 %v3867, %v3864
        %v4060 = vpack.c.b16 %v3871, %v3868
        %v4061 = vpack.c.b16 %v3872, %v3869
        %v4062 = vpack.c.b16 %v3873, %v3870
        %v4063 = vpack.c.b16 %v3877, %v3874
        %v4064 = vpack.c.b16 %v3878, %v3875
        %v4065 = vpack.c.b16 %v3879, %v3876
        %v4066 = vpack.c.b16 %v3883, %v3880
        %v4067 = vpack.c.b16 %v3884, %v3881
        %v4068 = vpack.c.b16 %v3885, %v3882
        %v4069 = vpack.c.b16 %v3889, %v3886
        %v4070 = vpack.c.b16 %v3890, %v3887
        %v4071 = vpack.c.b16 %v3891, %v3888
        %v4072 = vpack.c.b16 %v3895, %v3892
        %v4073 = vpack.c.b16 %v3896, %v3893
        %v4074 = vpack.c.b16 %v3897, %v3894
        %v4075 = vpack.c.b16 %v3901, %v3898
        %v4076 = vpack.c.b16 %v3902, %v3899
        %v4077 = vpack.c.b16 %v3903, %v3900
        %v4078 = vpack.c.b16 %v3907, %v3904
        %v4079 = vpack.c.b16 %v3908, %v3905
        %v4080 = vpack.c.b16 %v3909, %v3906
        %v4081 = vpack.c.b16 %v3913, %v3910
        %v4082 = vpack.c.b16 %v3914, %v3911
        %v4083 = vpack.c.b16 %v3915, %v3912
        %v4084 = vpack.c.b16 %v3919, %v3916
        %v4085 = vpack.c.b16 %v3920, %v3917
        %v4086 = vpack.c.b16 %v3921, %v3918
        %v4087 = vpack.c.b16 %v3925, %v3922
        %v4088 = vpack.c.b16 %v3926, %v3923
        %v4089 = vpack.c.b16 %v3927, %v3924
        %v4090 = vpack.c.b16 %v3931, %v3928
        %v4091 = vpack.c.b16 %v3932, %v3929
        %v4092 = vpack.c.b16 %v3933, %v3930
        %v4093 = vpack.c.b16 %v3937, %v3934
        %v4094 = vpack.c.b16 %v3938, %v3935
        %v4095 = vpack.c.b16 %v3939, %v3936
        %v4096 = vpack.c.b16 %v3943, %v3940
        %v4097 = vpack.c.b16 %v3944, %v3941
        %v4098 = vpack.c.b16 %v3945, %v3942
        %v4099 = vpack.c.b16 %v3949, %v3946
        %v4100 = vpack.c.b16 %v3950, %v3947
        %v4101 = vpack.c.b16 %v3951, %v3948
        %v4102 = vpack.c.b16 %v3955, %v3952
        %v4103 = vpack.c.b16 %v3956, %v3953
        %v4104 = vpack.c.b16 %v3957, %v3954
        %v4105 = vpack.c.b16 %v3961, %v3958
        %v4106 = vpack.c.b16 %v3962, %v3959
        %v4107 = vpack.c.b16 %v3963, %v3960
        %v4108 = vpack.c.b16 %v3967, %v3964
        %v4109 = vpack.c.b16 %v3968, %v3965
        %v4110 = vpack.c.b16 %v3969, %v3966
        %v4111 = vpack.c.b16 %v3973, %v3970
        %v4112 = vpack.c.b16 %v3974, %v3971
        %v4113 = vpack.c.b16 %v3975, %v3972
        %v4114 = vpack.c.b16 %v3979, %v3976
        %v4115 = vpack.c.b16 %v3980, %v3977
        %v4116 = vpack.c.b16 %v3981, %v3978
        %v4117 = vpack.c.b16 %v3985, %v3982
        %v4118 = vpack.c.b16 %v3986, %v3983
        %v4119 = vpack.c.b16 %v3987, %v3984
        %v4120 = vpack.c.b16 %v3991, %v3988
        %v4121 = vpack.c.b16 %v3992, %v3989
        %v4122 = vpack.c.b16 %v3993, %v3990
        %v4123 = vpack.c.b16 %v3997, %v3994
        %v4124 = vpack.c.b16 %v3998, %v3995
        %v4125 = vpack.c.b16 %v3999, %v3996
        %v4126 = vpack.c.b16 %v4003, %v4000
        %v4127 = vpack.c.b16 %v4004, %v4001
        %v4128 = vpack.c.b16 %v4005, %v4002
        %v4129 = vpack.c.b16 %v4009, %v4006
        %v4130 = vpack.c.b16 %v4010, %v4007
        %v4131 = vpack.c.b16 %v4011, %v4008
        %v4132 = vpack.c.b16 %v4015, %v4012
        %v4133 = vpack.c.b16 %v4016, %v4013
        %v4134 = vpack.c.b16 %v4017, %v4014
        %v4135 = vpack.c.b16 %v4021, %v4018
        %v4136 = vpack.c.b16 %v4022, %v4019
        %v4137 = vpack.c.b16 %v4023, %v4020
        %v4138 = vpack.c.b16 %v4027, %v4024
        %v4139 = vpack.c.b16 %v4028, %v4025
        %v4140 = vpack.c.b16 %v4029, %v4026
        %v4141 = vpack.c.b16 %v4033, %v4030
        %v4142 = vpack.c.b16 %v4034, %v4031
        %v4143 = vpack.c.b16 %v4035, %v4032
        %v4300 = vunpack.c.l.b16 %v3628
        %v4301 = vunpack.c.l.b16 %v3629
        %v4302 = vunpack.c.l.b16 %v3630
        %v4303 = vunpack.c.l.b16 %v3631
        %v4304 = vunpack.c.l.b16 %v3632
        %v4305 = vunpack.c.l.b16 %v3633
        %v4306 = vunpack.c.l.b16 %v3634
        %v4307 = vunpack.c.l.b16 %v3635
        %v4308 = vunpack.c.l.b16 %v3636
        %v4309 = vunpack.c.l.b16 %v3637
        %v4310 = vunpack.c.l.b16 %v3638
        %v4311 = vunpack.c.l.b16 %v3639
        %v4312 = vunpack.c.l.b16 %v3640
        %v4313 = vunpack.c.l.b16 %v3641
        %v4314 = vunpack.c.l.b16 %v3642
        %v4315 = vunpack.c.l.b16 %v3643
        %v4316 = vunpack.c.l.b16 %v3644
        %v4317 = vunpack.c.l.b16 %v3645
        %v4318 = vunpack.c.l.b16 %v3646
        %v4319 = vunpack.c.l.b16 %v3647
        %v4320 = vunpack.c.l.b16 %v3648
        %v4321 = vunpack.c.l.b16 %v3649
        %v4322 = vunpack.c.l.b16 %v3650
        %v4323 = vunpack.c.l.b16 %v3651
        %v4324 = vunpack.c.l.b16 %v3652
        %v4325 = vunpack.c.l.b16 %v3653
        %v4326 = vunpack.c.l.b16 %v3654
        %v4327 = vunpack.c.l.b16 %v3655
        %v4328 = vunpack.c.l.b16 %v3656
        %v4329 = vunpack.c.l.b16 %v3657
        %v4330 = vunpack.c.l.b16 %v3658
        %v4331 = vunpack.c.l.b16 %v3659
        %v4332 = vunpack.c.l.b16 %v3660
        %v4333 = vunpack.c.l.b16 %v3661
        %v4334 = vunpack.c.l.b16 %v3662
        %v4335 = vunpack.c.l.b16 %v3663
        %v4336 = vunpack.c.l.b16 %v3664
        %v4337 = vunpack.c.l.b16 %v3665
        %v4338 = vunpack.c.l.b16 %v3666
        %v4339 = vunpack.c.l.b16 %v3667
        %v4340 = vunpack.c.l.b16 %v3668
        %v4341 = vunpack.c.l.b16 %v3669
        %v4342 = vunpack.c.l.b16 %v3670
        %v4343 = vunpack.c.l.b16 %v3671
        %v4344 = vunpack.c.l.b16 %v3672
        %v4345 = vunpack.c.l.b16 %v3673
        %v4346 = vunpack.c.l.b16 %v3674
        %v4347 = vunpack.c.l.b16 %v3675
        %v4348 = vpack.c.b16 %v4301, %v4300
        %v4349 = vpack.c.b16 %v4303, %v4302
        %v4350 = vpack.c.b16 %v4305, %v4304
        %v4351 = vpack.c.b16 %v4307, %v4306
        %v4352 = vpack.c.b16 %v4309, %v4308
        %v4353 = vpack.c.b16 %v4311, %v4310
        %v4354 = vpack.c.b16 %v4313, %v4312
        %v4355 = vpack.c.b16 %v4315, %v4314
        %v4356 = vpack.c.b16 %v4317, %v4316
        %v4357 = vpack.c.b16 %v4319, %v4318
        %v4358 = vpack.c.b16 %v4321, %v4320
        %v4359 = vpack.c.b16 %v4323, %v4322
        %v4360 = vpack.c.b16 %v4325, %v4324
        %v4361 = vpack.c.b16 %v4327, %v4326
        %v4362 = vpack.c.b16 %v4329, %v4328
        %v4363 = vpack.c.b16 %v4331, %v4330
        %v4364 = vpack.c.b16 %v4333, %v4332
        %v4365 = vpack.c.b16 %v4335, %v4334
        %v4366 = vpack.c.b16 %v4337, %v4336
        %v4367 = vpack.c.b16 %v4339, %v4338
        %v4368 = vpack.c.b16 %v4341, %v4340
        %v4369 = vpack.c.b16 %v4343, %v4342
        %v4370 = vpack.c.b16 %v4345, %v4344
        %v4371 = vpack.c.b16 %v4347, %v4346
        %4396 = vmatprep.subr.bf16.mxu0 0
        %4397 = vmatpush1.bf16.msra.mxu0 %v4348
        %4398 = vmatprep.subr.bf16.mxu0 0
        %4399 = vmatpush1.bf16.msra.mxu0 %v4349
        %4400 = vmatprep.subr.bf16.mxu0 0
        %4401 = vmatpush1.bf16.msra.mxu0 %v4350
        %4402 = vmatprep.subr.bf16.mxu0 0
        %4403 = vmatpush1.bf16.msra.mxu0 %v4351
        %4404 = vmatprep.subr.bf16.mxu0 0
        %4405 = vmatpush1.bf16.msra.mxu0 %v4352
        %4406 = vmatprep.subr.bf16.mxu0 0
        %4407 = vmatpush1.bf16.msra.mxu0 %v4353
        %4408 = vmatprep.subr.bf16.mxu0 0
        %4409 = vmatpush1.bf16.msra.mxu0 %v4354
        %4410 = vmatprep.subr.bf16.mxu0 0
        %4411 = vmatpush1.bf16.msra.mxu0 %v4355
        %4412 = vmatprep.subr.bf16.mxu0 0
        %4413 = vmatpush1.bf16.msra.mxu0 %v4356
        %4414 = vmatprep.subr.bf16.mxu0 0
        %4415 = vmatpush1.bf16.msra.mxu0 %v4357
        %4416 = vmatprep.subr.bf16.mxu0 0
        %4417 = vmatpush1.bf16.msra.mxu0 %v4358
        %4418 = vmatprep.subr.bf16.mxu0 0
        %4419 = vmatpush1.bf16.msra.mxu0 %v4359
        %4420 = vmatprep.subr.bf16.mxu0 0
        %4421 = vmatpush1.bf16.msra.mxu0 %v4360
        %4422 = vmatprep.subr.bf16.mxu0 0
        %4423 = vmatpush1.bf16.msra.mxu0 %v4361
        %4424 = vmatprep.subr.bf16.mxu0 0
        %4425 = vmatpush1.bf16.msra.mxu0 %v4362
        %4426 = vmatprep.subr.bf16.mxu0 0
        %4427 = vmatpush1.bf16.msra.mxu0 %v4363
        %4428 = vmatprep.mubr.bf16.mxu0 %v4037
        %4429 = vmatmul.mubr.bf16.gmra.mrb[0].mxu0 %v4036
        %v4430 = vpop.f32.mrb[0].mxu0
        %v4431 = vadd.f32 0.0, %v4430
        %v4432 = vpop.f32.mrb[0].mxu0
        %v4433 = vpop.f32.mrb[0].mxu0
        %v4434 = vadd.f32 0.0, %v4433
        %v4435 = vpop.f32.mrb[0].mxu0
        %4436 = vmatprep.mubr.bf16.mxu0 %v4040
        %4437 = vmatmul.mubr.bf16.gmra.mrb[0].mxu0 %v4039
        %v4438 = vpop.f32.mrb[0].mxu0
        %v4439 = vadd.f32 0.0, %v4438
        %v4440 = vpop.f32.mrb[0].mxu0
        %v4441 = vpop.f32.mrb[0].mxu0
        %v4442 = vadd.f32 0.0, %v4441
        %v4443 = vpop.f32.mrb[0].mxu0
        %4444 = vmatprep.mubr.bf16.mxu0 %v4043
        %4445 = vmatmul.mubr.bf16.gmra.mrb[0].mxu0 %v4042
        %v4446 = vpop.f32.mrb[0].mxu0
        %v4447 = vadd.f32 0.0, %v4446
        %v4448 = vpop.f32.mrb[0].mxu0
        %v4449 = vpop.f32.mrb[0].mxu0
        %v4450 = vadd.f32 0.0, %v4449
        %v4451 = vpop.f32.mrb[0].mxu0
        %4452 = vmatprep.mubr.bf16.mxu0 %v4046
        %4453 = vmatmul.mubr.bf16.gmra.mrb[0].mxu0 %v4045
        %v4454 = vpop.f32.mrb[0].mxu0
        %v4455 = vadd.f32 0.0, %v4454
        %v4456 = vpop.f32.mrb[0].mxu0
        %v4457 = vpop.f32.mrb[0].mxu0
        %v4458 = vadd.f32 0.0, %v4457
        %v4459 = vpop.f32.mrb[0].mxu0
        %4460 = vmatprep.mubr.bf16.mxu0 %v4049
        %4461 = vmatmul.mubr.bf16.gmra.mrb[0].mxu0 %v4048
        %v4462 = vpop.f32.mrb[0].mxu0
        %v4463 = vadd.f32 0.0, %v4462
        %v4464 = vpop.f32.mrb[0].mxu0
        %v4465 = vpop.f32.mrb[0].mxu0
        %v4466 = vadd.f32 0.0, %v4465
        %v4467 = vpop.f32.mrb[0].mxu0
        %4468 = vmatprep.mubr.bf16.mxu0 %v4052
        %4469 = vmatmul.mubr.bf16.gmra.mrb[0].mxu0 %v4051
        %v4470 = vpop.f32.mrb[0].mxu0
        %v4471 = vadd.f32 0.0, %v4470
        %v4472 = vpop.f32.mrb[0].mxu0
        %v4473 = vpop.f32.mrb[0].mxu0
        %v4474 = vadd.f32 0.0, %v4473
        %v4475 = vpop.f32.mrb[0].mxu0
        %4476 = vmatprep.mubr.bf16.mxu0 %v4055
        %4477 = vmatmul.mubr.bf16.gmra.mrb[0].mxu0 %v4054
        %v4478 = vpop.f32.mrb[0].mxu0
        %v4479 = vadd.f32 0.0, %v4478
        %v4480 = vpop.f32.mrb[0].mxu0
        %v4481 = vpop.f32.mrb[0].mxu0
        %v4482 = vadd.f32 0.0, %v4481
        %v4483 = vpop.f32.mrb[0].mxu0
        %4484 = vmatprep.mubr.bf16.mxu0 %v4058
        %4485 = vmatmul.mubr.bf16.gmra.mrb[0].mxu0 %v4057
        %v4486 = vpop.f32.mrb[0].mxu0
        %v4487 = vadd.f32 0.0, %v4486
        %v4488 = vpop.f32.mrb[0].mxu0
        %v4489 = vpop.f32.mrb[0].mxu0
        %v4490 = vadd.f32 0.0, %v4489
        %v4491 = vpop.f32.mrb[0].mxu0
        %4492 = vmatprep.mubr.bf16.mxu0 %v4061
        %4493 = vmatmul.mubr.bf16.gmra.mrb[0].mxu0 %v4060
        %v4494 = vpop.f32.mrb[0].mxu0
        %v4495 = vadd.f32 0.0, %v4494
        %v4496 = vpop.f32.mrb[0].mxu0
        %v4497 = vpop.f32.mrb[0].mxu0
        %v4498 = vadd.f32 0.0, %v4497
        %v4499 = vpop.f32.mrb[0].mxu0
        %4500 = vmatprep.mubr.bf16.mxu0 %v4064
        %4501 = vmatmul.mubr.bf16.gmra.mrb[0].mxu0 %v4063
        %v4502 = vpop.f32.mrb[0].mxu0
        %v4503 = vadd.f32 0.0, %v4502
        %v4504 = vpop.f32.mrb[0].mxu0
        %v4505 = vpop.f32.mrb[0].mxu0
        %v4506 = vadd.f32 0.0, %v4505
        %v4507 = vpop.f32.mrb[0].mxu0
        %4508 = vmatprep.mubr.bf16.mxu0 %v4067
        %4509 = vmatmul.mubr.bf16.gmra.mrb[0].mxu0 %v4066
        %v4510 = vpop.f32.mrb[0].mxu0
        %v4511 = vadd.f32 0.0, %v4510
        %v4512 = vpop.f32.mrb[0].mxu0
        %v4513 = vpop.f32.mrb[0].mxu0
        %v4514 = vadd.f32 0.0, %v4513
        %v4515 = vpop.f32.mrb[0].mxu0
        %4516 = vmatprep.mubr.bf16.mxu0 %v4070
        %4517 = vmatmul.mubr.bf16.gmra.mrb[0].mxu0 %v4069
        %v4518 = vpop.f32.mrb[0].mxu0
        %v4519 = vadd.f32 0.0, %v4518
        %v4520 = vpop.f32.mrb[0].mxu0
        %v4521 = vpop.f32.mrb[0].mxu0
        %v4522 = vadd.f32 0.0, %v4521
        %v4523 = vpop.f32.mrb[0].mxu0
        %4524 = vmatprep.mubr.bf16.mxu0 %v4073
        %4525 = vmatmul.mubr.bf16.gmra.mrb[0].mxu0 %v4072
        %v4526 = vpop.f32.mrb[0].mxu0
        %v4527 = vadd.f32 0.0, %v4526
        %v4528 = vpop.f32.mrb[0].mxu0
        %v4529 = vpop.f32.mrb[0].mxu0
        %v4530 = vadd.f32 0.0, %v4529
        %v4531 = vpop.f32.mrb[0].mxu0
        %4532 = vmatprep.mubr.bf16.mxu0 %v4076
        %4533 = vmatmul.mubr.bf16.gmra.mrb[0].mxu0 %v4075
        %v4534 = vpop.f32.mrb[0].mxu0
        %v4535 = vadd.f32 0.0, %v4534
        %v4536 = vpop.f32.mrb[0].mxu0
        %v4537 = vpop.f32.mrb[0].mxu0
        %v4538 = vadd.f32 0.0, %v4537
        %v4539 = vpop.f32.mrb[0].mxu0
        %4540 = vmatprep.mubr.bf16.mxu0 %v4079
        %4541 = vmatmul.mubr.bf16.gmra.mrb[0].mxu0 %v4078
        %v4542 = vpop.f32.mrb[0].mxu0
        %v4543 = vadd.f32 0.0, %v4542
        %v4544 = vpop.f32.mrb[0].mxu0
        %v4545 = vpop.f32.mrb[0].mxu0
        %v4546 = vadd.f32 0.0, %v4545
        %v4547 = vpop.f32.mrb[0].mxu0
        %4548 = vmatprep.mubr.bf16.mxu0 %v4082
        %4549 = vmatmul.mubr.bf16.gmra.mrb[0].mxu0 %v4081
        %v4550 = vpop.f32.mrb[0].mxu0
        %v4551 = vadd.f32 0.0, %v4550
        %v4552 = vpop.f32.mrb[0].mxu0
        %v4553 = vpop.f32.mrb[0].mxu0
        %v4554 = vadd.f32 0.0, %v4553
        %v4555 = vpop.f32.mrb[0].mxu0
        %4556 = vmatprep.mubr.bf16.mxu0 %v4085
        %4557 = vmatmul.mubr.bf16.gmra.mrb[0].mxu0 %v4084
        %v4558 = vpop.f32.mrb[0].mxu0
        %v4559 = vadd.f32 0.0, %v4558
        %v4560 = vpop.f32.mrb[0].mxu0
        %v4561 = vpop.f32.mrb[0].mxu0
        %v4562 = vadd.f32 0.0, %v4561
        %v4563 = vpop.f32.mrb[0].mxu0
        %4564 = vmatprep.mubr.bf16.mxu0 %v4088
        %4565 = vmatmul.mubr.bf16.gmra.mrb[0].mxu0 %v4087
        %v4566 = vpop.f32.mrb[0].mxu0
        %v4567 = vadd.f32 0.0, %v4566
        %v4568 = vpop.f32.mrb[0].mxu0
        %v4569 = vpop.f32.mrb[0].mxu0
        %v4570 = vadd.f32 0.0, %v4569
        %v4571 = vpop.f32.mrb[0].mxu0
        %4572 = vmatprep.mubr.bf16.mxu0 %v4091
        %4573 = vmatmul.mubr.bf16.gmra.mrb[0].mxu0 %v4090
        %v4574 = vpop.f32.mrb[0].mxu0
        %v4575 = vadd.f32 0.0, %v4574
        %v4576 = vpop.f32.mrb[0].mxu0
        %v4577 = vpop.f32.mrb[0].mxu0
        %v4578 = vadd.f32 0.0, %v4577
        %v4579 = vpop.f32.mrb[0].mxu0
        %4580 = vmatprep.mubr.bf16.mxu0 %v4094
        %4581 = vmatmul.mubr.bf16.gmra.mrb[0].mxu0 %v4093
        %v4582 = vpop.f32.mrb[0].mxu0
        %v4583 = vadd.f32 0.0, %v4582
        %v4584 = vpop.f32.mrb[0].mxu0
        %v4585 = vpop.f32.mrb[0].mxu0
        %v4586 = vadd.f32 0.0, %v4585
        %v4587 = vpop.f32.mrb[0].mxu0
        %4588 = vmatprep.mubr.bf16.mxu0 %v4097
        %4589 = vmatmul.mubr.bf16.gmra.mrb[0].mxu0 %v4096
        %v4590 = vpop.f32.mrb[0].mxu0
        %v4591 = vadd.f32 0.0, %v4590
        %v4592 = vpop.f32.mrb[0].mxu0
        %v4593 = vpop.f32.mrb[0].mxu0
        %v4594 = vadd.f32 0.0, %v4593
        %v4595 = vpop.f32.mrb[0].mxu0
        %4596 = vmatprep.mubr.bf16.mxu0 %v4100
        %4597 = vmatmul.mubr.bf16.gmra.mrb[0].mxu0 %v4099
        %v4598 = vpop.f32.mrb[0].mxu0
        %v4599 = vadd.f32 0.0, %v4598
        %v4600 = vpop.f32.mrb[0].mxu0
        %v4601 = vpop.f32.mrb[0].mxu0
        %v4602 = vadd.f32 0.0, %v4601
        %v4603 = vpop.f32.mrb[0].mxu0
        %4604 = vmatprep.mubr.bf16.mxu0 %v4103
        %4605 = vmatmul.mubr.bf16.gmra.mrb[0].mxu0 %v4102
        %v4606 = vpop.f32.mrb[0].mxu0
        %v4607 = vadd.f32 0.0, %v4606
        %v4608 = vpop.f32.mrb[0].mxu0
        %v4609 = vpop.f32.mrb[0].mxu0
        %v4610 = vadd.f32 0.0, %v4609
        %v4611 = vpop.f32.mrb[0].mxu0
        %4612 = vmatprep.mubr.bf16.mxu0 %v4106
        %4613 = vmatmul.mubr.bf16.gmra.mrb[0].mxu0 %v4105
        %v4614 = vpop.f32.mrb[0].mxu0
        %v4615 = vadd.f32 0.0, %v4614
        %v4616 = vpop.f32.mrb[0].mxu0
        %v4617 = vpop.f32.mrb[0].mxu0
        %v4618 = vadd.f32 0.0, %v4617
        %v4619 = vpop.f32.mrb[0].mxu0
        %4620 = vmatprep.mubr.bf16.mxu0 %v4109
        %4621 = vmatmul.mubr.bf16.gmra.mrb[0].mxu0 %v4108
        %v4622 = vpop.f32.mrb[0].mxu0
        %v4623 = vadd.f32 0.0, %v4622
        %v4624 = vpop.f32.mrb[0].mxu0
        %v4625 = vpop.f32.mrb[0].mxu0
        %v4626 = vadd.f32 0.0, %v4625
        %v4627 = vpop.f32.mrb[0].mxu0
        %4628 = vmatprep.mubr.bf16.mxu0 %v4112
        %4629 = vmatmul.mubr.bf16.gmra.mrb[0].mxu0 %v4111
        %v4630 = vpop.f32.mrb[0].mxu0
        %v4631 = vadd.f32 0.0, %v4630
        %v4632 = vpop.f32.mrb[0].mxu0
        %v4633 = vpop.f32.mrb[0].mxu0
        %v4634 = vadd.f32 0.0, %v4633
        %v4635 = vpop.f32.mrb[0].mxu0
        %4636 = vmatprep.mubr.bf16.mxu0 %v4115
        %4637 = vmatmul.mubr.bf16.gmra.mrb[0].mxu0 %v4114
        %v4638 = vpop.f32.mrb[0].mxu0
        %v4639 = vadd.f32 0.0, %v4638
        %v4640 = vpop.f32.mrb[0].mxu0
        %v4641 = vpop.f32.mrb[0].mxu0
        %v4642 = vadd.f32 0.0, %v4641
        %v4643 = vpop.f32.mrb[0].mxu0
        %4644 = vmatprep.mubr.bf16.mxu0 %v4118
        %4645 = vmatmul.mubr.bf16.gmra.mrb[0].mxu0 %v4117
        %v4646 = vpop.f32.mrb[0].mxu0
        %v4647 = vadd.f32 0.0, %v4646
        %v4648 = vpop.f32.mrb[0].mxu0
        %v4649 = vpop.f32.mrb[0].mxu0
        %v4650 = vadd.f32 0.0, %v4649
        %v4651 = vpop.f32.mrb[0].mxu0
        %4652 = vmatprep.mubr.bf16.mxu0 %v4121
        %4653 = vmatmul.mubr.bf16.gmra.mrb[0].mxu0 %v4120
        %v4654 = vpop.f32.mrb[0].mxu0
        %v4655 = vadd.f32 0.0, %v4654
        %v4656 = vpop.f32.mrb[0].mxu0
        %v4657 = vpop.f32.mrb[0].mxu0
        %v4658 = vadd.f32 0.0, %v4657
        %v4659 = vpop.f32.mrb[0].mxu0
        %4660 = vmatprep.mubr.bf16.mxu0 %v4124
        %4661 = vmatmul.mubr.bf16.gmra.mrb[0].mxu0 %v4123
        %v4662 = vpop.f32.mrb[0].mxu0
        %v4663 = vadd.f32 0.0, %v4662
        %v4664 = vpop.f32.mrb[0].mxu0
        %v4665 = vpop.f32.mrb[0].mxu0
        %v4666 = vadd.f32 0.0, %v4665
        %v4667 = vpop.f32.mrb[0].mxu0
        %4668 = vmatprep.mubr.bf16.mxu0 %v4127
        %4669 = vmatmul.mubr.bf16.gmra.mrb[0].mxu0 %v4126
        %v4670 = vpop.f32.mrb[0].mxu0
        %v4671 = vadd.f32 0.0, %v4670
        %v4672 = vpop.f32.mrb[0].mxu0
        %v4673 = vpop.f32.mrb[0].mxu0
        %v4674 = vadd.f32 0.0, %v4673
        %v4675 = vpop.f32.mrb[0].mxu0
        %4676 = vmatprep.mubr.bf16.mxu0 %v4130
        %4677 = vmatmul.mubr.bf16.gmra.mrb[0].mxu0 %v4129
        %v4678 = vpop.f32.mrb[0].mxu0
        %v4679 = vadd.f32 0.0, %v4678
        %v4680 = vpop.f32.mrb[0].mxu0
        %v4681 = vpop.f32.mrb[0].mxu0
        %v4682 = vadd.f32 0.0, %v4681
        %v4683 = vpop.f32.mrb[0].mxu0
        %4684 = vmatprep.mubr.bf16.mxu0 %v4133
        %4685 = vmatmul.mubr.bf16.gmra.mrb[0].mxu0 %v4132
        %v4686 = vpop.f32.mrb[0].mxu0
        %v4687 = vadd.f32 0.0, %v4686
        %v4688 = vpop.f32.mrb[0].mxu0
        %v4689 = vpop.f32.mrb[0].mxu0
        %v4690 = vadd.f32 0.0, %v4689
        %v4691 = vpop.f32.mrb[0].mxu0
        %4692 = vmatprep.mubr.bf16.mxu0 %v4136
        %4693 = vmatmul.mubr.bf16.gmra.mrb[0].mxu0 %v4135
        %v4694 = vpop.f32.mrb[0].mxu0
        %v4695 = vadd.f32 0.0, %v4694
        %v4696 = vpop.f32.mrb[0].mxu0
        %v4697 = vpop.f32.mrb[0].mxu0
        %v4698 = vadd.f32 0.0, %v4697
        %v4699 = vpop.f32.mrb[0].mxu0
        %4700 = vmatprep.mubr.bf16.mxu0 %v4139
        %4701 = vmatmul.mubr.bf16.gmra.mrb[0].mxu0 %v4138
        %v4702 = vpop.f32.mrb[0].mxu0
        %v4703 = vadd.f32 0.0, %v4702
        %v4704 = vpop.f32.mrb[0].mxu0
        %v4705 = vpop.f32.mrb[0].mxu0
        %v4706 = vadd.f32 0.0, %v4705
        %v4707 = vpop.f32.mrb[0].mxu0
        %4708 = vmatprep.mubr.bf16.mxu0 %v4142
        %4709 = vmatmul.mubr.bf16.gmra.mrb[0].mxu0 %v4141
        %v4710 = vpop.f32.mrb[0].mxu0
        %v4711 = vadd.f32 0.0, %v4710
        %v4712 = vpop.f32.mrb[0].mxu0
        %v4713 = vpop.f32.mrb[0].mxu0
        %v4714 = vadd.f32 0.0, %v4713
        %v4715 = vpop.f32.mrb[0].mxu0
        %4716 = vdwg.mxu0
        %4717 = vmatprep.subr.bf16.mxu0 0
        %4718 = vmatpush1.bf16.msra.mxu0 %v4364
        %4719 = vmatprep.subr.bf16.mxu0 0
        %4720 = vmatpush1.bf16.msra.mxu0 %v4365
        %4721 = vmatprep.subr.bf16.mxu0 0
        %4722 = vmatpush1.bf16.msra.mxu0 %v4366
        %4723 = vmatprep.subr.bf16.mxu0 0
        %4724 = vmatpush1.bf16.msra.mxu0 %v4367
        %4725 = vmatprep.subr.bf16.mxu0 0
        %4726 = vmatpush1.bf16.msra.mxu0 %v4368
        %4727 = vmatprep.subr.bf16.mxu0 0
        %4728 = vmatpush1.bf16.msra.mxu0 %v4369
        %4729 = vmatprep.subr.bf16.mxu0 0
        %4730 = vmatpush1.bf16.msra.mxu0 %v4370
        %4731 = vmatprep.subr.bf16.mxu0 0
        %4732 = vmatpush1.bf16.msra.mxu0 %v4371
        %4733 = vmatprep.subr.bf16.mxu0 0
        %4734 = vmatpush1.bf16.msra.mxu0 0
        %4735 = vmatprep.subr.bf16.mxu0 0
        %4736 = vmatpush1.bf16.msra.mxu0 0
        %4737 = vmatprep.subr.bf16.mxu0 0
        %4738 = vmatpush1.bf16.msra.mxu0 0
        %4739 = vmatprep.subr.bf16.mxu0 0
        %4740 = vmatpush1.bf16.msra.mxu0 0
        %4741 = vmatprep.subr.bf16.mxu0 0
        %4742 = vmatpush1.bf16.msra.mxu0 0
        %4743 = vmatprep.subr.bf16.mxu0 0
        %4744 = vmatpush1.bf16.msra.mxu0 0
        %4745 = vmatprep.subr.bf16.mxu0 0
        %4746 = vmatpush1.bf16.msra.mxu0 0
        %4747 = vmatprep.subr.bf16.mxu0 0
        %4748 = vmatpush1.bf16.msra.mxu0 0
        %4749 = vmatprep.mubr.bf16.mxu0 0
        %4750 = vmatmul.mubr.bf16.gmra.mrb[0].mxu0 %v4038
        %v4751 = vpop.f32.mrb[0].mxu0
        %v4752 = vadd.f32 %v4431, %v4751
        %v4753 = vpop.f32.mrb[0].mxu0
        %v4754 = vpop.f32.mrb[0].mxu0
        %v4755 = vadd.f32 %v4434, %v4754
        %v4756 = vpop.f32.mrb[0].mxu0
        %4757 = vmatprep.mubr.bf16.mxu0 0
        %4758 = vmatmul.mubr.bf16.gmra.mrb[0].mxu0 %v4041
        %v4759 = vpop.f32.mrb[0].mxu0
        %v4760 = vadd.f32 %v4439, %v4759
        %v4761 = vpop.f32.mrb[0].mxu0
        %v4762 = vpop.f32.mrb[0].mxu0
        %v4763 = vadd.f32 %v4442, %v4762
        %v4764 = vpop.f32.mrb[0].mxu0
        %4765 = vmatprep.mubr.bf16.mxu0 0
        %4766 = vmatmul.mubr.bf16.gmra.mrb[0].mxu0 %v4044
        %v4767 = vpop.f32.mrb[0].mxu0
        %v4768 = vadd.f32 %v4447, %v4767
        %v4769 = vpop.f32.mrb[0].mxu0
        %v4770 = vpop.f32.mrb[0].mxu0
        %v4771 = vadd.f32 %v4450, %v4770
        %v4772 = vpop.f32.mrb[0].mxu0
        %4773 = vmatprep.mubr.bf16.mxu0 0
        %4774 = vmatmul.mubr.bf16.gmra.mrb[0].mxu0 %v4047
        %v4775 = vpop.f32.mrb[0].mxu0
        %v4776 = vadd.f32 %v4455, %v4775
        %v4777 = vpop.f32.mrb[0].mxu0
        %v4778 = vpop.f32.mrb[0].mxu0
        %v4779 = vadd.f32 %v4458, %v4778
        %v4780 = vpop.f32.mrb[0].mxu0
        %4781 = vmatprep.mubr.bf16.mxu0 0
        %4782 = vmatmul.mubr.bf16.gmra.mrb[0].mxu0 %v4050
        %v4783 = vpop.f32.mrb[0].mxu0
        %v4784 = vadd.f32 %v4463, %v4783
        %v4785 = vpop.f32.mrb[0].mxu0
        %v4786 = vpop.f32.mrb[0].mxu0
        %v4787 = vadd.f32 %v4466, %v4786
        %v4788 = vpop.f32.mrb[0].mxu0
        %4789 = vmatprep.mubr.bf16.mxu0 0
        %4790 = vmatmul.mubr.bf16.gmra.mrb[0].mxu0 %v4053
        %v4791 = vpop.f32.mrb[0].mxu0
        %v4792 = vadd.f32 %v4471, %v4791
        %v4793 = vpop.f32.mrb[0].mxu0
        %v4794 = vpop.f32.mrb[0].mxu0
        %v4795 = vadd.f32 %v4474, %v4794
        %v4796 = vpop.f32.mrb[0].mxu0
        %4797 = vmatprep.mubr.bf16.mxu0 0
        %4798 = vmatmul.mubr.bf16.gmra.mrb[0].mxu0 %v4056
        %v4799 = vpop.f32.mrb[0].mxu0
        %v4800 = vadd.f32 %v4479, %v4799
        %v4801 = vpop.f32.mrb[0].mxu0
        %v4802 = vpop.f32.mrb[0].mxu0
        %v4803 = vadd.f32 %v4482, %v4802
        %v4804 = vpop.f32.mrb[0].mxu0
        %4805 = vmatprep.mubr.bf16.mxu0 0
        %4806 = vmatmul.mubr.bf16.gmra.mrb[0].mxu0 %v4059
        %v4807 = vpop.f32.mrb[0].mxu0
        %v4808 = vadd.f32 %v4487, %v4807
        %v4809 = vpop.f32.mrb[0].mxu0
        %v4810 = vpop.f32.mrb[0].mxu0
        %v4811 = vadd.f32 %v4490, %v4810
        %v4812 = vpop.f32.mrb[0].mxu0
        %4813 = vmatprep.mubr.bf16.mxu0 0
        %4814 = vmatmul.mubr.bf16.gmra.mrb[0].mxu0 %v4062
        %v4815 = vpop.f32.mrb[0].mxu0
        %v4816 = vadd.f32 %v4495, %v4815
        %v4817 = vpop.f32.mrb[0].mxu0
        %v4818 = vpop.f32.mrb[0].mxu0
        %v4819 = vadd.f32 %v4498, %v4818
        %v4820 = vpop.f32.mrb[0].mxu0
        %4821 = vmatprep.mubr.bf16.mxu0 0
        %4822 = vmatmul.mubr.bf16.gmra.mrb[0].mxu0 %v4065
        %v4823 = vpop.f32.mrb[0].mxu0
        %v4824 = vadd.f32 %v4503, %v4823
        %v4825 = vpop.f32.mrb[0].mxu0
        %v4826 = vpop.f32.mrb[0].mxu0
        %v4827 = vadd.f32 %v4506, %v4826
        %v4828 = vpop.f32.mrb[0].mxu0
        %4829 = vmatprep.mubr.bf16.mxu0 0
        %4830 = vmatmul.mubr.bf16.gmra.mrb[0].mxu0 %v4068
        %v4831 = vpop.f32.mrb[0].mxu0
        %v4832 = vadd.f32 %v4511, %v4831
        %v4833 = vpop.f32.mrb[0].mxu0
        %v4834 = vpop.f32.mrb[0].mxu0
        %v4835 = vadd.f32 %v4514, %v4834
        %v4836 = vpop.f32.mrb[0].mxu0
        %4837 = vmatprep.mubr.bf16.mxu0 0
        %4838 = vmatmul.mubr.bf16.gmra.mrb[0].mxu0 %v4071
        %v4839 = vpop.f32.mrb[0].mxu0
        %v4840 = vadd.f32 %v4519, %v4839
        %v4841 = vpop.f32.mrb[0].mxu0
        %v4842 = vpop.f32.mrb[0].mxu0
        %v4843 = vadd.f32 %v4522, %v4842
        %v4844 = vpop.f32.mrb[0].mxu0
        %4845 = vmatprep.mubr.bf16.mxu0 0
        %4846 = vmatmul.mubr.bf16.gmra.mrb[0].mxu0 %v4074
        %v4847 = vpop.f32.mrb[0].mxu0
        %v4848 = vadd.f32 %v4527, %v4847
        %v4849 = vpop.f32.mrb[0].mxu0
        %v4850 = vpop.f32.mrb[0].mxu0
        %v4851 = vadd.f32 %v4530, %v4850
        %v4852 = vpop.f32.mrb[0].mxu0
        %4853 = vmatprep.mubr.bf16.mxu0 0
        %4854 = vmatmul.mubr.bf16.gmra.mrb[0].mxu0 %v4077
        %v4855 = vpop.f32.mrb[0].mxu0
        %v4856 = vadd.f32 %v4535, %v4855
        %v4857 = vpop.f32.mrb[0].mxu0
        %v4858 = vpop.f32.mrb[0].mxu0
        %v4859 = vadd.f32 %v4538, %v4858
        %v4860 = vpop.f32.mrb[0].mxu0
        %4861 = vmatprep.mubr.bf16.mxu0 0
        %4862 = vmatmul.mubr.bf16.gmra.mrb[0].mxu0 %v4080
        %v4863 = vpop.f32.mrb[0].mxu0
        %v4864 = vadd.f32 %v4543, %v4863
        %v4865 = vpop.f32.mrb[0].mxu0
        %v4866 = vpop.f32.mrb[0].mxu0
        %v4867 = vadd.f32 %v4546, %v4866
        %v4868 = vpop.f32.mrb[0].mxu0
        %4869 = vmatprep.mubr.bf16.mxu0 0
        %4870 = vmatmul.mubr.bf16.gmra.mrb[0].mxu0 %v4083
        %v4871 = vpop.f32.mrb[0].mxu0
        %v4872 = vadd.f32 %v4551, %v4871
        %v4873 = vpop.f32.mrb[0].mxu0
        %v4874 = vpop.f32.mrb[0].mxu0
        %v4875 = vadd.f32 %v4554, %v4874
        %v4876 = vpop.f32.mrb[0].mxu0
        %4877 = vmatprep.mubr.bf16.mxu0 0
        %4878 = vmatmul.mubr.bf16.gmra.mrb[0].mxu0 %v4086
        %v4879 = vpop.f32.mrb[0].mxu0
        %v4880 = vadd.f32 %v4559, %v4879
        %v4881 = vpop.f32.mrb[0].mxu0
        %v4882 = vpop.f32.mrb[0].mxu0
        %v4883 = vadd.f32 %v4562, %v4882
        %v4884 = vpop.f32.mrb[0].mxu0
        %4885 = vmatprep.mubr.bf16.mxu0 0
        %4886 = vmatmul.mubr.bf16.gmra.mrb[0].mxu0 %v4089
        %v4887 = vpop.f32.mrb[0].mxu0
        %v4888 = vadd.f32 %v4567, %v4887
        %v4889 = vpop.f32.mrb[0].mxu0
        %v4890 = vpop.f32.mrb[0].mxu0
        %v4891 = vadd.f32 %v4570, %v4890
        %v4892 = vpop.f32.mrb[0].mxu0
        %4893 = vmatprep.mubr.bf16.mxu0 0
        %4894 = vmatmul.mubr.bf16.gmra.mrb[0].mxu0 %v4092
        %v4895 = vpop.f32.mrb[0].mxu0
        %v4896 = vadd.f32 %v4575, %v4895
        %v4897 = vpop.f32.mrb[0].mxu0
        %v4898 = vpop.f32.mrb[0].mxu0
        %v4899 = vadd.f32 %v4578, %v4898
        %v4900 = vpop.f32.mrb[0].mxu0
        %4901 = vmatprep.mubr.bf16.mxu0 0
        %4902 = vmatmul.mubr.bf16.gmra.mrb[0].mxu0 %v4095
        %v4903 = vpop.f32.mrb[0].mxu0
        %v4904 = vadd.f32 %v4583, %v4903
        %v4905 = vpop.f32.mrb[0].mxu0
        %v4906 = vpop.f32.mrb[0].mxu0
        %v4907 = vadd.f32 %v4586, %v4906
        %v4908 = vpop.f32.mrb[0].mxu0
        %4909 = vmatprep.mubr.bf16.mxu0 0
        %4910 = vmatmul.mubr.bf16.gmra.mrb[0].mxu0 %v4098
        %v4911 = vpop.f32.mrb[0].mxu0
        %v4912 = vadd.f32 %v4591, %v4911
        %v4913 = vpop.f32.mrb[0].mxu0
        %v4914 = vpop.f32.mrb[0].mxu0
        %v4915 = vadd.f32 %v4594, %v4914
        %v4916 = vpop.f32.mrb[0].mxu0
        %4917 = vmatprep.mubr.bf16.mxu0 0
        %4918 = vmatmul.mubr.bf16.gmra.mrb[0].mxu0 %v4101
        %v4919 = vpop.f32.mrb[0].mxu0
        %v4920 = vadd.f32 %v4599, %v4919
        %v4921 = vpop.f32.mrb[0].mxu0
        %v4922 = vpop.f32.mrb[0].mxu0
        %v4923 = vadd.f32 %v4602, %v4922
        %v4924 = vpop.f32.mrb[0].mxu0
        %4925 = vmatprep.mubr.bf16.mxu0 0
        %4926 = vmatmul.mubr.bf16.gmra.mrb[0].mxu0 %v4104
        %v4927 = vpop.f32.mrb[0].mxu0
        %v4928 = vadd.f32 %v4607, %v4927
        %v4929 = vpop.f32.mrb[0].mxu0
        %v4930 = vpop.f32.mrb[0].mxu0
        %v4931 = vadd.f32 %v4610, %v4930
        %v4932 = vpop.f32.mrb[0].mxu0
        %4933 = vmatprep.mubr.bf16.mxu0 0
        %4934 = vmatmul.mubr.bf16.gmra.mrb[0].mxu0 %v4107
        %v4935 = vpop.f32.mrb[0].mxu0
        %v4936 = vadd.f32 %v4615, %v4935
        %v4937 = vpop.f32.mrb[0].mxu0
        %v4938 = vpop.f32.mrb[0].mxu0
        %v4939 = vadd.f32 %v4618, %v4938
        %v4940 = vpop.f32.mrb[0].mxu0
        %4941 = vmatprep.mubr.bf16.mxu0 0
        %4942 = vmatmul.mubr.bf16.gmra.mrb[0].mxu0 %v4110
        %v4943 = vpop.f32.mrb[0].mxu0
        %v4944 = vadd.f32 %v4623, %v4943
        %v4945 = vpop.f32.mrb[0].mxu0
        %v4946 = vpop.f32.mrb[0].mxu0
        %v4947 = vadd.f32 %v4626, %v4946
        %v4948 = vpop.f32.mrb[0].mxu0
        %4949 = vmatprep.mubr.bf16.mxu0 0
        %4950 = vmatmul.mubr.bf16.gmra.mrb[0].mxu0 %v4113
        %v4951 = vpop.f32.mrb[0].mxu0
        %v4952 = vadd.f32 %v4631, %v4951
        %v4953 = vpop.f32.mrb[0].mxu0
        %v4954 = vpop.f32.mrb[0].mxu0
        %v4955 = vadd.f32 %v4634, %v4954
        %v4956 = vpop.f32.mrb[0].mxu0
        %4957 = vmatprep.mubr.bf16.mxu0 0
        %4958 = vmatmul.mubr.bf16.gmra.mrb[0].mxu0 %v4116
        %v4959 = vpop.f32.mrb[0].mxu0
        %v4960 = vadd.f32 %v4639, %v4959
        %v4961 = vpop.f32.mrb[0].mxu0
        %v4962 = vpop.f32.mrb[0].mxu0
        %v4963 = vadd.f32 %v4642, %v4962
        %v4964 = vpop.f32.mrb[0].mxu0
        %4965 = vmatprep.mubr.bf16.mxu0 0
        %4966 = vmatmul.mubr.bf16.gmra.mrb[0].mxu0 %v4119
        %v4967 = vpop.f32.mrb[0].mxu0
        %v4968 = vadd.f32 %v4647, %v4967
        %v4969 = vpop.f32.mrb[0].mxu0
        %v4970 = vpop.f32.mrb[0].mxu0
        %v4971 = vadd.f32 %v4650, %v4970
        %v4972 = vpop.f32.mrb[0].mxu0
        %4973 = vmatprep.mubr.bf16.mxu0 0
        %4974 = vmatmul.mubr.bf16.gmra.mrb[0].mxu0 %v4122
        %v4975 = vpop.f32.mrb[0].mxu0
        %v4976 = vadd.f32 %v4655, %v4975
        %v4977 = vpop.f32.mrb[0].mxu0
        %v4978 = vpop.f32.mrb[0].mxu0
        %v4979 = vadd.f32 %v4658, %v4978
        %v4980 = vpop.f32.mrb[0].mxu0
        %4981 = vmatprep.mubr.bf16.mxu0 0
        %4982 = vmatmul.mubr.bf16.gmra.mrb[0].mxu0 %v4125
        %v4983 = vpop.f32.mrb[0].mxu0
        %v4984 = vadd.f32 %v4663, %v4983
        %v4985 = vpop.f32.mrb[0].mxu0
        %v4986 = vpop.f32.mrb[0].mxu0
        %v4987 = vadd.f32 %v4666, %v4986
        %v4988 = vpop.f32.mrb[0].mxu0
        %4989 = vmatprep.mubr.bf16.mxu0 0
        %4990 = vmatmul.mubr.bf16.gmra.mrb[0].mxu0 %v4128
        %v4991 = vpop.f32.mrb[0].mxu0
        %v4992 = vadd.f32 %v4671, %v4991
        %v4993 = vpop.f32.mrb[0].mxu0
        %v4994 = vpop.f32.mrb[0].mxu0
        %v4995 = vadd.f32 %v4674, %v4994
        %v4996 = vpop.f32.mrb[0].mxu0
        %4997 = vmatprep.mubr.bf16.mxu0 0
        %4998 = vmatmul.mubr.bf16.gmra.mrb[0].mxu0 %v4131
        %v4999 = vpop.f32.mrb[0].mxu0
        %v5000 = vadd.f32 %v4679, %v4999
        %v5001 = vpop.f32.mrb[0].mxu0
        %v5002 = vpop.f32.mrb[0].mxu0
        %v5003 = vadd.f32 %v4682, %v5002
        %v5004 = vpop.f32.mrb[0].mxu0
        %5005 = vmatprep.mubr.bf16.mxu0 0
        %5006 = vmatmul.mubr.bf16.gmra.mrb[0].mxu0 %v4134
        %v5007 = vpop.f32.mrb[0].mxu0
        %v5008 = vadd.f32 %v4687, %v5007
        %v5009 = vpop.f32.mrb[0].mxu0
        %v5010 = vpop.f32.mrb[0].mxu0
        %v5011 = vadd.f32 %v4690, %v5010
        %v5012 = vpop.f32.mrb[0].mxu0
        %5013 = vmatprep.mubr.bf16.mxu0 0
        %5014 = vmatmul.mubr.bf16.gmra.mrb[0].mxu0 %v4137
        %v5015 = vpop.f32.mrb[0].mxu0
        %v5016 = vadd.f32 %v4695, %v5015
        %v5017 = vpop.f32.mrb[0].mxu0
        %v5018 = vpop.f32.mrb[0].mxu0
        %v5019 = vadd.f32 %v4698, %v5018
        %v5020 = vpop.f32.mrb[0].mxu0
        %5021 = vmatprep.mubr.bf16.mxu0 0
        %5022 = vmatmul.mubr.bf16.gmra.mrb[0].mxu0 %v4140
        %v5023 = vpop.f32.mrb[0].mxu0
        %v5024 = vadd.f32 %v4703, %v5023
        %v5025 = vpop.f32.mrb[0].mxu0
        %v5026 = vpop.f32.mrb[0].mxu0
        %v5027 = vadd.f32 %v4706, %v5026
        %v5028 = vpop.f32.mrb[0].mxu0
        %5029 = vmatprep.mubr.bf16.mxu0 0
        %5030 = vmatmul.mubr.bf16.gmra.mrb[0].mxu0 %v4143
        %v5031 = vpop.f32.mrb[0].mxu0
        %v5032 = vadd.f32 %v4711, %v5031
        %v5033 = vpop.f32.mrb[0].mxu0
        %v5034 = vpop.f32.mrb[0].mxu0
        %v5035 = vadd.f32 %v4714, %v5034
        %v5036 = vpop.f32.mrb[0].mxu0
        %5037 = vdwg.mxu0
        %v5038 = vadd.f32 %v3196, %v4752
        %v5039 = vadd.f32 %v3199, %v4755
        %v5040 = vadd.f32 %v3204, %v4760
        %v5041 = vadd.f32 %v3207, %v4763
        %v5042 = vadd.f32 %v3212, %v4768
        %v5043 = vadd.f32 %v3215, %v4771
        %v5044 = vadd.f32 %v3220, %v4776
        %v5045 = vadd.f32 %v3223, %v4779
        %v5046 = vadd.f32 %v3228, %v4784
        %v5047 = vadd.f32 %v3231, %v4787
        %v5048 = vadd.f32 %v3236, %v4792
        %v5049 = vadd.f32 %v3239, %v4795
        %v5050 = vadd.f32 %v3244, %v4800
        %v5051 = vadd.f32 %v3247, %v4803
        %v5052 = vadd.f32 %v3252, %v4808
        %v5053 = vadd.f32 %v3255, %v4811
        %v5054 = vadd.f32 %v3260, %v4816
        %v5055 = vadd.f32 %v3263, %v4819
        %v5056 = vadd.f32 %v3268, %v4824
        %v5057 = vadd.f32 %v3271, %v4827
        %v5058 = vadd.f32 %v3276, %v4832
        %v5059 = vadd.f32 %v3279, %v4835
        %v5060 = vadd.f32 %v3284, %v4840
        %v5061 = vadd.f32 %v3287, %v4843
        %v5062 = vadd.f32 %v3292, %v4848
        %v5063 = vadd.f32 %v3295, %v4851
        %v5064 = vadd.f32 %v3300, %v4856
        %v5065 = vadd.f32 %v3303, %v4859
        %v5066 = vadd.f32 %v3308, %v4864
        %v5067 = vadd.f32 %v3311, %v4867
        %v5068 = vadd.f32 %v3316, %v4872
        %v5069 = vadd.f32 %v3319, %v4875
        %v5070 = vadd.f32 %v3324, %v4880
        %v5071 = vadd.f32 %v3327, %v4883
        %v5072 = vadd.f32 %v3332, %v4888
        %v5073 = vadd.f32 %v3335, %v4891
        %v5074 = vadd.f32 %v3340, %v4896
        %v5075 = vadd.f32 %v3343, %v4899
        %v5076 = vadd.f32 %v3348, %v4904
        %v5077 = vadd.f32 %v3351, %v4907
        %v5078 = vadd.f32 %v3356, %v4912
        %v5079 = vadd.f32 %v3359, %v4915
        %v5080 = vadd.f32 %v3364, %v4920
        %v5081 = vadd.f32 %v3367, %v4923
        %v5082 = vadd.f32 %v3372, %v4928
        %v5083 = vadd.f32 %v3375, %v4931
        %v5084 = vadd.f32 %v3380, %v4936
        %v5085 = vadd.f32 %v3383, %v4939
        %v5086 = vadd.f32 %v3388, %v4944
        %v5087 = vadd.f32 %v3391, %v4947
        %v5088 = vadd.f32 %v3396, %v4952
        %v5089 = vadd.f32 %v3399, %v4955
        %v5090 = vadd.f32 %v3404, %v4960
        %v5091 = vadd.f32 %v3407, %v4963
        %v5092 = vadd.f32 %v3412, %v4968
        %v5093 = vadd.f32 %v3415, %v4971
        %v5094 = vadd.f32 %v3420, %v4976
        %v5095 = vadd.f32 %v3423, %v4979
        %v5096 = vadd.f32 %v3428, %v4984
        %v5097 = vadd.f32 %v3431, %v4987
        %v5098 = vadd.f32 %v3436, %v4992
        %v5099 = vadd.f32 %v3439, %v4995
        %v5100 = vadd.f32 %v3444, %v5000
        %v5101 = vadd.f32 %v3447, %v5003
        %v5102 = vadd.f32 %v3452, %v5008
        %v5103 = vadd.f32 %v3455, %v5011
        %v5104 = vadd.f32 %v3460, %v5016
        %v5105 = vadd.f32 %v3463, %v5019
        %v5106 = vadd.f32 %v3468, %v5024
        %v5107 = vadd.f32 %v3471, %v5027
        %v5108 = vadd.f32 %v3476, %v5032
        %v5109 = vadd.f32 %v3479, %v5035
        %v5110 = vld [vmem:[%s4] sm:$0x1]
        %v5112 = vlaneseq
        %v5113 = vshrl.u32 %v5112, 7
        %v5114 = vsub.s32 0, %v5113
        %v5115 = vrot.slane %v5110, %v5114
        %v5117 = vmul.f32 %v5038, %v5115
        %v5118 = vmul.f32 %v5039, %v5115
        %v5119 = vmul.f32 %v5040, %v5115
        %v5120 = vmul.f32 %v5041, %v5115
        %v5121 = vmul.f32 %v5042, %v5115
        %v5122 = vmul.f32 %v5043, %v5115
        %v5123 = vmul.f32 %v5044, %v5115
        %v5124 = vmul.f32 %v5045, %v5115
        %v5125 = vmul.f32 %v5046, %v5115
        %v5126 = vmul.f32 %v5047, %v5115
        %v5127 = vmul.f32 %v5048, %v5115
        %v5128 = vmul.f32 %v5049, %v5115
        %v5129 = vmul.f32 %v5050, %v5115
        %v5130 = vmul.f32 %v5051, %v5115
        %v5131 = vmul.f32 %v5052, %v5115
        %v5132 = vmul.f32 %v5053, %v5115
        %v5133 = vmul.f32 %v5054, %v5115
        %v5134 = vmul.f32 %v5055, %v5115
        %v5135 = vmul.f32 %v5056, %v5115
        %v5136 = vmul.f32 %v5057, %v5115
        %v5137 = vmul.f32 %v5058, %v5115
        %v5138 = vmul.f32 %v5059, %v5115
        %v5139 = vmul.f32 %v5060, %v5115
        %v5140 = vmul.f32 %v5061, %v5115
        %v5141 = vmul.f32 %v5062, %v5115
        %v5142 = vmul.f32 %v5063, %v5115
        %v5143 = vmul.f32 %v5064, %v5115
        %v5144 = vmul.f32 %v5065, %v5115
        %v5145 = vmul.f32 %v5066, %v5115
        %v5146 = vmul.f32 %v5067, %v5115
        %v5147 = vmul.f32 %v5068, %v5115
        %v5148 = vmul.f32 %v5069, %v5115
        %v5149 = vmul.f32 %v5070, %v5115
        %v5150 = vmul.f32 %v5071, %v5115
        %v5151 = vmul.f32 %v5072, %v5115
        %v5152 = vmul.f32 %v5073, %v5115
        %v5153 = vmul.f32 %v5074, %v5115
        %v5154 = vmul.f32 %v5075, %v5115
        %v5155 = vmul.f32 %v5076, %v5115
        %v5156 = vmul.f32 %v5077, %v5115
        %v5157 = vmul.f32 %v5078, %v5115
        %v5158 = vmul.f32 %v5079, %v5115
        %v5159 = vmul.f32 %v5080, %v5115
        %v5160 = vmul.f32 %v5081, %v5115
        %v5161 = vmul.f32 %v5082, %v5115
        %v5162 = vmul.f32 %v5083, %v5115
        %v5163 = vmul.f32 %v5084, %v5115
        %v5164 = vmul.f32 %v5085, %v5115
        %v5165 = vmul.f32 %v5086, %v5115
        %v5166 = vmul.f32 %v5087, %v5115
        %v5167 = vmul.f32 %v5088, %v5115
        %v5168 = vmul.f32 %v5089, %v5115
        %v5169 = vmul.f32 %v5090, %v5115
        %v5170 = vmul.f32 %v5091, %v5115
        %v5171 = vmul.f32 %v5092, %v5115
        %v5172 = vmul.f32 %v5093, %v5115
        %v5173 = vmul.f32 %v5094, %v5115
        %v5174 = vmul.f32 %v5095, %v5115
        %v5175 = vmul.f32 %v5096, %v5115
        %v5176 = vmul.f32 %v5097, %v5115
        %v5177 = vmul.f32 %v5098, %v5115
        %v5178 = vmul.f32 %v5099, %v5115
        %v5179 = vmul.f32 %v5100, %v5115
        %v5180 = vmul.f32 %v5101, %v5115
        %v5181 = vmul.f32 %v5102, %v5115
        %v5182 = vmul.f32 %v5103, %v5115
        %v5183 = vmul.f32 %v5104, %v5115
        %v5184 = vmul.f32 %v5105, %v5115
        %v5185 = vmul.f32 %v5106, %v5115
        %v5186 = vmul.f32 %v5107, %v5115
        %v5187 = vmul.f32 %v5108, %v5115
        %v5188 = vmul.f32 %v5109, %v5115
        %v5189 = vld [vmem:[%s5] sm:$0x1]
        %v5191 = vlaneseq
        %v5192 = vshrl.u32 %v5191, 7
        %v5193 = vsub.s32 0, %v5192
        %v5194 = vrot.slane %v5189, %v5193
        %v5196 = vadd.f32 %v5117, %v5194
        %v5197 = vadd.f32 %v5118, %v5194
        %v5198 = vadd.f32 %v5119, %v5194
        %v5199 = vadd.f32 %v5120, %v5194
        %v5200 = vadd.f32 %v5121, %v5194
        %v5201 = vadd.f32 %v5122, %v5194
        %v5202 = vadd.f32 %v5123, %v5194
        %v5203 = vadd.f32 %v5124, %v5194
        %v5204 = vadd.f32 %v5125, %v5194
        %v5205 = vadd.f32 %v5126, %v5194
        %v5206 = vadd.f32 %v5127, %v5194
        %v5207 = vadd.f32 %v5128, %v5194
        %v5208 = vadd.f32 %v5129, %v5194
        %v5209 = vadd.f32 %v5130, %v5194
        %v5210 = vadd.f32 %v5131, %v5194
        %v5211 = vadd.f32 %v5132, %v5194
        %v5212 = vadd.f32 %v5133, %v5194
        %v5213 = vadd.f32 %v5134, %v5194
        %v5214 = vadd.f32 %v5135, %v5194
        %v5215 = vadd.f32 %v5136, %v5194
        %v5216 = vadd.f32 %v5137, %v5194
        %v5217 = vadd.f32 %v5138, %v5194
        %v5218 = vadd.f32 %v5139, %v5194
        %v5219 = vadd.f32 %v5140, %v5194
        %v5220 = vadd.f32 %v5141, %v5194
        %v5221 = vadd.f32 %v5142, %v5194
        %v5222 = vadd.f32 %v5143, %v5194
        %v5223 = vadd.f32 %v5144, %v5194
        %v5224 = vadd.f32 %v5145, %v5194
        %v5225 = vadd.f32 %v5146, %v5194
        %v5226 = vadd.f32 %v5147, %v5194
        %v5227 = vadd.f32 %v5148, %v5194
        %v5228 = vadd.f32 %v5149, %v5194
        %v5229 = vadd.f32 %v5150, %v5194
        %v5230 = vadd.f32 %v5151, %v5194
        %v5231 = vadd.f32 %v5152, %v5194
        %v5232 = vadd.f32 %v5153, %v5194
        %v5233 = vadd.f32 %v5154, %v5194
        %v5234 = vadd.f32 %v5155, %v5194
        %v5235 = vadd.f32 %v5156, %v5194
        %v5236 = vadd.f32 %v5157, %v5194
        %v5237 = vadd.f32 %v5158, %v5194
        %v5238 = vadd.f32 %v5159, %v5194
        %v5239 = vadd.f32 %v5160, %v5194
        %v5240 = vadd.f32 %v5161, %v5194
        %v5241 = vadd.f32 %v5162, %v5194
        %v5242 = vadd.f32 %v5163, %v5194
        %v5243 = vadd.f32 %v5164, %v5194
        %v5244 = vadd.f32 %v5165, %v5194
        %v5245 = vadd.f32 %v5166, %v5194
        %v5246 = vadd.f32 %v5167, %v5194
        %v5247 = vadd.f32 %v5168, %v5194
        %v5248 = vadd.f32 %v5169, %v5194
        %v5249 = vadd.f32 %v5170, %v5194
        %v5250 = vadd.f32 %v5171, %v5194
        %v5251 = vadd.f32 %v5172, %v5194
        %v5252 = vadd.f32 %v5173, %v5194
        %v5253 = vadd.f32 %v5174, %v5194
        %v5254 = vadd.f32 %v5175, %v5194
        %v5255 = vadd.f32 %v5176, %v5194
        %v5256 = vadd.f32 %v5177, %v5194
        %v5257 = vadd.f32 %v5178, %v5194
        %v5258 = vadd.f32 %v5179, %v5194
        %v5259 = vadd.f32 %v5180, %v5194
        %v5260 = vadd.f32 %v5181, %v5194
        %v5261 = vadd.f32 %v5182, %v5194
        %v5262 = vadd.f32 %v5183, %v5194
        %v5263 = vadd.f32 %v5184, %v5194
        %v5264 = vadd.f32 %v5185, %v5194
        %v5265 = vadd.f32 %v5186, %v5194
        %v5266 = vadd.f32 %v5187, %v5194
        %v5267 = vadd.f32 %v5188, %v5194
        %v5268 = vxor.u32 %v5196, 2147483648
        %v5269 = vxor.u32 %v5197, 2147483648
        %v5270 = vxor.u32 %v5198, 2147483648
        %v5271 = vxor.u32 %v5199, 2147483648
        %v5272 = vxor.u32 %v5200, 2147483648
        %v5273 = vxor.u32 %v5201, 2147483648
        %v5274 = vxor.u32 %v5202, 2147483648
        %v5275 = vxor.u32 %v5203, 2147483648
        %v5276 = vxor.u32 %v5204, 2147483648
        %v5277 = vxor.u32 %v5205, 2147483648
        %v5278 = vxor.u32 %v5206, 2147483648
        %v5279 = vxor.u32 %v5207, 2147483648
        %v5280 = vxor.u32 %v5208, 2147483648
        %v5281 = vxor.u32 %v5209, 2147483648
        %v5282 = vxor.u32 %v5210, 2147483648
        %v5283 = vxor.u32 %v5211, 2147483648
        %v5284 = vxor.u32 %v5212, 2147483648
        %v5285 = vxor.u32 %v5213, 2147483648
        %v5286 = vxor.u32 %v5214, 2147483648
        %v5287 = vxor.u32 %v5215, 2147483648
        %v5288 = vxor.u32 %v5216, 2147483648
        %v5289 = vxor.u32 %v5217, 2147483648
        %v5290 = vxor.u32 %v5218, 2147483648
        %v5291 = vxor.u32 %v5219, 2147483648
        %v5292 = vxor.u32 %v5220, 2147483648
        %v5293 = vxor.u32 %v5221, 2147483648
        %v5294 = vxor.u32 %v5222, 2147483648
        %v5295 = vxor.u32 %v5223, 2147483648
        %v5296 = vxor.u32 %v5224, 2147483648
        %v5297 = vxor.u32 %v5225, 2147483648
        %v5298 = vxor.u32 %v5226, 2147483648
        %v5299 = vxor.u32 %v5227, 2147483648
        %v5300 = vxor.u32 %v5228, 2147483648
        %v5301 = vxor.u32 %v5229, 2147483648
        %v5302 = vxor.u32 %v5230, 2147483648
        %v5303 = vxor.u32 %v5231, 2147483648
        %v5304 = vxor.u32 %v5232, 2147483648
        %v5305 = vxor.u32 %v5233, 2147483648
        %v5306 = vxor.u32 %v5234, 2147483648
        %v5307 = vxor.u32 %v5235, 2147483648
        %v5308 = vxor.u32 %v5236, 2147483648
        %v5309 = vxor.u32 %v5237, 2147483648
        %v5310 = vxor.u32 %v5238, 2147483648
        %v5311 = vxor.u32 %v5239, 2147483648
        %v5312 = vxor.u32 %v5240, 2147483648
        %v5313 = vxor.u32 %v5241, 2147483648
        %v5314 = vxor.u32 %v5242, 2147483648
        %v5315 = vxor.u32 %v5243, 2147483648
        %v5316 = vxor.u32 %v5244, 2147483648
        %v5317 = vxor.u32 %v5245, 2147483648
        %v5318 = vxor.u32 %v5246, 2147483648
        %v5319 = vxor.u32 %v5247, 2147483648
        %v5320 = vxor.u32 %v5248, 2147483648
        %v5321 = vxor.u32 %v5249, 2147483648
        %v5322 = vxor.u32 %v5250, 2147483648
        %v5323 = vxor.u32 %v5251, 2147483648
        %v5324 = vxor.u32 %v5252, 2147483648
        %v5325 = vxor.u32 %v5253, 2147483648
        %v5326 = vxor.u32 %v5254, 2147483648
        %v5327 = vxor.u32 %v5255, 2147483648
        %v5328 = vxor.u32 %v5256, 2147483648
        %v5329 = vxor.u32 %v5257, 2147483648
        %v5330 = vxor.u32 %v5258, 2147483648
        %v5331 = vxor.u32 %v5259, 2147483648
        %v5332 = vxor.u32 %v5260, 2147483648
        %v5333 = vxor.u32 %v5261, 2147483648
        %v5334 = vxor.u32 %v5262, 2147483648
        %v5335 = vxor.u32 %v5263, 2147483648
        %v5336 = vxor.u32 %v5264, 2147483648
        %v5337 = vxor.u32 %v5265, 2147483648
        %v5338 = vxor.u32 %v5266, 2147483648
        %v5339 = vxor.u32 %v5267, 2147483648
        %v5340 = vmul.f32 %v5268, 1.442695
        %v5341 = vpow.pop %v5340
        %v5342 = vmul.f32 %v5269, 1.442695
        %v5343 = vpow.pop %v5342
        %v5344 = vmul.f32 %v5270, 1.442695
        %v5345 = vpow.pop %v5344
        %v5346 = vmul.f32 %v5271, 1.442695
        %v5347 = vpow.pop %v5346
        %v5348 = vmul.f32 %v5272, 1.442695
        %v5349 = vpow.pop %v5348
        %v5350 = vmul.f32 %v5273, 1.442695
        %v5351 = vpow.pop %v5350
        %v5352 = vmul.f32 %v5274, 1.442695
        %v5353 = vpow.pop %v5352
        %v5354 = vmul.f32 %v5275, 1.442695
        %v5355 = vpow.pop %v5354
        %v5356 = vmul.f32 %v5276, 1.442695
        %v5357 = vpow.pop %v5356
        %v5358 = vmul.f32 %v5277, 1.442695
        %v5359 = vpow.pop %v5358
        %v5360 = vmul.f32 %v5278, 1.442695
        %v5361 = vpow.pop %v5360
        %v5362 = vmul.f32 %v5279, 1.442695
        %v5363 = vpow.pop %v5362
        %v5364 = vmul.f32 %v5280, 1.442695
        %v5365 = vpow.pop %v5364
        %v5366 = vmul.f32 %v5281, 1.442695
        %v5367 = vpow.pop %v5366
        %v5368 = vmul.f32 %v5282, 1.442695
        %v5369 = vpow.pop %v5368
        %v5370 = vmul.f32 %v5283, 1.442695
        %v5371 = vpow.pop %v5370
        %v5372 = vmul.f32 %v5284, 1.442695
        %v5373 = vpow.pop %v5372
        %v5374 = vmul.f32 %v5285, 1.442695
        %v5375 = vpow.pop %v5374
        %v5376 = vmul.f32 %v5286, 1.442695
        %v5377 = vpow.pop %v5376
        %v5378 = vmul.f32 %v5287, 1.442695
        %v5379 = vpow.pop %v5378
        %v5380 = vmul.f32 %v5288, 1.442695
        %v5381 = vpow.pop %v5380
        %v5382 = vmul.f32 %v5289, 1.442695
        %v5383 = vpow.pop %v5382
        %v5384 = vmul.f32 %v5290, 1.442695
        %v5385 = vpow.pop %v5384
        %v5386 = vmul.f32 %v5291, 1.442695
        %v5387 = vpow.pop %v5386
        %v5388 = vmul.f32 %v5292, 1.442695
        %v5389 = vpow.pop %v5388
        %v5390 = vmul.f32 %v5293, 1.442695
        %v5391 = vpow.pop %v5390
        %v5392 = vmul.f32 %v5294, 1.442695
        %v5393 = vpow.pop %v5392
        %v5394 = vmul.f32 %v5295, 1.442695
        %v5395 = vpow.pop %v5394
        %v5396 = vmul.f32 %v5296, 1.442695
        %v5397 = vpow.pop %v5396
        %v5398 = vmul.f32 %v5297, 1.442695
        %v5399 = vpow.pop %v5398
        %v5400 = vmul.f32 %v5298, 1.442695
        %v5401 = vpow.pop %v5400
        %v5402 = vmul.f32 %v5299, 1.442695
        %v5403 = vpow.pop %v5402
        %v5404 = vmul.f32 %v5300, 1.442695
        %v5405 = vpow.pop %v5404
        %v5406 = vmul.f32 %v5301, 1.442695
        %v5407 = vpow.pop %v5406
        %v5408 = vmul.f32 %v5302, 1.442695
        %v5409 = vpow.pop %v5408
        %v5410 = vmul.f32 %v5303, 1.442695
        %v5411 = vpow.pop %v5410
        %v5412 = vmul.f32 %v5304, 1.442695
        %v5413 = vpow.pop %v5412
        %v5414 = vmul.f32 %v5305, 1.442695
        %v5415 = vpow.pop %v5414
        %v5416 = vmul.f32 %v5306, 1.442695
        %v5417 = vpow.pop %v5416
        %v5418 = vmul.f32 %v5307, 1.442695
        %v5419 = vpow.pop %v5418
        %v5420 = vmul.f32 %v5308, 1.442695
        %v5421 = vpow.pop %v5420
        %v5422 = vmul.f32 %v5309, 1.442695
        %v5423 = vpow.pop %v5422
        %v5424 = vmul.f32 %v5310, 1.442695
        %v5425 = vpow.pop %v5424
        %v5426 = vmul.f32 %v5311, 1.442695
        %v5427 = vpow.pop %v5426
        %v5428 = vmul.f32 %v5312, 1.442695
        %v5429 = vpow.pop %v5428
        %v5430 = vmul.f32 %v5313, 1.442695
        %v5431 = vpow.pop %v5430
        %v5432 = vmul.f32 %v5314, 1.442695
        %v5433 = vpow.pop %v5432
        %v5434 = vmul.f32 %v5315, 1.442695
        %v5435 = vpow.pop %v5434
        %v5436 = vmul.f32 %v5316, 1.442695
        %v5437 = vpow.pop %v5436
        %v5438 = vmul.f32 %v5317, 1.442695
        %v5439 = vpow.pop %v5438
        %v5440 = vmul.f32 %v5318, 1.442695
        %v5441 = vpow.pop %v5440
        %v5442 = vmul.f32 %v5319, 1.442695
        %v5443 = vpow.pop %v5442
        %v5444 = vmul.f32 %v5320, 1.442695
        %v5445 = vpow.pop %v5444
        %v5446 = vmul.f32 %v5321, 1.442695
        %v5447 = vpow.pop %v5446
        %v5448 = vmul.f32 %v5322, 1.442695
        %v5449 = vpow.pop %v5448
        %v5450 = vmul.f32 %v5323, 1.442695
        %v5451 = vpow.pop %v5450
        %v5452 = vmul.f32 %v5324, 1.442695
        %v5453 = vpow.pop %v5452
        %v5454 = vmul.f32 %v5325, 1.442695
        %v5455 = vpow.pop %v5454
        %v5456 = vmul.f32 %v5326, 1.442695
        %v5457 = vpow.pop %v5456
        %v5458 = vmul.f32 %v5327, 1.442695
        %v5459 = vpow.pop %v5458
        %v5460 = vmul.f32 %v5328, 1.442695
        %v5461 = vpow.pop %v5460
        %v5462 = vmul.f32 %v5329, 1.442695
        %v5463 = vpow.pop %v5462
        %v5464 = vmul.f32 %v5330, 1.442695
        %v5465 = vpow.pop %v5464
        %v5466 = vmul.f32 %v5331, 1.442695
        %v5467 = vpow.pop %v5466
        %v5468 = vmul.f32 %v5332, 1.442695
        %v5469 = vpow.pop %v5468
        %v5470 = vmul.f32 %v5333, 1.442695
        %v5471 = vpow.pop %v5470
        %v5472 = vmul.f32 %v5334, 1.442695
        %v5473 = vpow.pop %v5472
        %v5474 = vmul.f32 %v5335, 1.442695
        %v5475 = vpow.pop %v5474
        %v5476 = vmul.f32 %v5336, 1.442695
        %v5477 = vpow.pop %v5476
        %v5478 = vmul.f32 %v5337, 1.442695
        %v5479 = vpow.pop %v5478
        %v5480 = vmul.f32 %v5338, 1.442695
        %v5481 = vpow.pop %v5480
        %v5482 = vmul.f32 %v5339, 1.442695
        %v5483 = vpow.pop %v5482
        %v5484 = vadd.f32 %v5341, 1.0
        %v5485 = vadd.f32 %v5343, 1.0
        %v5486 = vadd.f32 %v5345, 1.0
        %v5487 = vadd.f32 %v5347, 1.0
        %v5488 = vadd.f32 %v5349, 1.0
        %v5489 = vadd.f32 %v5351, 1.0
        %v5490 = vadd.f32 %v5353, 1.0
        %v5491 = vadd.f32 %v5355, 1.0
        %v5492 = vadd.f32 %v5357, 1.0
        %v5493 = vadd.f32 %v5359, 1.0
        %v5494 = vadd.f32 %v5361, 1.0
        %v5495 = vadd.f32 %v5363, 1.0
        %v5496 = vadd.f32 %v5365, 1.0
        %v5497 = vadd.f32 %v5367, 1.0
        %v5498 = vadd.f32 %v5369, 1.0
        %v5499 = vadd.f32 %v5371, 1.0
        %v5500 = vadd.f32 %v5373, 1.0
        %v5501 = vadd.f32 %v5375, 1.0
        %v5502 = vadd.f32 %v5377, 1.0
        %v5503 = vadd.f32 %v5379, 1.0
        %v5504 = vadd.f32 %v5381, 1.0
        %v5505 = vadd.f32 %v5383, 1.0
        %v5506 = vadd.f32 %v5385, 1.0
        %v5507 = vadd.f32 %v5387, 1.0
        %v5508 = vadd.f32 %v5389, 1.0
        %v5509 = vadd.f32 %v5391, 1.0
        %v5510 = vadd.f32 %v5393, 1.0
        %v5511 = vadd.f32 %v5395, 1.0
        %v5512 = vadd.f32 %v5397, 1.0
        %v5513 = vadd.f32 %v5399, 1.0
        %v5514 = vadd.f32 %v5401, 1.0
        %v5515 = vadd.f32 %v5403, 1.0
        %v5516 = vadd.f32 %v5405, 1.0
        %v5517 = vadd.f32 %v5407, 1.0
        %v5518 = vadd.f32 %v5409, 1.0
        %v5519 = vadd.f32 %v5411, 1.0
        %v5520 = vadd.f32 %v5413, 1.0
        %v5521 = vadd.f32 %v5415, 1.0
        %v5522 = vadd.f32 %v5417, 1.0
        %v5523 = vadd.f32 %v5419, 1.0
        %v5524 = vadd.f32 %v5421, 1.0
        %v5525 = vadd.f32 %v5423, 1.0
        %v5526 = vadd.f32 %v5425, 1.0
        %v5527 = vadd.f32 %v5427, 1.0
        %v5528 = vadd.f32 %v5429, 1.0
        %v5529 = vadd.f32 %v5431, 1.0
        %v5530 = vadd.f32 %v5433, 1.0
        %v5531 = vadd.f32 %v5435, 1.0
        %v5532 = vadd.f32 %v5437, 1.0
        %v5533 = vadd.f32 %v5439, 1.0
        %v5534 = vadd.f32 %v5441, 1.0
        %v5535 = vadd.f32 %v5443, 1.0
        %v5536 = vadd.f32 %v5445, 1.0
        %v5537 = vadd.f32 %v5447, 1.0
        %v5538 = vadd.f32 %v5449, 1.0
        %v5539 = vadd.f32 %v5451, 1.0
        %v5540 = vadd.f32 %v5453, 1.0
        %v5541 = vadd.f32 %v5455, 1.0
        %v5542 = vadd.f32 %v5457, 1.0
        %v5543 = vadd.f32 %v5459, 1.0
        %v5544 = vadd.f32 %v5461, 1.0
        %v5545 = vadd.f32 %v5463, 1.0
        %v5546 = vadd.f32 %v5465, 1.0
        %v5547 = vadd.f32 %v5467, 1.0
        %v5548 = vadd.f32 %v5469, 1.0
        %v5549 = vadd.f32 %v5471, 1.0
        %v5550 = vadd.f32 %v5473, 1.0
        %v5551 = vadd.f32 %v5475, 1.0
        %v5552 = vadd.f32 %v5477, 1.0
        %v5553 = vadd.f32 %v5479, 1.0
        %v5554 = vadd.f32 %v5481, 1.0
        %v5555 = vadd.f32 %v5483, 1.0
        %v5556 = vrcp.pop %v5484
        %v5557 = vmul.f32 1.0, %v5556
        %v5558 = vrcp.pop %v5485
        %v5559 = vmul.f32 1.0, %v5558
        %v5560 = vrcp.pop %v5486
        %v5561 = vmul.f32 1.0, %v5560
        %v5562 = vrcp.pop %v5487
        %v5563 = vmul.f32 1.0, %v5562
        %v5564 = vrcp.pop %v5488
        %v5565 = vmul.f32 1.0, %v5564
        %v5566 = vrcp.pop %v5489
        %v5567 = vmul.f32 1.0, %v5566
        %v5568 = vrcp.pop %v5490
        %v5569 = vmul.f32 1.0, %v5568
        %v5570 = vrcp.pop %v5491
        %v5571 = vmul.f32 1.0, %v5570
        %v5572 = vrcp.pop %v5492
        %v5573 = vmul.f32 1.0, %v5572
        %v5574 = vrcp.pop %v5493
        %v5575 = vmul.f32 1.0, %v5574
        %v5576 = vrcp.pop %v5494
        %v5577 = vmul.f32 1.0, %v5576
        %v5578 = vrcp.pop %v5495
        %v5579 = vmul.f32 1.0, %v5578
        %v5580 = vrcp.pop %v5496
        %v5581 = vmul.f32 1.0, %v5580
        %v5582 = vrcp.pop %v5497
        %v5583 = vmul.f32 1.0, %v5582
        %v5584 = vrcp.pop %v5498
        %v5585 = vmul.f32 1.0, %v5584
        %v5586 = vrcp.pop %v5499
        %v5587 = vmul.f32 1.0, %v5586
        %v5588 = vrcp.pop %v5500
        %v5589 = vmul.f32 1.0, %v5588
        %v5590 = vrcp.pop %v5501
        %v5591 = vmul.f32 1.0, %v5590
        %v5592 = vrcp.pop %v5502
        %v5593 = vmul.f32 1.0, %v5592
        %v5594 = vrcp.pop %v5503
        %v5595 = vmul.f32 1.0, %v5594
        %v5596 = vrcp.pop %v5504
        %v5597 = vmul.f32 1.0, %v5596
        %v5598 = vrcp.pop %v5505
        %v5599 = vmul.f32 1.0, %v5598
        %v5600 = vrcp.pop %v5506
        %v5601 = vmul.f32 1.0, %v5600
        %v5602 = vrcp.pop %v5507
        %v5603 = vmul.f32 1.0, %v5602
        %v5604 = vrcp.pop %v5508
        %v5605 = vmul.f32 1.0, %v5604
        %v5606 = vrcp.pop %v5509
        %v5607 = vmul.f32 1.0, %v5606
        %v5608 = vrcp.pop %v5510
        %v5609 = vmul.f32 1.0, %v5608
        %v5610 = vrcp.pop %v5511
        %v5611 = vmul.f32 1.0, %v5610
        %v5612 = vrcp.pop %v5512
        %v5613 = vmul.f32 1.0, %v5612
        %v5614 = vrcp.pop %v5513
        %v5615 = vmul.f32 1.0, %v5614
        %v5616 = vrcp.pop %v5514
        %v5617 = vmul.f32 1.0, %v5616
        %v5618 = vrcp.pop %v5515
        %v5619 = vmul.f32 1.0, %v5618
        %v5620 = vrcp.pop %v5516
        %v5621 = vmul.f32 1.0, %v5620
        %v5622 = vrcp.pop %v5517
        %v5623 = vmul.f32 1.0, %v5622
        %v5624 = vrcp.pop %v5518
        %v5625 = vmul.f32 1.0, %v5624
        %v5626 = vrcp.pop %v5519
        %v5627 = vmul.f32 1.0, %v5626
        %v5628 = vrcp.pop %v5520
        %v5629 = vmul.f32 1.0, %v5628
        %v5630 = vrcp.pop %v5521
        %v5631 = vmul.f32 1.0, %v5630
        %v5632 = vrcp.pop %v5522
        %v5633 = vmul.f32 1.0, %v5632
        %v5634 = vrcp.pop %v5523
        %v5635 = vmul.f32 1.0, %v5634
        %v5636 = vrcp.pop %v5524
        %v5637 = vmul.f32 1.0, %v5636
        %v5638 = vrcp.pop %v5525
        %v5639 = vmul.f32 1.0, %v5638
        %v5640 = vrcp.pop %v5526
        %v5641 = vmul.f32 1.0, %v5640
        %v5642 = vrcp.pop %v5527
        %v5643 = vmul.f32 1.0, %v5642
        %v5644 = vrcp.pop %v5528
        %v5645 = vmul.f32 1.0, %v5644
        %v5646 = vrcp.pop %v5529
        %v5647 = vmul.f32 1.0, %v5646
        %v5648 = vrcp.pop %v5530
        %v5649 = vmul.f32 1.0, %v5648
        %v5650 = vrcp.pop %v5531
        %v5651 = vmul.f32 1.0, %v5650
        %v5652 = vrcp.pop %v5532
        %v5653 = vmul.f32 1.0, %v5652
        %v5654 = vrcp.pop %v5533
        %v5655 = vmul.f32 1.0, %v5654
        %v5656 = vrcp.pop %v5534
        %v5657 = vmul.f32 1.0, %v5656
        %v5658 = vrcp.pop %v5535
        %v5659 = vmul.f32 1.0, %v5658
        %v5660 = vrcp.pop %v5536
        %v5661 = vmul.f32 1.0, %v5660
        %v5662 = vrcp.pop %v5537
        %v5663 = vmul.f32 1.0, %v5662
        %v5664 = vrcp.pop %v5538
        %v5665 = vmul.f32 1.0, %v5664
        %v5666 = vrcp.pop %v5539
        %v5667 = vmul.f32 1.0, %v5666
        %v5668 = vrcp.pop %v5540
        %v5669 = vmul.f32 1.0, %v5668
        %v5670 = vrcp.pop %v5541
        %v5671 = vmul.f32 1.0, %v5670
        %v5672 = vrcp.pop %v5542
        %v5673 = vmul.f32 1.0, %v5672
        %v5674 = vrcp.pop %v5543
        %v5675 = vmul.f32 1.0, %v5674
        %v5676 = vrcp.pop %v5544
        %v5677 = vmul.f32 1.0, %v5676
        %v5678 = vrcp.pop %v5545
        %v5679 = vmul.f32 1.0, %v5678
        %v5680 = vrcp.pop %v5546
        %v5681 = vmul.f32 1.0, %v5680
        %v5682 = vrcp.pop %v5547
        %v5683 = vmul.f32 1.0, %v5682
        %v5684 = vrcp.pop %v5548
        %v5685 = vmul.f32 1.0, %v5684
        %v5686 = vrcp.pop %v5549
        %v5687 = vmul.f32 1.0, %v5686
        %v5688 = vrcp.pop %v5550
        %v5689 = vmul.f32 1.0, %v5688
        %v5690 = vrcp.pop %v5551
        %v5691 = vmul.f32 1.0, %v5690
        %v5692 = vrcp.pop %v5552
        %v5693 = vmul.f32 1.0, %v5692
        %v5694 = vrcp.pop %v5553
        %v5695 = vmul.f32 1.0, %v5694
        %v5696 = vrcp.pop %v5554
        %v5697 = vmul.f32 1.0, %v5696
        %v5698 = vrcp.pop %v5555
        %v5699 = vmul.f32 1.0, %v5698
        %v5700 = vmul.f32 %v5196, %v5557
        %v5701 = vmul.f32 %v5197, %v5559
        %v5702 = vmul.f32 %v5198, %v5561
        %v5703 = vmul.f32 %v5199, %v5563
        %v5704 = vmul.f32 %v5200, %v5565
        %v5705 = vmul.f32 %v5201, %v5567
        %v5706 = vmul.f32 %v5202, %v5569
        %v5707 = vmul.f32 %v5203, %v5571
        %v5708 = vmul.f32 %v5204, %v5573
        %v5709 = vmul.f32 %v5205, %v5575
        %v5710 = vmul.f32 %v5206, %v5577
        %v5711 = vmul.f32 %v5207, %v5579
        %v5712 = vmul.f32 %v5208, %v5581
        %v5713 = vmul.f32 %v5209, %v5583
        %v5714 = vmul.f32 %v5210, %v5585
        %v5715 = vmul.f32 %v5211, %v5587
        %v5716 = vmul.f32 %v5212, %v5589
        %v5717 = vmul.f32 %v5213, %v5591
        %v5718 = vmul.f32 %v5214, %v5593
        %v5719 = vmul.f32 %v5215, %v5595
        %v5720 = vmul.f32 %v5216, %v5597
        %v5721 = vmul.f32 %v5217, %v5599
        %v5722 = vmul.f32 %v5218, %v5601
        %v5723 = vmul.f32 %v5219, %v5603
        %v5724 = vmul.f32 %v5220, %v5605
        %v5725 = vmul.f32 %v5221, %v5607
        %v5726 = vmul.f32 %v5222, %v5609
        %v5727 = vmul.f32 %v5223, %v5611
        %v5728 = vmul.f32 %v5224, %v5613
        %v5729 = vmul.f32 %v5225, %v5615
        %v5730 = vmul.f32 %v5226, %v5617
        %v5731 = vmul.f32 %v5227, %v5619
        %v5732 = vmul.f32 %v5228, %v5621
        %v5733 = vmul.f32 %v5229, %v5623
        %v5734 = vmul.f32 %v5230, %v5625
        %v5735 = vmul.f32 %v5231, %v5627
        %v5736 = vmul.f32 %v5232, %v5629
        %v5737 = vmul.f32 %v5233, %v5631
        %v5738 = vmul.f32 %v5234, %v5633
        %v5739 = vmul.f32 %v5235, %v5635
        %v5740 = vmul.f32 %v5236, %v5637
        %v5741 = vmul.f32 %v5237, %v5639
        %v5742 = vmul.f32 %v5238, %v5641
        %v5743 = vmul.f32 %v5239, %v5643
        %v5744 = vmul.f32 %v5240, %v5645
        %v5745 = vmul.f32 %v5241, %v5647
        %v5746 = vmul.f32 %v5242, %v5649
        %v5747 = vmul.f32 %v5243, %v5651
        %v5748 = vmul.f32 %v5244, %v5653
        %v5749 = vmul.f32 %v5245, %v5655
        %v5750 = vmul.f32 %v5246, %v5657
        %v5751 = vmul.f32 %v5247, %v5659
        %v5752 = vmul.f32 %v5248, %v5661
        %v5753 = vmul.f32 %v5249, %v5663
        %v5754 = vmul.f32 %v5250, %v5665
        %v5755 = vmul.f32 %v5251, %v5667
        %v5756 = vmul.f32 %v5252, %v5669
        %v5757 = vmul.f32 %v5253, %v5671
        %v5758 = vmul.f32 %v5254, %v5673
        %v5759 = vmul.f32 %v5255, %v5675
        %v5760 = vmul.f32 %v5256, %v5677
        %v5761 = vmul.f32 %v5257, %v5679
        %v5762 = vmul.f32 %v5258, %v5681
        %v5763 = vmul.f32 %v5259, %v5683
        %v5764 = vmul.f32 %v5260, %v5685
        %v5765 = vmul.f32 %v5261, %v5687
        %v5766 = vmul.f32 %v5262, %v5689
        %v5767 = vmul.f32 %v5263, %v5691
        %v5768 = vmul.f32 %v5264, %v5693
        %v5769 = vmul.f32 %v5265, %v5695
        %v5770 = vmul.f32 %v5266, %v5697
        %v5771 = vmul.f32 %v5267, %v5699
        %v5772 = vld [vmem:[%s2] sm:$0xff]
        %v5773 = vld [vmem:[%s2 + $0x8] sm:$0xff]
        %v5774 = vld [vmem:[%s2 + $0x10] sm:$0xff]
        %v5775 = vld [vmem:[%s2 + $0x18] sm:$0xff]
        %v5776 = vld [vmem:[%s2 + $0x20] sm:$0xff]
        %v5777 = vld [vmem:[%s2 + $0x28] sm:$0xff]
        %v5778 = vld [vmem:[%s2 + $0x30] sm:$0xff]
        %v5779 = vld [vmem:[%s2 + $0x38] sm:$0xff]
        %v5780 = vld [vmem:[%s2 + $0x40] sm:$0xff]
        %v5781 = vld [vmem:[%s2 + $0x48] sm:$0xff]
        %v5782 = vld [vmem:[%s2 + $0x50] sm:$0xff]
        %v5783 = vld [vmem:[%s2 + $0x58] sm:$0xff]
        %v5784 = vld [vmem:[%s2 + $0x60] sm:$0xff]
        %v5785 = vld [vmem:[%s2 + $0x68] sm:$0xff]
        %v5786 = vld [vmem:[%s2 + $0x70] sm:$0xff]
        %v5787 = vld [vmem:[%s2 + $0x78] sm:$0xff]
        %v5788 = vld [vmem:[%s2 + $0x80] sm:$0xff]
        %v5789 = vld [vmem:[%s2 + $0x88] sm:$0xff]
        %v5790 = vld [vmem:[%s2 + $0x90] sm:$0xff]
        %v5791 = vld [vmem:[%s2 + $0x98] sm:$0xff]
        %v5792 = vld [vmem:[%s2 + $0xa0] sm:$0xff]
        %v5793 = vld [vmem:[%s2 + $0xa8] sm:$0xff]
        %v5794 = vld [vmem:[%s2 + $0xb0] sm:$0xff]
        %v5795 = vld [vmem:[%s2 + $0xb8] sm:$0xff]
        %v5796 = vld [vmem:[%s2 + $0xc0] sm:$0xff]
        %v5797 = vld [vmem:[%s2 + $0xc8] sm:$0xff]
        %v5798 = vld [vmem:[%s2 + $0xd0] sm:$0xff]
        %v5799 = vld [vmem:[%s2 + $0xd8] sm:$0xff]
        %v5800 = vld [vmem:[%s2 + $0xe0] sm:$0xff]
        %v5801 = vld [vmem:[%s2 + $0xe8] sm:$0xff]
        %v5802 = vld [vmem:[%s2 + $0xf0] sm:$0xff]
        %v5803 = vld [vmem:[%s2 + $0xf8] sm:$0xff]
        %v5804 = vld [vmem:[%s2 + $0x100] sm:$0xff]
        %v5805 = vld [vmem:[%s2 + $0x108] sm:$0xff]
        %v5806 = vld [vmem:[%s2 + $0x110] sm:$0xff]
        %v5807 = vld [vmem:[%s2 + $0x118] sm:$0xff]
        %v5808 = vld [vmem:[%s2 + $0x120] sm:$0xff]
        %v5809 = vld [vmem:[%s2 + $0x128] sm:$0xff]
        %v5810 = vld [vmem:[%s2 + $0x130] sm:$0xff]
        %v5811 = vld [vmem:[%s2 + $0x138] sm:$0xff]
        %v5812 = vld [vmem:[%s2 + $0x140] sm:$0xff]
        %v5813 = vld [vmem:[%s2 + $0x148] sm:$0xff]
        %v5814 = vld [vmem:[%s2 + $0x150] sm:$0xff]
        %v5815 = vld [vmem:[%s2 + $0x158] sm:$0xff]
        %v5816 = vld [vmem:[%s2 + $0x160] sm:$0xff]
        %v5817 = vld [vmem:[%s2 + $0x168] sm:$0xff]
        %v5818 = vld [vmem:[%s2 + $0x170] sm:$0xff]
        %v5819 = vld [vmem:[%s2 + $0x178] sm:$0xff]
        %v5820 = vld [vmem:[%s2 + $0x180] sm:$0xff]
        %v5821 = vld [vmem:[%s2 + $0x188] sm:$0xff]
        %v5822 = vld [vmem:[%s2 + $0x190] sm:$0xff]
        %v5823 = vld [vmem:[%s2 + $0x198] sm:$0xff]
        %v5824 = vld [vmem:[%s2 + $0x1a0] sm:$0xff]
        %v5825 = vld [vmem:[%s2 + $0x1a8] sm:$0xff]
        %v5826 = vld [vmem:[%s2 + $0x1b0] sm:$0xff]
        %v5827 = vld [vmem:[%s2 + $0x1b8] sm:$0xff]
        %v5828 = vld [vmem:[%s2 + $0x1c0] sm:$0xff]
        %v5829 = vld [vmem:[%s2 + $0x1c8] sm:$0xff]
        %v5830 = vld [vmem:[%s2 + $0x1d0] sm:$0xff]
        %v5831 = vld [vmem:[%s2 + $0x1d8] sm:$0xff]
        %v5832 = vld [vmem:[%s2 + $0x1e0] sm:$0xff]
        %v5833 = vld [vmem:[%s2 + $0x1e8] sm:$0xff]
        %v5834 = vld [vmem:[%s2 + $0x1f0] sm:$0xff]
        %v5835 = vld [vmem:[%s2 + $0x1f8] sm:$0xff]
        %v5836 = vld [vmem:[%s2 + $0x200] sm:$0xff]
        %v5837 = vld [vmem:[%s2 + $0x208] sm:$0xff]
        %v5838 = vld [vmem:[%s2 + $0x210] sm:$0xff]
        %v5839 = vld [vmem:[%s2 + $0x218] sm:$0xff]
        %v5840 = vld [vmem:[%s2 + $0x220] sm:$0xff]
        %v5841 = vld [vmem:[%s2 + $0x228] sm:$0xff]
        %v5842 = vld [vmem:[%s2 + $0x230] sm:$0xff]
        %v5843 = vld [vmem:[%s2 + $0x238] sm:$0xff]
        %5845 = vset.pattern.permute.xlu0 0
        %5846 = vperm.xlu0 %5845, %v5772
        %v5847 = vpop.permute.xlu0 %5846
        %5850 = vset.pattern.permute.xlu0 0
        %5851 = vperm.xlu0 %5850, %v5773
        %v5852 = vpop.permute.xlu0 %5851
        %5855 = vset.pattern.permute.xlu0 0
        %5856 = vperm.xlu0 %5855, %v5774
        %v5857 = vpop.permute.xlu0 %5856
        %5860 = vset.pattern.permute.xlu0 0
        %5861 = vperm.xlu0 %5860, %v5775
        %v5862 = vpop.permute.xlu0 %5861
        %5865 = vset.pattern.permute.xlu0 0
        %5866 = vperm.xlu0 %5865, %v5776
        %v5867 = vpop.permute.xlu0 %5866
        %5870 = vset.pattern.permute.xlu0 0
        %5871 = vperm.xlu0 %5870, %v5777
        %v5872 = vpop.permute.xlu0 %5871
        %5875 = vset.pattern.permute.xlu0 0
        %5876 = vperm.xlu0 %5875, %v5778
        %v5877 = vpop.permute.xlu0 %5876
        %5880 = vset.pattern.permute.xlu0 0
        %5881 = vperm.xlu0 %5880, %v5779
        %v5882 = vpop.permute.xlu0 %5881
        %5885 = vset.pattern.permute.xlu0 0
        %5886 = vperm.xlu0 %5885, %v5780
        %v5887 = vpop.permute.xlu0 %5886
        %5890 = vset.pattern.permute.xlu0 0
        %5891 = vperm.xlu0 %5890, %v5781
        %v5892 = vpop.permute.xlu0 %5891
        %5895 = vset.pattern.permute.xlu0 0
        %5896 = vperm.xlu0 %5895, %v5782
        %v5897 = vpop.permute.xlu0 %5896
        %5900 = vset.pattern.permute.xlu0 0
        %5901 = vperm.xlu0 %5900, %v5783
        %v5902 = vpop.permute.xlu0 %5901
        %5905 = vset.pattern.permute.xlu0 0
        %5906 = vperm.xlu0 %5905, %v5784
        %v5907 = vpop.permute.xlu0 %5906
        %5910 = vset.pattern.permute.xlu0 0
        %5911 = vperm.xlu0 %5910, %v5785
        %v5912 = vpop.permute.xlu0 %5911
        %5915 = vset.pattern.permute.xlu0 0
        %5916 = vperm.xlu0 %5915, %v5786
        %v5917 = vpop.permute.xlu0 %5916
        %5920 = vset.pattern.permute.xlu0 0
        %5921 = vperm.xlu0 %5920, %v5787
        %v5922 = vpop.permute.xlu0 %5921
        %5925 = vset.pattern.permute.xlu0 0
        %5926 = vperm.xlu0 %5925, %v5788
        %v5927 = vpop.permute.xlu0 %5926
        %5930 = vset.pattern.permute.xlu0 0
        %5931 = vperm.xlu0 %5930, %v5789
        %v5932 = vpop.permute.xlu0 %5931
        %5935 = vset.pattern.permute.xlu0 0
        %5936 = vperm.xlu0 %5935, %v5790
        %v5937 = vpop.permute.xlu0 %5936
        %5940 = vset.pattern.permute.xlu0 0
        %5941 = vperm.xlu0 %5940, %v5791
        %v5942 = vpop.permute.xlu0 %5941
        %5945 = vset.pattern.permute.xlu0 0
        %5946 = vperm.xlu0 %5945, %v5792
        %v5947 = vpop.permute.xlu0 %5946
        %5950 = vset.pattern.permute.xlu0 0
        %5951 = vperm.xlu0 %5950, %v5793
        %v5952 = vpop.permute.xlu0 %5951
        %5955 = vset.pattern.permute.xlu0 0
        %5956 = vperm.xlu0 %5955, %v5794
        %v5957 = vpop.permute.xlu0 %5956
        %5960 = vset.pattern.permute.xlu0 0
        %5961 = vperm.xlu0 %5960, %v5795
        %v5962 = vpop.permute.xlu0 %5961
        %5965 = vset.pattern.permute.xlu0 0
        %5966 = vperm.xlu0 %5965, %v5796
        %v5967 = vpop.permute.xlu0 %5966
        %5970 = vset.pattern.permute.xlu0 0
        %5971 = vperm.xlu0 %5970, %v5797
        %v5972 = vpop.permute.xlu0 %5971
        %5975 = vset.pattern.permute.xlu0 0
        %5976 = vperm.xlu0 %5975, %v5798
        %v5977 = vpop.permute.xlu0 %5976
        %5980 = vset.pattern.permute.xlu0 0
        %5981 = vperm.xlu0 %5980, %v5799
        %v5982 = vpop.permute.xlu0 %5981
        %5985 = vset.pattern.permute.xlu0 0
        %5986 = vperm.xlu0 %5985, %v5800
        %v5987 = vpop.permute.xlu0 %5986
        %5990 = vset.pattern.permute.xlu0 0
        %5991 = vperm.xlu0 %5990, %v5801
        %v5992 = vpop.permute.xlu0 %5991
        %5995 = vset.pattern.permute.xlu0 0
        %5996 = vperm.xlu0 %5995, %v5802
        %v5997 = vpop.permute.xlu0 %5996
        %6000 = vset.pattern.permute.xlu0 0
        %6001 = vperm.xlu0 %6000, %v5803
        %v6002 = vpop.permute.xlu0 %6001
        %6005 = vset.pattern.permute.xlu0 0
        %6006 = vperm.xlu0 %6005, %v5804
        %v6007 = vpop.permute.xlu0 %6006
        %6010 = vset.pattern.permute.xlu0 0
        %6011 = vperm.xlu0 %6010, %v5805
        %v6012 = vpop.permute.xlu0 %6011
        %6015 = vset.pattern.permute.xlu0 0
        %6016 = vperm.xlu0 %6015, %v5806
        %v6017 = vpop.permute.xlu0 %6016
        %6020 = vset.pattern.permute.xlu0 0
        %6021 = vperm.xlu0 %6020, %v5807
        %v6022 = vpop.permute.xlu0 %6021
        %6025 = vset.pattern.permute.xlu0 0
        %6026 = vperm.xlu0 %6025, %v5808
        %v6027 = vpop.permute.xlu0 %6026
        %6030 = vset.pattern.permute.xlu0 0
        %6031 = vperm.xlu0 %6030, %v5809
        %v6032 = vpop.permute.xlu0 %6031
        %6035 = vset.pattern.permute.xlu0 0
        %6036 = vperm.xlu0 %6035, %v5810
        %v6037 = vpop.permute.xlu0 %6036
        %6040 = vset.pattern.permute.xlu0 0
        %6041 = vperm.xlu0 %6040, %v5811
        %v6042 = vpop.permute.xlu0 %6041
        %6045 = vset.pattern.permute.xlu0 0
        %6046 = vperm.xlu0 %6045, %v5812
        %v6047 = vpop.permute.xlu0 %6046
        %6050 = vset.pattern.permute.xlu0 0
        %6051 = vperm.xlu0 %6050, %v5813
        %v6052 = vpop.permute.xlu0 %6051
        %6055 = vset.pattern.permute.xlu0 0
        %6056 = vperm.xlu0 %6055, %v5814
        %v6057 = vpop.permute.xlu0 %6056
        %6060 = vset.pattern.permute.xlu0 0
        %6061 = vperm.xlu0 %6060, %v5815
        %v6062 = vpop.permute.xlu0 %6061
        %6065 = vset.pattern.permute.xlu0 0
        %6066 = vperm.xlu0 %6065, %v5816
        %v6067 = vpop.permute.xlu0 %6066
        %6070 = vset.pattern.permute.xlu0 0
        %6071 = vperm.xlu0 %6070, %v5817
        %v6072 = vpop.permute.xlu0 %6071
        %6075 = vset.pattern.permute.xlu0 0
        %6076 = vperm.xlu0 %6075, %v5818
        %v6077 = vpop.permute.xlu0 %6076
        %6080 = vset.pattern.permute.xlu0 0
        %6081 = vperm.xlu0 %6080, %v5819
        %v6082 = vpop.permute.xlu0 %6081
        %6085 = vset.pattern.permute.xlu0 0
        %6086 = vperm.xlu0 %6085, %v5820
        %v6087 = vpop.permute.xlu0 %6086
        %6090 = vset.pattern.permute.xlu0 0
        %6091 = vperm.xlu0 %6090, %v5821
        %v6092 = vpop.permute.xlu0 %6091
        %6095 = vset.pattern.permute.xlu0 0
        %6096 = vperm.xlu0 %6095, %v5822
        %v6097 = vpop.permute.xlu0 %6096
        %6100 = vset.pattern.permute.xlu0 0
        %6101 = vperm.xlu0 %6100, %v5823
        %v6102 = vpop.permute.xlu0 %6101
        %6105 = vset.pattern.permute.xlu0 0
        %6106 = vperm.xlu0 %6105, %v5824
        %v6107 = vpop.permute.xlu0 %6106
        %6110 = vset.pattern.permute.xlu0 0
        %6111 = vperm.xlu0 %6110, %v5825
        %v6112 = vpop.permute.xlu0 %6111
        %6115 = vset.pattern.permute.xlu0 0
        %6116 = vperm.xlu0 %6115, %v5826
        %v6117 = vpop.permute.xlu0 %6116
        %6120 = vset.pattern.permute.xlu0 0
        %6121 = vperm.xlu0 %6120, %v5827
        %v6122 = vpop.permute.xlu0 %6121
        %6125 = vset.pattern.permute.xlu0 0
        %6126 = vperm.xlu0 %6125, %v5828
        %v6127 = vpop.permute.xlu0 %6126
        %6130 = vset.pattern.permute.xlu0 0
        %6131 = vperm.xlu0 %6130, %v5829
        %v6132 = vpop.permute.xlu0 %6131
        %6135 = vset.pattern.permute.xlu0 0
        %6136 = vperm.xlu0 %6135, %v5830
        %v6137 = vpop.permute.xlu0 %6136
        %6140 = vset.pattern.permute.xlu0 0
        %6141 = vperm.xlu0 %6140, %v5831
        %v6142 = vpop.permute.xlu0 %6141
        %6145 = vset.pattern.permute.xlu0 0
        %6146 = vperm.xlu0 %6145, %v5832
        %v6147 = vpop.permute.xlu0 %6146
        %6150 = vset.pattern.permute.xlu0 0
        %6151 = vperm.xlu0 %6150, %v5833
        %v6152 = vpop.permute.xlu0 %6151
        %6155 = vset.pattern.permute.xlu0 0
        %6156 = vperm.xlu0 %6155, %v5834
        %v6157 = vpop.permute.xlu0 %6156
        %6160 = vset.pattern.permute.xlu0 0
        %6161 = vperm.xlu0 %6160, %v5835
        %v6162 = vpop.permute.xlu0 %6161
        %6165 = vset.pattern.permute.xlu0 0
        %6166 = vperm.xlu0 %6165, %v5836
        %v6167 = vpop.permute.xlu0 %6166
        %6170 = vset.pattern.permute.xlu0 0
        %6171 = vperm.xlu0 %6170, %v5837
        %v6172 = vpop.permute.xlu0 %6171
        %6175 = vset.pattern.permute.xlu0 0
        %6176 = vperm.xlu0 %6175, %v5838
        %v6177 = vpop.permute.xlu0 %6176
        %6180 = vset.pattern.permute.xlu0 0
        %6181 = vperm.xlu0 %6180, %v5839
        %v6182 = vpop.permute.xlu0 %6181
        %6185 = vset.pattern.permute.xlu0 0
        %6186 = vperm.xlu0 %6185, %v5840
        %v6187 = vpop.permute.xlu0 %6186
        %6190 = vset.pattern.permute.xlu0 0
        %6191 = vperm.xlu0 %6190, %v5841
        %v6192 = vpop.permute.xlu0 %6191
        %6195 = vset.pattern.permute.xlu0 0
        %6196 = vperm.xlu0 %6195, %v5842
        %v6197 = vpop.permute.xlu0 %6196
        %6200 = vset.pattern.permute.xlu0 0
        %6201 = vperm.xlu0 %6200, %v5843
        %v6202 = vpop.permute.xlu0 %6201
        %v6204 = vmul.f32 %v5700, %v5847
        %v6205 = vmul.f32 %v5701, %v5852
        %v6206 = vmul.f32 %v5702, %v5857
        %v6207 = vmul.f32 %v5703, %v5862
        %v6208 = vmul.f32 %v5704, %v5867
        %v6209 = vmul.f32 %v5705, %v5872
        %v6210 = vmul.f32 %v5706, %v5877
        %v6211 = vmul.f32 %v5707, %v5882
        %v6212 = vmul.f32 %v5708, %v5887
        %v6213 = vmul.f32 %v5709, %v5892
        %v6214 = vmul.f32 %v5710, %v5897
        %v6215 = vmul.f32 %v5711, %v5902
        %v6216 = vmul.f32 %v5712, %v5907
        %v6217 = vmul.f32 %v5713, %v5912
        %v6218 = vmul.f32 %v5714, %v5917
        %v6219 = vmul.f32 %v5715, %v5922
        %v6220 = vmul.f32 %v5716, %v5927
        %v6221 = vmul.f32 %v5717, %v5932
        %v6222 = vmul.f32 %v5718, %v5937
        %v6223 = vmul.f32 %v5719, %v5942
        %v6224 = vmul.f32 %v5720, %v5947
        %v6225 = vmul.f32 %v5721, %v5952
        %v6226 = vmul.f32 %v5722, %v5957
        %v6227 = vmul.f32 %v5723, %v5962
        %v6228 = vmul.f32 %v5724, %v5967
        %v6229 = vmul.f32 %v5725, %v5972
        %v6230 = vmul.f32 %v5726, %v5977
        %v6231 = vmul.f32 %v5727, %v5982
        %v6232 = vmul.f32 %v5728, %v5987
        %v6233 = vmul.f32 %v5729, %v5992
        %v6234 = vmul.f32 %v5730, %v5997
        %v6235 = vmul.f32 %v5731, %v6002
        %v6236 = vmul.f32 %v5732, %v6007
        %v6237 = vmul.f32 %v5733, %v6012
        %v6238 = vmul.f32 %v5734, %v6017
        %v6239 = vmul.f32 %v5735, %v6022
        %v6240 = vmul.f32 %v5736, %v6027
        %v6241 = vmul.f32 %v5737, %v6032
        %v6242 = vmul.f32 %v5738, %v6037
        %v6243 = vmul.f32 %v5739, %v6042
        %v6244 = vmul.f32 %v5740, %v6047
        %v6245 = vmul.f32 %v5741, %v6052
        %v6246 = vmul.f32 %v5742, %v6057
        %v6247 = vmul.f32 %v5743, %v6062
        %v6248 = vmul.f32 %v5744, %v6067
        %v6249 = vmul.f32 %v5745, %v6072
        %v6250 = vmul.f32 %v5746, %v6077
        %v6251 = vmul.f32 %v5747, %v6082
        %v6252 = vmul.f32 %v5748, %v6087
        %v6253 = vmul.f32 %v5749, %v6092
        %v6254 = vmul.f32 %v5750, %v6097
        %v6255 = vmul.f32 %v5751, %v6102
        %v6256 = vmul.f32 %v5752, %v6107
        %v6257 = vmul.f32 %v5753, %v6112
        %v6258 = vmul.f32 %v5754, %v6117
        %v6259 = vmul.f32 %v5755, %v6122
        %v6260 = vmul.f32 %v5756, %v6127
        %v6261 = vmul.f32 %v5757, %v6132
        %v6262 = vmul.f32 %v5758, %v6137
        %v6263 = vmul.f32 %v5759, %v6142
        %v6264 = vmul.f32 %v5760, %v6147
        %v6265 = vmul.f32 %v5761, %v6152
        %v6266 = vmul.f32 %v5762, %v6157
        %v6267 = vmul.f32 %v5763, %v6162
        %v6268 = vmul.f32 %v5764, %v6167
        %v6269 = vmul.f32 %v5765, %v6172
        %v6270 = vmul.f32 %v5766, %v6177
        %v6271 = vmul.f32 %v5767, %v6182
        %v6272 = vmul.f32 %v5768, %v6187
        %v6273 = vmul.f32 %v5769, %v6192
        %v6274 = vmul.f32 %v5770, %v6197
        %v6275 = vmul.f32 %v5771, %v6202
        %v6276 = vpack.c.bf16 %v6205, %v6204
        %v6277 = vpack.c.bf16 %v6207, %v6206
        %v6278 = vpack.c.bf16 %v6209, %v6208
        %v6279 = vpack.c.bf16 %v6211, %v6210
        %v6280 = vpack.c.bf16 %v6213, %v6212
        %v6281 = vpack.c.bf16 %v6215, %v6214
        %v6282 = vpack.c.bf16 %v6217, %v6216
        %v6283 = vpack.c.bf16 %v6219, %v6218
        %v6284 = vpack.c.bf16 %v6221, %v6220
        %v6285 = vpack.c.bf16 %v6223, %v6222
        %v6286 = vpack.c.bf16 %v6225, %v6224
        %v6287 = vpack.c.bf16 %v6227, %v6226
        %v6288 = vpack.c.bf16 %v6229, %v6228
        %v6289 = vpack.c.bf16 %v6231, %v6230
        %v6290 = vpack.c.bf16 %v6233, %v6232
        %v6291 = vpack.c.bf16 %v6235, %v6234
        %v6292 = vpack.c.bf16 %v6237, %v6236
        %v6293 = vpack.c.bf16 %v6239, %v6238
        %v6294 = vpack.c.bf16 %v6241, %v6240
        %v6295 = vpack.c.bf16 %v6243, %v6242
        %v6296 = vpack.c.bf16 %v6245, %v6244
        %v6297 = vpack.c.bf16 %v6247, %v6246
        %v6298 = vpack.c.bf16 %v6249, %v6248
        %v6299 = vpack.c.bf16 %v6251, %v6250
        %v6300 = vpack.c.bf16 %v6253, %v6252
        %v6301 = vpack.c.bf16 %v6255, %v6254
        %v6302 = vpack.c.bf16 %v6257, %v6256
        %v6303 = vpack.c.bf16 %v6259, %v6258
        %v6304 = vpack.c.bf16 %v6261, %v6260
        %v6305 = vpack.c.bf16 %v6263, %v6262
        %v6306 = vpack.c.bf16 %v6265, %v6264
        %v6307 = vpack.c.bf16 %v6267, %v6266
        %v6308 = vpack.c.bf16 %v6269, %v6268
        %v6309 = vpack.c.bf16 %v6271, %v6270
        %v6310 = vpack.c.bf16 %v6273, %v6272
        %v6311 = vpack.c.bf16 %v6275, %v6274
        %vm6312 = vsmask.f32 7424
        %v6314 = vshrl.u32 %v6276, 16
        %v6316 = vshll.u32 %v6276, 16
        %v6318 = vrot.slane %v6316, 1
        %v6319 = vor.u32 %v6314, %v6318
        %v6321 = vshll.u32 %v6277, 16
        %v6323 = vrot.slane %v6321, 1
        %v6324 = vsel %vm6312, %v6319, %v6323
        %v6326 = vshrl.u32 %v6278, 16
        %v6328 = vshll.u32 %v6278, 16
        %v6330 = vrot.slane %v6328, 1
        %v6331 = vor.u32 %v6326, %v6330
        %v6333 = vshll.u32 %v6279, 16
        %v6335 = vrot.slane %v6333, 1
        %v6336 = vsel %vm6312, %v6331, %v6335
        %v6338 = vshrl.u32 %v6280, 16
        %v6340 = vshll.u32 %v6280, 16
        %v6342 = vrot.slane %v6340, 1
        %v6343 = vor.u32 %v6338, %v6342
        %v6345 = vshll.u32 %v6281, 16
        %v6347 = vrot.slane %v6345, 1
        %v6348 = vsel %vm6312, %v6343, %v6347
        %v6350 = vshrl.u32 %v6282, 16
        %v6352 = vshll.u32 %v6282, 16
        %v6354 = vrot.slane %v6352, 1
        %v6355 = vor.u32 %v6350, %v6354
        %v6357 = vshll.u32 %v6283, 16
        %v6359 = vrot.slane %v6357, 1
        %v6360 = vsel %vm6312, %v6355, %v6359
        %v6362 = vshrl.u32 %v6284, 16
        %v6364 = vshll.u32 %v6284, 16
        %v6366 = vrot.slane %v6364, 1
        %v6367 = vor.u32 %v6362, %v6366
        %v6369 = vshll.u32 %v6285, 16
        %v6371 = vrot.slane %v6369, 1
        %v6372 = vsel %vm6312, %v6367, %v6371
        %v6374 = vshrl.u32 %v6286, 16
        %v6376 = vshll.u32 %v6286, 16
        %v6378 = vrot.slane %v6376, 1
        %v6379 = vor.u32 %v6374, %v6378
        %v6381 = vshll.u32 %v6287, 16
        %v6383 = vrot.slane %v6381, 1
        %v6384 = vsel %vm6312, %v6379, %v6383
        %v6386 = vshrl.u32 %v6288, 16
        %v6388 = vshll.u32 %v6288, 16
        %v6390 = vrot.slane %v6388, 1
        %v6391 = vor.u32 %v6386, %v6390
        %v6393 = vshll.u32 %v6289, 16
        %v6395 = vrot.slane %v6393, 1
        %v6396 = vsel %vm6312, %v6391, %v6395
        %v6398 = vshrl.u32 %v6290, 16
        %v6400 = vshll.u32 %v6290, 16
        %v6402 = vrot.slane %v6400, 1
        %v6403 = vor.u32 %v6398, %v6402
        %v6405 = vshll.u32 %v6291, 16
        %v6407 = vrot.slane %v6405, 1
        %v6408 = vsel %vm6312, %v6403, %v6407
        %v6410 = vshrl.u32 %v6292, 16
        %v6412 = vshll.u32 %v6292, 16
        %v6414 = vrot.slane %v6412, 1
        %v6415 = vor.u32 %v6410, %v6414
        %v6417 = vshll.u32 %v6293, 16
        %v6419 = vrot.slane %v6417, 1
        %v6420 = vsel %vm6312, %v6415, %v6419
        %v6422 = vshrl.u32 %v6294, 16
        %v6424 = vshll.u32 %v6294, 16
        %v6426 = vrot.slane %v6424, 1
        %v6427 = vor.u32 %v6422, %v6426
        %v6429 = vshll.u32 %v6295, 16
        %v6431 = vrot.slane %v6429, 1
        %v6432 = vsel %vm6312, %v6427, %v6431
        %v6434 = vshrl.u32 %v6296, 16
        %v6436 = vshll.u32 %v6296, 16
        %v6438 = vrot.slane %v6436, 1
        %v6439 = vor.u32 %v6434, %v6438
        %v6441 = vshll.u32 %v6297, 16
        %v6443 = vrot.slane %v6441, 1
        %v6444 = vsel %vm6312, %v6439, %v6443
        %v6446 = vshrl.u32 %v6298, 16
        %v6448 = vshll.u32 %v6298, 16
        %v6450 = vrot.slane %v6448, 1
        %v6451 = vor.u32 %v6446, %v6450
        %v6453 = vshll.u32 %v6299, 16
        %v6455 = vrot.slane %v6453, 1
        %v6456 = vsel %vm6312, %v6451, %v6455
        %v6458 = vshrl.u32 %v6300, 16
        %v6460 = vshll.u32 %v6300, 16
        %v6462 = vrot.slane %v6460, 1
        %v6463 = vor.u32 %v6458, %v6462
        %v6465 = vshll.u32 %v6301, 16
        %v6467 = vrot.slane %v6465, 1
        %v6468 = vsel %vm6312, %v6463, %v6467
        %v6470 = vshrl.u32 %v6302, 16
        %v6472 = vshll.u32 %v6302, 16
        %v6474 = vrot.slane %v6472, 1
        %v6475 = vor.u32 %v6470, %v6474
        %v6477 = vshll.u32 %v6303, 16
        %v6479 = vrot.slane %v6477, 1
        %v6480 = vsel %vm6312, %v6475, %v6479
        %v6482 = vshrl.u32 %v6304, 16
        %v6484 = vshll.u32 %v6304, 16
        %v6486 = vrot.slane %v6484, 1
        %v6487 = vor.u32 %v6482, %v6486
        %v6489 = vshll.u32 %v6305, 16
        %v6491 = vrot.slane %v6489, 1
        %v6492 = vsel %vm6312, %v6487, %v6491
        %v6494 = vshrl.u32 %v6306, 16
        %v6496 = vshll.u32 %v6306, 16
        %v6498 = vrot.slane %v6496, 1
        %v6499 = vor.u32 %v6494, %v6498
        %v6501 = vshll.u32 %v6307, 16
        %v6503 = vrot.slane %v6501, 1
        %v6504 = vsel %vm6312, %v6499, %v6503
        %v6506 = vshrl.u32 %v6308, 16
        %v6508 = vshll.u32 %v6308, 16
        %v6510 = vrot.slane %v6508, 1
        %v6511 = vor.u32 %v6506, %v6510
        %v6513 = vshll.u32 %v6309, 16
        %v6515 = vrot.slane %v6513, 1
        %v6516 = vsel %vm6312, %v6511, %v6515
        %v6518 = vshrl.u32 %v6310, 16
        %v6520 = vshll.u32 %v6310, 16
        %v6522 = vrot.slane %v6520, 1
        %v6523 = vor.u32 %v6518, %v6522
        %v6525 = vshll.u32 %v6311, 16
        %v6527 = vrot.slane %v6525, 1
        %v6528 = vsel %vm6312, %v6523, %v6527
        %6529 = vrot.lane.b32.xlu0 %v6324, 64
        %v6530 = vpop.permute.xlu0 %6529
        %6531 = vrot.lane.b32.xlu0 %v6336, 64
        %v6532 = vpop.permute.xlu0 %6531
        %6533 = vrot.lane.b32.xlu0 %v6348, 64
        %v6534 = vpop.permute.xlu0 %6533
        %6535 = vrot.lane.b32.xlu0 %v6360, 64
        %v6536 = vpop.permute.xlu0 %6535
        %6537 = vrot.lane.b32.xlu0 %v6372, 64
        %v6538 = vpop.permute.xlu0 %6537
        %6539 = vrot.lane.b32.xlu0 %v6384, 64
        %v6540 = vpop.permute.xlu0 %6539
        %6541 = vrot.lane.b32.xlu0 %v6396, 64
        %v6542 = vpop.permute.xlu0 %6541
        %6543 = vrot.lane.b32.xlu0 %v6408, 64
        %v6544 = vpop.permute.xlu0 %6543
        %6545 = vrot.lane.b32.xlu0 %v6420, 64
        %v6546 = vpop.permute.xlu0 %6545
        %6547 = vrot.lane.b32.xlu0 %v6432, 64
        %v6548 = vpop.permute.xlu0 %6547
        %6549 = vrot.lane.b32.xlu0 %v6444, 64
        %v6550 = vpop.permute.xlu0 %6549
        %6551 = vrot.lane.b32.xlu0 %v6456, 64
        %v6552 = vpop.permute.xlu0 %6551
        %6553 = vrot.lane.b32.xlu0 %v6468, 64
        %v6554 = vpop.permute.xlu0 %6553
        %6555 = vrot.lane.b32.xlu0 %v6480, 64
        %v6556 = vpop.permute.xlu0 %6555
        %6557 = vrot.lane.b32.xlu0 %v6492, 64
        %v6558 = vpop.permute.xlu0 %6557
        %6559 = vrot.lane.b32.xlu0 %v6504, 64
        %v6560 = vpop.permute.xlu0 %6559
        %6561 = vrot.lane.b32.xlu0 %v6516, 64
        %v6562 = vpop.permute.xlu0 %6561
        %6563 = vrot.lane.b32.xlu0 %v6528, 64
        %v6564 = vpop.permute.xlu0 %6563
        %vm6601 = vcmask 1046528
        %v6602 = vrot.slane %v6276, 1
        %v6603 = vrot.slane %v6277, 1
        %v6604 = vsel %vm6601, %v6602, %v6603
        %v6605 = vrot.slane %v6278, 1
        %v6606 = vrot.slane %v6279, 1
        %v6607 = vsel %vm6601, %v6605, %v6606
        %v6608 = vrot.slane %v6280, 1
        %v6609 = vrot.slane %v6281, 1
        %v6610 = vsel %vm6601, %v6608, %v6609
        %v6611 = vrot.slane %v6282, 1
        %v6612 = vrot.slane %v6283, 1
        %v6613 = vsel %vm6601, %v6611, %v6612
        %v6614 = vrot.slane %v6284, 1
        %v6615 = vrot.slane %v6285, 1
        %v6616 = vsel %vm6601, %v6614, %v6615
        %v6617 = vrot.slane %v6286, 1
        %v6618 = vrot.slane %v6287, 1
        %v6619 = vsel %vm6601, %v6617, %v6618
        %v6620 = vrot.slane %v6288, 1
        %v6621 = vrot.slane %v6289, 1
        %v6622 = vsel %vm6601, %v6620, %v6621
        %v6623 = vrot.slane %v6290, 1
        %v6624 = vrot.slane %v6291, 1
        %v6625 = vsel %vm6601, %v6623, %v6624
        %v6626 = vrot.slane %v6292, 1
        %v6627 = vrot.slane %v6293, 1
        %v6628 = vsel %vm6601, %v6626, %v6627
        %v6629 = vrot.slane %v6294, 1
        %v6630 = vrot.slane %v6295, 1
        %v6631 = vsel %vm6601, %v6629, %v6630
        %v6632 = vrot.slane %v6296, 1
        %v6633 = vrot.slane %v6297, 1
        %v6634 = vsel %vm6601, %v6632, %v6633
        %v6635 = vrot.slane %v6298, 1
        %v6636 = vrot.slane %v6299, 1
        %v6637 = vsel %vm6601, %v6635, %v6636
        %v6638 = vrot.slane %v6300, 1
        %v6639 = vrot.slane %v6301, 1
        %v6640 = vsel %vm6601, %v6638, %v6639
        %v6641 = vrot.slane %v6302, 1
        %v6642 = vrot.slane %v6303, 1
        %v6643 = vsel %vm6601, %v6641, %v6642
        %v6644 = vrot.slane %v6304, 1
        %v6645 = vrot.slane %v6305, 1
        %v6646 = vsel %vm6601, %v6644, %v6645
        %v6647 = vrot.slane %v6306, 1
        %v6648 = vrot.slane %v6307, 1
        %v6649 = vsel %vm6601, %v6647, %v6648
        %v6650 = vrot.slane %v6308, 1
        %v6651 = vrot.slane %v6309, 1
        %v6652 = vsel %vm6601, %v6650, %v6651
        %v6653 = vrot.slane %v6310, 1
        %v6654 = vrot.slane %v6311, 1
        %v6655 = vsel %vm6601, %v6653, %v6654
        %vm6656 = vcmask 523264
        %v6658 = vsel %vm6656, %v6276, %v6530
        %v6661 = vsel %vm6656, %v6278, %v6532
        %v6664 = vsel %vm6656, %v6280, %v6534
        %v6667 = vsel %vm6656, %v6282, %v6536
        %v6670 = vsel %vm6656, %v6284, %v6538
        %v6673 = vsel %vm6656, %v6286, %v6540
        %v6676 = vsel %vm6656, %v6288, %v6542
        %v6679 = vsel %vm6656, %v6290, %v6544
        %v6682 = vsel %vm6656, %v6292, %v6546
        %v6685 = vsel %vm6656, %v6294, %v6548
        %v6688 = vsel %vm6656, %v6296, %v6550
        %v6691 = vsel %vm6656, %v6298, %v6552
        %v6694 = vsel %vm6656, %v6300, %v6554
        %v6697 = vsel %vm6656, %v6302, %v6556
        %v6700 = vsel %vm6656, %v6304, %v6558
        %v6703 = vsel %vm6656, %v6306, %v6560
        %v6706 = vsel %vm6656, %v6308, %v6562
        %v6709 = vsel %vm6656, %v6310, %v6564
        %v6711 = vld [vmem:[%s6] sm:$0xf]
        %v6712 = vld [vmem:[%s6 + $0x4] sm:$0xf]
        %v6713 = vld [vmem:[%s6 + $0x8] sm:$0xf]
        %v6714 = vld [vmem:[%s6 + $0xc] sm:$0xf]
        %v6715 = vld [vmem:[%s6 + $0x10] sm:$0xf]
        %v6716 = vld [vmem:[%s6 + $0x14] sm:$0xf]
        %v6717 = vld [vmem:[%s6 + $0x18] sm:$0xf]
        %v6718 = vld [vmem:[%s6 + $0x1c] sm:$0xf]
        %v6719 = vld [vmem:[%s6 + $0x20] sm:$0xf]
        %v6720 = vld [vmem:[%s6 + $0x24] sm:$0xf]
        %v6721 = vld [vmem:[%s6 + $0x28] sm:$0xf]
        %v6722 = vld [vmem:[%s6 + $0x2c] sm:$0xf]
        %v6723 = vld [vmem:[%s6 + $0x30] sm:$0xf]
        %v6724 = vld [vmem:[%s6 + $0x34] sm:$0xf]
        %v6725 = vld [vmem:[%s6 + $0x38] sm:$0xf]
        %v6726 = vld [vmem:[%s6 + $0x3c] sm:$0xf]
        %v6727 = vld [vmem:[%s6 + $0x40] sm:$0xf]
        %v6728 = vld [vmem:[%s6 + $0x44] sm:$0xf]
        %v6729 = vld [vmem:[%s6 + $0x48] sm:$0xf]
        %v6730 = vld [vmem:[%s6 + $0x4c] sm:$0xf]
        %v6731 = vld [vmem:[%s6 + $0x50] sm:$0xf]
        %v6732 = vld [vmem:[%s6 + $0x54] sm:$0xf]
        %v6733 = vld [vmem:[%s6 + $0x58] sm:$0xf]
        %v6734 = vld [vmem:[%s6 + $0x5c] sm:$0xf]
        %s6735 = scalar_lea.vmem %s6, 96
        %v6736 = vld [vmem:[%s6735] sm:$0xf]
        %v6737 = vld [vmem:[%s6735 + $0x4] sm:$0xf]
        %v6738 = vld [vmem:[%s6735 + $0x8] sm:$0xf]
        %v6739 = vld [vmem:[%s6735 + $0xc] sm:$0xf]
        %v6740 = vld [vmem:[%s6735 + $0x10] sm:$0xf]
        %v6741 = vld [vmem:[%s6735 + $0x14] sm:$0xf]
        %v6742 = vld [vmem:[%s6735 + $0x18] sm:$0xf]
        %v6743 = vld [vmem:[%s6735 + $0x1c] sm:$0xf]
        %v6744 = vld [vmem:[%s6735 + $0x20] sm:$0xf]
        %v6745 = vld [vmem:[%s6735 + $0x24] sm:$0xf]
        %v6746 = vld [vmem:[%s6735 + $0x28] sm:$0xf]
        %v6747 = vld [vmem:[%s6735 + $0x2c] sm:$0xf]
        %v6748 = vld [vmem:[%s6735 + $0x30] sm:$0xf]
        %v6749 = vld [vmem:[%s6735 + $0x34] sm:$0xf]
        %v6750 = vld [vmem:[%s6735 + $0x38] sm:$0xf]
        %v6751 = vld [vmem:[%s6735 + $0x3c] sm:$0xf]
        %v6752 = vld [vmem:[%s6735 + $0x40] sm:$0xf]
        %v6753 = vld [vmem:[%s6735 + $0x44] sm:$0xf]
        %v6754 = vld [vmem:[%s6735 + $0x48] sm:$0xf]
        %v6755 = vld [vmem:[%s6735 + $0x4c] sm:$0xf]
        %v6756 = vld [vmem:[%s6735 + $0x50] sm:$0xf]
        %v6757 = vld [vmem:[%s6735 + $0x54] sm:$0xf]
        %v6758 = vld [vmem:[%s6735 + $0x58] sm:$0xf]
        %v6759 = vld [vmem:[%s6735 + $0x5c] sm:$0xf]
        %v6784 = vunpack.c.l.b16 %v6736
        %v6785 = vunpack.c.l.b16 %v6737
        %v6786 = vunpack.c.l.b16 %v6738
        %v6787 = vunpack.c.l.b16 %v6739
        %v6788 = vunpack.c.l.b16 %v6740
        %v6789 = vunpack.c.l.b16 %v6741
        %v6790 = vunpack.c.l.b16 %v6742
        %v6791 = vunpack.c.l.b16 %v6743
        %v6792 = vunpack.c.l.b16 %v6744
        %v6793 = vunpack.c.l.b16 %v6745
        %v6794 = vunpack.c.l.b16 %v6746
        %v6795 = vunpack.c.l.b16 %v6747
        %v6796 = vunpack.c.l.b16 %v6748
        %v6797 = vunpack.c.l.b16 %v6749
        %v6798 = vunpack.c.l.b16 %v6750
        %v6799 = vunpack.c.l.b16 %v6751
        %v6800 = vunpack.c.l.b16 %v6752
        %v6801 = vunpack.c.l.b16 %v6753
        %v6802 = vunpack.c.l.b16 %v6754
        %v6803 = vunpack.c.l.b16 %v6755
        %v6804 = vunpack.c.l.b16 %v6756
        %v6805 = vunpack.c.l.b16 %v6757
        %v6806 = vunpack.c.l.b16 %v6758
        %v6807 = vunpack.c.l.b16 %v6759
        %v6808 = vpack.c.b16 %v6785, %v6784
        %v6809 = vpack.c.b16 %v6787, %v6786
        %v6810 = vpack.c.b16 %v6789, %v6788
        %v6811 = vpack.c.b16 %v6791, %v6790
        %v6812 = vpack.c.b16 %v6793, %v6792
        %v6813 = vpack.c.b16 %v6795, %v6794
        %v6814 = vpack.c.b16 %v6797, %v6796
        %v6815 = vpack.c.b16 %v6799, %v6798
        %v6816 = vpack.c.b16 %v6801, %v6800
        %v6817 = vpack.c.b16 %v6803, %v6802
        %v6818 = vpack.c.b16 %v6805, %v6804
        %v6819 = vpack.c.b16 %v6807, %v6806
        %v6833 = vsel %vm6656, %v6607, 0
        %v6836 = vsel %vm6656, %v6610, 0
        %v6839 = vsel %vm6656, %v6613, 0
        %v6842 = vsel %vm6656, %v6616, 0
        %v6845 = vsel %vm6656, %v6619, 0
        %v6848 = vsel %vm6656, %v6622, 0
        %v6851 = vsel %vm6656, %v6625, 0
        %v6854 = vsel %vm6656, %v6628, 0
        %v6857 = vsel %vm6656, %v6631, 0
        %v6860 = vsel %vm6656, %v6634, 0
        %v6863 = vsel %vm6656, %v6637, 0
        %v6866 = vsel %vm6656, %v6640, 0
        %v6869 = vsel %vm6656, %v6643, 0
        %v6872 = vsel %vm6656, %v6646, 0
        %v6875 = vsel %vm6656, %v6649, 0
        %v6878 = vsel %vm6656, %v6652, 0
        %6880 = vmatprep.subr.bf16.mxu0 0
        %6881 = vmatpush1.bf16.msra.mxu0 %v6808
        %6882 = vmatprep.subr.bf16.mxu0 0
        %6883 = vmatpush1.bf16.msra.mxu0 %v6809
        %6884 = vmatprep.subr.bf16.mxu0 0
        %6885 = vmatpush1.bf16.msra.mxu0 %v6810
        %6886 = vmatprep.subr.bf16.mxu0 0
        %6887 = vmatpush1.bf16.msra.mxu0 %v6811
        %6888 = vmatprep.subr.bf16.mxu0 0
        %6889 = vmatpush1.bf16.msra.mxu0 %v6812
        %6890 = vmatprep.subr.bf16.mxu0 0
        %6891 = vmatpush1.bf16.msra.mxu0 %v6813
        %6892 = vmatprep.subr.bf16.mxu0 0
        %6893 = vmatpush1.bf16.msra.mxu0 %v6814
        %6894 = vmatprep.subr.bf16.mxu0 0
        %6895 = vmatpush1.bf16.msra.mxu0 %v6815
        %6896 = vmatprep.subr.bf16.mxu0 0
        %6897 = vmatpush1.bf16.msra.mxu0 %v6816
        %6898 = vmatprep.subr.bf16.mxu0 0
        %6899 = vmatpush1.bf16.msra.mxu0 %v6817
        %6900 = vmatprep.subr.bf16.mxu0 0
        %6901 = vmatpush1.bf16.msra.mxu0 %v6818
        %6902 = vmatprep.subr.bf16.mxu0 0
        %6903 = vmatpush1.bf16.msra.mxu0 %v6819
        %6904 = vmatprep.subr.bf16.mxu0 0
        %6905 = vmatpush1.bf16.msra.mxu0 0
        %6906 = vmatprep.subr.bf16.mxu0 0
        %6907 = vmatpush1.bf16.msra.mxu0 0
        %6908 = vmatprep.subr.bf16.mxu0 0
        %6909 = vmatpush1.bf16.msra.mxu0 0
        %6910 = vmatprep.subr.bf16.mxu0 0
        %6911 = vmatpush1.bf16.msra.mxu0 0
        %6912 = vmatprep.mubr.bf16.mxu0 %v6833
        %6913 = vmatmul.mubr.bf16.gmra.mrb[0].mxu0 %v6661
        %v6914 = vpop.f32.mrb[0].mxu0
        %v6915 = vadd.f32 0.0, %v6914
        %v6916 = vpop.f32.mrb[0].mxu0
        %v6917 = vpop.f32.mrb[0].mxu0
        %v6918 = vadd.f32 0.0, %v6917
        %v6919 = vpop.f32.mrb[0].mxu0
        %6920 = vmatprep.mubr.bf16.mxu0 %v6836
        %6921 = vmatmul.mubr.bf16.gmra.mrb[0].mxu0 %v6664
        %v6922 = vpop.f32.mrb[0].mxu0
        %v6923 = vadd.f32 0.0, %v6922
        %v6924 = vpop.f32.mrb[0].mxu0
        %v6925 = vpop.f32.mrb[0].mxu0
        %v6926 = vadd.f32 0.0, %v6925
        %v6927 = vpop.f32.mrb[0].mxu0
        %6928 = vmatprep.mubr.bf16.mxu0 %v6839
        %6929 = vmatmul.mubr.bf16.gmra.mrb[0].mxu0 %v6667
        %v6930 = vpop.f32.mrb[0].mxu0
        %v6931 = vadd.f32 0.0, %v6930
        %v6932 = vpop.f32.mrb[0].mxu0
        %v6933 = vpop.f32.mrb[0].mxu0
        %v6934 = vadd.f32 0.0, %v6933
        %v6935 = vpop.f32.mrb[0].mxu0
        %6936 = vmatprep.mubr.bf16.mxu0 %v6842
        %6937 = vmatmul.mubr.bf16.gmra.mrb[0].mxu0 %v6670
        %v6938 = vpop.f32.mrb[0].mxu0
        %v6939 = vadd.f32 0.0, %v6938
        %v6940 = vpop.f32.mrb[0].mxu0
        %v6941 = vpop.f32.mrb[0].mxu0
        %v6942 = vadd.f32 0.0, %v6941
        %v6943 = vpop.f32.mrb[0].mxu0
        %6944 = vmatprep.mubr.bf16.mxu0 %v6845
        %6945 = vmatmul.mubr.bf16.gmra.mrb[0].mxu0 %v6673
        %v6946 = vpop.f32.mrb[0].mxu0
        %v6947 = vadd.f32 0.0, %v6946
        %v6948 = vpop.f32.mrb[0].mxu0
        %v6949 = vpop.f32.mrb[0].mxu0
        %v6950 = vadd.f32 0.0, %v6949
        %v6951 = vpop.f32.mrb[0].mxu0
        %6952 = vmatprep.mubr.bf16.mxu0 %v6848
        %6953 = vmatmul.mubr.bf16.gmra.mrb[0].mxu0 %v6676
        %v6954 = vpop.f32.mrb[0].mxu0
        %v6955 = vadd.f32 0.0, %v6954
        %v6956 = vpop.f32.mrb[0].mxu0
        %v6957 = vpop.f32.mrb[0].mxu0
        %v6958 = vadd.f32 0.0, %v6957
        %v6959 = vpop.f32.mrb[0].mxu0
        %6960 = vmatprep.mubr.bf16.mxu0 %v6851
        %6961 = vmatmul.mubr.bf16.gmra.mrb[0].mxu0 %v6679
        %v6962 = vpop.f32.mrb[0].mxu0
        %v6963 = vadd.f32 0.0, %v6962
        %v6964 = vpop.f32.mrb[0].mxu0
        %v6965 = vpop.f32.mrb[0].mxu0
        %v6966 = vadd.f32 0.0, %v6965
        %v6967 = vpop.f32.mrb[0].mxu0
        %6968 = vmatprep.mubr.bf16.mxu0 %v6854
        %6969 = vmatmul.mubr.bf16.gmra.mrb[0].mxu0 %v6682
        %v6970 = vpop.f32.mrb[0].mxu0
        %v6971 = vadd.f32 0.0, %v6970
        %v6972 = vpop.f32.mrb[0].mxu0
        %v6973 = vpop.f32.mrb[0].mxu0
        %v6974 = vadd.f32 0.0, %v6973
        %v6975 = vpop.f32.mrb[0].mxu0
        %6976 = vmatprep.mubr.bf16.mxu0 %v6857
        %6977 = vmatmul.mubr.bf16.gmra.mrb[0].mxu0 %v6685
        %v6978 = vpop.f32.mrb[0].mxu0
        %v6979 = vadd.f32 0.0, %v6978
        %v6980 = vpop.f32.mrb[0].mxu0
        %v6981 = vpop.f32.mrb[0].mxu0
        %v6982 = vadd.f32 0.0, %v6981
        %v6983 = vpop.f32.mrb[0].mxu0
        %6984 = vmatprep.mubr.bf16.mxu0 %v6860
        %6985 = vmatmul.mubr.bf16.gmra.mrb[0].mxu0 %v6688
        %v6986 = vpop.f32.mrb[0].mxu0
        %v6987 = vadd.f32 0.0, %v6986
        %v6988 = vpop.f32.mrb[0].mxu0
        %v6989 = vpop.f32.mrb[0].mxu0
        %v6990 = vadd.f32 0.0, %v6989
        %v6991 = vpop.f32.mrb[0].mxu0
        %6992 = vmatprep.mubr.bf16.mxu0 %v6863
        %6993 = vmatmul.mubr.bf16.gmra.mrb[0].mxu0 %v6691
        %v6994 = vpop.f32.mrb[0].mxu0
        %v6995 = vadd.f32 0.0, %v6994
        %v6996 = vpop.f32.mrb[0].mxu0
        %v6997 = vpop.f32.mrb[0].mxu0
        %v6998 = vadd.f32 0.0, %v6997
        %v6999 = vpop.f32.mrb[0].mxu0
        %7000 = vmatprep.mubr.bf16.mxu0 %v6866
        %7001 = vmatmul.mubr.bf16.gmra.mrb[0].mxu0 %v6694
        %v7002 = vpop.f32.mrb[0].mxu0
        %v7003 = vadd.f32 0.0, %v7002
        %v7004 = vpop.f32.mrb[0].mxu0
        %v7005 = vpop.f32.mrb[0].mxu0
        %v7006 = vadd.f32 0.0, %v7005
        %v7007 = vpop.f32.mrb[0].mxu0
        %7008 = vmatprep.mubr.bf16.mxu0 %v6869
        %7009 = vmatmul.mubr.bf16.gmra.mrb[0].mxu0 %v6697
        %v7010 = vpop.f32.mrb[0].mxu0
        %v7011 = vadd.f32 0.0, %v7010
        %v7012 = vpop.f32.mrb[0].mxu0
        %v7013 = vpop.f32.mrb[0].mxu0
        %v7014 = vadd.f32 0.0, %v7013
        %v7015 = vpop.f32.mrb[0].mxu0
        %7016 = vmatprep.mubr.bf16.mxu0 %v6872
        %7017 = vmatmul.mubr.bf16.gmra.mrb[0].mxu0 %v6700
        %v7018 = vpop.f32.mrb[0].mxu0
        %v7019 = vadd.f32 0.0, %v7018
        %v7020 = vpop.f32.mrb[0].mxu0
        %v7021 = vpop.f32.mrb[0].mxu0
        %v7022 = vadd.f32 0.0, %v7021
        %v7023 = vpop.f32.mrb[0].mxu0
        %7024 = vmatprep.mubr.bf16.mxu0 %v6875
        %7025 = vmatmul.mubr.bf16.gmra.mrb[0].mxu0 %v6703
        %v7026 = vpop.f32.mrb[0].mxu0
        %v7027 = vadd.f32 0.0, %v7026
        %v7028 = vpop.f32.mrb[0].mxu0
        %v7029 = vpop.f32.mrb[0].mxu0
        %v7030 = vadd.f32 0.0, %v7029
        %v7031 = vpop.f32.mrb[0].mxu0
        %7032 = vmatprep.mubr.bf16.mxu0 %v6878
        %7033 = vmatmul.mubr.bf16.gmra.mrb[0].mxu0 %v6706
        %v7034 = vpop.f32.mrb[0].mxu0
        %v7035 = vadd.f32 0.0, %v7034
        %v7036 = vpop.f32.mrb[0].mxu0
        %v7037 = vpop.f32.mrb[0].mxu0
        %v7038 = vadd.f32 0.0, %v7037
        %v7039 = vpop.f32.mrb[0].mxu0
        %7040 = vdwg.mxu0
        %v7065 = vunpack.c.l.b16 %v6711
        %v7066 = vunpack.c.l.b16 %v6712
        %v7067 = vunpack.c.l.b16 %v6713
        %v7068 = vunpack.c.l.b16 %v6714
        %v7069 = vunpack.c.l.b16 %v6715
        %v7070 = vunpack.c.l.b16 %v6716
        %v7071 = vunpack.c.l.b16 %v6717
        %v7072 = vunpack.c.l.b16 %v6718
        %v7073 = vunpack.c.l.b16 %v6719
        %v7074 = vunpack.c.l.b16 %v6720
        %v7075 = vunpack.c.l.b16 %v6721
        %v7076 = vunpack.c.l.b16 %v6722
        %v7077 = vunpack.c.l.b16 %v6723
        %v7078 = vunpack.c.l.b16 %v6724
        %v7079 = vunpack.c.l.b16 %v6725
        %v7080 = vunpack.c.l.b16 %v6726
        %v7081 = vunpack.c.l.b16 %v6727
        %v7082 = vunpack.c.l.b16 %v6728
        %v7083 = vunpack.c.l.b16 %v6729
        %v7084 = vunpack.c.l.b16 %v6730
        %v7085 = vunpack.c.l.b16 %v6731
        %v7086 = vunpack.c.l.b16 %v6732
        %v7087 = vunpack.c.l.b16 %v6733
        %v7088 = vunpack.c.l.b16 %v6734
        %v7089 = vpack.c.b16 %v7066, %v7065
        %v7090 = vpack.c.b16 %v7068, %v7067
        %v7091 = vpack.c.b16 %v7070, %v7069
        %v7092 = vpack.c.b16 %v7072, %v7071
        %v7093 = vpack.c.b16 %v7074, %v7073
        %v7094 = vpack.c.b16 %v7076, %v7075
        %v7095 = vpack.c.b16 %v7078, %v7077
        %v7096 = vpack.c.b16 %v7080, %v7079
        %v7097 = vpack.c.b16 %v7082, %v7081
        %v7098 = vpack.c.b16 %v7084, %v7083
        %v7099 = vpack.c.b16 %v7086, %v7085
        %v7100 = vpack.c.b16 %v7088, %v7087
        %v7114 = vsel %vm6656, %v6604, 0
        %7116 = vmatprep.subr.bf16.mxu0 0
        %7117 = vmatpush1.bf16.msra.mxu0 %v7089
        %7118 = vmatprep.subr.bf16.mxu0 0
        %7119 = vmatpush1.bf16.msra.mxu0 %v7090
        %7120 = vmatprep.subr.bf16.mxu0 0
        %7121 = vmatpush1.bf16.msra.mxu0 %v7091
        %7122 = vmatprep.subr.bf16.mxu0 0
        %7123 = vmatpush1.bf16.msra.mxu0 %v7092
        %7124 = vmatprep.subr.bf16.mxu0 0
        %7125 = vmatpush1.bf16.msra.mxu0 %v7093
        %7126 = vmatprep.subr.bf16.mxu0 0
        %7127 = vmatpush1.bf16.msra.mxu0 %v7094
        %7128 = vmatprep.subr.bf16.mxu0 0
        %7129 = vmatpush1.bf16.msra.mxu0 %v7095
        %7130 = vmatprep.subr.bf16.mxu0 0
        %7131 = vmatpush1.bf16.msra.mxu0 %v7096
        %7132 = vmatprep.subr.bf16.mxu0 0
        %7133 = vmatpush1.bf16.msra.mxu0 %v7097
        %7134 = vmatprep.subr.bf16.mxu0 0
        %7135 = vmatpush1.bf16.msra.mxu0 %v7098
        %7136 = vmatprep.subr.bf16.mxu0 0
        %7137 = vmatpush1.bf16.msra.mxu0 %v7099
        %7138 = vmatprep.subr.bf16.mxu0 0
        %7139 = vmatpush1.bf16.msra.mxu0 %v7100
        %7140 = vmatprep.subr.bf16.mxu0 0
        %7141 = vmatpush1.bf16.msra.mxu0 0
        %7142 = vmatprep.subr.bf16.mxu0 0
        %7143 = vmatpush1.bf16.msra.mxu0 0
        %7144 = vmatprep.subr.bf16.mxu0 0
        %7145 = vmatpush1.bf16.msra.mxu0 0
        %7146 = vmatprep.subr.bf16.mxu0 0
        %7147 = vmatpush1.bf16.msra.mxu0 0
        %7148 = vmatprep.mubr.bf16.mxu0 %v7114
        %7149 = vmatmul.mubr.bf16.gmra.mrb[0].mxu0 %v6658
        %v7150 = vpop.f32.mrb[0].mxu0
        %v7151 = vadd.f32 %v6915, %v7150
        %v7152 = vpop.f32.mrb[0].mxu0
        %v7153 = vpop.f32.mrb[0].mxu0
        %v7154 = vadd.f32 %v6918, %v7153
        %v7155 = vpop.f32.mrb[0].mxu0
        %7156 = vmatprep.mubr.bf16.mxu0 %v6833
        %7157 = vmatmul.mubr.bf16.gmra.mrb[0].mxu0 %v6661
        %v7158 = vpop.f32.mrb[0].mxu0
        %v7159 = vadd.f32 %v6923, %v7158
        %v7160 = vpop.f32.mrb[0].mxu0
        %v7161 = vpop.f32.mrb[0].mxu0
        %v7162 = vadd.f32 %v6926, %v7161
        %v7163 = vpop.f32.mrb[0].mxu0
        %7164 = vmatprep.mubr.bf16.mxu0 %v6836
        %7165 = vmatmul.mubr.bf16.gmra.mrb[0].mxu0 %v6664
        %v7166 = vpop.f32.mrb[0].mxu0
        %v7167 = vadd.f32 %v6931, %v7166
        %v7168 = vpop.f32.mrb[0].mxu0
        %v7169 = vpop.f32.mrb[0].mxu0
        %v7170 = vadd.f32 %v6934, %v7169
        %v7171 = vpop.f32.mrb[0].mxu0
        %7172 = vmatprep.mubr.bf16.mxu0 %v6839
        %7173 = vmatmul.mubr.bf16.gmra.mrb[0].mxu0 %v6667
        %v7174 = vpop.f32.mrb[0].mxu0
        %v7175 = vadd.f32 %v6939, %v7174
        %v7176 = vpop.f32.mrb[0].mxu0
        %v7177 = vpop.f32.mrb[0].mxu0
        %v7178 = vadd.f32 %v6942, %v7177
        %v7179 = vpop.f32.mrb[0].mxu0
        %7180 = vmatprep.mubr.bf16.mxu0 %v6842
        %7181 = vmatmul.mubr.bf16.gmra.mrb[0].mxu0 %v6670
        %v7182 = vpop.f32.mrb[0].mxu0
        %v7183 = vadd.f32 %v6947, %v7182
        %v7184 = vpop.f32.mrb[0].mxu0
        %v7185 = vpop.f32.mrb[0].mxu0
        %v7186 = vadd.f32 %v6950, %v7185
        %v7187 = vpop.f32.mrb[0].mxu0
        %7188 = vmatprep.mubr.bf16.mxu0 %v6845
        %7189 = vmatmul.mubr.bf16.gmra.mrb[0].mxu0 %v6673
        %v7190 = vpop.f32.mrb[0].mxu0
        %v7191 = vadd.f32 %v6955, %v7190
        %v7192 = vpop.f32.mrb[0].mxu0
        %v7193 = vpop.f32.mrb[0].mxu0
        %v7194 = vadd.f32 %v6958, %v7193
        %v7195 = vpop.f32.mrb[0].mxu0
        %7196 = vmatprep.mubr.bf16.mxu0 %v6848
        %7197 = vmatmul.mubr.bf16.gmra.mrb[0].mxu0 %v6676
        %v7198 = vpop.f32.mrb[0].mxu0
        %v7199 = vadd.f32 %v6963, %v7198
        %v7200 = vpop.f32.mrb[0].mxu0
        %v7201 = vpop.f32.mrb[0].mxu0
        %v7202 = vadd.f32 %v6966, %v7201
        %v7203 = vpop.f32.mrb[0].mxu0
        %7204 = vmatprep.mubr.bf16.mxu0 %v6851
        %7205 = vmatmul.mubr.bf16.gmra.mrb[0].mxu0 %v6679
        %v7206 = vpop.f32.mrb[0].mxu0
        %v7207 = vadd.f32 %v6971, %v7206
        %v7208 = vpop.f32.mrb[0].mxu0
        %v7209 = vpop.f32.mrb[0].mxu0
        %v7210 = vadd.f32 %v6974, %v7209
        %v7211 = vpop.f32.mrb[0].mxu0
        %7212 = vmatprep.mubr.bf16.mxu0 %v6854
        %7213 = vmatmul.mubr.bf16.gmra.mrb[0].mxu0 %v6682
        %v7214 = vpop.f32.mrb[0].mxu0
        %v7215 = vadd.f32 %v6979, %v7214
        %v7216 = vpop.f32.mrb[0].mxu0
        %v7217 = vpop.f32.mrb[0].mxu0
        %v7218 = vadd.f32 %v6982, %v7217
        %v7219 = vpop.f32.mrb[0].mxu0
        %7220 = vmatprep.mubr.bf16.mxu0 %v6857
        %7221 = vmatmul.mubr.bf16.gmra.mrb[0].mxu0 %v6685
        %v7222 = vpop.f32.mrb[0].mxu0
        %v7223 = vadd.f32 %v6987, %v7222
        %v7224 = vpop.f32.mrb[0].mxu0
        %v7225 = vpop.f32.mrb[0].mxu0
        %v7226 = vadd.f32 %v6990, %v7225
        %v7227 = vpop.f32.mrb[0].mxu0
        %7228 = vmatprep.mubr.bf16.mxu0 %v6860
        %7229 = vmatmul.mubr.bf16.gmra.mrb[0].mxu0 %v6688
        %v7230 = vpop.f32.mrb[0].mxu0
        %v7231 = vadd.f32 %v6995, %v7230
        %v7232 = vpop.f32.mrb[0].mxu0
        %v7233 = vpop.f32.mrb[0].mxu0
        %v7234 = vadd.f32 %v6998, %v7233
        %v7235 = vpop.f32.mrb[0].mxu0
        %7236 = vmatprep.mubr.bf16.mxu0 %v6863
        %7237 = vmatmul.mubr.bf16.gmra.mrb[0].mxu0 %v6691
        %v7238 = vpop.f32.mrb[0].mxu0
        %v7239 = vadd.f32 %v7003, %v7238
        %v7240 = vpop.f32.mrb[0].mxu0
        %v7241 = vpop.f32.mrb[0].mxu0
        %v7242 = vadd.f32 %v7006, %v7241
        %v7243 = vpop.f32.mrb[0].mxu0
        %7244 = vmatprep.mubr.bf16.mxu0 %v6866
        %7245 = vmatmul.mubr.bf16.gmra.mrb[0].mxu0 %v6694
        %v7246 = vpop.f32.mrb[0].mxu0
        %v7247 = vadd.f32 %v7011, %v7246
        %v7248 = vpop.f32.mrb[0].mxu0
        %v7249 = vpop.f32.mrb[0].mxu0
        %v7250 = vadd.f32 %v7014, %v7249
        %v7251 = vpop.f32.mrb[0].mxu0
        %7252 = vmatprep.mubr.bf16.mxu0 %v6869
        %7253 = vmatmul.mubr.bf16.gmra.mrb[0].mxu0 %v6697
        %v7254 = vpop.f32.mrb[0].mxu0
        %v7255 = vadd.f32 %v7019, %v7254
        %v7256 = vpop.f32.mrb[0].mxu0
        %v7257 = vpop.f32.mrb[0].mxu0
        %v7258 = vadd.f32 %v7022, %v7257
        %v7259 = vpop.f32.mrb[0].mxu0
        %7260 = vmatprep.mubr.bf16.mxu0 %v6872
        %7261 = vmatmul.mubr.bf16.gmra.mrb[0].mxu0 %v6700
        %v7262 = vpop.f32.mrb[0].mxu0
        %v7263 = vadd.f32 %v7027, %v7262
        %v7264 = vpop.f32.mrb[0].mxu0
        %v7265 = vpop.f32.mrb[0].mxu0
        %v7266 = vadd.f32 %v7030, %v7265
        %v7267 = vpop.f32.mrb[0].mxu0
        %7268 = vmatprep.mubr.bf16.mxu0 %v6875
        %7269 = vmatmul.mubr.bf16.gmra.mrb[0].mxu0 %v6703
        %v7270 = vpop.f32.mrb[0].mxu0
        %v7271 = vadd.f32 %v7035, %v7270
        %v7272 = vpop.f32.mrb[0].mxu0
        %v7273 = vpop.f32.mrb[0].mxu0
        %v7274 = vadd.f32 %v7038, %v7273
        %v7275 = vpop.f32.mrb[0].mxu0
        %7276 = vdwg.mxu0
        %s7277 = scalar_lea.vmem %s6, 192
        %v7278 = vld [vmem:[%s7277] sm:$0xf]
        %v7279 = vld [vmem:[%s7277 + $0x4] sm:$0xf]
        %v7280 = vld [vmem:[%s7277 + $0x8] sm:$0xf]
        %v7281 = vld [vmem:[%s7277 + $0xc] sm:$0xf]
        %v7282 = vld [vmem:[%s7277 + $0x10] sm:$0xf]
        %v7283 = vld [vmem:[%s7277 + $0x14] sm:$0xf]
        %v7284 = vld [vmem:[%s7277 + $0x18] sm:$0xf]
        %v7285 = vld [vmem:[%s7277 + $0x1c] sm:$0xf]
        %v7286 = vld [vmem:[%s7277 + $0x20] sm:$0xf]
        %v7287 = vld [vmem:[%s7277 + $0x24] sm:$0xf]
        %v7288 = vld [vmem:[%s7277 + $0x28] sm:$0xf]
        %v7289 = vld [vmem:[%s7277 + $0x2c] sm:$0xf]
        %v7290 = vld [vmem:[%s7277 + $0x30] sm:$0xf]
        %v7291 = vld [vmem:[%s7277 + $0x34] sm:$0xf]
        %v7292 = vld [vmem:[%s7277 + $0x38] sm:$0xf]
        %v7293 = vld [vmem:[%s7277 + $0x3c] sm:$0xf]
        %v7294 = vld [vmem:[%s7277 + $0x40] sm:$0xf]
        %v7295 = vld [vmem:[%s7277 + $0x44] sm:$0xf]
        %v7296 = vld [vmem:[%s7277 + $0x48] sm:$0xf]
        %v7297 = vld [vmem:[%s7277 + $0x4c] sm:$0xf]
        %v7298 = vld [vmem:[%s7277 + $0x50] sm:$0xf]
        %v7299 = vld [vmem:[%s7277 + $0x54] sm:$0xf]
        %v7300 = vld [vmem:[%s7277 + $0x58] sm:$0xf]
        %v7301 = vld [vmem:[%s7277 + $0x5c] sm:$0xf]
        %v7326 = vunpack.c.l.b16 %v7278
        %v7327 = vunpack.c.l.b16 %v7279
        %v7328 = vunpack.c.l.b16 %v7280
        %v7329 = vunpack.c.l.b16 %v7281
        %v7330 = vunpack.c.l.b16 %v7282
        %v7331 = vunpack.c.l.b16 %v7283
        %v7332 = vunpack.c.l.b16 %v7284
        %v7333 = vunpack.c.l.b16 %v7285
        %v7334 = vunpack.c.l.b16 %v7286
        %v7335 = vunpack.c.l.b16 %v7287
        %v7336 = vunpack.c.l.b16 %v7288
        %v7337 = vunpack.c.l.b16 %v7289
        %v7338 = vunpack.c.l.b16 %v7290
        %v7339 = vunpack.c.l.b16 %v7291
        %v7340 = vunpack.c.l.b16 %v7292
        %v7341 = vunpack.c.l.b16 %v7293
        %v7342 = vunpack.c.l.b16 %v7294
        %v7343 = vunpack.c.l.b16 %v7295
        %v7344 = vunpack.c.l.b16 %v7296
        %v7345 = vunpack.c.l.b16 %v7297
        %v7346 = vunpack.c.l.b16 %v7298
        %v7347 = vunpack.c.l.b16 %v7299
        %v7348 = vunpack.c.l.b16 %v7300
        %v7349 = vunpack.c.l.b16 %v7301
        %v7350 = vpack.c.b16 %v7327, %v7326
        %v7351 = vpack.c.b16 %v7329, %v7328
        %v7352 = vpack.c.b16 %v7331, %v7330
        %v7353 = vpack.c.b16 %v7333, %v7332
        %v7354 = vpack.c.b16 %v7335, %v7334
        %v7355 = vpack.c.b16 %v7337, %v7336
        %v7356 = vpack.c.b16 %v7339, %v7338
        %v7357 = vpack.c.b16 %v7341, %v7340
        %v7358 = vpack.c.b16 %v7343, %v7342
        %v7359 = vpack.c.b16 %v7345, %v7344
        %v7360 = vpack.c.b16 %v7347, %v7346
        %v7361 = vpack.c.b16 %v7349, %v7348
        %v7375 = vsel %vm6656, %v6655, 0
        %7377 = vmatprep.subr.bf16.mxu0 0
        %7378 = vmatpush1.bf16.msra.mxu0 %v7350
        %7379 = vmatprep.subr.bf16.mxu0 0
        %7380 = vmatpush1.bf16.msra.mxu0 %v7351
        %7381 = vmatprep.subr.bf16.mxu0 0
        %7382 = vmatpush1.bf16.msra.mxu0 %v7352
        %7383 = vmatprep.subr.bf16.mxu0 0
        %7384 = vmatpush1.bf16.msra.mxu0 %v7353
        %7385 = vmatprep.subr.bf16.mxu0 0
        %7386 = vmatpush1.bf16.msra.mxu0 %v7354
        %7387 = vmatprep.subr.bf16.mxu0 0
        %7388 = vmatpush1.bf16.msra.mxu0 %v7355
        %7389 = vmatprep.subr.bf16.mxu0 0
        %7390 = vmatpush1.bf16.msra.mxu0 %v7356
        %7391 = vmatprep.subr.bf16.mxu0 0
        %7392 = vmatpush1.bf16.msra.mxu0 %v7357
        %7393 = vmatprep.subr.bf16.mxu0 0
        %7394 = vmatpush1.bf16.msra.mxu0 %v7358
        %7395 = vmatprep.subr.bf16.mxu0 0
        %7396 = vmatpush1.bf16.msra.mxu0 %v7359
        %7397 = vmatprep.subr.bf16.mxu0 0
        %7398 = vmatpush1.bf16.msra.mxu0 %v7360
        %7399 = vmatprep.subr.bf16.mxu0 0
        %7400 = vmatpush1.bf16.msra.mxu0 %v7361
        %7401 = vmatprep.subr.bf16.mxu0 0
        %7402 = vmatpush1.bf16.msra.mxu0 0
        %7403 = vmatprep.subr.bf16.mxu0 0
        %7404 = vmatpush1.bf16.msra.mxu0 0
        %7405 = vmatprep.subr.bf16.mxu0 0
        %7406 = vmatpush1.bf16.msra.mxu0 0
        %7407 = vmatprep.subr.bf16.mxu0 0
        %7408 = vmatpush1.bf16.msra.mxu0 0
        %7409 = vmatprep.mubr.bf16.mxu0 %v6836
        %7410 = vmatmul.mubr.bf16.gmra.mrb[0].mxu0 %v6664
        %v7411 = vpop.f32.mrb[0].mxu0
        %v7412 = vadd.f32 0.0, %v7411
        %v7413 = vpop.f32.mrb[0].mxu0
        %v7414 = vpop.f32.mrb[0].mxu0
        %v7415 = vadd.f32 0.0, %v7414
        %v7416 = vpop.f32.mrb[0].mxu0
        %7417 = vmatprep.mubr.bf16.mxu0 %v6839
        %7418 = vmatmul.mubr.bf16.gmra.mrb[0].mxu0 %v6667
        %v7419 = vpop.f32.mrb[0].mxu0
        %v7420 = vadd.f32 0.0, %v7419
        %v7421 = vpop.f32.mrb[0].mxu0
        %v7422 = vpop.f32.mrb[0].mxu0
        %v7423 = vadd.f32 0.0, %v7422
        %v7424 = vpop.f32.mrb[0].mxu0
        %7425 = vmatprep.mubr.bf16.mxu0 %v6842
        %7426 = vmatmul.mubr.bf16.gmra.mrb[0].mxu0 %v6670
        %v7427 = vpop.f32.mrb[0].mxu0
        %v7428 = vadd.f32 0.0, %v7427
        %v7429 = vpop.f32.mrb[0].mxu0
        %v7430 = vpop.f32.mrb[0].mxu0
        %v7431 = vadd.f32 0.0, %v7430
        %v7432 = vpop.f32.mrb[0].mxu0
        %7433 = vmatprep.mubr.bf16.mxu0 %v6845
        %7434 = vmatmul.mubr.bf16.gmra.mrb[0].mxu0 %v6673
        %v7435 = vpop.f32.mrb[0].mxu0
        %v7436 = vadd.f32 0.0, %v7435
        %v7437 = vpop.f32.mrb[0].mxu0
        %v7438 = vpop.f32.mrb[0].mxu0
        %v7439 = vadd.f32 0.0, %v7438
        %v7440 = vpop.f32.mrb[0].mxu0
        %7441 = vmatprep.mubr.bf16.mxu0 %v6848
        %7442 = vmatmul.mubr.bf16.gmra.mrb[0].mxu0 %v6676
        %v7443 = vpop.f32.mrb[0].mxu0
        %v7444 = vadd.f32 0.0, %v7443
        %v7445 = vpop.f32.mrb[0].mxu0
        %v7446 = vpop.f32.mrb[0].mxu0
        %v7447 = vadd.f32 0.0, %v7446
        %v7448 = vpop.f32.mrb[0].mxu0
        %7449 = vmatprep.mubr.bf16.mxu0 %v6851
        %7450 = vmatmul.mubr.bf16.gmra.mrb[0].mxu0 %v6679
        %v7451 = vpop.f32.mrb[0].mxu0
        %v7452 = vadd.f32 0.0, %v7451
        %v7453 = vpop.f32.mrb[0].mxu0
        %v7454 = vpop.f32.mrb[0].mxu0
        %v7455 = vadd.f32 0.0, %v7454
        %v7456 = vpop.f32.mrb[0].mxu0
        %7457 = vmatprep.mubr.bf16.mxu0 %v6854
        %7458 = vmatmul.mubr.bf16.gmra.mrb[0].mxu0 %v6682
        %v7459 = vpop.f32.mrb[0].mxu0
        %v7460 = vadd.f32 0.0, %v7459
        %v7461 = vpop.f32.mrb[0].mxu0
        %v7462 = vpop.f32.mrb[0].mxu0
        %v7463 = vadd.f32 0.0, %v7462
        %v7464 = vpop.f32.mrb[0].mxu0
        %7465 = vmatprep.mubr.bf16.mxu0 %v6857
        %7466 = vmatmul.mubr.bf16.gmra.mrb[0].mxu0 %v6685
        %v7467 = vpop.f32.mrb[0].mxu0
        %v7468 = vadd.f32 0.0, %v7467
        %v7469 = vpop.f32.mrb[0].mxu0
        %v7470 = vpop.f32.mrb[0].mxu0
        %v7471 = vadd.f32 0.0, %v7470
        %v7472 = vpop.f32.mrb[0].mxu0
        %7473 = vmatprep.mubr.bf16.mxu0 %v6860
        %7474 = vmatmul.mubr.bf16.gmra.mrb[0].mxu0 %v6688
        %v7475 = vpop.f32.mrb[0].mxu0
        %v7476 = vadd.f32 0.0, %v7475
        %v7477 = vpop.f32.mrb[0].mxu0
        %v7478 = vpop.f32.mrb[0].mxu0
        %v7479 = vadd.f32 0.0, %v7478
        %v7480 = vpop.f32.mrb[0].mxu0
        %7481 = vmatprep.mubr.bf16.mxu0 %v6863
        %7482 = vmatmul.mubr.bf16.gmra.mrb[0].mxu0 %v6691
        %v7483 = vpop.f32.mrb[0].mxu0
        %v7484 = vadd.f32 0.0, %v7483
        %v7485 = vpop.f32.mrb[0].mxu0
        %v7486 = vpop.f32.mrb[0].mxu0
        %v7487 = vadd.f32 0.0, %v7486
        %v7488 = vpop.f32.mrb[0].mxu0
        %7489 = vmatprep.mubr.bf16.mxu0 %v6866
        %7490 = vmatmul.mubr.bf16.gmra.mrb[0].mxu0 %v6694
        %v7491 = vpop.f32.mrb[0].mxu0
        %v7492 = vadd.f32 0.0, %v7491
        %v7493 = vpop.f32.mrb[0].mxu0
        %v7494 = vpop.f32.mrb[0].mxu0
        %v7495 = vadd.f32 0.0, %v7494
        %v7496 = vpop.f32.mrb[0].mxu0
        %7497 = vmatprep.mubr.bf16.mxu0 %v6869
        %7498 = vmatmul.mubr.bf16.gmra.mrb[0].mxu0 %v6697
        %v7499 = vpop.f32.mrb[0].mxu0
        %v7500 = vadd.f32 0.0, %v7499
        %v7501 = vpop.f32.mrb[0].mxu0
        %v7502 = vpop.f32.mrb[0].mxu0
        %v7503 = vadd.f32 0.0, %v7502
        %v7504 = vpop.f32.mrb[0].mxu0
        %7505 = vmatprep.mubr.bf16.mxu0 %v6872
        %7506 = vmatmul.mubr.bf16.gmra.mrb[0].mxu0 %v6700
        %v7507 = vpop.f32.mrb[0].mxu0
        %v7508 = vadd.f32 0.0, %v7507
        %v7509 = vpop.f32.mrb[0].mxu0
        %v7510 = vpop.f32.mrb[0].mxu0
        %v7511 = vadd.f32 0.0, %v7510
        %v7512 = vpop.f32.mrb[0].mxu0
        %7513 = vmatprep.mubr.bf16.mxu0 %v6875
        %7514 = vmatmul.mubr.bf16.gmra.mrb[0].mxu0 %v6703
        %v7515 = vpop.f32.mrb[0].mxu0
        %v7516 = vadd.f32 0.0, %v7515
        %v7517 = vpop.f32.mrb[0].mxu0
        %v7518 = vpop.f32.mrb[0].mxu0
        %v7519 = vadd.f32 0.0, %v7518
        %v7520 = vpop.f32.mrb[0].mxu0
        %7521 = vmatprep.mubr.bf16.mxu0 %v6878
        %7522 = vmatmul.mubr.bf16.gmra.mrb[0].mxu0 %v6706
        %v7523 = vpop.f32.mrb[0].mxu0
        %v7524 = vadd.f32 0.0, %v7523
        %v7525 = vpop.f32.mrb[0].mxu0
        %v7526 = vpop.f32.mrb[0].mxu0
        %v7527 = vadd.f32 0.0, %v7526
        %v7528 = vpop.f32.mrb[0].mxu0
        %7529 = vmatprep.mubr.bf16.mxu0 %v7375
        %7530 = vmatmul.mubr.bf16.gmra.mrb[0].mxu0 %v6709
        %v7531 = vpop.f32.mrb[0].mxu0
        %v7532 = vadd.f32 0.0, %v7531
        %v7533 = vpop.f32.mrb[0].mxu0
        %v7534 = vpop.f32.mrb[0].mxu0
        %v7535 = vadd.f32 0.0, %v7534
        %v7536 = vpop.f32.mrb[0].mxu0
        %7537 = vdwg.mxu0
        %v7538 = vadd.f32 %v7151, %v7412
        %v7539 = vadd.f32 %v7154, %v7415
        %v7540 = vadd.f32 %v7159, %v7420
        %v7541 = vadd.f32 %v7162, %v7423
        %v7542 = vadd.f32 %v7167, %v7428
        %v7543 = vadd.f32 %v7170, %v7431
        %v7544 = vadd.f32 %v7175, %v7436
        %v7545 = vadd.f32 %v7178, %v7439
        %v7546 = vadd.f32 %v7183, %v7444
        %v7547 = vadd.f32 %v7186, %v7447
        %v7548 = vadd.f32 %v7191, %v7452
        %v7549 = vadd.f32 %v7194, %v7455
        %v7550 = vadd.f32 %v7199, %v7460
        %v7551 = vadd.f32 %v7202, %v7463
        %v7552 = vadd.f32 %v7207, %v7468
        %v7553 = vadd.f32 %v7210, %v7471
        %v7554 = vadd.f32 %v7215, %v7476
        %v7555 = vadd.f32 %v7218, %v7479
        %v7556 = vadd.f32 %v7223, %v7484
        %v7557 = vadd.f32 %v7226, %v7487
        %v7558 = vadd.f32 %v7231, %v7492
        %v7559 = vadd.f32 %v7234, %v7495
        %v7560 = vadd.f32 %v7239, %v7500
        %v7561 = vadd.f32 %v7242, %v7503
        %v7562 = vadd.f32 %v7247, %v7508
        %v7563 = vadd.f32 %v7250, %v7511
        %v7564 = vadd.f32 %v7255, %v7516
        %v7565 = vadd.f32 %v7258, %v7519
        %v7566 = vadd.f32 %v7263, %v7524
        %v7567 = vadd.f32 %v7266, %v7527
        %v7568 = vadd.f32 %v7271, %v7532
        %v7569 = vadd.f32 %v7274, %v7535
        %v7570 = vld [vmem:[%s7] sm:$0x1]
        %v7572 = vlaneseq
        %v7573 = vshrl.u32 %v7572, 7
        %v7574 = vsub.s32 0, %v7573
        %v7575 = vrot.slane %v7570, %v7574
        %v7577 = vmul.f32 %v7538, %v7575
        %v7578 = vmul.f32 %v7539, %v7575
        %v7579 = vmul.f32 %v7540, %v7575
        %v7580 = vmul.f32 %v7541, %v7575
        %v7581 = vmul.f32 %v7542, %v7575
        %v7582 = vmul.f32 %v7543, %v7575
        %v7583 = vmul.f32 %v7544, %v7575
        %v7584 = vmul.f32 %v7545, %v7575
        %v7585 = vmul.f32 %v7546, %v7575
        %v7586 = vmul.f32 %v7547, %v7575
        %v7587 = vmul.f32 %v7548, %v7575
        %v7588 = vmul.f32 %v7549, %v7575
        %v7589 = vmul.f32 %v7550, %v7575
        %v7590 = vmul.f32 %v7551, %v7575
        %v7591 = vmul.f32 %v7552, %v7575
        %v7592 = vmul.f32 %v7553, %v7575
        %v7593 = vmul.f32 %v7554, %v7575
        %v7594 = vmul.f32 %v7555, %v7575
        %v7595 = vmul.f32 %v7556, %v7575
        %v7596 = vmul.f32 %v7557, %v7575
        %v7597 = vmul.f32 %v7558, %v7575
        %v7598 = vmul.f32 %v7559, %v7575
        %v7599 = vmul.f32 %v7560, %v7575
        %v7600 = vmul.f32 %v7561, %v7575
        %v7601 = vmul.f32 %v7562, %v7575
        %v7602 = vmul.f32 %v7563, %v7575
        %v7603 = vmul.f32 %v7564, %v7575
        %v7604 = vmul.f32 %v7565, %v7575
        %v7605 = vmul.f32 %v7566, %v7575
        %v7606 = vmul.f32 %v7567, %v7575
        %v7607 = vmul.f32 %v7568, %v7575
        %v7608 = vmul.f32 %v7569, %v7575
        %v7609 = vld [vmem:[%s8] sm:$0x1]
        %v7611 = vlaneseq
        %v7612 = vshrl.u32 %v7611, 7
        %v7613 = vsub.s32 0, %v7612
        %v7614 = vrot.slane %v7609, %v7613
        %v7616 = vadd.f32 %v7577, %v7614
        %v7617 = vadd.f32 %v7578, %v7614
        %v7618 = vadd.f32 %v7579, %v7614
        %v7619 = vadd.f32 %v7580, %v7614
        %v7620 = vadd.f32 %v7581, %v7614
        %v7621 = vadd.f32 %v7582, %v7614
        %v7622 = vadd.f32 %v7583, %v7614
        %v7623 = vadd.f32 %v7584, %v7614
        %v7624 = vadd.f32 %v7585, %v7614
        %v7625 = vadd.f32 %v7586, %v7614
        %v7626 = vadd.f32 %v7587, %v7614
        %v7627 = vadd.f32 %v7588, %v7614
        %v7628 = vadd.f32 %v7589, %v7614
        %v7629 = vadd.f32 %v7590, %v7614
        %v7630 = vadd.f32 %v7591, %v7614
        %v7631 = vadd.f32 %v7592, %v7614
        %v7632 = vadd.f32 %v7593, %v7614
        %v7633 = vadd.f32 %v7594, %v7614
        %v7634 = vadd.f32 %v7595, %v7614
        %v7635 = vadd.f32 %v7596, %v7614
        %v7636 = vadd.f32 %v7597, %v7614
        %v7637 = vadd.f32 %v7598, %v7614
        %v7638 = vadd.f32 %v7599, %v7614
        %v7639 = vadd.f32 %v7600, %v7614
        %v7640 = vadd.f32 %v7601, %v7614
        %v7641 = vadd.f32 %v7602, %v7614
        %v7642 = vadd.f32 %v7603, %v7614
        %v7643 = vadd.f32 %v7604, %v7614
        %v7644 = vadd.f32 %v7605, %v7614
        %v7645 = vadd.f32 %v7606, %v7614
        %v7646 = vadd.f32 %v7607, %v7614
        %v7647 = vadd.f32 %v7608, %v7614
        %v7648 = vxor.u32 %v7616, 2147483648
        %v7649 = vxor.u32 %v7617, 2147483648
        %v7650 = vxor.u32 %v7618, 2147483648
        %v7651 = vxor.u32 %v7619, 2147483648
        %v7652 = vxor.u32 %v7620, 2147483648
        %v7653 = vxor.u32 %v7621, 2147483648
        %v7654 = vxor.u32 %v7622, 2147483648
        %v7655 = vxor.u32 %v7623, 2147483648
        %v7656 = vxor.u32 %v7624, 2147483648
        %v7657 = vxor.u32 %v7625, 2147483648
        %v7658 = vxor.u32 %v7626, 2147483648
        %v7659 = vxor.u32 %v7627, 2147483648
        %v7660 = vxor.u32 %v7628, 2147483648
        %v7661 = vxor.u32 %v7629, 2147483648
        %v7662 = vxor.u32 %v7630, 2147483648
        %v7663 = vxor.u32 %v7631, 2147483648
        %v7664 = vxor.u32 %v7632, 2147483648
        %v7665 = vxor.u32 %v7633, 2147483648
        %v7666 = vxor.u32 %v7634, 2147483648
        %v7667 = vxor.u32 %v7635, 2147483648
        %v7668 = vxor.u32 %v7636, 2147483648
        %v7669 = vxor.u32 %v7637, 2147483648
        %v7670 = vxor.u32 %v7638, 2147483648
        %v7671 = vxor.u32 %v7639, 2147483648
        %v7672 = vxor.u32 %v7640, 2147483648
        %v7673 = vxor.u32 %v7641, 2147483648
        %v7674 = vxor.u32 %v7642, 2147483648
        %v7675 = vxor.u32 %v7643, 2147483648
        %v7676 = vxor.u32 %v7644, 2147483648
        %v7677 = vxor.u32 %v7645, 2147483648
        %v7678 = vxor.u32 %v7646, 2147483648
        %v7679 = vxor.u32 %v7647, 2147483648
        %v7680 = vmul.f32 %v7648, 1.442695
        %v7681 = vpow.pop %v7680
        %v7682 = vmul.f32 %v7649, 1.442695
        %v7683 = vpow.pop %v7682
        %v7684 = vmul.f32 %v7650, 1.442695
        %v7685 = vpow.pop %v7684
        %v7686 = vmul.f32 %v7651, 1.442695
        %v7687 = vpow.pop %v7686
        %v7688 = vmul.f32 %v7652, 1.442695
        %v7689 = vpow.pop %v7688
        %v7690 = vmul.f32 %v7653, 1.442695
        %v7691 = vpow.pop %v7690
        %v7692 = vmul.f32 %v7654, 1.442695
        %v7693 = vpow.pop %v7692
        %v7694 = vmul.f32 %v7655, 1.442695
        %v7695 = vpow.pop %v7694
        %v7696 = vmul.f32 %v7656, 1.442695
        %v7697 = vpow.pop %v7696
        %v7698 = vmul.f32 %v7657, 1.442695
        %v7699 = vpow.pop %v7698
        %v7700 = vmul.f32 %v7658, 1.442695
        %v7701 = vpow.pop %v7700
        %v7702 = vmul.f32 %v7659, 1.442695
        %v7703 = vpow.pop %v7702
        %v7704 = vmul.f32 %v7660, 1.442695
        %v7705 = vpow.pop %v7704
        %v7706 = vmul.f32 %v7661, 1.442695
        %v7707 = vpow.pop %v7706
        %v7708 = vmul.f32 %v7662, 1.442695
        %v7709 = vpow.pop %v7708
        %v7710 = vmul.f32 %v7663, 1.442695
        %v7711 = vpow.pop %v7710
        %v7712 = vmul.f32 %v7664, 1.442695
        %v7713 = vpow.pop %v7712
        %v7714 = vmul.f32 %v7665, 1.442695
        %v7715 = vpow.pop %v7714
        %v7716 = vmul.f32 %v7666, 1.442695
        %v7717 = vpow.pop %v7716
        %v7718 = vmul.f32 %v7667, 1.442695
        %v7719 = vpow.pop %v7718
        %v7720 = vmul.f32 %v7668, 1.442695
        %v7721 = vpow.pop %v7720
        %v7722 = vmul.f32 %v7669, 1.442695
        %v7723 = vpow.pop %v7722
        %v7724 = vmul.f32 %v7670, 1.442695
        %v7725 = vpow.pop %v7724
        %v7726 = vmul.f32 %v7671, 1.442695
        %v7727 = vpow.pop %v7726
        %v7728 = vmul.f32 %v7672, 1.442695
        %v7729 = vpow.pop %v7728
        %v7730 = vmul.f32 %v7673, 1.442695
        %v7731 = vpow.pop %v7730
        %v7732 = vmul.f32 %v7674, 1.442695
        %v7733 = vpow.pop %v7732
        %v7734 = vmul.f32 %v7675, 1.442695
        %v7735 = vpow.pop %v7734
        %v7736 = vmul.f32 %v7676, 1.442695
        %v7737 = vpow.pop %v7736
        %v7738 = vmul.f32 %v7677, 1.442695
        %v7739 = vpow.pop %v7738
        %v7740 = vmul.f32 %v7678, 1.442695
        %v7741 = vpow.pop %v7740
        %v7742 = vmul.f32 %v7679, 1.442695
        %v7743 = vpow.pop %v7742
        %v7744 = vadd.f32 %v7681, 1.0
        %v7745 = vadd.f32 %v7683, 1.0
        %v7746 = vadd.f32 %v7685, 1.0
        %v7747 = vadd.f32 %v7687, 1.0
        %v7748 = vadd.f32 %v7689, 1.0
        %v7749 = vadd.f32 %v7691, 1.0
        %v7750 = vadd.f32 %v7693, 1.0
        %v7751 = vadd.f32 %v7695, 1.0
        %v7752 = vadd.f32 %v7697, 1.0
        %v7753 = vadd.f32 %v7699, 1.0
        %v7754 = vadd.f32 %v7701, 1.0
        %v7755 = vadd.f32 %v7703, 1.0
        %v7756 = vadd.f32 %v7705, 1.0
        %v7757 = vadd.f32 %v7707, 1.0
        %v7758 = vadd.f32 %v7709, 1.0
        %v7759 = vadd.f32 %v7711, 1.0
        %v7760 = vadd.f32 %v7713, 1.0
        %v7761 = vadd.f32 %v7715, 1.0
        %v7762 = vadd.f32 %v7717, 1.0
        %v7763 = vadd.f32 %v7719, 1.0
        %v7764 = vadd.f32 %v7721, 1.0
        %v7765 = vadd.f32 %v7723, 1.0
        %v7766 = vadd.f32 %v7725, 1.0
        %v7767 = vadd.f32 %v7727, 1.0
        %v7768 = vadd.f32 %v7729, 1.0
        %v7769 = vadd.f32 %v7731, 1.0
        %v7770 = vadd.f32 %v7733, 1.0
        %v7771 = vadd.f32 %v7735, 1.0
        %v7772 = vadd.f32 %v7737, 1.0
        %v7773 = vadd.f32 %v7739, 1.0
        %v7774 = vadd.f32 %v7741, 1.0
        %v7775 = vadd.f32 %v7743, 1.0
        %v7776 = vrcp.pop %v7744
        %v7777 = vmul.f32 1.0, %v7776
        %v7778 = vrcp.pop %v7745
        %v7779 = vmul.f32 1.0, %v7778
        %v7780 = vrcp.pop %v7746
        %v7781 = vmul.f32 1.0, %v7780
        %v7782 = vrcp.pop %v7747
        %v7783 = vmul.f32 1.0, %v7782
        %v7784 = vrcp.pop %v7748
        %v7785 = vmul.f32 1.0, %v7784
        %v7786 = vrcp.pop %v7749
        %v7787 = vmul.f32 1.0, %v7786
        %v7788 = vrcp.pop %v7750
        %v7789 = vmul.f32 1.0, %v7788
        %v7790 = vrcp.pop %v7751
        %v7791 = vmul.f32 1.0, %v7790
        %v7792 = vrcp.pop %v7752
        %v7793 = vmul.f32 1.0, %v7792
        %v7794 = vrcp.pop %v7753
        %v7795 = vmul.f32 1.0, %v7794
        %v7796 = vrcp.pop %v7754
        %v7797 = vmul.f32 1.0, %v7796
        %v7798 = vrcp.pop %v7755
        %v7799 = vmul.f32 1.0, %v7798
        %v7800 = vrcp.pop %v7756
        %v7801 = vmul.f32 1.0, %v7800
        %v7802 = vrcp.pop %v7757
        %v7803 = vmul.f32 1.0, %v7802
        %v7804 = vrcp.pop %v7758
        %v7805 = vmul.f32 1.0, %v7804
        %v7806 = vrcp.pop %v7759
        %v7807 = vmul.f32 1.0, %v7806
        %v7808 = vrcp.pop %v7760
        %v7809 = vmul.f32 1.0, %v7808
        %v7810 = vrcp.pop %v7761
        %v7811 = vmul.f32 1.0, %v7810
        %v7812 = vrcp.pop %v7762
        %v7813 = vmul.f32 1.0, %v7812
        %v7814 = vrcp.pop %v7763
        %v7815 = vmul.f32 1.0, %v7814
        %v7816 = vrcp.pop %v7764
        %v7817 = vmul.f32 1.0, %v7816
        %v7818 = vrcp.pop %v7765
        %v7819 = vmul.f32 1.0, %v7818
        %v7820 = vrcp.pop %v7766
        %v7821 = vmul.f32 1.0, %v7820
        %v7822 = vrcp.pop %v7767
        %v7823 = vmul.f32 1.0, %v7822
        %v7824 = vrcp.pop %v7768
        %v7825 = vmul.f32 1.0, %v7824
        %v7826 = vrcp.pop %v7769
        %v7827 = vmul.f32 1.0, %v7826
        %v7828 = vrcp.pop %v7770
        %v7829 = vmul.f32 1.0, %v7828
        %v7830 = vrcp.pop %v7771
        %v7831 = vmul.f32 1.0, %v7830
        %v7832 = vrcp.pop %v7772
        %v7833 = vmul.f32 1.0, %v7832
        %v7834 = vrcp.pop %v7773
        %v7835 = vmul.f32 1.0, %v7834
        %v7836 = vrcp.pop %v7774
        %v7837 = vmul.f32 1.0, %v7836
        %v7838 = vrcp.pop %v7775
        %v7839 = vmul.f32 1.0, %v7838
        %v7840 = vmul.f32 %v7616, %v7777
        %v7841 = vmul.f32 %v7617, %v7779
        %v7842 = vmul.f32 %v7618, %v7781
        %v7843 = vmul.f32 %v7619, %v7783
        %v7844 = vmul.f32 %v7620, %v7785
        %v7845 = vmul.f32 %v7621, %v7787
        %v7846 = vmul.f32 %v7622, %v7789
        %v7847 = vmul.f32 %v7623, %v7791
        %v7848 = vmul.f32 %v7624, %v7793
        %v7849 = vmul.f32 %v7625, %v7795
        %v7850 = vmul.f32 %v7626, %v7797
        %v7851 = vmul.f32 %v7627, %v7799
        %v7852 = vmul.f32 %v7628, %v7801
        %v7853 = vmul.f32 %v7629, %v7803
        %v7854 = vmul.f32 %v7630, %v7805
        %v7855 = vmul.f32 %v7631, %v7807
        %v7856 = vmul.f32 %v7632, %v7809
        %v7857 = vmul.f32 %v7633, %v7811
        %v7858 = vmul.f32 %v7634, %v7813
        %v7859 = vmul.f32 %v7635, %v7815
        %v7860 = vmul.f32 %v7636, %v7817
        %v7861 = vmul.f32 %v7637, %v7819
        %v7862 = vmul.f32 %v7638, %v7821
        %v7863 = vmul.f32 %v7639, %v7823
        %v7864 = vmul.f32 %v7640, %v7825
        %v7865 = vmul.f32 %v7641, %v7827
        %v7866 = vmul.f32 %v7642, %v7829
        %v7867 = vmul.f32 %v7643, %v7831
        %v7868 = vmul.f32 %v7644, %v7833
        %v7869 = vmul.f32 %v7645, %v7835
        %v7870 = vmul.f32 %v7646, %v7837
        %v7871 = vmul.f32 %v7647, %v7839
        %v7872 = vld [vmem:[%s370] sm:$0xff]
        %v7873 = vld [vmem:[%s370 + $0x8] sm:$0xff]
        %v7874 = vld [vmem:[%s370 + $0x10] sm:$0xff]
        %v7875 = vld [vmem:[%s370 + $0x18] sm:$0xff]
        %v7876 = vld [vmem:[%s370 + $0x20] sm:$0xff]
        %v7877 = vld [vmem:[%s370 + $0x28] sm:$0xff]
        %v7878 = vld [vmem:[%s370 + $0x30] sm:$0xff]
        %v7879 = vld [vmem:[%s370 + $0x38] sm:$0xff]
        %v7880 = vld [vmem:[%s370 + $0x40] sm:$0xff]
        %v7881 = vld [vmem:[%s370 + $0x48] sm:$0xff]
        %v7882 = vld [vmem:[%s370 + $0x50] sm:$0xff]
        %v7883 = vld [vmem:[%s370 + $0x58] sm:$0xff]
        %v7884 = vld [vmem:[%s370 + $0x60] sm:$0xff]
        %v7885 = vld [vmem:[%s370 + $0x68] sm:$0xff]
        %v7886 = vld [vmem:[%s370 + $0x70] sm:$0xff]
        %v7887 = vld [vmem:[%s370 + $0x78] sm:$0xff]
        %v7888 = vld [vmem:[%s370 + $0x80] sm:$0xff]
        %v7889 = vld [vmem:[%s370 + $0x88] sm:$0xff]
        %v7890 = vld [vmem:[%s370 + $0x90] sm:$0xff]
        %v7891 = vld [vmem:[%s370 + $0x98] sm:$0xff]
        %v7892 = vld [vmem:[%s370 + $0xa0] sm:$0xff]
        %v7893 = vld [vmem:[%s370 + $0xa8] sm:$0xff]
        %v7894 = vld [vmem:[%s370 + $0xb0] sm:$0xff]
        %v7895 = vld [vmem:[%s370 + $0xb8] sm:$0xff]
        %v7896 = vld [vmem:[%s370 + $0xc0] sm:$0xff]
        %v7897 = vld [vmem:[%s370 + $0xc8] sm:$0xff]
        %v7898 = vld [vmem:[%s370 + $0xd0] sm:$0xff]
        %v7899 = vld [vmem:[%s370 + $0xd8] sm:$0xff]
        %v7900 = vld [vmem:[%s370 + $0xe0] sm:$0xff]
        %v7901 = vld [vmem:[%s370 + $0xe8] sm:$0xff]
        %v7902 = vld [vmem:[%s370 + $0xf0] sm:$0xff]
        %v7903 = vld [vmem:[%s370 + $0xf8] sm:$0xff]
        %v7904 = vadd.f32 %v7840, %v7872
        %v7905 = vadd.f32 %v7841, %v7873
        %v7906 = vadd.f32 %v7842, %v7874
        %v7907 = vadd.f32 %v7843, %v7875
        %v7908 = vadd.f32 %v7844, %v7876
        %v7909 = vadd.f32 %v7845, %v7877
        %v7910 = vadd.f32 %v7846, %v7878
        %v7911 = vadd.f32 %v7847, %v7879
        %v7912 = vadd.f32 %v7848, %v7880
        %v7913 = vadd.f32 %v7849, %v7881
        %v7914 = vadd.f32 %v7850, %v7882
        %v7915 = vadd.f32 %v7851, %v7883
        %v7916 = vadd.f32 %v7852, %v7884
        %v7917 = vadd.f32 %v7853, %v7885
        %v7918 = vadd.f32 %v7854, %v7886
        %v7919 = vadd.f32 %v7855, %v7887
        %v7920 = vadd.f32 %v7856, %v7888
        %v7921 = vadd.f32 %v7857, %v7889
        %v7922 = vadd.f32 %v7858, %v7890
        %v7923 = vadd.f32 %v7859, %v7891
        %v7924 = vadd.f32 %v7860, %v7892
        %v7925 = vadd.f32 %v7861, %v7893
        %v7926 = vadd.f32 %v7862, %v7894
        %v7927 = vadd.f32 %v7863, %v7895
        %v7928 = vadd.f32 %v7864, %v7896
        %v7929 = vadd.f32 %v7865, %v7897
        %v7930 = vadd.f32 %v7866, %v7898
        %v7931 = vadd.f32 %v7867, %v7899
        %v7932 = vadd.f32 %v7868, %v7900
        %v7933 = vadd.f32 %v7869, %v7901
        %v7934 = vadd.f32 %v7870, %v7902
        %v7935 = vadd.f32 %v7871, %v7903
        %7936 = vst [vmem:[%s365] sm:$0xff] %v7904
        %7937 = vst [vmem:[%s365 + $0x8] sm:$0xff] %v7905
        %7938 = vst [vmem:[%s365 + $0x10] sm:$0xff] %v7906
        %7939 = vst [vmem:[%s365 + $0x18] sm:$0xff] %v7907
        %7940 = vst [vmem:[%s365 + $0x20] sm:$0xff] %v7908
        %7941 = vst [vmem:[%s365 + $0x28] sm:$0xff] %v7909
        %7942 = vst [vmem:[%s365 + $0x30] sm:$0xff] %v7910
        %7943 = vst [vmem:[%s365 + $0x38] sm:$0xff] %v7911
        %7944 = vst [vmem:[%s365 + $0x40] sm:$0xff] %v7912
        %7945 = vst [vmem:[%s365 + $0x48] sm:$0xff] %v7913
        %7946 = vst [vmem:[%s365 + $0x50] sm:$0xff] %v7914
        %7947 = vst [vmem:[%s365 + $0x58] sm:$0xff] %v7915
        %7948 = vst [vmem:[%s365 + $0x60] sm:$0xff] %v7916
        %7949 = vst [vmem:[%s365 + $0x68] sm:$0xff] %v7917
        %7950 = vst [vmem:[%s365 + $0x70] sm:$0xff] %v7918
        %7951 = vst [vmem:[%s365 + $0x78] sm:$0xff] %v7919
        %7952 = vst [vmem:[%s365 + $0x80] sm:$0xff] %v7920
        %7953 = vst [vmem:[%s365 + $0x88] sm:$0xff] %v7921
        %7954 = vst [vmem:[%s365 + $0x90] sm:$0xff] %v7922
        %7955 = vst [vmem:[%s365 + $0x98] sm:$0xff] %v7923
        %7956 = vst [vmem:[%s365 + $0xa0] sm:$0xff] %v7924
        %7957 = vst [vmem:[%s365 + $0xa8] sm:$0xff] %v7925
        %7958 = vst [vmem:[%s365 + $0xb0] sm:$0xff] %v7926
        %7959 = vst [vmem:[%s365 + $0xb8] sm:$0xff] %v7927
        %7960 = vst [vmem:[%s365 + $0xc0] sm:$0xff] %v7928
        %7961 = vst [vmem:[%s365 + $0xc8] sm:$0xff] %v7929
        %7962 = vst [vmem:[%s365 + $0xd0] sm:$0xff] %v7930
        %7963 = vst [vmem:[%s365 + $0xd8] sm:$0xff] %v7931
        %7964 = vst [vmem:[%s365 + $0xe0] sm:$0xff] %v7932
        %7965 = vst [vmem:[%s365 + $0xe8] sm:$0xff] %v7933
        %7966 = vst [vmem:[%s365 + $0xf0] sm:$0xff] %v7934
        %7967 = vst [vmem:[%s365 + $0xf8] sm:$0xff] %v7935
        %s7968 = sand.u32 %s233, 1
        %s7969 = scalar_lea.sflag [#allocation4], %s7968
        %s7970 = sand.u32 %s233, 1
        %s7971 = smul.addr %s7970, 256
        %s7972 = scalar_lea.vmem [#allocation5], %s7971
        // Predicated region
        $region61: #{tpu_custom_call.1} parent=55 // pred_check
          %p7973 = pneg %p243
        $region62: #{tpu_custom_call.1} parent=55 // pred_check_branch
          %7975 = sbr.rel (%p7973) target = $region64
        $region63: #{tpu_custom_call.1} parent=55 // pred_region
          %s7977 = ssub.s32 4096, 4096
          %7978 = vsyncadd %s7969, %s7977
          %s7979 = smul.addr %s26, 32
          %s7980 = smul.addr %s7979, 128
          %s7981 = scalar_lea.hbm %s9, %s7980
          %s7982 = sshll.u32 %s7972, 4
          %s7983 = int_to_ptr.vmem [resolvable:$true] %s7982
          %7988 = dma.vmem_to_hbm [thread:$0]  %s7983, 4096, %s7981, %s7969, 128, 128, 8
        $region64: #{tpu_custom_call.1} parent=55 // pred_fallthru
          _
      $region56: #{tpu_custom_call.1} parent=5 // pred_fallthru
        _
      %p7989 = scmp.le.s32.totalorder 2, %s21
      // Predicated region
      $region65: #{tpu_custom_call.1} parent=5 // pred_check
        %p7990 = pneg %p7989
      $region66: #{tpu_custom_call.1} parent=5 // pred_check_branch
        %7992 = sbr.rel (%p7990) target = $region68
      $region67: #{tpu_custom_call.1} parent=5 // pred_region
        %s7993 = ssub.s32 %s21, 2
        // Predicated region
        $region69: #{tpu_custom_call.1} parent=67 // pred_check
          %p7994 = pneg %p249
        $region70: #{tpu_custom_call.1} parent=67 // pred_check_branch
          %7996 = sbr.rel (%p7994) target = $region72
        $region71: #{tpu_custom_call.1} parent=67 // pred_region
          %s7997 = sand.u32 %s234, 1
          %s7998 = scalar_lea.sflag [#allocation4], %s7997
          %s7999 = sand.u32 %s234, 1
          %s8000 = smul.addr %s7999, 256
          %s8001 = scalar_lea.vmem [#allocation5], %s8000
          %8002 = dma.done %s7998, 4096
        $region72: #{tpu_custom_call.1} parent=67 // pred_fallthru
          _
      $region68: #{tpu_custom_call.1} parent=5 // pred_fallthru
        _
    $region6: #{tpu_custom_call.1} parent=1 // loop_footer
      %s25 = sadd.s32 1, %s21
    $region7: #{tpu_custom_call.1} parent=1 // loop_footer_branch
      %20 = sbr.rel target = $region3
    $region8: #{tpu_custom_call.1} parent=1 // loop_exit
      _
    %8003 = vsyncpa [#allocation3], 1
    %s8004 = scalar_lea.sflag [#allocation3], 1
    %8005 = vsyncpa %s8004, 1
    %8006 = vsyncpa [#allocation4], 1
    %s8007 = scalar_lea.sflag [#allocation4], 1
    %8008 = vsyncpa %s8007, 1

</llo_original>
